<compile_context>
chip_gen: v7x
topology: tpu7x:2x2x1
jax: 0.10.0
libtpu: 0.0.40
codegen_flags: <defaults>
</compile_context>

<pallas_src>
import math
import jax
import jax.numpy as jnp
from jax import lax
from jax.experimental import pallas as pl
from jax.experimental.pallas import tpu as pltpu  # noqa: F401

# ----------------------------- tiny mT5 config -----------------------------
VOCAB = 64
VOCAB_PAD = 128          # lane-dense padded lm_head output width
D_MODEL = 32
N_HEADS = 4
D_KV = 8
INNER = N_HEADS * D_KV
D_FF = 64
N_LAYERS = 2
REL_BUCKETS = 8
REL_MAX_DIST = 16
EPS = 1e-6
NEG = -1e9

# ------------------------------ Pallas kernel ------------------------------


def model_kernel(enc_x_ref, dec_x_ref, enc_bias_ref, dec_bias_ref,
                 cross_bias_ref,
                 e_ln_sa_ref, e_wq_ref, e_wkv_ref, e_wo_ref,
                 e_ln_ff_ref, e_wi_ref, e_wff_ref,
                 d_ln_sa_ref, d_saq_ref, d_sakv_ref, d_sao_ref,
                 d_ln_ca_ref, d_caq_ref, d_cakv_ref, d_cao_ref,
                 d_ln_ff_ref, d_wi_ref, d_wff_ref,
                 enc_fln_ref, dec_fln_ref, lm_head_ref,
                 logits_ref):
    """Whole encoder-decoder forward fused into one kernel (no grid).

    Activations stay in vregs/VMEM; the only ref store is the final logits.
    Batch is folded into rows; cross-batch attention terms are killed by the
    precomputed block-diagonal additive bias.
    """

    def rmsnorm(x, w):
        # T5 LayerNorm (RMSNorm: no mean subtraction, no bias).  w: (1, D).
        var = jnp.mean(x * x, axis=-1, keepdims=True)
        return x * lax.rsqrt(var + EPS) * w

    def attn(x, kv_src, bias, ln_w, wq, wkv, wo):
        """x: (M, D) residual input.  kv_src: None => self-attn (reuse xn).
        bias: (H, M, N) fully combined additive term (rel-bias + masks +
        block-diagonal batch mask).  Returns x + attention(x)."""
        xn = rmsnorm(x, ln_w)
        kv_in = xn if kv_src is None else kv_src
        q = jnp.dot(xn, wq, preferred_element_type=jnp.float32)      # (M, I)
        kv = jnp.dot(kv_in, wkv, preferred_element_type=jnp.float32)  # (N, 2I)
        k = kv[:, :INNER]
        v = kv[:, INNER:]
        out = jnp.zeros((x.shape[0], D_MODEL), jnp.float32)
        for h in range(N_HEADS):                      # unrolled, H = 4
            sl = slice(h * D_KV, (h + 1) * D_KV)
            # T5 does NOT scale scores by 1/sqrt(d_kv).
            s = lax.dot_general(q[:, sl], k[:, sl],
                                (((1,), (1,)), ((), ())),
                                preferred_element_type=jnp.float32)   # (M, N)
            s = s + bias[h]
            m = jnp.max(s, axis=-1, keepdims=True)
            p = jnp.exp(s - m)
            denom = jnp.sum(p, axis=-1, keepdims=True)
            probs = p * pl.reciprocal(denom, approx=True)
            head_out = jnp.dot(probs, v[:, sl],
                               preferred_element_type=jnp.float32)    # (M, Dk)
            # Per-head block-row of wo, summed == concat(heads) @ wo.
            out = out + jnp.dot(head_out, wo[sl, :],
                                preferred_element_type=jnp.float32)
        return x + out

    def ffn(x, ln_w, wi, wo):
        """RMSNorm + gated-GELU FFN + residual.  wi = [wi_0 | wi_1]."""
        xn = rmsnorm(x, ln_w)
        hi = jnp.dot(xn, wi, preferred_element_type=jnp.float32)  # (M, 2*D_FF)
        a = hi[:, :D_FF]
        g = hi[:, D_FF:]
        c = 0.7978845608028654                        # sqrt(2/pi), "gelu_new"
        gelu = 0.5 * a * (1.0 + jnp.tanh(c * (a + 0.044715 * a * a * a)))
        return x + jnp.dot(gelu * g, wo, preferred_element_type=jnp.float32)

    # Combined biases loaded once (shared across both layers).
    enc_bias = enc_bias_ref[...]        # (H, B*Se, B*Se)
    dec_bias = dec_bias_ref[...]        # (H, B*Sd, B*Sd)
    cross_bias = cross_bias_ref[...]    # (H, B*Sd, B*Se)

    # ------------------------------ encoder ------------------------------
    x = enc_x_ref[...]                  # (B*Se, D)
    for l in range(N_LAYERS):           # unrolled
        x = attn(x, None, enc_bias, e_ln_sa_ref[l],
                 e_wq_ref[l], e_wkv_ref[l], e_wo_ref[l])
        x = ffn(x, e_ln_ff_ref[l], e_wi_ref[l], e_wff_ref[l])
    enc_out = rmsnorm(x, enc_fln_ref[...])

    # ------------------------------ decoder ------------------------------
    y = dec_x_ref[...]                  # (B*Sd, D)
    for l in range(N_LAYERS):           # unrolled
        y = attn(y, None, dec_bias, d_ln_sa_ref[l],
                 d_saq_ref[l], d_sakv_ref[l], d_sao_ref[l])
        y = attn(y, enc_out, cross_bias, d_ln_ca_ref[l],
                 d_caq_ref[l], d_cakv_ref[l], d_cao_ref[l])
        y = ffn(y, d_ln_ff_ref[l], d_wi_ref[l], d_wff_ref[l])

    # Final LN + lm_head (mT5: untied head, no d_model scaling).
    yn = rmsnorm(y, dec_fln_ref[...])
    logits_ref[...] = jnp.dot(yn, lm_head_ref[...],
                              preferred_element_type=jnp.float32)  # (B*Sd,128)


# ------------------------------ model glue ---------------------------------


def _relative_position_bucket(rel_pos, bidirectional, num_buckets, max_dist):
    buckets = jnp.zeros_like(rel_pos)
    if bidirectional:
        num_buckets //= 2
        buckets = buckets + (rel_pos > 0).astype(jnp.int32) * num_buckets
        rel_pos = jnp.abs(rel_pos)
    else:
        rel_pos = -jnp.minimum(rel_pos, 0)
    max_exact = num_buckets // 2
    is_small = rel_pos < max_exact
    large = max_exact + (
        jnp.log(jnp.maximum(rel_pos, 1).astype(jnp.float32) / max_exact)
        / math.log(max_dist / max_exact) * (num_buckets - max_exact)
    ).astype(jnp.int32)
    large = jnp.minimum(large, num_buckets - 1)
    return buckets + jnp.where(is_small, rel_pos, large)


def compute_bias(qlen, klen, bidirectional, rel_emb):
    ctx = jnp.arange(qlen)[:, None]
    mem = jnp.arange(klen)[None, :]
    buckets = _relative_position_bucket(mem - ctx, bidirectional,
                                        REL_BUCKETS, REL_MAX_DIST)
    values = rel_emb[buckets]                      # (q, k, H)
    return jnp.transpose(values, (2, 0, 1))        # (H, q, k)


def block_diag_bias(per_head, pad_add, B, Sq, Sk):
    """Fully combined additive attention bias of shape (H, B*Sq, B*Sk).

    Off-batch-diagonal blocks get -1e9 (so folding batch into rows is exact);
    diagonal block b gets per_head bias (+causal if baked in) plus the
    additive padding mask for batch b."""
    full = jnp.full((N_HEADS, B * Sq, B * Sk), NEG, jnp.float32)
    for b in range(B):
        blk = jnp.zeros((N_HEADS, Sq, Sk), jnp.float32)
        if per_head is not None:
            blk = blk + per_head
        if pad_add is not None:
            blk = blk + pad_add[b][None, None, :]
        full = full.at[:, b * Sq:(b + 1) * Sq, b * Sk:(b + 1) * Sk].set(blk)
    return full


def forward(params, input_ids, attention_mask, decoder_input_ids):
    """Equivalent of MyModel.forward(**x, return_dict=True).logits."""
    B, Se = input_ids.shape
    _, Sd = decoder_input_ids.shape

    # Embedding gathers stay in JAX.
    enc_x = params['shared'][input_ids].reshape(B * Se, D_MODEL)
    dec_x = params['shared'][decoder_input_ids].reshape(B * Sd, D_MODEL)

    # Combined additive biases (rel bias + causal + padding + batch-diag).
    enc_pad = (1.0 - attention_mask.astype(jnp.float32)) * NEG          # (B,Se)
    enc_rel = compute_bias(Se, Se, True, params['enc_rel_bias'])        # (H,Se,Se)
    causal = (1.0 - jnp.tril(jnp.ones((Sd, Sd), jnp.float32))) * NEG
    dec_rel = compute_bias(Sd, Sd, False, params['dec_rel_bias']) + causal[None]

    enc_bias = block_diag_bias(enc_rel, enc_pad, B, Se, Se)
    dec_bias = block_diag_bias(dec_rel, None, B, Sd, Sd)
    cross_bias = block_diag_bias(None, enc_pad, B, Sd, Se)

    # Stack per-layer weights so the kernel indexes a leading layer axis.
    def stack(layers, key, reshape=None):
        arrs = [layers[l][key] for l in range(N_LAYERS)]
        if reshape is not None:
            arrs = [a.reshape(reshape) for a in arrs]
        return jnp.stack(arrs, axis=0)

    enc_w = [stack(params['enc'], 'ln_sa', (1, D_MODEL)),
             stack(params['enc'], 'sa_q'),
             stack(params['enc'], 'sa_kv'),
             stack(params['enc'], 'sa_o'),
             stack(params['enc'], 'ln_ff', (1, D_MODEL)),
             stack(params['enc'], 'ff_wi'),
             stack(params['enc'], 'ff_wo')]
    dec_w = [stack(params['dec'], 'ln_sa', (1, D_MODEL)),
             stack(params['dec'], 'sa_q'),
             stack(params['dec'], 'sa_kv'),
             stack(params['dec'], 'sa_o'),
             stack(params['dec'], 'ln_ca', (1, D_MODEL)),
             stack(params['dec'], 'ca_q'),
             stack(params['dec'], 'ca_kv'),
             stack(params['dec'], 'ca_o'),
             stack(params['dec'], 'ln_ff', (1, D_MODEL)),
             stack(params['dec'], 'ff_wi'),
             stack(params['dec'], 'ff_wo')]

    # Zero-pad lm_head to 128 output lanes for an unmasked lane-dense store.
    lm_head_pad = jnp.zeros((D_MODEL, VOCAB_PAD), jnp.float32)
    lm_head_pad = lm_head_pad.at[:, :VOCAB].set(params['lm_head'])

    logits_pad = pl.pallas_call(
        model_kernel,
        out_shape=jax.ShapeDtypeStruct((B * Sd, VOCAB_PAD), jnp.float32),
    )(enc_x, dec_x, enc_bias, dec_bias, cross_bias,
      *enc_w, *dec_w,
      params['enc_final_ln'].reshape(1, D_MODEL),
      params['dec_final_ln'].reshape(1, D_MODEL),
      lm_head_pad)

    return logits_pad[:, :VOCAB].reshape(B, Sd, VOCAB)


# --------------------------- deterministic weights --------------------------


def init_params(key):
    keys = iter(jax.random.split(key, 64))

    def w(shape, scale=0.05):
        return jax.random.normal(next(keys), shape, jnp.float32) * scale

    def attn_p(prefix):
        return {prefix + '_q': w((D_MODEL, INNER)),
                prefix + '_kv': jnp.concatenate(
                    [w((D_MODEL, INNER)), w((D_MODEL, INNER))], axis=1),
                prefix + '_o': w((INNER, D_MODEL))}

    def ff_p():
        return {'ff_wi': jnp.concatenate(
                    [w((D_MODEL, D_FF)), w((D_MODEL, D_FF))], axis=1),
                'ff_wo': w((D_FF, D_MODEL))}

    params = {
        'shared': w((VOCAB, D_MODEL), 1.0),
        'enc_rel_bias': w((REL_BUCKETS, N_HEADS), 0.1),
        'dec_rel_bias': w((REL_BUCKETS, N_HEADS), 0.1),
        'enc_final_ln': jnp.ones((D_MODEL,), jnp.float32),
        'dec_final_ln': jnp.ones((D_MODEL,), jnp.float32),
        'lm_head': w((D_MODEL, VOCAB)),
        'enc': [], 'dec': [],
    }
    for _ in range(N_LAYERS):
        layer_e = {'ln_sa': jnp.ones((D_MODEL,), jnp.float32),
                   'ln_ff': jnp.ones((D_MODEL,), jnp.float32)}
        layer_e.update(attn_p('sa'))
        layer_e.update(ff_p())
        params['enc'].append(layer_e)

        layer_d = {'ln_sa': jnp.ones((D_MODEL,), jnp.float32),
                   'ln_ca': jnp.ones((D_MODEL,), jnp.float32),
                   'ln_ff': jnp.ones((D_MODEL,), jnp.float32)}
        layer_d.update(attn_p('sa'))
        layer_d.update(attn_p('ca'))
        layer_d.update(ff_p())
        params['dec'].append(layer_d)
    return params


# ---------------------------------- main ------------------------------------

if __name__ == "__main__":
    B, S_ENC, S_DEC = 2, 8, 8
    key = jax.random.PRNGKey(0)
    k_in, k_dec = jax.random.split(key, 2)

    input_ids = jax.random.randint(k_in, (B, S_ENC), 0, VOCAB, jnp.int32)
    attention_mask = jnp.ones((B, S_ENC), jnp.int32).at[1, -2:].set(0)
    decoder_input_ids = jax.random.randint(k_dec, (B, S_DEC), 0, VOCAB,
                                           jnp.int32)

    params = init_params(jax.random.PRNGKey(42))

    # TODO(synk): loss computation (labels) and cache/past_key_values of the
    # HF Seq2SeqLMOutput are not reproduced; only logits of the forward pass.
    logits = jax.jit(forward)(params, input_ids, attention_mask,
                              decoder_input_ids)
    logits = jax.block_until_ready(logits)

    assert logits.shape == (B, S_DEC, VOCAB)
    assert bool(jnp.isfinite(logits).all())
    print("KERNEL_OK")
</pallas_src>

<mosaic_0001>
module attributes {stable_mosaic.version = 11 : i64} {
  func.func @model_kernel(%arg0: memref<16x32xf32, #tpu.memory_space<vmem>>, %arg1: memref<16x32xf32, #tpu.memory_space<vmem>>, %arg2: memref<4x16x16xf32, #tpu.memory_space<vmem>>, %arg3: memref<4x16x16xf32, #tpu.memory_space<vmem>>, %arg4: memref<4x16x16xf32, #tpu.memory_space<vmem>>, %arg5: memref<2x1x32xf32, #tpu.memory_space<vmem>>, %arg6: memref<2x32x32xf32, #tpu.memory_space<vmem>>, %arg7: memref<2x32x64xf32, #tpu.memory_space<vmem>>, %arg8: memref<2x32x32xf32, #tpu.memory_space<vmem>>, %arg9: memref<2x1x32xf32, #tpu.memory_space<vmem>>, %arg10: memref<2x32x128xf32, #tpu.memory_space<vmem>>, %arg11: memref<2x64x32xf32, #tpu.memory_space<vmem>>, %arg12: memref<2x1x32xf32, #tpu.memory_space<vmem>>, %arg13: memref<2x32x32xf32, #tpu.memory_space<vmem>>, %arg14: memref<2x32x64xf32, #tpu.memory_space<vmem>>, %arg15: memref<2x32x32xf32, #tpu.memory_space<vmem>>, %arg16: memref<2x1x32xf32, #tpu.memory_space<vmem>>, %arg17: memref<2x32x32xf32, #tpu.memory_space<vmem>>, %arg18: memref<2x32x64xf32, #tpu.memory_space<vmem>>, %arg19: memref<2x32x32xf32, #tpu.memory_space<vmem>>, %arg20: memref<2x1x32xf32, #tpu.memory_space<vmem>>, %arg21: memref<2x32x128xf32, #tpu.memory_space<vmem>>, %arg22: memref<2x64x32xf32, #tpu.memory_space<vmem>>, %arg23: memref<1x32xf32, #tpu.memory_space<vmem>>, %arg24: memref<1x32xf32, #tpu.memory_space<vmem>>, %arg25: memref<32x128xf32, #tpu.memory_space<vmem>>, %arg26: memref<16x128xf32, #tpu.memory_space<vmem>>) attributes {dimension_semantics = [], scalar_prefetch = 0 : i64, scratch_operands = 0 : i64, tpu.core_type = #tpu.core_type<tc>} {
    %c0 = arith.constant 0 : index
    %c0_0 = arith.constant 0 : index
    %c0_1 = arith.constant 0 : index
    %0 = vector.load %arg2[%c0, %c0_0, %c0_1] : memref<4x16x16xf32, #tpu.memory_space<vmem>>, vector<4x16x16xf32>
    %c0_2 = arith.constant 0 : index
    %c0_3 = arith.constant 0 : index
    %c0_4 = arith.constant 0 : index
    %1 = vector.load %arg3[%c0_2, %c0_3, %c0_4] : memref<4x16x16xf32, #tpu.memory_space<vmem>>, vector<4x16x16xf32>
    %c0_5 = arith.constant 0 : index
    %c0_6 = arith.constant 0 : index
    %c0_7 = arith.constant 0 : index
    %2 = vector.load %arg4[%c0_5, %c0_6, %c0_7] : memref<4x16x16xf32, #tpu.memory_space<vmem>>, vector<4x16x16xf32>
    %c0_8 = arith.constant 0 : index
    %c0_9 = arith.constant 0 : index
    %3 = vector.load %arg0[%c0_8, %c0_9] : memref<16x32xf32, #tpu.memory_space<vmem>>, vector<16x32xf32>
    %c0_10 = arith.constant 0 : index
    %c0_11 = arith.constant 0 : index
    %c0_12 = arith.constant 0 : index
    %4 = vector.load %arg5[%c0_10, %c0_11, %c0_12] : memref<2x1x32xf32, #tpu.memory_space<vmem>>, vector<1x1x32xf32>
    %5 = vector.shape_cast %4 : vector<1x1x32xf32> to vector<1x32xf32>
    %c0_13 = arith.constant 0 : index
    %c0_14 = arith.constant 0 : index
    %c0_15 = arith.constant 0 : index
    %6 = vector.load %arg6[%c0_13, %c0_14, %c0_15] : memref<2x32x32xf32, #tpu.memory_space<vmem>>, vector<1x32x32xf32>
    %7 = vector.shape_cast %6 : vector<1x32x32xf32> to vector<32x32xf32>
    %c0_16 = arith.constant 0 : index
    %c0_17 = arith.constant 0 : index
    %c0_18 = arith.constant 0 : index
    %8 = vector.load %arg7[%c0_16, %c0_17, %c0_18] : memref<2x32x64xf32, #tpu.memory_space<vmem>>, vector<1x32x64xf32>
    %9 = vector.shape_cast %8 : vector<1x32x64xf32> to vector<32x64xf32>
    %c0_19 = arith.constant 0 : index
    %c0_20 = arith.constant 0 : index
    %c0_21 = arith.constant 0 : index
    %10 = vector.load %arg8[%c0_19, %c0_20, %c0_21] : memref<2x32x32xf32, #tpu.memory_space<vmem>>, vector<1x32x32xf32>
    %11 = vector.shape_cast %10 : vector<1x32x32xf32> to vector<32x32xf32>
    %12 = arith.mulf %3, %3 : vector<16x32xf32>
    %cst = arith.constant dense<0.000000e+00> : vector<16xf32>
    %13 = vector.multi_reduction <add>, %12, %cst [1] : vector<16x32xf32> to vector<16xf32>
    %14 = vector.shape_cast %13 : vector<16xf32> to vector<16x1xf32>
    %cst_22 = arith.constant 3.200000e+01 : f32
    %15 = vector.broadcast %cst_22 : f32 to vector<16x1xf32>
    %16 = arith.divf %14, %15 : vector<16x1xf32>
    %cst_23 = arith.constant 9.99999997E-7 : f32
    %17 = vector.broadcast %cst_23 : f32 to vector<16x1xf32>
    %18 = arith.addf %16, %17 : vector<16x1xf32>
    %19 = math.rsqrt %18 : vector<16x1xf32>
    %20 = vector.broadcast %19 : vector<16x1xf32> to vector<16x32xf32>
    %21 = arith.mulf %3, %20 : vector<16x32xf32>
    %22 = vector.broadcast %5 : vector<1x32xf32> to vector<16x32xf32>
    %23 = arith.mulf %21, %22 : vector<16x32xf32>
    %cst_24 = arith.constant dense<0.000000e+00> : vector<16x32xf32>
    %24 = tpu.matmul %23, %7, %cst_24 {dimension_numbers = #tpu.dot_dimension_numbers<[1], [0], [0], [1], [0, 0, 1, 1], [], []>} : vector<16x32xf32>, vector<32x32xf32>, vector<16x32xf32> -> vector<16x32xf32>
    %cst_25 = arith.constant dense<0.000000e+00> : vector<16x64xf32>
    %25 = tpu.matmul %23, %9, %cst_25 {dimension_numbers = #tpu.dot_dimension_numbers<[1], [0], [0], [1], [0, 0, 1, 1], [], []>} : vector<16x32xf32>, vector<32x64xf32>, vector<16x64xf32> -> vector<16x64xf32>
    %26 = vector.extract_strided_slice %25 {offsets = [0, 0], sizes = [16, 32], strides = [1, 1]} : vector<16x64xf32> to vector<16x32xf32>
    %27 = vector.extract_strided_slice %25 {offsets = [0, 32], sizes = [16, 32], strides = [1, 1]} : vector<16x64xf32> to vector<16x32xf32>
    %cst_26 = arith.constant 0.000000e+00 : f32
    %28 = vector.broadcast %cst_26 : f32 to vector<16x32xf32>
    %29 = vector.extract_strided_slice %24 {offsets = [0, 0], sizes = [16, 8], strides = [1, 1]} : vector<16x32xf32> to vector<16x8xf32>
    %30 = vector.extract_strided_slice %26 {offsets = [0, 0], sizes = [16, 8], strides = [1, 1]} : vector<16x32xf32> to vector<16x8xf32>
    %cst_27 = arith.constant dense<0.000000e+00> : vector<16x16xf32>
    %31 = tpu.matmul %29, %30, %cst_27 {dimension_numbers = #tpu.dot_dimension_numbers<[1], [1], [0], [0], [0, 0, 1, 0], [], []>} : vector<16x8xf32>, vector<16x8xf32>, vector<16x16xf32> -> vector<16x16xf32>
    %32 = vector.extract_strided_slice %0 {offsets = [0, 0, 0], sizes = [1, 16, 16], strides = [1, 1, 1]} : vector<4x16x16xf32> to vector<1x16x16xf32>
    %33 = vector.shape_cast %32 : vector<1x16x16xf32> to vector<16x16xf32>
    %34 = arith.addf %31, %33 : vector<16x16xf32>
    %cst_28 = arith.constant dense<0xFF800000> : vector<16xf32>
    %35 = vector.multi_reduction <maximumf>, %34, %cst_28 [1] : vector<16x16xf32> to vector<16xf32>
    %36 = vector.shape_cast %35 : vector<16xf32> to vector<16x1xf32>
    %37 = vector.broadcast %36 : vector<16x1xf32> to vector<16x16xf32>
    %38 = arith.subf %34, %37 : vector<16x16xf32>
    %39 = math.exp %38 : vector<16x16xf32>
    %cst_29 = arith.constant dense<0.000000e+00> : vector<16xf32>
    %40 = vector.multi_reduction <add>, %39, %cst_29 [1] : vector<16x16xf32> to vector<16xf32>
    %41 = vector.shape_cast %40 : vector<16xf32> to vector<16x1xf32>
    %42 = tpu.reciprocal %41 {approx = true} : vector<16x1xf32> -> vector<16x1xf32>
    %43 = vector.broadcast %42 : vector<16x1xf32> to vector<16x16xf32>
    %44 = arith.mulf %39, %43 : vector<16x16xf32>
    %45 = vector.extract_strided_slice %27 {offsets = [0, 0], sizes = [16, 8], strides = [1, 1]} : vector<16x32xf32> to vector<16x8xf32>
    %cst_30 = arith.constant dense<0.000000e+00> : vector<16x8xf32>
    %46 = tpu.matmul %44, %45, %cst_30 {dimension_numbers = #tpu.dot_dimension_numbers<[1], [0], [0], [1], [0, 0, 1, 1], [], []>} : vector<16x16xf32>, vector<16x8xf32>, vector<16x8xf32> -> vector<16x8xf32>
    %47 = vector.extract_strided_slice %11 {offsets = [0, 0], sizes = [8, 32], strides = [1, 1]} : vector<32x32xf32> to vector<8x32xf32>
    %cst_31 = arith.constant dense<0.000000e+00> : vector<16x32xf32>
    %48 = tpu.matmul %46, %47, %cst_31 {dimension_numbers = #tpu.dot_dimension_numbers<[1], [0], [0], [1], [0, 0, 1, 1], [], []>} : vector<16x8xf32>, vector<8x32xf32>, vector<16x32xf32> -> vector<16x32xf32>
    %49 = arith.addf %28, %48 : vector<16x32xf32>
    %50 = vector.extract_strided_slice %24 {offsets = [0, 8], sizes = [16, 8], strides = [1, 1]} : vector<16x32xf32> to vector<16x8xf32>
    %51 = vector.extract_strided_slice %26 {offsets = [0, 8], sizes = [16, 8], strides = [1, 1]} : vector<16x32xf32> to vector<16x8xf32>
    %cst_32 = arith.constant dense<0.000000e+00> : vector<16x16xf32>
    %52 = tpu.matmul %50, %51, %cst_32 {dimension_numbers = #tpu.dot_dimension_numbers<[1], [1], [0], [0], [0, 0, 1, 0], [], []>} : vector<16x8xf32>, vector<16x8xf32>, vector<16x16xf32> -> vector<16x16xf32>
    %53 = vector.extract_strided_slice %0 {offsets = [1, 0, 0], sizes = [1, 16, 16], strides = [1, 1, 1]} : vector<4x16x16xf32> to vector<1x16x16xf32>
    %54 = vector.shape_cast %53 : vector<1x16x16xf32> to vector<16x16xf32>
    %55 = arith.addf %52, %54 : vector<16x16xf32>
    %cst_33 = arith.constant dense<0xFF800000> : vector<16xf32>
    %56 = vector.multi_reduction <maximumf>, %55, %cst_33 [1] : vector<16x16xf32> to vector<16xf32>
    %57 = vector.shape_cast %56 : vector<16xf32> to vector<16x1xf32>
    %58 = vector.broadcast %57 : vector<16x1xf32> to vector<16x16xf32>
    %59 = arith.subf %55, %58 : vector<16x16xf32>
    %60 = math.exp %59 : vector<16x16xf32>
    %cst_34 = arith.constant dense<0.000000e+00> : vector<16xf32>
    %61 = vector.multi_reduction <add>, %60, %cst_34 [1] : vector<16x16xf32> to vector<16xf32>
    %62 = vector.shape_cast %61 : vector<16xf32> to vector<16x1xf32>
    %63 = tpu.reciprocal %62 {approx = true} : vector<16x1xf32> -> vector<16x1xf32>
    %64 = vector.broadcast %63 : vector<16x1xf32> to vector<16x16xf32>
    %65 = arith.mulf %60, %64 : vector<16x16xf32>
    %66 = vector.extract_strided_slice %27 {offsets = [0, 8], sizes = [16, 8], strides = [1, 1]} : vector<16x32xf32> to vector<16x8xf32>
    %cst_35 = arith.constant dense<0.000000e+00> : vector<16x8xf32>
    %67 = tpu.matmul %65, %66, %cst_35 {dimension_numbers = #tpu.dot_dimension_numbers<[1], [0], [0], [1], [0, 0, 1, 1], [], []>} : vector<16x16xf32>, vector<16x8xf32>, vector<16x8xf32> -> vector<16x8xf32>
    %68 = vector.extract_strided_slice %11 {offsets = [8, 0], sizes = [8, 32], strides = [1, 1]} : vector<32x32xf32> to vector<8x32xf32>
    %cst_36 = arith.constant dense<0.000000e+00> : vector<16x32xf32>
    %69 = tpu.matmul %67, %68, %cst_36 {dimension_numbers = #tpu.dot_dimension_numbers<[1], [0], [0], [1], [0, 0, 1, 1], [], []>} : vector<16x8xf32>, vector<8x32xf32>, vector<16x32xf32> -> vector<16x32xf32>
    %70 = arith.addf %49, %69 : vector<16x32xf32>
    %71 = vector.extract_strided_slice %24 {offsets = [0, 16], sizes = [16, 8], strides = [1, 1]} : vector<16x32xf32> to vector<16x8xf32>
    %72 = vector.extract_strided_slice %26 {offsets = [0, 16], sizes = [16, 8], strides = [1, 1]} : vector<16x32xf32> to vector<16x8xf32>
    %cst_37 = arith.constant dense<0.000000e+00> : vector<16x16xf32>
    %73 = tpu.matmul %71, %72, %cst_37 {dimension_numbers = #tpu.dot_dimension_numbers<[1], [1], [0], [0], [0, 0, 1, 0], [], []>} : vector<16x8xf32>, vector<16x8xf32>, vector<16x16xf32> -> vector<16x16xf32>
    %74 = vector.extract_strided_slice %0 {offsets = [2, 0, 0], sizes = [1, 16, 16], strides = [1, 1, 1]} : vector<4x16x16xf32> to vector<1x16x16xf32>
    %75 = vector.shape_cast %74 : vector<1x16x16xf32> to vector<16x16xf32>
    %76 = arith.addf %73, %75 : vector<16x16xf32>
    %cst_38 = arith.constant dense<0xFF800000> : vector<16xf32>
    %77 = vector.multi_reduction <maximumf>, %76, %cst_38 [1] : vector<16x16xf32> to vector<16xf32>
    %78 = vector.shape_cast %77 : vector<16xf32> to vector<16x1xf32>
    %79 = vector.broadcast %78 : vector<16x1xf32> to vector<16x16xf32>
    %80 = arith.subf %76, %79 : vector<16x16xf32>
    %81 = math.exp %80 : vector<16x16xf32>
    %cst_39 = arith.constant dense<0.000000e+00> : vector<16xf32>
    %82 = vector.multi_reduction <add>, %81, %cst_39 [1] : vector<16x16xf32> to vector<16xf32>
    %83 = vector.shape_cast %82 : vector<16xf32> to vector<16x1xf32>
    %84 = tpu.reciprocal %83 {approx = true} : vector<16x1xf32> -> vector<16x1xf32>
    %85 = vector.broadcast %84 : vector<16x1xf32> to vector<16x16xf32>
    %86 = arith.mulf %81, %85 : vector<16x16xf32>
    %87 = vector.extract_strided_slice %27 {offsets = [0, 16], sizes = [16, 8], strides = [1, 1]} : vector<16x32xf32> to vector<16x8xf32>
    %cst_40 = arith.constant dense<0.000000e+00> : vector<16x8xf32>
    %88 = tpu.matmul %86, %87, %cst_40 {dimension_numbers = #tpu.dot_dimension_numbers<[1], [0], [0], [1], [0, 0, 1, 1], [], []>} : vector<16x16xf32>, vector<16x8xf32>, vector<16x8xf32> -> vector<16x8xf32>
    %89 = vector.extract_strided_slice %11 {offsets = [16, 0], sizes = [8, 32], strides = [1, 1]} : vector<32x32xf32> to vector<8x32xf32>
    %cst_41 = arith.constant dense<0.000000e+00> : vector<16x32xf32>
    %90 = tpu.matmul %88, %89, %cst_41 {dimension_numbers = #tpu.dot_dimension_numbers<[1], [0], [0], [1], [0, 0, 1, 1], [], []>} : vector<16x8xf32>, vector<8x32xf32>, vector<16x32xf32> -> vector<16x32xf32>
    %91 = arith.addf %70, %90 : vector<16x32xf32>
    %92 = vector.extract_strided_slice %24 {offsets = [0, 24], sizes = [16, 8], strides = [1, 1]} : vector<16x32xf32> to vector<16x8xf32>
    %93 = vector.extract_strided_slice %26 {offsets = [0, 24], sizes = [16, 8], strides = [1, 1]} : vector<16x32xf32> to vector<16x8xf32>
    %cst_42 = arith.constant dense<0.000000e+00> : vector<16x16xf32>
    %94 = tpu.matmul %92, %93, %cst_42 {dimension_numbers = #tpu.dot_dimension_numbers<[1], [1], [0], [0], [0, 0, 1, 0], [], []>} : vector<16x8xf32>, vector<16x8xf32>, vector<16x16xf32> -> vector<16x16xf32>
    %95 = vector.extract_strided_slice %0 {offsets = [3, 0, 0], sizes = [1, 16, 16], strides = [1, 1, 1]} : vector<4x16x16xf32> to vector<1x16x16xf32>
    %96 = vector.shape_cast %95 : vector<1x16x16xf32> to vector<16x16xf32>
    %97 = arith.addf %94, %96 : vector<16x16xf32>
    %cst_43 = arith.constant dense<0xFF800000> : vector<16xf32>
    %98 = vector.multi_reduction <maximumf>, %97, %cst_43 [1] : vector<16x16xf32> to vector<16xf32>
    %99 = vector.shape_cast %98 : vector<16xf32> to vector<16x1xf32>
    %100 = vector.broadcast %99 : vector<16x1xf32> to vector<16x16xf32>
    %101 = arith.subf %97, %100 : vector<16x16xf32>
    %102 = math.exp %101 : vector<16x16xf32>
    %cst_44 = arith.constant dense<0.000000e+00> : vector<16xf32>
    %103 = vector.multi_reduction <add>, %102, %cst_44 [1] : vector<16x16xf32> to vector<16xf32>
    %104 = vector.shape_cast %103 : vector<16xf32> to vector<16x1xf32>
    %105 = tpu.reciprocal %104 {approx = true} : vector<16x1xf32> -> vector<16x1xf32>
    %106 = vector.broadcast %105 : vector<16x1xf32> to vector<16x16xf32>
    %107 = arith.mulf %102, %106 : vector<16x16xf32>
    %108 = vector.extract_strided_slice %27 {offsets = [0, 24], sizes = [16, 8], strides = [1, 1]} : vector<16x32xf32> to vector<16x8xf32>
    %cst_45 = arith.constant dense<0.000000e+00> : vector<16x8xf32>
    %109 = tpu.matmul %107, %108, %cst_45 {dimension_numbers = #tpu.dot_dimension_numbers<[1], [0], [0], [1], [0, 0, 1, 1], [], []>} : vector<16x16xf32>, vector<16x8xf32>, vector<16x8xf32> -> vector<16x8xf32>
    %110 = vector.extract_strided_slice %11 {offsets = [24, 0], sizes = [8, 32], strides = [1, 1]} : vector<32x32xf32> to vector<8x32xf32>
    %cst_46 = arith.constant dense<0.000000e+00> : vector<16x32xf32>
    %111 = tpu.matmul %109, %110, %cst_46 {dimension_numbers = #tpu.dot_dimension_numbers<[1], [0], [0], [1], [0, 0, 1, 1], [], []>} : vector<16x8xf32>, vector<8x32xf32>, vector<16x32xf32> -> vector<16x32xf32>
    %112 = arith.addf %91, %111 : vector<16x32xf32>
    %113 = arith.addf %3, %112 : vector<16x32xf32>
    %c0_47 = arith.constant 0 : index
    %c0_48 = arith.constant 0 : index
    %c0_49 = arith.constant 0 : index
    %114 = vector.load %arg9[%c0_47, %c0_48, %c0_49] : memref<2x1x32xf32, #tpu.memory_space<vmem>>, vector<1x1x32xf32>
    %115 = vector.shape_cast %114 : vector<1x1x32xf32> to vector<1x32xf32>
    %c0_50 = arith.constant 0 : index
    %c0_51 = arith.constant 0 : index
    %c0_52 = arith.constant 0 : index
    %116 = vector.load %arg10[%c0_50, %c0_51, %c0_52] : memref<2x32x128xf32, #tpu.memory_space<vmem>>, vector<1x32x128xf32>
    %117 = vector.shape_cast %116 : vector<1x32x128xf32> to vector<32x128xf32>
    %c0_53 = arith.constant 0 : index
    %c0_54 = arith.constant 0 : index
    %c0_55 = arith.constant 0 : index
    %118 = vector.load %arg11[%c0_53, %c0_54, %c0_55] : memref<2x64x32xf32, #tpu.memory_space<vmem>>, vector<1x64x32xf32>
    %119 = vector.shape_cast %118 : vector<1x64x32xf32> to vector<64x32xf32>
    %120 = arith.mulf %113, %113 : vector<16x32xf32>
    %cst_56 = arith.constant dense<0.000000e+00> : vector<16xf32>
    %121 = vector.multi_reduction <add>, %120, %cst_56 [1] : vector<16x32xf32> to vector<16xf32>
    %122 = vector.shape_cast %121 : vector<16xf32> to vector<16x1xf32>
    %cst_57 = arith.constant 3.200000e+01 : f32
    %123 = vector.broadcast %cst_57 : f32 to vector<16x1xf32>
    %124 = arith.divf %122, %123 : vector<16x1xf32>
    %cst_58 = arith.constant 9.99999997E-7 : f32
    %125 = vector.broadcast %cst_58 : f32 to vector<16x1xf32>
    %126 = arith.addf %124, %125 : vector<16x1xf32>
    %127 = math.rsqrt %126 : vector<16x1xf32>
    %128 = vector.broadcast %127 : vector<16x1xf32> to vector<16x32xf32>
    %129 = arith.mulf %113, %128 : vector<16x32xf32>
    %130 = vector.broadcast %115 : vector<1x32xf32> to vector<16x32xf32>
    %131 = arith.mulf %129, %130 : vector<16x32xf32>
    %cst_59 = arith.constant dense<0.000000e+00> : vector<16x128xf32>
    %132 = tpu.matmul %131, %117, %cst_59 {dimension_numbers = #tpu.dot_dimension_numbers<[1], [0], [0], [1], [0, 0, 1, 1], [], []>} : vector<16x32xf32>, vector<32x128xf32>, vector<16x128xf32> -> vector<16x128xf32>
    %133 = vector.extract_strided_slice %132 {offsets = [0, 0], sizes = [16, 64], strides = [1, 1]} : vector<16x128xf32> to vector<16x64xf32>
    %134 = vector.extract_strided_slice %132 {offsets = [0, 64], sizes = [16, 64], strides = [1, 1]} : vector<16x128xf32> to vector<16x64xf32>
    %cst_60 = arith.constant 5.000000e-01 : f32
    %135 = vector.broadcast %cst_60 : f32 to vector<16x64xf32>
    %136 = arith.mulf %135, %133 : vector<16x64xf32>
    %cst_61 = arith.constant 4.471500e-02 : f32
    %137 = vector.broadcast %cst_61 : f32 to vector<16x64xf32>
    %138 = arith.mulf %137, %133 : vector<16x64xf32>
    %139 = arith.mulf %138, %133 : vector<16x64xf32>
    %140 = arith.mulf %139, %133 : vector<16x64xf32>
    %141 = arith.addf %133, %140 : vector<16x64xf32>
    %cst_62 = arith.constant 0.797884583 : f32
    %142 = vector.broadcast %cst_62 : f32 to vector<16x64xf32>
    %143 = arith.mulf %142, %141 : vector<16x64xf32>
    %144 = math.tanh %143 : vector<16x64xf32>
    %cst_63 = arith.constant 1.000000e+00 : f32
    %145 = vector.broadcast %cst_63 : f32 to vector<16x64xf32>
    %146 = arith.addf %145, %144 : vector<16x64xf32>
    %147 = arith.mulf %136, %146 : vector<16x64xf32>
    %148 = arith.mulf %147, %134 : vector<16x64xf32>
    %cst_64 = arith.constant dense<0.000000e+00> : vector<16x32xf32>
    %149 = tpu.matmul %148, %119, %cst_64 {dimension_numbers = #tpu.dot_dimension_numbers<[1], [0], [0], [1], [0, 0, 1, 1], [], []>} : vector<16x64xf32>, vector<64x32xf32>, vector<16x32xf32> -> vector<16x32xf32>
    %150 = arith.addf %113, %149 : vector<16x32xf32>
    %c1 = arith.constant 1 : index
    %c0_65 = arith.constant 0 : index
    %c0_66 = arith.constant 0 : index
    %151 = vector.load %arg5[%c1, %c0_65, %c0_66] : memref<2x1x32xf32, #tpu.memory_space<vmem>>, vector<1x1x32xf32>
    %152 = vector.shape_cast %151 : vector<1x1x32xf32> to vector<1x32xf32>
    %c1_67 = arith.constant 1 : index
    %c0_68 = arith.constant 0 : index
    %c0_69 = arith.constant 0 : index
    %153 = vector.load %arg6[%c1_67, %c0_68, %c0_69] : memref<2x32x32xf32, #tpu.memory_space<vmem>>, vector<1x32x32xf32>
    %154 = vector.shape_cast %153 : vector<1x32x32xf32> to vector<32x32xf32>
    %c1_70 = arith.constant 1 : index
    %c0_71 = arith.constant 0 : index
    %c0_72 = arith.constant 0 : index
    %155 = vector.load %arg7[%c1_70, %c0_71, %c0_72] : memref<2x32x64xf32, #tpu.memory_space<vmem>>, vector<1x32x64xf32>
    %156 = vector.shape_cast %155 : vector<1x32x64xf32> to vector<32x64xf32>
    %c1_73 = arith.constant 1 : index
    %c0_74 = arith.constant 0 : index
    %c0_75 = arith.constant 0 : index
    %157 = vector.load %arg8[%c1_73, %c0_74, %c0_75] : memref<2x32x32xf32, #tpu.memory_space<vmem>>, vector<1x32x32xf32>
    %158 = vector.shape_cast %157 : vector<1x32x32xf32> to vector<32x32xf32>
    %159 = arith.mulf %150, %150 : vector<16x32xf32>
    %cst_76 = arith.constant dense<0.000000e+00> : vector<16xf32>
    %160 = vector.multi_reduction <add>, %159, %cst_76 [1] : vector<16x32xf32> to vector<16xf32>
    %161 = vector.shape_cast %160 : vector<16xf32> to vector<16x1xf32>
    %cst_77 = arith.constant 3.200000e+01 : f32
    %162 = vector.broadcast %cst_77 : f32 to vector<16x1xf32>
    %163 = arith.divf %161, %162 : vector<16x1xf32>
    %cst_78 = arith.constant 9.99999997E-7 : f32
    %164 = vector.broadcast %cst_78 : f32 to vector<16x1xf32>
    %165 = arith.addf %163, %164 : vector<16x1xf32>
    %166 = math.rsqrt %165 : vector<16x1xf32>
    %167 = vector.broadcast %166 : vector<16x1xf32> to vector<16x32xf32>
    %168 = arith.mulf %150, %167 : vector<16x32xf32>
    %169 = vector.broadcast %152 : vector<1x32xf32> to vector<16x32xf32>
    %170 = arith.mulf %168, %169 : vector<16x32xf32>
    %cst_79 = arith.constant dense<0.000000e+00> : vector<16x32xf32>
    %171 = tpu.matmul %170, %154, %cst_79 {dimension_numbers = #tpu.dot_dimension_numbers<[1], [0], [0], [1], [0, 0, 1, 1], [], []>} : vector<16x32xf32>, vector<32x32xf32>, vector<16x32xf32> -> vector<16x32xf32>
    %cst_80 = arith.constant dense<0.000000e+00> : vector<16x64xf32>
    %172 = tpu.matmul %170, %156, %cst_80 {dimension_numbers = #tpu.dot_dimension_numbers<[1], [0], [0], [1], [0, 0, 1, 1], [], []>} : vector<16x32xf32>, vector<32x64xf32>, vector<16x64xf32> -> vector<16x64xf32>
    %173 = vector.extract_strided_slice %172 {offsets = [0, 0], sizes = [16, 32], strides = [1, 1]} : vector<16x64xf32> to vector<16x32xf32>
    %174 = vector.extract_strided_slice %172 {offsets = [0, 32], sizes = [16, 32], strides = [1, 1]} : vector<16x64xf32> to vector<16x32xf32>
    %cst_81 = arith.constant 0.000000e+00 : f32
    %175 = vector.broadcast %cst_81 : f32 to vector<16x32xf32>
    %176 = vector.extract_strided_slice %171 {offsets = [0, 0], sizes = [16, 8], strides = [1, 1]} : vector<16x32xf32> to vector<16x8xf32>
    %177 = vector.extract_strided_slice %173 {offsets = [0, 0], sizes = [16, 8], strides = [1, 1]} : vector<16x32xf32> to vector<16x8xf32>
    %cst_82 = arith.constant dense<0.000000e+00> : vector<16x16xf32>
    %178 = tpu.matmul %176, %177, %cst_82 {dimension_numbers = #tpu.dot_dimension_numbers<[1], [1], [0], [0], [0, 0, 1, 0], [], []>} : vector<16x8xf32>, vector<16x8xf32>, vector<16x16xf32> -> vector<16x16xf32>
    %179 = vector.extract_strided_slice %0 {offsets = [0, 0, 0], sizes = [1, 16, 16], strides = [1, 1, 1]} : vector<4x16x16xf32> to vector<1x16x16xf32>
    %180 = vector.shape_cast %179 : vector<1x16x16xf32> to vector<16x16xf32>
    %181 = arith.addf %178, %180 : vector<16x16xf32>
    %cst_83 = arith.constant dense<0xFF800000> : vector<16xf32>
    %182 = vector.multi_reduction <maximumf>, %181, %cst_83 [1] : vector<16x16xf32> to vector<16xf32>
    %183 = vector.shape_cast %182 : vector<16xf32> to vector<16x1xf32>
    %184 = vector.broadcast %183 : vector<16x1xf32> to vector<16x16xf32>
    %185 = arith.subf %181, %184 : vector<16x16xf32>
    %186 = math.exp %185 : vector<16x16xf32>
    %cst_84 = arith.constant dense<0.000000e+00> : vector<16xf32>
    %187 = vector.multi_reduction <add>, %186, %cst_84 [1] : vector<16x16xf32> to vector<16xf32>
    %188 = vector.shape_cast %187 : vector<16xf32> to vector<16x1xf32>
    %189 = tpu.reciprocal %188 {approx = true} : vector<16x1xf32> -> vector<16x1xf32>
    %190 = vector.broadcast %189 : vector<16x1xf32> to vector<16x16xf32>
    %191 = arith.mulf %186, %190 : vector<16x16xf32>
    %192 = vector.extract_strided_slice %174 {offsets = [0, 0], sizes = [16, 8], strides = [1, 1]} : vector<16x32xf32> to vector<16x8xf32>
    %cst_85 = arith.constant dense<0.000000e+00> : vector<16x8xf32>
    %193 = tpu.matmul %191, %192, %cst_85 {dimension_numbers = #tpu.dot_dimension_numbers<[1], [0], [0], [1], [0, 0, 1, 1], [], []>} : vector<16x16xf32>, vector<16x8xf32>, vector<16x8xf32> -> vector<16x8xf32>
    %194 = vector.extract_strided_slice %158 {offsets = [0, 0], sizes = [8, 32], strides = [1, 1]} : vector<32x32xf32> to vector<8x32xf32>
    %cst_86 = arith.constant dense<0.000000e+00> : vector<16x32xf32>
    %195 = tpu.matmul %193, %194, %cst_86 {dimension_numbers = #tpu.dot_dimension_numbers<[1], [0], [0], [1], [0, 0, 1, 1], [], []>} : vector<16x8xf32>, vector<8x32xf32>, vector<16x32xf32> -> vector<16x32xf32>
    %196 = arith.addf %175, %195 : vector<16x32xf32>
    %197 = vector.extract_strided_slice %171 {offsets = [0, 8], sizes = [16, 8], strides = [1, 1]} : vector<16x32xf32> to vector<16x8xf32>
    %198 = vector.extract_strided_slice %173 {offsets = [0, 8], sizes = [16, 8], strides = [1, 1]} : vector<16x32xf32> to vector<16x8xf32>
    %cst_87 = arith.constant dense<0.000000e+00> : vector<16x16xf32>
    %199 = tpu.matmul %197, %198, %cst_87 {dimension_numbers = #tpu.dot_dimension_numbers<[1], [1], [0], [0], [0, 0, 1, 0], [], []>} : vector<16x8xf32>, vector<16x8xf32>, vector<16x16xf32> -> vector<16x16xf32>
    %200 = vector.extract_strided_slice %0 {offsets = [1, 0, 0], sizes = [1, 16, 16], strides = [1, 1, 1]} : vector<4x16x16xf32> to vector<1x16x16xf32>
    %201 = vector.shape_cast %200 : vector<1x16x16xf32> to vector<16x16xf32>
    %202 = arith.addf %199, %201 : vector<16x16xf32>
    %cst_88 = arith.constant dense<0xFF800000> : vector<16xf32>
    %203 = vector.multi_reduction <maximumf>, %202, %cst_88 [1] : vector<16x16xf32> to vector<16xf32>
    %204 = vector.shape_cast %203 : vector<16xf32> to vector<16x1xf32>
    %205 = vector.broadcast %204 : vector<16x1xf32> to vector<16x16xf32>
    %206 = arith.subf %202, %205 : vector<16x16xf32>
    %207 = math.exp %206 : vector<16x16xf32>
    %cst_89 = arith.constant dense<0.000000e+00> : vector<16xf32>
    %208 = vector.multi_reduction <add>, %207, %cst_89 [1] : vector<16x16xf32> to vector<16xf32>
    %209 = vector.shape_cast %208 : vector<16xf32> to vector<16x1xf32>
    %210 = tpu.reciprocal %209 {approx = true} : vector<16x1xf32> -> vector<16x1xf32>
    %211 = vector.broadcast %210 : vector<16x1xf32> to vector<16x16xf32>
    %212 = arith.mulf %207, %211 : vector<16x16xf32>
    %213 = vector.extract_strided_slice %174 {offsets = [0, 8], sizes = [16, 8], strides = [1, 1]} : vector<16x32xf32> to vector<16x8xf32>
    %cst_90 = arith.constant dense<0.000000e+00> : vector<16x8xf32>
    %214 = tpu.matmul %212, %213, %cst_90 {dimension_numbers = #tpu.dot_dimension_numbers<[1], [0], [0], [1], [0, 0, 1, 1], [], []>} : vector<16x16xf32>, vector<16x8xf32>, vector<16x8xf32> -> vector<16x8xf32>
    %215 = vector.extract_strided_slice %158 {offsets = [8, 0], sizes = [8, 32], strides = [1, 1]} : vector<32x32xf32> to vector<8x32xf32>
    %cst_91 = arith.constant dense<0.000000e+00> : vector<16x32xf32>
    %216 = tpu.matmul %214, %215, %cst_91 {dimension_numbers = #tpu.dot_dimension_numbers<[1], [0], [0], [1], [0, 0, 1, 1], [], []>} : vector<16x8xf32>, vector<8x32xf32>, vector<16x32xf32> -> vector<16x32xf32>
    %217 = arith.addf %196, %216 : vector<16x32xf32>
    %218 = vector.extract_strided_slice %171 {offsets = [0, 16], sizes = [16, 8], strides = [1, 1]} : vector<16x32xf32> to vector<16x8xf32>
    %219 = vector.extract_strided_slice %173 {offsets = [0, 16], sizes = [16, 8], strides = [1, 1]} : vector<16x32xf32> to vector<16x8xf32>
    %cst_92 = arith.constant dense<0.000000e+00> : vector<16x16xf32>
    %220 = tpu.matmul %218, %219, %cst_92 {dimension_numbers = #tpu.dot_dimension_numbers<[1], [1], [0], [0], [0, 0, 1, 0], [], []>} : vector<16x8xf32>, vector<16x8xf32>, vector<16x16xf32> -> vector<16x16xf32>
    %221 = vector.extract_strided_slice %0 {offsets = [2, 0, 0], sizes = [1, 16, 16], strides = [1, 1, 1]} : vector<4x16x16xf32> to vector<1x16x16xf32>
    %222 = vector.shape_cast %221 : vector<1x16x16xf32> to vector<16x16xf32>
    %223 = arith.addf %220, %222 : vector<16x16xf32>
    %cst_93 = arith.constant dense<0xFF800000> : vector<16xf32>
    %224 = vector.multi_reduction <maximumf>, %223, %cst_93 [1] : vector<16x16xf32> to vector<16xf32>
    %225 = vector.shape_cast %224 : vector<16xf32> to vector<16x1xf32>
    %226 = vector.broadcast %225 : vector<16x1xf32> to vector<16x16xf32>
    %227 = arith.subf %223, %226 : vector<16x16xf32>
    %228 = math.exp %227 : vector<16x16xf32>
    %cst_94 = arith.constant dense<0.000000e+00> : vector<16xf32>
    %229 = vector.multi_reduction <add>, %228, %cst_94 [1] : vector<16x16xf32> to vector<16xf32>
    %230 = vector.shape_cast %229 : vector<16xf32> to vector<16x1xf32>
    %231 = tpu.reciprocal %230 {approx = true} : vector<16x1xf32> -> vector<16x1xf32>
    %232 = vector.broadcast %231 : vector<16x1xf32> to vector<16x16xf32>
    %233 = arith.mulf %228, %232 : vector<16x16xf32>
    %234 = vector.extract_strided_slice %174 {offsets = [0, 16], sizes = [16, 8], strides = [1, 1]} : vector<16x32xf32> to vector<16x8xf32>
    %cst_95 = arith.constant dense<0.000000e+00> : vector<16x8xf32>
    %235 = tpu.matmul %233, %234, %cst_95 {dimension_numbers = #tpu.dot_dimension_numbers<[1], [0], [0], [1], [0, 0, 1, 1], [], []>} : vector<16x16xf32>, vector<16x8xf32>, vector<16x8xf32> -> vector<16x8xf32>
    %236 = vector.extract_strided_slice %158 {offsets = [16, 0], sizes = [8, 32], strides = [1, 1]} : vector<32x32xf32> to vector<8x32xf32>
    %cst_96 = arith.constant dense<0.000000e+00> : vector<16x32xf32>
    %237 = tpu.matmul %235, %236, %cst_96 {dimension_numbers = #tpu.dot_dimension_numbers<[1], [0], [0], [1], [0, 0, 1, 1], [], []>} : vector<16x8xf32>, vector<8x32xf32>, vector<16x32xf32> -> vector<16x32xf32>
    %238 = arith.addf %217, %237 : vector<16x32xf32>
    %239 = vector.extract_strided_slice %171 {offsets = [0, 24], sizes = [16, 8], strides = [1, 1]} : vector<16x32xf32> to vector<16x8xf32>
    %240 = vector.extract_strided_slice %173 {offsets = [0, 24], sizes = [16, 8], strides = [1, 1]} : vector<16x32xf32> to vector<16x8xf32>
    %cst_97 = arith.constant dense<0.000000e+00> : vector<16x16xf32>
    %241 = tpu.matmul %239, %240, %cst_97 {dimension_numbers = #tpu.dot_dimension_numbers<[1], [1], [0], [0], [0, 0, 1, 0], [], []>} : vector<16x8xf32>, vector<16x8xf32>, vector<16x16xf32> -> vector<16x16xf32>
    %242 = vector.extract_strided_slice %0 {offsets = [3, 0, 0], sizes = [1, 16, 16], strides = [1, 1, 1]} : vector<4x16x16xf32> to vector<1x16x16xf32>
    %243 = vector.shape_cast %242 : vector<1x16x16xf32> to vector<16x16xf32>
    %244 = arith.addf %241, %243 : vector<16x16xf32>
    %cst_98 = arith.constant dense<0xFF800000> : vector<16xf32>
    %245 = vector.multi_reduction <maximumf>, %244, %cst_98 [1] : vector<16x16xf32> to vector<16xf32>
    %246 = vector.shape_cast %245 : vector<16xf32> to vector<16x1xf32>
    %247 = vector.broadcast %246 : vector<16x1xf32> to vector<16x16xf32>
    %248 = arith.subf %244, %247 : vector<16x16xf32>
    %249 = math.exp %248 : vector<16x16xf32>
    %cst_99 = arith.constant dense<0.000000e+00> : vector<16xf32>
    %250 = vector.multi_reduction <add>, %249, %cst_99 [1] : vector<16x16xf32> to vector<16xf32>
    %251 = vector.shape_cast %250 : vector<16xf32> to vector<16x1xf32>
    %252 = tpu.reciprocal %251 {approx = true} : vector<16x1xf32> -> vector<16x1xf32>
    %253 = vector.broadcast %252 : vector<16x1xf32> to vector<16x16xf32>
    %254 = arith.mulf %249, %253 : vector<16x16xf32>
    %255 = vector.extract_strided_slice %174 {offsets = [0, 24], sizes = [16, 8], strides = [1, 1]} : vector<16x32xf32> to vector<16x8xf32>
    %cst_100 = arith.constant dense<0.000000e+00> : vector<16x8xf32>
    %256 = tpu.matmul %254, %255, %cst_100 {dimension_numbers = #tpu.dot_dimension_numbers<[1], [0], [0], [1], [0, 0, 1, 1], [], []>} : vector<16x16xf32>, vector<16x8xf32>, vector<16x8xf32> -> vector<16x8xf32>
    %257 = vector.extract_strided_slice %158 {offsets = [24, 0], sizes = [8, 32], strides = [1, 1]} : vector<32x32xf32> to vector<8x32xf32>
    %cst_101 = arith.constant dense<0.000000e+00> : vector<16x32xf32>
    %258 = tpu.matmul %256, %257, %cst_101 {dimension_numbers = #tpu.dot_dimension_numbers<[1], [0], [0], [1], [0, 0, 1, 1], [], []>} : vector<16x8xf32>, vector<8x32xf32>, vector<16x32xf32> -> vector<16x32xf32>
    %259 = arith.addf %238, %258 : vector<16x32xf32>
    %260 = arith.addf %150, %259 : vector<16x32xf32>
    %c1_102 = arith.constant 1 : index
    %c0_103 = arith.constant 0 : index
    %c0_104 = arith.constant 0 : index
    %261 = vector.load %arg9[%c1_102, %c0_103, %c0_104] : memref<2x1x32xf32, #tpu.memory_space<vmem>>, vector<1x1x32xf32>
    %262 = vector.shape_cast %261 : vector<1x1x32xf32> to vector<1x32xf32>
    %c1_105 = arith.constant 1 : index
    %c0_106 = arith.constant 0 : index
    %c0_107 = arith.constant 0 : index
    %263 = vector.load %arg10[%c1_105, %c0_106, %c0_107] : memref<2x32x128xf32, #tpu.memory_space<vmem>>, vector<1x32x128xf32>
    %264 = vector.shape_cast %263 : vector<1x32x128xf32> to vector<32x128xf32>
    %c1_108 = arith.constant 1 : index
    %c0_109 = arith.constant 0 : index
    %c0_110 = arith.constant 0 : index
    %265 = vector.load %arg11[%c1_108, %c0_109, %c0_110] : memref<2x64x32xf32, #tpu.memory_space<vmem>>, vector<1x64x32xf32>
    %266 = vector.shape_cast %265 : vector<1x64x32xf32> to vector<64x32xf32>
    %267 = arith.mulf %260, %260 : vector<16x32xf32>
    %cst_111 = arith.constant dense<0.000000e+00> : vector<16xf32>
    %268 = vector.multi_reduction <add>, %267, %cst_111 [1] : vector<16x32xf32> to vector<16xf32>
    %269 = vector.shape_cast %268 : vector<16xf32> to vector<16x1xf32>
    %cst_112 = arith.constant 3.200000e+01 : f32
    %270 = vector.broadcast %cst_112 : f32 to vector<16x1xf32>
    %271 = arith.divf %269, %270 : vector<16x1xf32>
    %cst_113 = arith.constant 9.99999997E-7 : f32
    %272 = vector.broadcast %cst_113 : f32 to vector<16x1xf32>
    %273 = arith.addf %271, %272 : vector<16x1xf32>
    %274 = math.rsqrt %273 : vector<16x1xf32>
    %275 = vector.broadcast %274 : vector<16x1xf32> to vector<16x32xf32>
    %276 = arith.mulf %260, %275 : vector<16x32xf32>
    %277 = vector.broadcast %262 : vector<1x32xf32> to vector<16x32xf32>
    %278 = arith.mulf %276, %277 : vector<16x32xf32>
    %cst_114 = arith.constant dense<0.000000e+00> : vector<16x128xf32>
    %279 = tpu.matmul %278, %264, %cst_114 {dimension_numbers = #tpu.dot_dimension_numbers<[1], [0], [0], [1], [0, 0, 1, 1], [], []>} : vector<16x32xf32>, vector<32x128xf32>, vector<16x128xf32> -> vector<16x128xf32>
    %280 = vector.extract_strided_slice %279 {offsets = [0, 0], sizes = [16, 64], strides = [1, 1]} : vector<16x128xf32> to vector<16x64xf32>
    %281 = vector.extract_strided_slice %279 {offsets = [0, 64], sizes = [16, 64], strides = [1, 1]} : vector<16x128xf32> to vector<16x64xf32>
    %cst_115 = arith.constant 5.000000e-01 : f32
    %282 = vector.broadcast %cst_115 : f32 to vector<16x64xf32>
    %283 = arith.mulf %282, %280 : vector<16x64xf32>
    %cst_116 = arith.constant 4.471500e-02 : f32
    %284 = vector.broadcast %cst_116 : f32 to vector<16x64xf32>
    %285 = arith.mulf %284, %280 : vector<16x64xf32>
    %286 = arith.mulf %285, %280 : vector<16x64xf32>
    %287 = arith.mulf %286, %280 : vector<16x64xf32>
    %288 = arith.addf %280, %287 : vector<16x64xf32>
    %cst_117 = arith.constant 0.797884583 : f32
    %289 = vector.broadcast %cst_117 : f32 to vector<16x64xf32>
    %290 = arith.mulf %289, %288 : vector<16x64xf32>
    %291 = math.tanh %290 : vector<16x64xf32>
    %cst_118 = arith.constant 1.000000e+00 : f32
    %292 = vector.broadcast %cst_118 : f32 to vector<16x64xf32>
    %293 = arith.addf %292, %291 : vector<16x64xf32>
    %294 = arith.mulf %283, %293 : vector<16x64xf32>
    %295 = arith.mulf %294, %281 : vector<16x64xf32>
    %cst_119 = arith.constant dense<0.000000e+00> : vector<16x32xf32>
    %296 = tpu.matmul %295, %266, %cst_119 {dimension_numbers = #tpu.dot_dimension_numbers<[1], [0], [0], [1], [0, 0, 1, 1], [], []>} : vector<16x64xf32>, vector<64x32xf32>, vector<16x32xf32> -> vector<16x32xf32>
    %297 = arith.addf %260, %296 : vector<16x32xf32>
    %c0_120 = arith.constant 0 : index
    %c0_121 = arith.constant 0 : index
    %298 = vector.load %arg23[%c0_120, %c0_121] : memref<1x32xf32, #tpu.memory_space<vmem>>, vector<1x32xf32>
    %299 = arith.mulf %297, %297 : vector<16x32xf32>
    %cst_122 = arith.constant dense<0.000000e+00> : vector<16xf32>
    %300 = vector.multi_reduction <add>, %299, %cst_122 [1] : vector<16x32xf32> to vector<16xf32>
    %301 = vector.shape_cast %300 : vector<16xf32> to vector<16x1xf32>
    %cst_123 = arith.constant 3.200000e+01 : f32
    %302 = vector.broadcast %cst_123 : f32 to vector<16x1xf32>
    %303 = arith.divf %301, %302 : vector<16x1xf32>
    %cst_124 = arith.constant 9.99999997E-7 : f32
    %304 = vector.broadcast %cst_124 : f32 to vector<16x1xf32>
    %305 = arith.addf %303, %304 : vector<16x1xf32>
    %306 = math.rsqrt %305 : vector<16x1xf32>
    %307 = vector.broadcast %306 : vector<16x1xf32> to vector<16x32xf32>
    %308 = arith.mulf %297, %307 : vector<16x32xf32>
    %309 = vector.broadcast %298 : vector<1x32xf32> to vector<16x32xf32>
    %310 = arith.mulf %308, %309 : vector<16x32xf32>
    %c0_125 = arith.constant 0 : index
    %c0_126 = arith.constant 0 : index
    %311 = vector.load %arg1[%c0_125, %c0_126] : memref<16x32xf32, #tpu.memory_space<vmem>>, vector<16x32xf32>
    %c0_127 = arith.constant 0 : index
    %c0_128 = arith.constant 0 : index
    %c0_129 = arith.constant 0 : index
    %312 = vector.load %arg12[%c0_127, %c0_128, %c0_129] : memref<2x1x32xf32, #tpu.memory_space<vmem>>, vector<1x1x32xf32>
    %313 = vector.shape_cast %312 : vector<1x1x32xf32> to vector<1x32xf32>
    %c0_130 = arith.constant 0 : index
    %c0_131 = arith.constant 0 : index
    %c0_132 = arith.constant 0 : index
    %314 = vector.load %arg13[%c0_130, %c0_131, %c0_132] : memref<2x32x32xf32, #tpu.memory_space<vmem>>, vector<1x32x32xf32>
    %315 = vector.shape_cast %314 : vector<1x32x32xf32> to vector<32x32xf32>
    %c0_133 = arith.constant 0 : index
    %c0_134 = arith.constant 0 : index
    %c0_135 = arith.constant 0 : index
    %316 = vector.load %arg14[%c0_133, %c0_134, %c0_135] : memref<2x32x64xf32, #tpu.memory_space<vmem>>, vector<1x32x64xf32>
    %317 = vector.shape_cast %316 : vector<1x32x64xf32> to vector<32x64xf32>
    %c0_136 = arith.constant 0 : index
    %c0_137 = arith.constant 0 : index
    %c0_138 = arith.constant 0 : index
    %318 = vector.load %arg15[%c0_136, %c0_137, %c0_138] : memref<2x32x32xf32, #tpu.memory_space<vmem>>, vector<1x32x32xf32>
    %319 = vector.shape_cast %318 : vector<1x32x32xf32> to vector<32x32xf32>
    %320 = arith.mulf %311, %311 : vector<16x32xf32>
    %cst_139 = arith.constant dense<0.000000e+00> : vector<16xf32>
    %321 = vector.multi_reduction <add>, %320, %cst_139 [1] : vector<16x32xf32> to vector<16xf32>
    %322 = vector.shape_cast %321 : vector<16xf32> to vector<16x1xf32>
    %cst_140 = arith.constant 3.200000e+01 : f32
    %323 = vector.broadcast %cst_140 : f32 to vector<16x1xf32>
    %324 = arith.divf %322, %323 : vector<16x1xf32>
    %cst_141 = arith.constant 9.99999997E-7 : f32
    %325 = vector.broadcast %cst_141 : f32 to vector<16x1xf32>
    %326 = arith.addf %324, %325 : vector<16x1xf32>
    %327 = math.rsqrt %326 : vector<16x1xf32>
    %328 = vector.broadcast %327 : vector<16x1xf32> to vector<16x32xf32>
    %329 = arith.mulf %311, %328 : vector<16x32xf32>
    %330 = vector.broadcast %313 : vector<1x32xf32> to vector<16x32xf32>
    %331 = arith.mulf %329, %330 : vector<16x32xf32>
    %cst_142 = arith.constant dense<0.000000e+00> : vector<16x32xf32>
    %332 = tpu.matmul %331, %315, %cst_142 {dimension_numbers = #tpu.dot_dimension_numbers<[1], [0], [0], [1], [0, 0, 1, 1], [], []>} : vector<16x32xf32>, vector<32x32xf32>, vector<16x32xf32> -> vector<16x32xf32>
    %cst_143 = arith.constant dense<0.000000e+00> : vector<16x64xf32>
    %333 = tpu.matmul %331, %317, %cst_143 {dimension_numbers = #tpu.dot_dimension_numbers<[1], [0], [0], [1], [0, 0, 1, 1], [], []>} : vector<16x32xf32>, vector<32x64xf32>, vector<16x64xf32> -> vector<16x64xf32>
    %334 = vector.extract_strided_slice %333 {offsets = [0, 0], sizes = [16, 32], strides = [1, 1]} : vector<16x64xf32> to vector<16x32xf32>
    %335 = vector.extract_strided_slice %333 {offsets = [0, 32], sizes = [16, 32], strides = [1, 1]} : vector<16x64xf32> to vector<16x32xf32>
    %cst_144 = arith.constant 0.000000e+00 : f32
    %336 = vector.broadcast %cst_144 : f32 to vector<16x32xf32>
    %337 = vector.extract_strided_slice %332 {offsets = [0, 0], sizes = [16, 8], strides = [1, 1]} : vector<16x32xf32> to vector<16x8xf32>
    %338 = vector.extract_strided_slice %334 {offsets = [0, 0], sizes = [16, 8], strides = [1, 1]} : vector<16x32xf32> to vector<16x8xf32>
    %cst_145 = arith.constant dense<0.000000e+00> : vector<16x16xf32>
    %339 = tpu.matmul %337, %338, %cst_145 {dimension_numbers = #tpu.dot_dimension_numbers<[1], [1], [0], [0], [0, 0, 1, 0], [], []>} : vector<16x8xf32>, vector<16x8xf32>, vector<16x16xf32> -> vector<16x16xf32>
    %340 = vector.extract_strided_slice %1 {offsets = [0, 0, 0], sizes = [1, 16, 16], strides = [1, 1, 1]} : vector<4x16x16xf32> to vector<1x16x16xf32>
    %341 = vector.shape_cast %340 : vector<1x16x16xf32> to vector<16x16xf32>
    %342 = arith.addf %339, %341 : vector<16x16xf32>
    %cst_146 = arith.constant dense<0xFF800000> : vector<16xf32>
    %343 = vector.multi_reduction <maximumf>, %342, %cst_146 [1] : vector<16x16xf32> to vector<16xf32>
    %344 = vector.shape_cast %343 : vector<16xf32> to vector<16x1xf32>
    %345 = vector.broadcast %344 : vector<16x1xf32> to vector<16x16xf32>
    %346 = arith.subf %342, %345 : vector<16x16xf32>
    %347 = math.exp %346 : vector<16x16xf32>
    %cst_147 = arith.constant dense<0.000000e+00> : vector<16xf32>
    %348 = vector.multi_reduction <add>, %347, %cst_147 [1] : vector<16x16xf32> to vector<16xf32>
    %349 = vector.shape_cast %348 : vector<16xf32> to vector<16x1xf32>
    %350 = tpu.reciprocal %349 {approx = true} : vector<16x1xf32> -> vector<16x1xf32>
    %351 = vector.broadcast %350 : vector<16x1xf32> to vector<16x16xf32>
    %352 = arith.mulf %347, %351 : vector<16x16xf32>
    %353 = vector.extract_strided_slice %335 {offsets = [0, 0], sizes = [16, 8], strides = [1, 1]} : vector<16x32xf32> to vector<16x8xf32>
    %cst_148 = arith.constant dense<0.000000e+00> : vector<16x8xf32>
    %354 = tpu.matmul %352, %353, %cst_148 {dimension_numbers = #tpu.dot_dimension_numbers<[1], [0], [0], [1], [0, 0, 1, 1], [], []>} : vector<16x16xf32>, vector<16x8xf32>, vector<16x8xf32> -> vector<16x8xf32>
    %355 = vector.extract_strided_slice %319 {offsets = [0, 0], sizes = [8, 32], strides = [1, 1]} : vector<32x32xf32> to vector<8x32xf32>
    %cst_149 = arith.constant dense<0.000000e+00> : vector<16x32xf32>
    %356 = tpu.matmul %354, %355, %cst_149 {dimension_numbers = #tpu.dot_dimension_numbers<[1], [0], [0], [1], [0, 0, 1, 1], [], []>} : vector<16x8xf32>, vector<8x32xf32>, vector<16x32xf32> -> vector<16x32xf32>
    %357 = arith.addf %336, %356 : vector<16x32xf32>
    %358 = vector.extract_strided_slice %332 {offsets = [0, 8], sizes = [16, 8], strides = [1, 1]} : vector<16x32xf32> to vector<16x8xf32>
    %359 = vector.extract_strided_slice %334 {offsets = [0, 8], sizes = [16, 8], strides = [1, 1]} : vector<16x32xf32> to vector<16x8xf32>
    %cst_150 = arith.constant dense<0.000000e+00> : vector<16x16xf32>
    %360 = tpu.matmul %358, %359, %cst_150 {dimension_numbers = #tpu.dot_dimension_numbers<[1], [1], [0], [0], [0, 0, 1, 0], [], []>} : vector<16x8xf32>, vector<16x8xf32>, vector<16x16xf32> -> vector<16x16xf32>
    %361 = vector.extract_strided_slice %1 {offsets = [1, 0, 0], sizes = [1, 16, 16], strides = [1, 1, 1]} : vector<4x16x16xf32> to vector<1x16x16xf32>
    %362 = vector.shape_cast %361 : vector<1x16x16xf32> to vector<16x16xf32>
    %363 = arith.addf %360, %362 : vector<16x16xf32>
    %cst_151 = arith.constant dense<0xFF800000> : vector<16xf32>
    %364 = vector.multi_reduction <maximumf>, %363, %cst_151 [1] : vector<16x16xf32> to vector<16xf32>
    %365 = vector.shape_cast %364 : vector<16xf32> to vector<16x1xf32>
    %366 = vector.broadcast %365 : vector<16x1xf32> to vector<16x16xf32>
    %367 = arith.subf %363, %366 : vector<16x16xf32>
    %368 = math.exp %367 : vector<16x16xf32>
    %cst_152 = arith.constant dense<0.000000e+00> : vector<16xf32>
    %369 = vector.multi_reduction <add>, %368, %cst_152 [1] : vector<16x16xf32> to vector<16xf32>
    %370 = vector.shape_cast %369 : vector<16xf32> to vector<16x1xf32>
    %371 = tpu.reciprocal %370 {approx = true} : vector<16x1xf32> -> vector<16x1xf32>
    %372 = vector.broadcast %371 : vector<16x1xf32> to vector<16x16xf32>
    %373 = arith.mulf %368, %372 : vector<16x16xf32>
    %374 = vector.extract_strided_slice %335 {offsets = [0, 8], sizes = [16, 8], strides = [1, 1]} : vector<16x32xf32> to vector<16x8xf32>
    %cst_153 = arith.constant dense<0.000000e+00> : vector<16x8xf32>
    %375 = tpu.matmul %373, %374, %cst_153 {dimension_numbers = #tpu.dot_dimension_numbers<[1], [0], [0], [1], [0, 0, 1, 1], [], []>} : vector<16x16xf32>, vector<16x8xf32>, vector<16x8xf32> -> vector<16x8xf32>
    %376 = vector.extract_strided_slice %319 {offsets = [8, 0], sizes = [8, 32], strides = [1, 1]} : vector<32x32xf32> to vector<8x32xf32>
    %cst_154 = arith.constant dense<0.000000e+00> : vector<16x32xf32>
    %377 = tpu.matmul %375, %376, %cst_154 {dimension_numbers = #tpu.dot_dimension_numbers<[1], [0], [0], [1], [0, 0, 1, 1], [], []>} : vector<16x8xf32>, vector<8x32xf32>, vector<16x32xf32> -> vector<16x32xf32>
    %378 = arith.addf %357, %377 : vector<16x32xf32>
    %379 = vector.extract_strided_slice %332 {offsets = [0, 16], sizes = [16, 8], strides = [1, 1]} : vector<16x32xf32> to vector<16x8xf32>
    %380 = vector.extract_strided_slice %334 {offsets = [0, 16], sizes = [16, 8], strides = [1, 1]} : vector<16x32xf32> to vector<16x8xf32>
    %cst_155 = arith.constant dense<0.000000e+00> : vector<16x16xf32>
    %381 = tpu.matmul %379, %380, %cst_155 {dimension_numbers = #tpu.dot_dimension_numbers<[1], [1], [0], [0], [0, 0, 1, 0], [], []>} : vector<16x8xf32>, vector<16x8xf32>, vector<16x16xf32> -> vector<16x16xf32>
    %382 = vector.extract_strided_slice %1 {offsets = [2, 0, 0], sizes = [1, 16, 16], strides = [1, 1, 1]} : vector<4x16x16xf32> to vector<1x16x16xf32>
    %383 = vector.shape_cast %382 : vector<1x16x16xf32> to vector<16x16xf32>
    %384 = arith.addf %381, %383 : vector<16x16xf32>
    %cst_156 = arith.constant dense<0xFF800000> : vector<16xf32>
    %385 = vector.multi_reduction <maximumf>, %384, %cst_156 [1] : vector<16x16xf32> to vector<16xf32>
    %386 = vector.shape_cast %385 : vector<16xf32> to vector<16x1xf32>
    %387 = vector.broadcast %386 : vector<16x1xf32> to vector<16x16xf32>
    %388 = arith.subf %384, %387 : vector<16x16xf32>
    %389 = math.exp %388 : vector<16x16xf32>
    %cst_157 = arith.constant dense<0.000000e+00> : vector<16xf32>
    %390 = vector.multi_reduction <add>, %389, %cst_157 [1] : vector<16x16xf32> to vector<16xf32>
    %391 = vector.shape_cast %390 : vector<16xf32> to vector<16x1xf32>
    %392 = tpu.reciprocal %391 {approx = true} : vector<16x1xf32> -> vector<16x1xf32>
    %393 = vector.broadcast %392 : vector<16x1xf32> to vector<16x16xf32>
    %394 = arith.mulf %389, %393 : vector<16x16xf32>
    %395 = vector.extract_strided_slice %335 {offsets = [0, 16], sizes = [16, 8], strides = [1, 1]} : vector<16x32xf32> to vector<16x8xf32>
    %cst_158 = arith.constant dense<0.000000e+00> : vector<16x8xf32>
    %396 = tpu.matmul %394, %395, %cst_158 {dimension_numbers = #tpu.dot_dimension_numbers<[1], [0], [0], [1], [0, 0, 1, 1], [], []>} : vector<16x16xf32>, vector<16x8xf32>, vector<16x8xf32> -> vector<16x8xf32>
    %397 = vector.extract_strided_slice %319 {offsets = [16, 0], sizes = [8, 32], strides = [1, 1]} : vector<32x32xf32> to vector<8x32xf32>
    %cst_159 = arith.constant dense<0.000000e+00> : vector<16x32xf32>
    %398 = tpu.matmul %396, %397, %cst_159 {dimension_numbers = #tpu.dot_dimension_numbers<[1], [0], [0], [1], [0, 0, 1, 1], [], []>} : vector<16x8xf32>, vector<8x32xf32>, vector<16x32xf32> -> vector<16x32xf32>
    %399 = arith.addf %378, %398 : vector<16x32xf32>
    %400 = vector.extract_strided_slice %332 {offsets = [0, 24], sizes = [16, 8], strides = [1, 1]} : vector<16x32xf32> to vector<16x8xf32>
    %401 = vector.extract_strided_slice %334 {offsets = [0, 24], sizes = [16, 8], strides = [1, 1]} : vector<16x32xf32> to vector<16x8xf32>
    %cst_160 = arith.constant dense<0.000000e+00> : vector<16x16xf32>
    %402 = tpu.matmul %400, %401, %cst_160 {dimension_numbers = #tpu.dot_dimension_numbers<[1], [1], [0], [0], [0, 0, 1, 0], [], []>} : vector<16x8xf32>, vector<16x8xf32>, vector<16x16xf32> -> vector<16x16xf32>
    %403 = vector.extract_strided_slice %1 {offsets = [3, 0, 0], sizes = [1, 16, 16], strides = [1, 1, 1]} : vector<4x16x16xf32> to vector<1x16x16xf32>
    %404 = vector.shape_cast %403 : vector<1x16x16xf32> to vector<16x16xf32>
    %405 = arith.addf %402, %404 : vector<16x16xf32>
    %cst_161 = arith.constant dense<0xFF800000> : vector<16xf32>
    %406 = vector.multi_reduction <maximumf>, %405, %cst_161 [1] : vector<16x16xf32> to vector<16xf32>
    %407 = vector.shape_cast %406 : vector<16xf32> to vector<16x1xf32>
    %408 = vector.broadcast %407 : vector<16x1xf32> to vector<16x16xf32>
    %409 = arith.subf %405, %408 : vector<16x16xf32>
    %410 = math.exp %409 : vector<16x16xf32>
    %cst_162 = arith.constant dense<0.000000e+00> : vector<16xf32>
    %411 = vector.multi_reduction <add>, %410, %cst_162 [1] : vector<16x16xf32> to vector<16xf32>
    %412 = vector.shape_cast %411 : vector<16xf32> to vector<16x1xf32>
    %413 = tpu.reciprocal %412 {approx = true} : vector<16x1xf32> -> vector<16x1xf32>
    %414 = vector.broadcast %413 : vector<16x1xf32> to vector<16x16xf32>
    %415 = arith.mulf %410, %414 : vector<16x16xf32>
    %416 = vector.extract_strided_slice %335 {offsets = [0, 24], sizes = [16, 8], strides = [1, 1]} : vector<16x32xf32> to vector<16x8xf32>
    %cst_163 = arith.constant dense<0.000000e+00> : vector<16x8xf32>
    %417 = tpu.matmul %415, %416, %cst_163 {dimension_numbers = #tpu.dot_dimension_numbers<[1], [0], [0], [1], [0, 0, 1, 1], [], []>} : vector<16x16xf32>, vector<16x8xf32>, vector<16x8xf32> -> vector<16x8xf32>
    %418 = vector.extract_strided_slice %319 {offsets = [24, 0], sizes = [8, 32], strides = [1, 1]} : vector<32x32xf32> to vector<8x32xf32>
    %cst_164 = arith.constant dense<0.000000e+00> : vector<16x32xf32>
    %419 = tpu.matmul %417, %418, %cst_164 {dimension_numbers = #tpu.dot_dimension_numbers<[1], [0], [0], [1], [0, 0, 1, 1], [], []>} : vector<16x8xf32>, vector<8x32xf32>, vector<16x32xf32> -> vector<16x32xf32>
    %420 = arith.addf %399, %419 : vector<16x32xf32>
    %421 = arith.addf %311, %420 : vector<16x32xf32>
    %c0_165 = arith.constant 0 : index
    %c0_166 = arith.constant 0 : index
    %c0_167 = arith.constant 0 : index
    %422 = vector.load %arg16[%c0_165, %c0_166, %c0_167] : memref<2x1x32xf32, #tpu.memory_space<vmem>>, vector<1x1x32xf32>
    %423 = vector.shape_cast %422 : vector<1x1x32xf32> to vector<1x32xf32>
    %c0_168 = arith.constant 0 : index
    %c0_169 = arith.constant 0 : index
    %c0_170 = arith.constant 0 : index
    %424 = vector.load %arg17[%c0_168, %c0_169, %c0_170] : memref<2x32x32xf32, #tpu.memory_space<vmem>>, vector<1x32x32xf32>
    %425 = vector.shape_cast %424 : vector<1x32x32xf32> to vector<32x32xf32>
    %c0_171 = arith.constant 0 : index
    %c0_172 = arith.constant 0 : index
    %c0_173 = arith.constant 0 : index
    %426 = vector.load %arg18[%c0_171, %c0_172, %c0_173] : memref<2x32x64xf32, #tpu.memory_space<vmem>>, vector<1x32x64xf32>
    %427 = vector.shape_cast %426 : vector<1x32x64xf32> to vector<32x64xf32>
    %c0_174 = arith.constant 0 : index
    %c0_175 = arith.constant 0 : index
    %c0_176 = arith.constant 0 : index
    %428 = vector.load %arg19[%c0_174, %c0_175, %c0_176] : memref<2x32x32xf32, #tpu.memory_space<vmem>>, vector<1x32x32xf32>
    %429 = vector.shape_cast %428 : vector<1x32x32xf32> to vector<32x32xf32>
    %430 = arith.mulf %421, %421 : vector<16x32xf32>
    %cst_177 = arith.constant dense<0.000000e+00> : vector<16xf32>
    %431 = vector.multi_reduction <add>, %430, %cst_177 [1] : vector<16x32xf32> to vector<16xf32>
    %432 = vector.shape_cast %431 : vector<16xf32> to vector<16x1xf32>
    %cst_178 = arith.constant 3.200000e+01 : f32
    %433 = vector.broadcast %cst_178 : f32 to vector<16x1xf32>
    %434 = arith.divf %432, %433 : vector<16x1xf32>
    %cst_179 = arith.constant 9.99999997E-7 : f32
    %435 = vector.broadcast %cst_179 : f32 to vector<16x1xf32>
    %436 = arith.addf %434, %435 : vector<16x1xf32>
    %437 = math.rsqrt %436 : vector<16x1xf32>
    %438 = vector.broadcast %437 : vector<16x1xf32> to vector<16x32xf32>
    %439 = arith.mulf %421, %438 : vector<16x32xf32>
    %440 = vector.broadcast %423 : vector<1x32xf32> to vector<16x32xf32>
    %441 = arith.mulf %439, %440 : vector<16x32xf32>
    %cst_180 = arith.constant dense<0.000000e+00> : vector<16x32xf32>
    %442 = tpu.matmul %441, %425, %cst_180 {dimension_numbers = #tpu.dot_dimension_numbers<[1], [0], [0], [1], [0, 0, 1, 1], [], []>} : vector<16x32xf32>, vector<32x32xf32>, vector<16x32xf32> -> vector<16x32xf32>
    %cst_181 = arith.constant dense<0.000000e+00> : vector<16x64xf32>
    %443 = tpu.matmul %310, %427, %cst_181 {dimension_numbers = #tpu.dot_dimension_numbers<[1], [0], [0], [1], [0, 0, 1, 1], [], []>} : vector<16x32xf32>, vector<32x64xf32>, vector<16x64xf32> -> vector<16x64xf32>
    %444 = vector.extract_strided_slice %443 {offsets = [0, 0], sizes = [16, 32], strides = [1, 1]} : vector<16x64xf32> to vector<16x32xf32>
    %445 = vector.extract_strided_slice %443 {offsets = [0, 32], sizes = [16, 32], strides = [1, 1]} : vector<16x64xf32> to vector<16x32xf32>
    %cst_182 = arith.constant 0.000000e+00 : f32
    %446 = vector.broadcast %cst_182 : f32 to vector<16x32xf32>
    %447 = vector.extract_strided_slice %442 {offsets = [0, 0], sizes = [16, 8], strides = [1, 1]} : vector<16x32xf32> to vector<16x8xf32>
    %448 = vector.extract_strided_slice %444 {offsets = [0, 0], sizes = [16, 8], strides = [1, 1]} : vector<16x32xf32> to vector<16x8xf32>
    %cst_183 = arith.constant dense<0.000000e+00> : vector<16x16xf32>
    %449 = tpu.matmul %447, %448, %cst_183 {dimension_numbers = #tpu.dot_dimension_numbers<[1], [1], [0], [0], [0, 0, 1, 0], [], []>} : vector<16x8xf32>, vector<16x8xf32>, vector<16x16xf32> -> vector<16x16xf32>
    %450 = vector.extract_strided_slice %2 {offsets = [0, 0, 0], sizes = [1, 16, 16], strides = [1, 1, 1]} : vector<4x16x16xf32> to vector<1x16x16xf32>
    %451 = vector.shape_cast %450 : vector<1x16x16xf32> to vector<16x16xf32>
    %452 = arith.addf %449, %451 : vector<16x16xf32>
    %cst_184 = arith.constant dense<0xFF800000> : vector<16xf32>
    %453 = vector.multi_reduction <maximumf>, %452, %cst_184 [1] : vector<16x16xf32> to vector<16xf32>
    %454 = vector.shape_cast %453 : vector<16xf32> to vector<16x1xf32>
    %455 = vector.broadcast %454 : vector<16x1xf32> to vector<16x16xf32>
    %456 = arith.subf %452, %455 : vector<16x16xf32>
    %457 = math.exp %456 : vector<16x16xf32>
    %cst_185 = arith.constant dense<0.000000e+00> : vector<16xf32>
    %458 = vector.multi_reduction <add>, %457, %cst_185 [1] : vector<16x16xf32> to vector<16xf32>
    %459 = vector.shape_cast %458 : vector<16xf32> to vector<16x1xf32>
    %460 = tpu.reciprocal %459 {approx = true} : vector<16x1xf32> -> vector<16x1xf32>
    %461 = vector.broadcast %460 : vector<16x1xf32> to vector<16x16xf32>
    %462 = arith.mulf %457, %461 : vector<16x16xf32>
    %463 = vector.extract_strided_slice %445 {offsets = [0, 0], sizes = [16, 8], strides = [1, 1]} : vector<16x32xf32> to vector<16x8xf32>
    %cst_186 = arith.constant dense<0.000000e+00> : vector<16x8xf32>
    %464 = tpu.matmul %462, %463, %cst_186 {dimension_numbers = #tpu.dot_dimension_numbers<[1], [0], [0], [1], [0, 0, 1, 1], [], []>} : vector<16x16xf32>, vector<16x8xf32>, vector<16x8xf32> -> vector<16x8xf32>
    %465 = vector.extract_strided_slice %429 {offsets = [0, 0], sizes = [8, 32], strides = [1, 1]} : vector<32x32xf32> to vector<8x32xf32>
    %cst_187 = arith.constant dense<0.000000e+00> : vector<16x32xf32>
    %466 = tpu.matmul %464, %465, %cst_187 {dimension_numbers = #tpu.dot_dimension_numbers<[1], [0], [0], [1], [0, 0, 1, 1], [], []>} : vector<16x8xf32>, vector<8x32xf32>, vector<16x32xf32> -> vector<16x32xf32>
    %467 = arith.addf %446, %466 : vector<16x32xf32>
    %468 = vector.extract_strided_slice %442 {offsets = [0, 8], sizes = [16, 8], strides = [1, 1]} : vector<16x32xf32> to vector<16x8xf32>
    %469 = vector.extract_strided_slice %444 {offsets = [0, 8], sizes = [16, 8], strides = [1, 1]} : vector<16x32xf32> to vector<16x8xf32>
    %cst_188 = arith.constant dense<0.000000e+00> : vector<16x16xf32>
    %470 = tpu.matmul %468, %469, %cst_188 {dimension_numbers = #tpu.dot_dimension_numbers<[1], [1], [0], [0], [0, 0, 1, 0], [], []>} : vector<16x8xf32>, vector<16x8xf32>, vector<16x16xf32> -> vector<16x16xf32>
    %471 = vector.extract_strided_slice %2 {offsets = [1, 0, 0], sizes = [1, 16, 16], strides = [1, 1, 1]} : vector<4x16x16xf32> to vector<1x16x16xf32>
    %472 = vector.shape_cast %471 : vector<1x16x16xf32> to vector<16x16xf32>
    %473 = arith.addf %470, %472 : vector<16x16xf32>
    %cst_189 = arith.constant dense<0xFF800000> : vector<16xf32>
    %474 = vector.multi_reduction <maximumf>, %473, %cst_189 [1] : vector<16x16xf32> to vector<16xf32>
    %475 = vector.shape_cast %474 : vector<16xf32> to vector<16x1xf32>
    %476 = vector.broadcast %475 : vector<16x1xf32> to vector<16x16xf32>
    %477 = arith.subf %473, %476 : vector<16x16xf32>
    %478 = math.exp %477 : vector<16x16xf32>
    %cst_190 = arith.constant dense<0.000000e+00> : vector<16xf32>
    %479 = vector.multi_reduction <add>, %478, %cst_190 [1] : vector<16x16xf32> to vector<16xf32>
    %480 = vector.shape_cast %479 : vector<16xf32> to vector<16x1xf32>
    %481 = tpu.reciprocal %480 {approx = true} : vector<16x1xf32> -> vector<16x1xf32>
    %482 = vector.broadcast %481 : vector<16x1xf32> to vector<16x16xf32>
    %483 = arith.mulf %478, %482 : vector<16x16xf32>
    %484 = vector.extract_strided_slice %445 {offsets = [0, 8], sizes = [16, 8], strides = [1, 1]} : vector<16x32xf32> to vector<16x8xf32>
    %cst_191 = arith.constant dense<0.000000e+00> : vector<16x8xf32>
    %485 = tpu.matmul %483, %484, %cst_191 {dimension_numbers = #tpu.dot_dimension_numbers<[1], [0], [0], [1], [0, 0, 1, 1], [], []>} : vector<16x16xf32>, vector<16x8xf32>, vector<16x8xf32> -> vector<16x8xf32>
    %486 = vector.extract_strided_slice %429 {offsets = [8, 0], sizes = [8, 32], strides = [1, 1]} : vector<32x32xf32> to vector<8x32xf32>
    %cst_192 = arith.constant dense<0.000000e+00> : vector<16x32xf32>
    %487 = tpu.matmul %485, %486, %cst_192 {dimension_numbers = #tpu.dot_dimension_numbers<[1], [0], [0], [1], [0, 0, 1, 1], [], []>} : vector<16x8xf32>, vector<8x32xf32>, vector<16x32xf32> -> vector<16x32xf32>
    %488 = arith.addf %467, %487 : vector<16x32xf32>
    %489 = vector.extract_strided_slice %442 {offsets = [0, 16], sizes = [16, 8], strides = [1, 1]} : vector<16x32xf32> to vector<16x8xf32>
    %490 = vector.extract_strided_slice %444 {offsets = [0, 16], sizes = [16, 8], strides = [1, 1]} : vector<16x32xf32> to vector<16x8xf32>
    %cst_193 = arith.constant dense<0.000000e+00> : vector<16x16xf32>
    %491 = tpu.matmul %489, %490, %cst_193 {dimension_numbers = #tpu.dot_dimension_numbers<[1], [1], [0], [0], [0, 0, 1, 0], [], []>} : vector<16x8xf32>, vector<16x8xf32>, vector<16x16xf32> -> vector<16x16xf32>
    %492 = vector.extract_strided_slice %2 {offsets = [2, 0, 0], sizes = [1, 16, 16], strides = [1, 1, 1]} : vector<4x16x16xf32> to vector<1x16x16xf32>
    %493 = vector.shape_cast %492 : vector<1x16x16xf32> to vector<16x16xf32>
    %494 = arith.addf %491, %493 : vector<16x16xf32>
    %cst_194 = arith.constant dense<0xFF800000> : vector<16xf32>
    %495 = vector.multi_reduction <maximumf>, %494, %cst_194 [1] : vector<16x16xf32> to vector<16xf32>
    %496 = vector.shape_cast %495 : vector<16xf32> to vector<16x1xf32>
    %497 = vector.broadcast %496 : vector<16x1xf32> to vector<16x16xf32>
    %498 = arith.subf %494, %497 : vector<16x16xf32>
    %499 = math.exp %498 : vector<16x16xf32>
    %cst_195 = arith.constant dense<0.000000e+00> : vector<16xf32>
    %500 = vector.multi_reduction <add>, %499, %cst_195 [1] : vector<16x16xf32> to vector<16xf32>
    %501 = vector.shape_cast %500 : vector<16xf32> to vector<16x1xf32>
    %502 = tpu.reciprocal %501 {approx = true} : vector<16x1xf32> -> vector<16x1xf32>
    %503 = vector.broadcast %502 : vector<16x1xf32> to vector<16x16xf32>
    %504 = arith.mulf %499, %503 : vector<16x16xf32>
    %505 = vector.extract_strided_slice %445 {offsets = [0, 16], sizes = [16, 8], strides = [1, 1]} : vector<16x32xf32> to vector<16x8xf32>
    %cst_196 = arith.constant dense<0.000000e+00> : vector<16x8xf32>
    %506 = tpu.matmul %504, %505, %cst_196 {dimension_numbers = #tpu.dot_dimension_numbers<[1], [0], [0], [1], [0, 0, 1, 1], [], []>} : vector<16x16xf32>, vector<16x8xf32>, vector<16x8xf32> -> vector<16x8xf32>
    %507 = vector.extract_strided_slice %429 {offsets = [16, 0], sizes = [8, 32], strides = [1, 1]} : vector<32x32xf32> to vector<8x32xf32>
    %cst_197 = arith.constant dense<0.000000e+00> : vector<16x32xf32>
    %508 = tpu.matmul %506, %507, %cst_197 {dimension_numbers = #tpu.dot_dimension_numbers<[1], [0], [0], [1], [0, 0, 1, 1], [], []>} : vector<16x8xf32>, vector<8x32xf32>, vector<16x32xf32> -> vector<16x32xf32>
    %509 = arith.addf %488, %508 : vector<16x32xf32>
    %510 = vector.extract_strided_slice %442 {offsets = [0, 24], sizes = [16, 8], strides = [1, 1]} : vector<16x32xf32> to vector<16x8xf32>
    %511 = vector.extract_strided_slice %444 {offsets = [0, 24], sizes = [16, 8], strides = [1, 1]} : vector<16x32xf32> to vector<16x8xf32>
    %cst_198 = arith.constant dense<0.000000e+00> : vector<16x16xf32>
    %512 = tpu.matmul %510, %511, %cst_198 {dimension_numbers = #tpu.dot_dimension_numbers<[1], [1], [0], [0], [0, 0, 1, 0], [], []>} : vector<16x8xf32>, vector<16x8xf32>, vector<16x16xf32> -> vector<16x16xf32>
    %513 = vector.extract_strided_slice %2 {offsets = [3, 0, 0], sizes = [1, 16, 16], strides = [1, 1, 1]} : vector<4x16x16xf32> to vector<1x16x16xf32>
    %514 = vector.shape_cast %513 : vector<1x16x16xf32> to vector<16x16xf32>
    %515 = arith.addf %512, %514 : vector<16x16xf32>
    %cst_199 = arith.constant dense<0xFF800000> : vector<16xf32>
    %516 = vector.multi_reduction <maximumf>, %515, %cst_199 [1] : vector<16x16xf32> to vector<16xf32>
    %517 = vector.shape_cast %516 : vector<16xf32> to vector<16x1xf32>
    %518 = vector.broadcast %517 : vector<16x1xf32> to vector<16x16xf32>
    %519 = arith.subf %515, %518 : vector<16x16xf32>
    %520 = math.exp %519 : vector<16x16xf32>
    %cst_200 = arith.constant dense<0.000000e+00> : vector<16xf32>
    %521 = vector.multi_reduction <add>, %520, %cst_200 [1] : vector<16x16xf32> to vector<16xf32>
    %522 = vector.shape_cast %521 : vector<16xf32> to vector<16x1xf32>
    %523 = tpu.reciprocal %522 {approx = true} : vector<16x1xf32> -> vector<16x1xf32>
    %524 = vector.broadcast %523 : vector<16x1xf32> to vector<16x16xf32>
    %525 = arith.mulf %520, %524 : vector<16x16xf32>
    %526 = vector.extract_strided_slice %445 {offsets = [0, 24], sizes = [16, 8], strides = [1, 1]} : vector<16x32xf32> to vector<16x8xf32>
    %cst_201 = arith.constant dense<0.000000e+00> : vector<16x8xf32>
    %527 = tpu.matmul %525, %526, %cst_201 {dimension_numbers = #tpu.dot_dimension_numbers<[1], [0], [0], [1], [0, 0, 1, 1], [], []>} : vector<16x16xf32>, vector<16x8xf32>, vector<16x8xf32> -> vector<16x8xf32>
    %528 = vector.extract_strided_slice %429 {offsets = [24, 0], sizes = [8, 32], strides = [1, 1]} : vector<32x32xf32> to vector<8x32xf32>
    %cst_202 = arith.constant dense<0.000000e+00> : vector<16x32xf32>
    %529 = tpu.matmul %527, %528, %cst_202 {dimension_numbers = #tpu.dot_dimension_numbers<[1], [0], [0], [1], [0, 0, 1, 1], [], []>} : vector<16x8xf32>, vector<8x32xf32>, vector<16x32xf32> -> vector<16x32xf32>
    %530 = arith.addf %509, %529 : vector<16x32xf32>
    %531 = arith.addf %421, %530 : vector<16x32xf32>
    %c0_203 = arith.constant 0 : index
    %c0_204 = arith.constant 0 : index
    %c0_205 = arith.constant 0 : index
    %532 = vector.load %arg20[%c0_203, %c0_204, %c0_205] : memref<2x1x32xf32, #tpu.memory_space<vmem>>, vector<1x1x32xf32>
    %533 = vector.shape_cast %532 : vector<1x1x32xf32> to vector<1x32xf32>
    %c0_206 = arith.constant 0 : index
    %c0_207 = arith.constant 0 : index
    %c0_208 = arith.constant 0 : index
    %534 = vector.load %arg21[%c0_206, %c0_207, %c0_208] : memref<2x32x128xf32, #tpu.memory_space<vmem>>, vector<1x32x128xf32>
    %535 = vector.shape_cast %534 : vector<1x32x128xf32> to vector<32x128xf32>
    %c0_209 = arith.constant 0 : index
    %c0_210 = arith.constant 0 : index
    %c0_211 = arith.constant 0 : index
    %536 = vector.load %arg22[%c0_209, %c0_210, %c0_211] : memref<2x64x32xf32, #tpu.memory_space<vmem>>, vector<1x64x32xf32>
    %537 = vector.shape_cast %536 : vector<1x64x32xf32> to vector<64x32xf32>
    %538 = arith.mulf %531, %531 : vector<16x32xf32>
    %cst_212 = arith.constant dense<0.000000e+00> : vector<16xf32>
    %539 = vector.multi_reduction <add>, %538, %cst_212 [1] : vector<16x32xf32> to vector<16xf32>
    %540 = vector.shape_cast %539 : vector<16xf32> to vector<16x1xf32>
    %cst_213 = arith.constant 3.200000e+01 : f32
    %541 = vector.broadcast %cst_213 : f32 to vector<16x1xf32>
    %542 = arith.divf %540, %541 : vector<16x1xf32>
    %cst_214 = arith.constant 9.99999997E-7 : f32
    %543 = vector.broadcast %cst_214 : f32 to vector<16x1xf32>
    %544 = arith.addf %542, %543 : vector<16x1xf32>
    %545 = math.rsqrt %544 : vector<16x1xf32>
    %546 = vector.broadcast %545 : vector<16x1xf32> to vector<16x32xf32>
    %547 = arith.mulf %531, %546 : vector<16x32xf32>
    %548 = vector.broadcast %533 : vector<1x32xf32> to vector<16x32xf32>
    %549 = arith.mulf %547, %548 : vector<16x32xf32>
    %cst_215 = arith.constant dense<0.000000e+00> : vector<16x128xf32>
    %550 = tpu.matmul %549, %535, %cst_215 {dimension_numbers = #tpu.dot_dimension_numbers<[1], [0], [0], [1], [0, 0, 1, 1], [], []>} : vector<16x32xf32>, vector<32x128xf32>, vector<16x128xf32> -> vector<16x128xf32>
    %551 = vector.extract_strided_slice %550 {offsets = [0, 0], sizes = [16, 64], strides = [1, 1]} : vector<16x128xf32> to vector<16x64xf32>
    %552 = vector.extract_strided_slice %550 {offsets = [0, 64], sizes = [16, 64], strides = [1, 1]} : vector<16x128xf32> to vector<16x64xf32>
    %cst_216 = arith.constant 5.000000e-01 : f32
    %553 = vector.broadcast %cst_216 : f32 to vector<16x64xf32>
    %554 = arith.mulf %553, %551 : vector<16x64xf32>
    %cst_217 = arith.constant 4.471500e-02 : f32
    %555 = vector.broadcast %cst_217 : f32 to vector<16x64xf32>
    %556 = arith.mulf %555, %551 : vector<16x64xf32>
    %557 = arith.mulf %556, %551 : vector<16x64xf32>
    %558 = arith.mulf %557, %551 : vector<16x64xf32>
    %559 = arith.addf %551, %558 : vector<16x64xf32>
    %cst_218 = arith.constant 0.797884583 : f32
    %560 = vector.broadcast %cst_218 : f32 to vector<16x64xf32>
    %561 = arith.mulf %560, %559 : vector<16x64xf32>
    %562 = math.tanh %561 : vector<16x64xf32>
    %cst_219 = arith.constant 1.000000e+00 : f32
    %563 = vector.broadcast %cst_219 : f32 to vector<16x64xf32>
    %564 = arith.addf %563, %562 : vector<16x64xf32>
    %565 = arith.mulf %554, %564 : vector<16x64xf32>
    %566 = arith.mulf %565, %552 : vector<16x64xf32>
    %cst_220 = arith.constant dense<0.000000e+00> : vector<16x32xf32>
    %567 = tpu.matmul %566, %537, %cst_220 {dimension_numbers = #tpu.dot_dimension_numbers<[1], [0], [0], [1], [0, 0, 1, 1], [], []>} : vector<16x64xf32>, vector<64x32xf32>, vector<16x32xf32> -> vector<16x32xf32>
    %568 = arith.addf %531, %567 : vector<16x32xf32>
    %c1_221 = arith.constant 1 : index
    %c0_222 = arith.constant 0 : index
    %c0_223 = arith.constant 0 : index
    %569 = vector.load %arg12[%c1_221, %c0_222, %c0_223] : memref<2x1x32xf32, #tpu.memory_space<vmem>>, vector<1x1x32xf32>
    %570 = vector.shape_cast %569 : vector<1x1x32xf32> to vector<1x32xf32>
    %c1_224 = arith.constant 1 : index
    %c0_225 = arith.constant 0 : index
    %c0_226 = arith.constant 0 : index
    %571 = vector.load %arg13[%c1_224, %c0_225, %c0_226] : memref<2x32x32xf32, #tpu.memory_space<vmem>>, vector<1x32x32xf32>
    %572 = vector.shape_cast %571 : vector<1x32x32xf32> to vector<32x32xf32>
    %c1_227 = arith.constant 1 : index
    %c0_228 = arith.constant 0 : index
    %c0_229 = arith.constant 0 : index
    %573 = vector.load %arg14[%c1_227, %c0_228, %c0_229] : memref<2x32x64xf32, #tpu.memory_space<vmem>>, vector<1x32x64xf32>
    %574 = vector.shape_cast %573 : vector<1x32x64xf32> to vector<32x64xf32>
    %c1_230 = arith.constant 1 : index
    %c0_231 = arith.constant 0 : index
    %c0_232 = arith.constant 0 : index
    %575 = vector.load %arg15[%c1_230, %c0_231, %c0_232] : memref<2x32x32xf32, #tpu.memory_space<vmem>>, vector<1x32x32xf32>
    %576 = vector.shape_cast %575 : vector<1x32x32xf32> to vector<32x32xf32>
    %577 = arith.mulf %568, %568 : vector<16x32xf32>
    %cst_233 = arith.constant dense<0.000000e+00> : vector<16xf32>
    %578 = vector.multi_reduction <add>, %577, %cst_233 [1] : vector<16x32xf32> to vector<16xf32>
    %579 = vector.shape_cast %578 : vector<16xf32> to vector<16x1xf32>
    %cst_234 = arith.constant 3.200000e+01 : f32
    %580 = vector.broadcast %cst_234 : f32 to vector<16x1xf32>
    %581 = arith.divf %579, %580 : vector<16x1xf32>
    %cst_235 = arith.constant 9.99999997E-7 : f32
    %582 = vector.broadcast %cst_235 : f32 to vector<16x1xf32>
    %583 = arith.addf %581, %582 : vector<16x1xf32>
    %584 = math.rsqrt %583 : vector<16x1xf32>
    %585 = vector.broadcast %584 : vector<16x1xf32> to vector<16x32xf32>
    %586 = arith.mulf %568, %585 : vector<16x32xf32>
    %587 = vector.broadcast %570 : vector<1x32xf32> to vector<16x32xf32>
    %588 = arith.mulf %586, %587 : vector<16x32xf32>
    %cst_236 = arith.constant dense<0.000000e+00> : vector<16x32xf32>
    %589 = tpu.matmul %588, %572, %cst_236 {dimension_numbers = #tpu.dot_dimension_numbers<[1], [0], [0], [1], [0, 0, 1, 1], [], []>} : vector<16x32xf32>, vector<32x32xf32>, vector<16x32xf32> -> vector<16x32xf32>
    %cst_237 = arith.constant dense<0.000000e+00> : vector<16x64xf32>
    %590 = tpu.matmul %588, %574, %cst_237 {dimension_numbers = #tpu.dot_dimension_numbers<[1], [0], [0], [1], [0, 0, 1, 1], [], []>} : vector<16x32xf32>, vector<32x64xf32>, vector<16x64xf32> -> vector<16x64xf32>
    %591 = vector.extract_strided_slice %590 {offsets = [0, 0], sizes = [16, 32], strides = [1, 1]} : vector<16x64xf32> to vector<16x32xf32>
    %592 = vector.extract_strided_slice %590 {offsets = [0, 32], sizes = [16, 32], strides = [1, 1]} : vector<16x64xf32> to vector<16x32xf32>
    %cst_238 = arith.constant 0.000000e+00 : f32
    %593 = vector.broadcast %cst_238 : f32 to vector<16x32xf32>
    %594 = vector.extract_strided_slice %589 {offsets = [0, 0], sizes = [16, 8], strides = [1, 1]} : vector<16x32xf32> to vector<16x8xf32>
    %595 = vector.extract_strided_slice %591 {offsets = [0, 0], sizes = [16, 8], strides = [1, 1]} : vector<16x32xf32> to vector<16x8xf32>
    %cst_239 = arith.constant dense<0.000000e+00> : vector<16x16xf32>
    %596 = tpu.matmul %594, %595, %cst_239 {dimension_numbers = #tpu.dot_dimension_numbers<[1], [1], [0], [0], [0, 0, 1, 0], [], []>} : vector<16x8xf32>, vector<16x8xf32>, vector<16x16xf32> -> vector<16x16xf32>
    %597 = vector.extract_strided_slice %1 {offsets = [0, 0, 0], sizes = [1, 16, 16], strides = [1, 1, 1]} : vector<4x16x16xf32> to vector<1x16x16xf32>
    %598 = vector.shape_cast %597 : vector<1x16x16xf32> to vector<16x16xf32>
    %599 = arith.addf %596, %598 : vector<16x16xf32>
    %cst_240 = arith.constant dense<0xFF800000> : vector<16xf32>
    %600 = vector.multi_reduction <maximumf>, %599, %cst_240 [1] : vector<16x16xf32> to vector<16xf32>
    %601 = vector.shape_cast %600 : vector<16xf32> to vector<16x1xf32>
    %602 = vector.broadcast %601 : vector<16x1xf32> to vector<16x16xf32>
    %603 = arith.subf %599, %602 : vector<16x16xf32>
    %604 = math.exp %603 : vector<16x16xf32>
    %cst_241 = arith.constant dense<0.000000e+00> : vector<16xf32>
    %605 = vector.multi_reduction <add>, %604, %cst_241 [1] : vector<16x16xf32> to vector<16xf32>
    %606 = vector.shape_cast %605 : vector<16xf32> to vector<16x1xf32>
    %607 = tpu.reciprocal %606 {approx = true} : vector<16x1xf32> -> vector<16x1xf32>
    %608 = vector.broadcast %607 : vector<16x1xf32> to vector<16x16xf32>
    %609 = arith.mulf %604, %608 : vector<16x16xf32>
    %610 = vector.extract_strided_slice %592 {offsets = [0, 0], sizes = [16, 8], strides = [1, 1]} : vector<16x32xf32> to vector<16x8xf32>
    %cst_242 = arith.constant dense<0.000000e+00> : vector<16x8xf32>
    %611 = tpu.matmul %609, %610, %cst_242 {dimension_numbers = #tpu.dot_dimension_numbers<[1], [0], [0], [1], [0, 0, 1, 1], [], []>} : vector<16x16xf32>, vector<16x8xf32>, vector<16x8xf32> -> vector<16x8xf32>
    %612 = vector.extract_strided_slice %576 {offsets = [0, 0], sizes = [8, 32], strides = [1, 1]} : vector<32x32xf32> to vector<8x32xf32>
    %cst_243 = arith.constant dense<0.000000e+00> : vector<16x32xf32>
    %613 = tpu.matmul %611, %612, %cst_243 {dimension_numbers = #tpu.dot_dimension_numbers<[1], [0], [0], [1], [0, 0, 1, 1], [], []>} : vector<16x8xf32>, vector<8x32xf32>, vector<16x32xf32> -> vector<16x32xf32>
    %614 = arith.addf %593, %613 : vector<16x32xf32>
    %615 = vector.extract_strided_slice %589 {offsets = [0, 8], sizes = [16, 8], strides = [1, 1]} : vector<16x32xf32> to vector<16x8xf32>
    %616 = vector.extract_strided_slice %591 {offsets = [0, 8], sizes = [16, 8], strides = [1, 1]} : vector<16x32xf32> to vector<16x8xf32>
    %cst_244 = arith.constant dense<0.000000e+00> : vector<16x16xf32>
    %617 = tpu.matmul %615, %616, %cst_244 {dimension_numbers = #tpu.dot_dimension_numbers<[1], [1], [0], [0], [0, 0, 1, 0], [], []>} : vector<16x8xf32>, vector<16x8xf32>, vector<16x16xf32> -> vector<16x16xf32>
    %618 = vector.extract_strided_slice %1 {offsets = [1, 0, 0], sizes = [1, 16, 16], strides = [1, 1, 1]} : vector<4x16x16xf32> to vector<1x16x16xf32>
    %619 = vector.shape_cast %618 : vector<1x16x16xf32> to vector<16x16xf32>
    %620 = arith.addf %617, %619 : vector<16x16xf32>
    %cst_245 = arith.constant dense<0xFF800000> : vector<16xf32>
    %621 = vector.multi_reduction <maximumf>, %620, %cst_245 [1] : vector<16x16xf32> to vector<16xf32>
    %622 = vector.shape_cast %621 : vector<16xf32> to vector<16x1xf32>
    %623 = vector.broadcast %622 : vector<16x1xf32> to vector<16x16xf32>
    %624 = arith.subf %620, %623 : vector<16x16xf32>
    %625 = math.exp %624 : vector<16x16xf32>
    %cst_246 = arith.constant dense<0.000000e+00> : vector<16xf32>
    %626 = vector.multi_reduction <add>, %625, %cst_246 [1] : vector<16x16xf32> to vector<16xf32>
    %627 = vector.shape_cast %626 : vector<16xf32> to vector<16x1xf32>
    %628 = tpu.reciprocal %627 {approx = true} : vector<16x1xf32> -> vector<16x1xf32>
    %629 = vector.broadcast %628 : vector<16x1xf32> to vector<16x16xf32>
    %630 = arith.mulf %625, %629 : vector<16x16xf32>
    %631 = vector.extract_strided_slice %592 {offsets = [0, 8], sizes = [16, 8], strides = [1, 1]} : vector<16x32xf32> to vector<16x8xf32>
    %cst_247 = arith.constant dense<0.000000e+00> : vector<16x8xf32>
    %632 = tpu.matmul %630, %631, %cst_247 {dimension_numbers = #tpu.dot_dimension_numbers<[1], [0], [0], [1], [0, 0, 1, 1], [], []>} : vector<16x16xf32>, vector<16x8xf32>, vector<16x8xf32> -> vector<16x8xf32>
    %633 = vector.extract_strided_slice %576 {offsets = [8, 0], sizes = [8, 32], strides = [1, 1]} : vector<32x32xf32> to vector<8x32xf32>
    %cst_248 = arith.constant dense<0.000000e+00> : vector<16x32xf32>
    %634 = tpu.matmul %632, %633, %cst_248 {dimension_numbers = #tpu.dot_dimension_numbers<[1], [0], [0], [1], [0, 0, 1, 1], [], []>} : vector<16x8xf32>, vector<8x32xf32>, vector<16x32xf32> -> vector<16x32xf32>
    %635 = arith.addf %614, %634 : vector<16x32xf32>
    %636 = vector.extract_strided_slice %589 {offsets = [0, 16], sizes = [16, 8], strides = [1, 1]} : vector<16x32xf32> to vector<16x8xf32>
    %637 = vector.extract_strided_slice %591 {offsets = [0, 16], sizes = [16, 8], strides = [1, 1]} : vector<16x32xf32> to vector<16x8xf32>
    %cst_249 = arith.constant dense<0.000000e+00> : vector<16x16xf32>
    %638 = tpu.matmul %636, %637, %cst_249 {dimension_numbers = #tpu.dot_dimension_numbers<[1], [1], [0], [0], [0, 0, 1, 0], [], []>} : vector<16x8xf32>, vector<16x8xf32>, vector<16x16xf32> -> vector<16x16xf32>
    %639 = vector.extract_strided_slice %1 {offsets = [2, 0, 0], sizes = [1, 16, 16], strides = [1, 1, 1]} : vector<4x16x16xf32> to vector<1x16x16xf32>
    %640 = vector.shape_cast %639 : vector<1x16x16xf32> to vector<16x16xf32>
    %641 = arith.addf %638, %640 : vector<16x16xf32>
    %cst_250 = arith.constant dense<0xFF800000> : vector<16xf32>
    %642 = vector.multi_reduction <maximumf>, %641, %cst_250 [1] : vector<16x16xf32> to vector<16xf32>
    %643 = vector.shape_cast %642 : vector<16xf32> to vector<16x1xf32>
    %644 = vector.broadcast %643 : vector<16x1xf32> to vector<16x16xf32>
    %645 = arith.subf %641, %644 : vector<16x16xf32>
    %646 = math.exp %645 : vector<16x16xf32>
    %cst_251 = arith.constant dense<0.000000e+00> : vector<16xf32>
    %647 = vector.multi_reduction <add>, %646, %cst_251 [1] : vector<16x16xf32> to vector<16xf32>
    %648 = vector.shape_cast %647 : vector<16xf32> to vector<16x1xf32>
    %649 = tpu.reciprocal %648 {approx = true} : vector<16x1xf32> -> vector<16x1xf32>
    %650 = vector.broadcast %649 : vector<16x1xf32> to vector<16x16xf32>
    %651 = arith.mulf %646, %650 : vector<16x16xf32>
    %652 = vector.extract_strided_slice %592 {offsets = [0, 16], sizes = [16, 8], strides = [1, 1]} : vector<16x32xf32> to vector<16x8xf32>
    %cst_252 = arith.constant dense<0.000000e+00> : vector<16x8xf32>
    %653 = tpu.matmul %651, %652, %cst_252 {dimension_numbers = #tpu.dot_dimension_numbers<[1], [0], [0], [1], [0, 0, 1, 1], [], []>} : vector<16x16xf32>, vector<16x8xf32>, vector<16x8xf32> -> vector<16x8xf32>
    %654 = vector.extract_strided_slice %576 {offsets = [16, 0], sizes = [8, 32], strides = [1, 1]} : vector<32x32xf32> to vector<8x32xf32>
    %cst_253 = arith.constant dense<0.000000e+00> : vector<16x32xf32>
    %655 = tpu.matmul %653, %654, %cst_253 {dimension_numbers = #tpu.dot_dimension_numbers<[1], [0], [0], [1], [0, 0, 1, 1], [], []>} : vector<16x8xf32>, vector<8x32xf32>, vector<16x32xf32> -> vector<16x32xf32>
    %656 = arith.addf %635, %655 : vector<16x32xf32>
    %657 = vector.extract_strided_slice %589 {offsets = [0, 24], sizes = [16, 8], strides = [1, 1]} : vector<16x32xf32> to vector<16x8xf32>
    %658 = vector.extract_strided_slice %591 {offsets = [0, 24], sizes = [16, 8], strides = [1, 1]} : vector<16x32xf32> to vector<16x8xf32>
    %cst_254 = arith.constant dense<0.000000e+00> : vector<16x16xf32>
    %659 = tpu.matmul %657, %658, %cst_254 {dimension_numbers = #tpu.dot_dimension_numbers<[1], [1], [0], [0], [0, 0, 1, 0], [], []>} : vector<16x8xf32>, vector<16x8xf32>, vector<16x16xf32> -> vector<16x16xf32>
    %660 = vector.extract_strided_slice %1 {offsets = [3, 0, 0], sizes = [1, 16, 16], strides = [1, 1, 1]} : vector<4x16x16xf32> to vector<1x16x16xf32>
    %661 = vector.shape_cast %660 : vector<1x16x16xf32> to vector<16x16xf32>
    %662 = arith.addf %659, %661 : vector<16x16xf32>
    %cst_255 = arith.constant dense<0xFF800000> : vector<16xf32>
    %663 = vector.multi_reduction <maximumf>, %662, %cst_255 [1] : vector<16x16xf32> to vector<16xf32>
    %664 = vector.shape_cast %663 : vector<16xf32> to vector<16x1xf32>
    %665 = vector.broadcast %664 : vector<16x1xf32> to vector<16x16xf32>
    %666 = arith.subf %662, %665 : vector<16x16xf32>
    %667 = math.exp %666 : vector<16x16xf32>
    %cst_256 = arith.constant dense<0.000000e+00> : vector<16xf32>
    %668 = vector.multi_reduction <add>, %667, %cst_256 [1] : vector<16x16xf32> to vector<16xf32>
    %669 = vector.shape_cast %668 : vector<16xf32> to vector<16x1xf32>
    %670 = tpu.reciprocal %669 {approx = true} : vector<16x1xf32> -> vector<16x1xf32>
    %671 = vector.broadcast %670 : vector<16x1xf32> to vector<16x16xf32>
    %672 = arith.mulf %667, %671 : vector<16x16xf32>
    %673 = vector.extract_strided_slice %592 {offsets = [0, 24], sizes = [16, 8], strides = [1, 1]} : vector<16x32xf32> to vector<16x8xf32>
    %cst_257 = arith.constant dense<0.000000e+00> : vector<16x8xf32>
    %674 = tpu.matmul %672, %673, %cst_257 {dimension_numbers = #tpu.dot_dimension_numbers<[1], [0], [0], [1], [0, 0, 1, 1], [], []>} : vector<16x16xf32>, vector<16x8xf32>, vector<16x8xf32> -> vector<16x8xf32>
    %675 = vector.extract_strided_slice %576 {offsets = [24, 0], sizes = [8, 32], strides = [1, 1]} : vector<32x32xf32> to vector<8x32xf32>
    %cst_258 = arith.constant dense<0.000000e+00> : vector<16x32xf32>
    %676 = tpu.matmul %674, %675, %cst_258 {dimension_numbers = #tpu.dot_dimension_numbers<[1], [0], [0], [1], [0, 0, 1, 1], [], []>} : vector<16x8xf32>, vector<8x32xf32>, vector<16x32xf32> -> vector<16x32xf32>
    %677 = arith.addf %656, %676 : vector<16x32xf32>
    %678 = arith.addf %568, %677 : vector<16x32xf32>
    %c1_259 = arith.constant 1 : index
    %c0_260 = arith.constant 0 : index
    %c0_261 = arith.constant 0 : index
    %679 = vector.load %arg16[%c1_259, %c0_260, %c0_261] : memref<2x1x32xf32, #tpu.memory_space<vmem>>, vector<1x1x32xf32>
    %680 = vector.shape_cast %679 : vector<1x1x32xf32> to vector<1x32xf32>
    %c1_262 = arith.constant 1 : index
    %c0_263 = arith.constant 0 : index
    %c0_264 = arith.constant 0 : index
    %681 = vector.load %arg17[%c1_262, %c0_263, %c0_264] : memref<2x32x32xf32, #tpu.memory_space<vmem>>, vector<1x32x32xf32>
    %682 = vector.shape_cast %681 : vector<1x32x32xf32> to vector<32x32xf32>
    %c1_265 = arith.constant 1 : index
    %c0_266 = arith.constant 0 : index
    %c0_267 = arith.constant 0 : index
    %683 = vector.load %arg18[%c1_265, %c0_266, %c0_267] : memref<2x32x64xf32, #tpu.memory_space<vmem>>, vector<1x32x64xf32>
    %684 = vector.shape_cast %683 : vector<1x32x64xf32> to vector<32x64xf32>
    %c1_268 = arith.constant 1 : index
    %c0_269 = arith.constant 0 : index
    %c0_270 = arith.constant 0 : index
    %685 = vector.load %arg19[%c1_268, %c0_269, %c0_270] : memref<2x32x32xf32, #tpu.memory_space<vmem>>, vector<1x32x32xf32>
    %686 = vector.shape_cast %685 : vector<1x32x32xf32> to vector<32x32xf32>
    %687 = arith.mulf %678, %678 : vector<16x32xf32>
    %cst_271 = arith.constant dense<0.000000e+00> : vector<16xf32>
    %688 = vector.multi_reduction <add>, %687, %cst_271 [1] : vector<16x32xf32> to vector<16xf32>
    %689 = vector.shape_cast %688 : vector<16xf32> to vector<16x1xf32>
    %cst_272 = arith.constant 3.200000e+01 : f32
    %690 = vector.broadcast %cst_272 : f32 to vector<16x1xf32>
    %691 = arith.divf %689, %690 : vector<16x1xf32>
    %cst_273 = arith.constant 9.99999997E-7 : f32
    %692 = vector.broadcast %cst_273 : f32 to vector<16x1xf32>
    %693 = arith.addf %691, %692 : vector<16x1xf32>
    %694 = math.rsqrt %693 : vector<16x1xf32>
    %695 = vector.broadcast %694 : vector<16x1xf32> to vector<16x32xf32>
    %696 = arith.mulf %678, %695 : vector<16x32xf32>
    %697 = vector.broadcast %680 : vector<1x32xf32> to vector<16x32xf32>
    %698 = arith.mulf %696, %697 : vector<16x32xf32>
    %cst_274 = arith.constant dense<0.000000e+00> : vector<16x32xf32>
    %699 = tpu.matmul %698, %682, %cst_274 {dimension_numbers = #tpu.dot_dimension_numbers<[1], [0], [0], [1], [0, 0, 1, 1], [], []>} : vector<16x32xf32>, vector<32x32xf32>, vector<16x32xf32> -> vector<16x32xf32>
    %cst_275 = arith.constant dense<0.000000e+00> : vector<16x64xf32>
    %700 = tpu.matmul %310, %684, %cst_275 {dimension_numbers = #tpu.dot_dimension_numbers<[1], [0], [0], [1], [0, 0, 1, 1], [], []>} : vector<16x32xf32>, vector<32x64xf32>, vector<16x64xf32> -> vector<16x64xf32>
    %701 = vector.extract_strided_slice %700 {offsets = [0, 0], sizes = [16, 32], strides = [1, 1]} : vector<16x64xf32> to vector<16x32xf32>
    %702 = vector.extract_strided_slice %700 {offsets = [0, 32], sizes = [16, 32], strides = [1, 1]} : vector<16x64xf32> to vector<16x32xf32>
    %cst_276 = arith.constant 0.000000e+00 : f32
    %703 = vector.broadcast %cst_276 : f32 to vector<16x32xf32>
    %704 = vector.extract_strided_slice %699 {offsets = [0, 0], sizes = [16, 8], strides = [1, 1]} : vector<16x32xf32> to vector<16x8xf32>
    %705 = vector.extract_strided_slice %701 {offsets = [0, 0], sizes = [16, 8], strides = [1, 1]} : vector<16x32xf32> to vector<16x8xf32>
    %cst_277 = arith.constant dense<0.000000e+00> : vector<16x16xf32>
    %706 = tpu.matmul %704, %705, %cst_277 {dimension_numbers = #tpu.dot_dimension_numbers<[1], [1], [0], [0], [0, 0, 1, 0], [], []>} : vector<16x8xf32>, vector<16x8xf32>, vector<16x16xf32> -> vector<16x16xf32>
    %707 = vector.extract_strided_slice %2 {offsets = [0, 0, 0], sizes = [1, 16, 16], strides = [1, 1, 1]} : vector<4x16x16xf32> to vector<1x16x16xf32>
    %708 = vector.shape_cast %707 : vector<1x16x16xf32> to vector<16x16xf32>
    %709 = arith.addf %706, %708 : vector<16x16xf32>
    %cst_278 = arith.constant dense<0xFF800000> : vector<16xf32>
    %710 = vector.multi_reduction <maximumf>, %709, %cst_278 [1] : vector<16x16xf32> to vector<16xf32>
    %711 = vector.shape_cast %710 : vector<16xf32> to vector<16x1xf32>
    %712 = vector.broadcast %711 : vector<16x1xf32> to vector<16x16xf32>
    %713 = arith.subf %709, %712 : vector<16x16xf32>
    %714 = math.exp %713 : vector<16x16xf32>
    %cst_279 = arith.constant dense<0.000000e+00> : vector<16xf32>
    %715 = vector.multi_reduction <add>, %714, %cst_279 [1] : vector<16x16xf32> to vector<16xf32>
    %716 = vector.shape_cast %715 : vector<16xf32> to vector<16x1xf32>
    %717 = tpu.reciprocal %716 {approx = true} : vector<16x1xf32> -> vector<16x1xf32>
    %718 = vector.broadcast %717 : vector<16x1xf32> to vector<16x16xf32>
    %719 = arith.mulf %714, %718 : vector<16x16xf32>
    %720 = vector.extract_strided_slice %702 {offsets = [0, 0], sizes = [16, 8], strides = [1, 1]} : vector<16x32xf32> to vector<16x8xf32>
    %cst_280 = arith.constant dense<0.000000e+00> : vector<16x8xf32>
    %721 = tpu.matmul %719, %720, %cst_280 {dimension_numbers = #tpu.dot_dimension_numbers<[1], [0], [0], [1], [0, 0, 1, 1], [], []>} : vector<16x16xf32>, vector<16x8xf32>, vector<16x8xf32> -> vector<16x8xf32>
    %722 = vector.extract_strided_slice %686 {offsets = [0, 0], sizes = [8, 32], strides = [1, 1]} : vector<32x32xf32> to vector<8x32xf32>
    %cst_281 = arith.constant dense<0.000000e+00> : vector<16x32xf32>
    %723 = tpu.matmul %721, %722, %cst_281 {dimension_numbers = #tpu.dot_dimension_numbers<[1], [0], [0], [1], [0, 0, 1, 1], [], []>} : vector<16x8xf32>, vector<8x32xf32>, vector<16x32xf32> -> vector<16x32xf32>
    %724 = arith.addf %703, %723 : vector<16x32xf32>
    %725 = vector.extract_strided_slice %699 {offsets = [0, 8], sizes = [16, 8], strides = [1, 1]} : vector<16x32xf32> to vector<16x8xf32>
    %726 = vector.extract_strided_slice %701 {offsets = [0, 8], sizes = [16, 8], strides = [1, 1]} : vector<16x32xf32> to vector<16x8xf32>
    %cst_282 = arith.constant dense<0.000000e+00> : vector<16x16xf32>
    %727 = tpu.matmul %725, %726, %cst_282 {dimension_numbers = #tpu.dot_dimension_numbers<[1], [1], [0], [0], [0, 0, 1, 0], [], []>} : vector<16x8xf32>, vector<16x8xf32>, vector<16x16xf32> -> vector<16x16xf32>
    %728 = vector.extract_strided_slice %2 {offsets = [1, 0, 0], sizes = [1, 16, 16], strides = [1, 1, 1]} : vector<4x16x16xf32> to vector<1x16x16xf32>
    %729 = vector.shape_cast %728 : vector<1x16x16xf32> to vector<16x16xf32>
    %730 = arith.addf %727, %729 : vector<16x16xf32>
    %cst_283 = arith.constant dense<0xFF800000> : vector<16xf32>
    %731 = vector.multi_reduction <maximumf>, %730, %cst_283 [1] : vector<16x16xf32> to vector<16xf32>
    %732 = vector.shape_cast %731 : vector<16xf32> to vector<16x1xf32>
    %733 = vector.broadcast %732 : vector<16x1xf32> to vector<16x16xf32>
    %734 = arith.subf %730, %733 : vector<16x16xf32>
    %735 = math.exp %734 : vector<16x16xf32>
    %cst_284 = arith.constant dense<0.000000e+00> : vector<16xf32>
    %736 = vector.multi_reduction <add>, %735, %cst_284 [1] : vector<16x16xf32> to vector<16xf32>
    %737 = vector.shape_cast %736 : vector<16xf32> to vector<16x1xf32>
    %738 = tpu.reciprocal %737 {approx = true} : vector<16x1xf32> -> vector<16x1xf32>
    %739 = vector.broadcast %738 : vector<16x1xf32> to vector<16x16xf32>
    %740 = arith.mulf %735, %739 : vector<16x16xf32>
    %741 = vector.extract_strided_slice %702 {offsets = [0, 8], sizes = [16, 8], strides = [1, 1]} : vector<16x32xf32> to vector<16x8xf32>
    %cst_285 = arith.constant dense<0.000000e+00> : vector<16x8xf32>
    %742 = tpu.matmul %740, %741, %cst_285 {dimension_numbers = #tpu.dot_dimension_numbers<[1], [0], [0], [1], [0, 0, 1, 1], [], []>} : vector<16x16xf32>, vector<16x8xf32>, vector<16x8xf32> -> vector<16x8xf32>
    %743 = vector.extract_strided_slice %686 {offsets = [8, 0], sizes = [8, 32], strides = [1, 1]} : vector<32x32xf32> to vector<8x32xf32>
    %cst_286 = arith.constant dense<0.000000e+00> : vector<16x32xf32>
    %744 = tpu.matmul %742, %743, %cst_286 {dimension_numbers = #tpu.dot_dimension_numbers<[1], [0], [0], [1], [0, 0, 1, 1], [], []>} : vector<16x8xf32>, vector<8x32xf32>, vector<16x32xf32> -> vector<16x32xf32>
    %745 = arith.addf %724, %744 : vector<16x32xf32>
    %746 = vector.extract_strided_slice %699 {offsets = [0, 16], sizes = [16, 8], strides = [1, 1]} : vector<16x32xf32> to vector<16x8xf32>
    %747 = vector.extract_strided_slice %701 {offsets = [0, 16], sizes = [16, 8], strides = [1, 1]} : vector<16x32xf32> to vector<16x8xf32>
    %cst_287 = arith.constant dense<0.000000e+00> : vector<16x16xf32>
    %748 = tpu.matmul %746, %747, %cst_287 {dimension_numbers = #tpu.dot_dimension_numbers<[1], [1], [0], [0], [0, 0, 1, 0], [], []>} : vector<16x8xf32>, vector<16x8xf32>, vector<16x16xf32> -> vector<16x16xf32>
    %749 = vector.extract_strided_slice %2 {offsets = [2, 0, 0], sizes = [1, 16, 16], strides = [1, 1, 1]} : vector<4x16x16xf32> to vector<1x16x16xf32>
    %750 = vector.shape_cast %749 : vector<1x16x16xf32> to vector<16x16xf32>
    %751 = arith.addf %748, %750 : vector<16x16xf32>
    %cst_288 = arith.constant dense<0xFF800000> : vector<16xf32>
    %752 = vector.multi_reduction <maximumf>, %751, %cst_288 [1] : vector<16x16xf32> to vector<16xf32>
    %753 = vector.shape_cast %752 : vector<16xf32> to vector<16x1xf32>
    %754 = vector.broadcast %753 : vector<16x1xf32> to vector<16x16xf32>
    %755 = arith.subf %751, %754 : vector<16x16xf32>
    %756 = math.exp %755 : vector<16x16xf32>
    %cst_289 = arith.constant dense<0.000000e+00> : vector<16xf32>
    %757 = vector.multi_reduction <add>, %756, %cst_289 [1] : vector<16x16xf32> to vector<16xf32>
    %758 = vector.shape_cast %757 : vector<16xf32> to vector<16x1xf32>
    %759 = tpu.reciprocal %758 {approx = true} : vector<16x1xf32> -> vector<16x1xf32>
    %760 = vector.broadcast %759 : vector<16x1xf32> to vector<16x16xf32>
    %761 = arith.mulf %756, %760 : vector<16x16xf32>
    %762 = vector.extract_strided_slice %702 {offsets = [0, 16], sizes = [16, 8], strides = [1, 1]} : vector<16x32xf32> to vector<16x8xf32>
    %cst_290 = arith.constant dense<0.000000e+00> : vector<16x8xf32>
    %763 = tpu.matmul %761, %762, %cst_290 {dimension_numbers = #tpu.dot_dimension_numbers<[1], [0], [0], [1], [0, 0, 1, 1], [], []>} : vector<16x16xf32>, vector<16x8xf32>, vector<16x8xf32> -> vector<16x8xf32>
    %764 = vector.extract_strided_slice %686 {offsets = [16, 0], sizes = [8, 32], strides = [1, 1]} : vector<32x32xf32> to vector<8x32xf32>
    %cst_291 = arith.constant dense<0.000000e+00> : vector<16x32xf32>
    %765 = tpu.matmul %763, %764, %cst_291 {dimension_numbers = #tpu.dot_dimension_numbers<[1], [0], [0], [1], [0, 0, 1, 1], [], []>} : vector<16x8xf32>, vector<8x32xf32>, vector<16x32xf32> -> vector<16x32xf32>
    %766 = arith.addf %745, %765 : vector<16x32xf32>
    %767 = vector.extract_strided_slice %699 {offsets = [0, 24], sizes = [16, 8], strides = [1, 1]} : vector<16x32xf32> to vector<16x8xf32>
    %768 = vector.extract_strided_slice %701 {offsets = [0, 24], sizes = [16, 8], strides = [1, 1]} : vector<16x32xf32> to vector<16x8xf32>
    %cst_292 = arith.constant dense<0.000000e+00> : vector<16x16xf32>
    %769 = tpu.matmul %767, %768, %cst_292 {dimension_numbers = #tpu.dot_dimension_numbers<[1], [1], [0], [0], [0, 0, 1, 0], [], []>} : vector<16x8xf32>, vector<16x8xf32>, vector<16x16xf32> -> vector<16x16xf32>
    %770 = vector.extract_strided_slice %2 {offsets = [3, 0, 0], sizes = [1, 16, 16], strides = [1, 1, 1]} : vector<4x16x16xf32> to vector<1x16x16xf32>
    %771 = vector.shape_cast %770 : vector<1x16x16xf32> to vector<16x16xf32>
    %772 = arith.addf %769, %771 : vector<16x16xf32>
    %cst_293 = arith.constant dense<0xFF800000> : vector<16xf32>
    %773 = vector.multi_reduction <maximumf>, %772, %cst_293 [1] : vector<16x16xf32> to vector<16xf32>
    %774 = vector.shape_cast %773 : vector<16xf32> to vector<16x1xf32>
    %775 = vector.broadcast %774 : vector<16x1xf32> to vector<16x16xf32>
    %776 = arith.subf %772, %775 : vector<16x16xf32>
    %777 = math.exp %776 : vector<16x16xf32>
    %cst_294 = arith.constant dense<0.000000e+00> : vector<16xf32>
    %778 = vector.multi_reduction <add>, %777, %cst_294 [1] : vector<16x16xf32> to vector<16xf32>
    %779 = vector.shape_cast %778 : vector<16xf32> to vector<16x1xf32>
    %780 = tpu.reciprocal %779 {approx = true} : vector<16x1xf32> -> vector<16x1xf32>
    %781 = vector.broadcast %780 : vector<16x1xf32> to vector<16x16xf32>
    %782 = arith.mulf %777, %781 : vector<16x16xf32>
    %783 = vector.extract_strided_slice %702 {offsets = [0, 24], sizes = [16, 8], strides = [1, 1]} : vector<16x32xf32> to vector<16x8xf32>
    %cst_295 = arith.constant dense<0.000000e+00> : vector<16x8xf32>
    %784 = tpu.matmul %782, %783, %cst_295 {dimension_numbers = #tpu.dot_dimension_numbers<[1], [0], [0], [1], [0, 0, 1, 1], [], []>} : vector<16x16xf32>, vector<16x8xf32>, vector<16x8xf32> -> vector<16x8xf32>
    %785 = vector.extract_strided_slice %686 {offsets = [24, 0], sizes = [8, 32], strides = [1, 1]} : vector<32x32xf32> to vector<8x32xf32>
    %cst_296 = arith.constant dense<0.000000e+00> : vector<16x32xf32>
    %786 = tpu.matmul %784, %785, %cst_296 {dimension_numbers = #tpu.dot_dimension_numbers<[1], [0], [0], [1], [0, 0, 1, 1], [], []>} : vector<16x8xf32>, vector<8x32xf32>, vector<16x32xf32> -> vector<16x32xf32>
    %787 = arith.addf %766, %786 : vector<16x32xf32>
    %788 = arith.addf %678, %787 : vector<16x32xf32>
    %c1_297 = arith.constant 1 : index
    %c0_298 = arith.constant 0 : index
    %c0_299 = arith.constant 0 : index
    %789 = vector.load %arg20[%c1_297, %c0_298, %c0_299] : memref<2x1x32xf32, #tpu.memory_space<vmem>>, vector<1x1x32xf32>
    %790 = vector.shape_cast %789 : vector<1x1x32xf32> to vector<1x32xf32>
    %c1_300 = arith.constant 1 : index
    %c0_301 = arith.constant 0 : index
    %c0_302 = arith.constant 0 : index
    %791 = vector.load %arg21[%c1_300, %c0_301, %c0_302] : memref<2x32x128xf32, #tpu.memory_space<vmem>>, vector<1x32x128xf32>
    %792 = vector.shape_cast %791 : vector<1x32x128xf32> to vector<32x128xf32>
    %c1_303 = arith.constant 1 : index
    %c0_304 = arith.constant 0 : index
    %c0_305 = arith.constant 0 : index
    %793 = vector.load %arg22[%c1_303, %c0_304, %c0_305] : memref<2x64x32xf32, #tpu.memory_space<vmem>>, vector<1x64x32xf32>
    %794 = vector.shape_cast %793 : vector<1x64x32xf32> to vector<64x32xf32>
    %795 = arith.mulf %788, %788 : vector<16x32xf32>
    %cst_306 = arith.constant dense<0.000000e+00> : vector<16xf32>
    %796 = vector.multi_reduction <add>, %795, %cst_306 [1] : vector<16x32xf32> to vector<16xf32>
    %797 = vector.shape_cast %796 : vector<16xf32> to vector<16x1xf32>
    %cst_307 = arith.constant 3.200000e+01 : f32
    %798 = vector.broadcast %cst_307 : f32 to vector<16x1xf32>
    %799 = arith.divf %797, %798 : vector<16x1xf32>
    %cst_308 = arith.constant 9.99999997E-7 : f32
    %800 = vector.broadcast %cst_308 : f32 to vector<16x1xf32>
    %801 = arith.addf %799, %800 : vector<16x1xf32>
    %802 = math.rsqrt %801 : vector<16x1xf32>
    %803 = vector.broadcast %802 : vector<16x1xf32> to vector<16x32xf32>
    %804 = arith.mulf %788, %803 : vector<16x32xf32>
    %805 = vector.broadcast %790 : vector<1x32xf32> to vector<16x32xf32>
    %806 = arith.mulf %804, %805 : vector<16x32xf32>
    %cst_309 = arith.constant dense<0.000000e+00> : vector<16x128xf32>
    %807 = tpu.matmul %806, %792, %cst_309 {dimension_numbers = #tpu.dot_dimension_numbers<[1], [0], [0], [1], [0, 0, 1, 1], [], []>} : vector<16x32xf32>, vector<32x128xf32>, vector<16x128xf32> -> vector<16x128xf32>
    %808 = vector.extract_strided_slice %807 {offsets = [0, 0], sizes = [16, 64], strides = [1, 1]} : vector<16x128xf32> to vector<16x64xf32>
    %809 = vector.extract_strided_slice %807 {offsets = [0, 64], sizes = [16, 64], strides = [1, 1]} : vector<16x128xf32> to vector<16x64xf32>
    %cst_310 = arith.constant 5.000000e-01 : f32
    %810 = vector.broadcast %cst_310 : f32 to vector<16x64xf32>
    %811 = arith.mulf %810, %808 : vector<16x64xf32>
    %cst_311 = arith.constant 4.471500e-02 : f32
    %812 = vector.broadcast %cst_311 : f32 to vector<16x64xf32>
    %813 = arith.mulf %812, %808 : vector<16x64xf32>
    %814 = arith.mulf %813, %808 : vector<16x64xf32>
    %815 = arith.mulf %814, %808 : vector<16x64xf32>
    %816 = arith.addf %808, %815 : vector<16x64xf32>
    %cst_312 = arith.constant 0.797884583 : f32
    %817 = vector.broadcast %cst_312 : f32 to vector<16x64xf32>
    %818 = arith.mulf %817, %816 : vector<16x64xf32>
    %819 = math.tanh %818 : vector<16x64xf32>
    %cst_313 = arith.constant 1.000000e+00 : f32
    %820 = vector.broadcast %cst_313 : f32 to vector<16x64xf32>
    %821 = arith.addf %820, %819 : vector<16x64xf32>
    %822 = arith.mulf %811, %821 : vector<16x64xf32>
    %823 = arith.mulf %822, %809 : vector<16x64xf32>
    %cst_314 = arith.constant dense<0.000000e+00> : vector<16x32xf32>
    %824 = tpu.matmul %823, %794, %cst_314 {dimension_numbers = #tpu.dot_dimension_numbers<[1], [0], [0], [1], [0, 0, 1, 1], [], []>} : vector<16x64xf32>, vector<64x32xf32>, vector<16x32xf32> -> vector<16x32xf32>
    %825 = arith.addf %788, %824 : vector<16x32xf32>
    %c0_315 = arith.constant 0 : index
    %c0_316 = arith.constant 0 : index
    %826 = vector.load %arg24[%c0_315, %c0_316] : memref<1x32xf32, #tpu.memory_space<vmem>>, vector<1x32xf32>
    %827 = arith.mulf %825, %825 : vector<16x32xf32>
    %cst_317 = arith.constant dense<0.000000e+00> : vector<16xf32>
    %828 = vector.multi_reduction <add>, %827, %cst_317 [1] : vector<16x32xf32> to vector<16xf32>
    %829 = vector.shape_cast %828 : vector<16xf32> to vector<16x1xf32>
    %cst_318 = arith.constant 3.200000e+01 : f32
    %830 = vector.broadcast %cst_318 : f32 to vector<16x1xf32>
    %831 = arith.divf %829, %830 : vector<16x1xf32>
    %cst_319 = arith.constant 9.99999997E-7 : f32
    %832 = vector.broadcast %cst_319 : f32 to vector<16x1xf32>
    %833 = arith.addf %831, %832 : vector<16x1xf32>
    %834 = math.rsqrt %833 : vector<16x1xf32>
    %835 = vector.broadcast %834 : vector<16x1xf32> to vector<16x32xf32>
    %836 = arith.mulf %825, %835 : vector<16x32xf32>
    %837 = vector.broadcast %826 : vector<1x32xf32> to vector<16x32xf32>
    %838 = arith.mulf %836, %837 : vector<16x32xf32>
    %c0_320 = arith.constant 0 : index
    %c0_321 = arith.constant 0 : index
    %839 = vector.load %arg25[%c0_320, %c0_321] : memref<32x128xf32, #tpu.memory_space<vmem>>, vector<32x128xf32>
    %cst_322 = arith.constant dense<0.000000e+00> : vector<16x128xf32>
    %840 = tpu.matmul %838, %839, %cst_322 {dimension_numbers = #tpu.dot_dimension_numbers<[1], [0], [0], [1], [0, 0, 1, 1], [], []>} : vector<16x32xf32>, vector<32x128xf32>, vector<16x128xf32> -> vector<16x128xf32>
    %c0_323 = arith.constant 0 : index
    %c0_324 = arith.constant 0 : index
    %841 = vector.load %arg26[%c0_323, %c0_324] : memref<16x128xf32, #tpu.memory_space<vmem>>, vector<16x128xf32>
    tpu.vector_store %arg26[%c0_323, %c0_324], %840 {strides = array<i32>} : memref<16x128xf32, #tpu.memory_space<vmem>>, vector<16x128xf32>,
    return
  }
}

</mosaic_0001>

<llo_original>
// kernel: forward.1
$region0: #{forward.1}
  #allocation0 [shape = 'u32[]', space=smem, size = 0x4, offset = 0x4, fixed_abs, tag = 'smem constant byte address 0x4 - core index']
  #allocation1 [shape = 'u32[144,128]{1,0:T(1,128)}', space=vmem, size = 0x12000, scoped, tag = 'internal scratch']
  %s0 = inlined_call_operand.vmem [shape: f32[16,32], index: 0, kind: input, shape index: {}]
  %s1 = inlined_call_operand.vmem [shape: f32[16,32], index: 1, kind: input, shape index: {}]
  %s2 = inlined_call_operand.vmem [shape: f32[4,16,16], index: 2, kind: input, shape index: {}]
  %s3 = inlined_call_operand.vmem [shape: f32[4,16,16], index: 3, kind: input, shape index: {}]
  %s4 = inlined_call_operand.vmem [shape: f32[4,16,16], index: 4, kind: input, shape index: {}]
  %s5 = inlined_call_operand.vmem [shape: f32[2,1,32], index: 5, kind: input, shape index: {}]
  %s6 = inlined_call_operand.vmem [shape: f32[2,32,32], index: 6, kind: input, shape index: {}]
  %s7 = inlined_call_operand.vmem [shape: f32[2,32,64], index: 7, kind: input, shape index: {}]
  %s8 = inlined_call_operand.vmem [shape: f32[2,32,32], index: 8, kind: input, shape index: {}]
  %s9 = inlined_call_operand.vmem [shape: f32[2,1,32], index: 9, kind: input, shape index: {}]
  %s10 = inlined_call_operand.vmem [shape: f32[2,32,128], index: 10, kind: input, shape index: {}]
  %s11 = inlined_call_operand.vmem [shape: f32[2,64,32], index: 11, kind: input, shape index: {}]
  %s12 = inlined_call_operand.vmem [shape: f32[2,1,32], index: 12, kind: input, shape index: {}]
  %s13 = inlined_call_operand.vmem [shape: f32[2,32,32], index: 13, kind: input, shape index: {}]
  %s14 = inlined_call_operand.vmem [shape: f32[2,32,64], index: 14, kind: input, shape index: {}]
  %s15 = inlined_call_operand.vmem [shape: f32[2,32,32], index: 15, kind: input, shape index: {}]
  %s16 = inlined_call_operand.vmem [shape: f32[2,1,32], index: 16, kind: input, shape index: {}]
  %s17 = inlined_call_operand.vmem [shape: f32[2,32,32], index: 17, kind: input, shape index: {}]
  %s18 = inlined_call_operand.vmem [shape: f32[2,32,64], index: 18, kind: input, shape index: {}]
  %s19 = inlined_call_operand.vmem [shape: f32[2,32,32], index: 19, kind: input, shape index: {}]
  %s20 = inlined_call_operand.vmem [shape: f32[2,1,32], index: 20, kind: input, shape index: {}]
  %s21 = inlined_call_operand.vmem [shape: f32[2,32,128], index: 21, kind: input, shape index: {}]
  %s22 = inlined_call_operand.vmem [shape: f32[2,64,32], index: 22, kind: input, shape index: {}]
  %s23 = inlined_call_operand.vmem [shape: f32[1,32], index: 23, kind: input, shape index: {}]
  %s24 = inlined_call_operand.vmem [shape: f32[1,32], index: 24, kind: input, shape index: {}]
  %s25 = inlined_call_operand.vmem [shape: f32[32,128], index: 25, kind: input, shape index: {}]
  %s26 = inlined_call_operand.vmem [shape: f32[16,128], index: 26, kind: output, shape index: {}]
  %s27 = sld [smem:[#allocation0]]
  $region114: #{forward.1} parent=0
    _
  %s29 = ssub.s32 1, %s27
  %s30 = scalar_select 0, %s29, %s27
  // Predicated region
  $region2: #{forward.1} parent=0 // pred_check
    _
  $region3: #{forward.1} parent=0 // pred_check_branch
    %32 = sbr.rel (0) target = $region5
  $region4: #{forward.1} parent=0 // pred_region
    _
  $region5: #{forward.1} parent=0 // pred_fallthru
    _
  // Predicated region
  $region6: #{forward.1} parent=0 // pred_check
    _
  $region7: #{forward.1} parent=0 // pred_check_branch
    %34 = sbr.rel (0) target = $region9
  $region8: #{forward.1} parent=0 // pred_region
    _
  $region9: #{forward.1} parent=0 // pred_fallthru
    _
  // Predicated region
  $region10: #{forward.1} parent=0 // pred_check
    _
  $region11: #{forward.1} parent=0 // pred_check_branch
    %36 = sbr.rel (0) target = $region13
  $region12: #{forward.1} parent=0 // pred_region
    _
  $region13: #{forward.1} parent=0 // pred_fallthru
    _
  // Predicated region
  $region14: #{forward.1} parent=0 // pred_check
    _
  $region15: #{forward.1} parent=0 // pred_check_branch
    %38 = sbr.rel (0) target = $region17
  $region16: #{forward.1} parent=0 // pred_region
    _
  $region17: #{forward.1} parent=0 // pred_fallthru
    _
  // Predicated region
  $region18: #{forward.1} parent=0 // pred_check
    _
  $region19: #{forward.1} parent=0 // pred_check_branch
    %40 = sbr.rel (0) target = $region21
  $region20: #{forward.1} parent=0 // pred_region
    _
  $region21: #{forward.1} parent=0 // pred_fallthru
    _
  // Predicated region
  $region22: #{forward.1} parent=0 // pred_check
    _
  $region23: #{forward.1} parent=0 // pred_check_branch
    %42 = sbr.rel (0) target = $region25
  $region24: #{forward.1} parent=0 // pred_region
    _
  $region25: #{forward.1} parent=0 // pred_fallthru
    _
  // Predicated region
  $region26: #{forward.1} parent=0 // pred_check
    _
  $region27: #{forward.1} parent=0 // pred_check_branch
    %44 = sbr.rel (0) target = $region29
  $region28: #{forward.1} parent=0 // pred_region
    _
  $region29: #{forward.1} parent=0 // pred_fallthru
    _
  // Predicated region
  $region30: #{forward.1} parent=0 // pred_check
    _
  $region31: #{forward.1} parent=0 // pred_check_branch
    %46 = sbr.rel (0) target = $region33
  $region32: #{forward.1} parent=0 // pred_region
    _
  $region33: #{forward.1} parent=0 // pred_fallthru
    _
  // Predicated region
  $region34: #{forward.1} parent=0 // pred_check
    _
  $region35: #{forward.1} parent=0 // pred_check_branch
    %48 = sbr.rel (0) target = $region37
  $region36: #{forward.1} parent=0 // pred_region
    _
  $region37: #{forward.1} parent=0 // pred_fallthru
    _
  // Predicated region
  $region38: #{forward.1} parent=0 // pred_check
    _
  $region39: #{forward.1} parent=0 // pred_check_branch
    %50 = sbr.rel (0) target = $region41
  $region40: #{forward.1} parent=0 // pred_region
    _
  $region41: #{forward.1} parent=0 // pred_fallthru
    _
  // Predicated region
  $region42: #{forward.1} parent=0 // pred_check
    _
  $region43: #{forward.1} parent=0 // pred_check_branch
    %52 = sbr.rel (0) target = $region45
  $region44: #{forward.1} parent=0 // pred_region
    _
  $region45: #{forward.1} parent=0 // pred_fallthru
    _
  // Predicated region
  $region46: #{forward.1} parent=0 // pred_check
    _
  $region47: #{forward.1} parent=0 // pred_check_branch
    %54 = sbr.rel (0) target = $region49
  $region48: #{forward.1} parent=0 // pred_region
    _
  $region49: #{forward.1} parent=0 // pred_fallthru
    _
  // Predicated region
  $region50: #{forward.1} parent=0 // pred_check
    _
  $region51: #{forward.1} parent=0 // pred_check_branch
    %56 = sbr.rel (0) target = $region53
  $region52: #{forward.1} parent=0 // pred_region
    _
  $region53: #{forward.1} parent=0 // pred_fallthru
    _
  // Predicated region
  $region54: #{forward.1} parent=0 // pred_check
    _
  $region55: #{forward.1} parent=0 // pred_check_branch
    %58 = sbr.rel (0) target = $region57
  $region56: #{forward.1} parent=0 // pred_region
    _
  $region57: #{forward.1} parent=0 // pred_fallthru
    _
  // Predicated region
  $region58: #{forward.1} parent=0 // pred_check
    _
  $region59: #{forward.1} parent=0 // pred_check_branch
    %60 = sbr.rel (0) target = $region61
  $region60: #{forward.1} parent=0 // pred_region
    _
  $region61: #{forward.1} parent=0 // pred_fallthru
    _
  // Predicated region
  $region62: #{forward.1} parent=0 // pred_check
    _
  $region63: #{forward.1} parent=0 // pred_check_branch
    %62 = sbr.rel (0) target = $region65
  $region64: #{forward.1} parent=0 // pred_region
    _
  $region65: #{forward.1} parent=0 // pred_fallthru
    _
  // Predicated region
  $region66: #{forward.1} parent=0 // pred_check
    _
  $region67: #{forward.1} parent=0 // pred_check_branch
    %64 = sbr.rel (0) target = $region69
  $region68: #{forward.1} parent=0 // pred_region
    _
  $region69: #{forward.1} parent=0 // pred_fallthru
    _
  // Predicated region
  $region70: #{forward.1} parent=0 // pred_check
    _
  $region71: #{forward.1} parent=0 // pred_check_branch
    %66 = sbr.rel (0) target = $region73
  $region72: #{forward.1} parent=0 // pred_region
    _
  $region73: #{forward.1} parent=0 // pred_fallthru
    _
  // Predicated region
  $region74: #{forward.1} parent=0 // pred_check
    _
  $region75: #{forward.1} parent=0 // pred_check_branch
    %68 = sbr.rel (0) target = $region77
  $region76: #{forward.1} parent=0 // pred_region
    _
  $region77: #{forward.1} parent=0 // pred_fallthru
    _
  // Predicated region
  $region78: #{forward.1} parent=0 // pred_check
    _
  $region79: #{forward.1} parent=0 // pred_check_branch
    %70 = sbr.rel (0) target = $region81
  $region80: #{forward.1} parent=0 // pred_region
    _
  $region81: #{forward.1} parent=0 // pred_fallthru
    _
  // Predicated region
  $region82: #{forward.1} parent=0 // pred_check
    _
  $region83: #{forward.1} parent=0 // pred_check_branch
    %72 = sbr.rel (0) target = $region85
  $region84: #{forward.1} parent=0 // pred_region
    _
  $region85: #{forward.1} parent=0 // pred_fallthru
    _
  // Predicated region
  $region86: #{forward.1} parent=0 // pred_check
    _
  $region87: #{forward.1} parent=0 // pred_check_branch
    %74 = sbr.rel (0) target = $region89
  $region88: #{forward.1} parent=0 // pred_region
    _
  $region89: #{forward.1} parent=0 // pred_fallthru
    _
  // Predicated region
  $region90: #{forward.1} parent=0 // pred_check
    _
  $region91: #{forward.1} parent=0 // pred_check_branch
    %76 = sbr.rel (0) target = $region93
  $region92: #{forward.1} parent=0 // pred_region
    _
  $region93: #{forward.1} parent=0 // pred_fallthru
    _
  // Predicated region
  $region94: #{forward.1} parent=0 // pred_check
    _
  $region95: #{forward.1} parent=0 // pred_check_branch
    %78 = sbr.rel (0) target = $region97
  $region96: #{forward.1} parent=0 // pred_region
    _
  $region97: #{forward.1} parent=0 // pred_fallthru
    _
  // Predicated region
  $region98: #{forward.1} parent=0 // pred_check
    _
  $region99: #{forward.1} parent=0 // pred_check_branch
    %80 = sbr.rel (0) target = $region101
  $region100: #{forward.1} parent=0 // pred_region
    _
  $region101: #{forward.1} parent=0 // pred_fallthru
    _
  // Predicated region
  $region102: #{forward.1} parent=0 // pred_check
    _
  $region103: #{forward.1} parent=0 // pred_check_branch
    %82 = sbr.rel (0) target = $region105
  $region104: #{forward.1} parent=0 // pred_region
    _
  $region105: #{forward.1} parent=0 // pred_fallthru
    _
  %v83 = vld [vmem:[%s2] sm:$0xff]
  %v84 = vld [vmem:[%s2 + $0x8] sm:$0xff]
  %v85 = vld [vmem:[%s2 + $0x10] sm:$0xff]
  %v86 = vld [vmem:[%s2 + $0x18] sm:$0xff]
  %v87 = vld [vmem:[%s2 + $0x20] sm:$0xff]
  %v88 = vld [vmem:[%s2 + $0x28] sm:$0xff]
  %v89 = vld [vmem:[%s2 + $0x30] sm:$0xff]
  %v90 = vld [vmem:[%s2 + $0x38] sm:$0xff]
  %v91 = vld [vmem:[%s3] sm:$0xff]
  %v92 = vld [vmem:[%s3 + $0x8] sm:$0xff]
  %v93 = vld [vmem:[%s3 + $0x10] sm:$0xff]
  %v94 = vld [vmem:[%s3 + $0x18] sm:$0xff]
  %v95 = vld [vmem:[%s3 + $0x20] sm:$0xff]
  %v96 = vld [vmem:[%s3 + $0x28] sm:$0xff]
  %v97 = vld [vmem:[%s3 + $0x30] sm:$0xff]
  %v98 = vld [vmem:[%s3 + $0x38] sm:$0xff]
  %v99 = vld [vmem:[%s4] sm:$0xff]
  %v100 = vld [vmem:[%s4 + $0x8] sm:$0xff]
  %v101 = vld [vmem:[%s4 + $0x10] sm:$0xff]
  %v102 = vld [vmem:[%s4 + $0x18] sm:$0xff]
  %v103 = vld [vmem:[%s4 + $0x20] sm:$0xff]
  %v104 = vld [vmem:[%s4 + $0x28] sm:$0xff]
  %v105 = vld [vmem:[%s4 + $0x30] sm:$0xff]
  %v106 = vld [vmem:[%s4 + $0x38] sm:$0xff]
  %v107 = vld [vmem:[%s0] sm:$0xff]
  %v108 = vld [vmem:[%s0 + $0x8] sm:$0xff]
  %v109 = vld [vmem:[%s5] sm:$0x1]
  %v110 = vld [vmem:[%s6] sm:$0xff]
  %v111 = vld [vmem:[%s6 + $0x8] sm:$0xff]
  %v112 = vld [vmem:[%s6 + $0x10] sm:$0xff]
  %v113 = vld [vmem:[%s6 + $0x18] sm:$0xff]
  %v114 = vld [vmem:[%s7] sm:$0xff]
  %v115 = vld [vmem:[%s7 + $0x8] sm:$0xff]
  %v116 = vld [vmem:[%s7 + $0x10] sm:$0xff]
  %v117 = vld [vmem:[%s7 + $0x18] sm:$0xff]
  %v118 = vld [vmem:[%s8] sm:$0xff]
  %v119 = vld [vmem:[%s8 + $0x8] sm:$0xff]
  %v120 = vld [vmem:[%s8 + $0x10] sm:$0xff]
  %v121 = vld [vmem:[%s8 + $0x18] sm:$0xff]
  %v122 = vmul.f32 %v107, %v107
  %v123 = vmul.f32 %v108, %v108
  %vm124 = vcmask 261120
  %v125 = vsel %vm124, %v122, 0.0
  %126 = vadd.xlane.f32.xlu0 %v125
  %v127 = vpop.xlane.xlu0 %126
  %v128 = vsel %vm124, %v123, 0.0
  %129 = vadd.xlane.f32.xlu0 %v128
  %v130 = vpop.xlane.xlu0 %129
  %v131 = vrcp.pop 32.0
  %v132 = vmul.f32 %v127, %v131
  %v133 = vmul.f32 %v130, %v131
  %v134 = vadd.f32 %v132, 1e-06
  %v135 = vadd.f32 %v133, 1e-06
  %v136 = vrsqrt.pop %v134
  %v137 = vrsqrt.pop %v135
  %v138 = vmul.f32 %v107, %v136
  %v139 = vmul.f32 %v108, %v137
  %v141 = vlaneseq
  %v142 = vshrl.u32 %v141, 7
  %v143 = vsub.s32 0, %v142
  %v144 = vrot.slane %v109, %v143
  %v146 = vmul.f32 %v138, %v144
  %v147 = vmul.f32 %v139, %v144
  %v149 = vsel %vm124, %v146, 0
  %v152 = vsel %vm124, %v147, 0
  %154 = vmatprep.subr.mxu0 0.0
  %155 = vmatpush1.msra.mxu0 %v110
  %156 = vmatprep.subr.mxu0 0.0
  %157 = vmatpush1.msra.mxu0 %v111
  %158 = vmatprep.subr.mxu0 0.0
  %159 = vmatpush1.msra.mxu0 %v112
  %160 = vmatprep.subr.mxu0 0.0
  %161 = vmatpush1.msra.mxu0 %v113
  %162 = vmatprep.subr.mxu0 0.0
  %163 = vmatpush1.msra.mxu0 0.0
  %164 = vmatprep.subr.mxu0 0.0
  %165 = vmatpush1.msra.mxu0 0.0
  %166 = vmatprep.subr.mxu0 0.0
  %167 = vmatpush1.msra.mxu0 0.0
  %168 = vmatprep.subr.mxu0 0.0
  %169 = vmatpush1.msra.mxu0 0.0
  %170 = vmatprep.subr.mxu0 0.0
  %171 = vmatpush1.msra.mxu0 0.0
  %172 = vmatprep.subr.mxu0 0.0
  %173 = vmatpush1.msra.mxu0 0.0
  %174 = vmatprep.subr.mxu0 0.0
  %175 = vmatpush1.msra.mxu0 0.0
  %176 = vmatprep.subr.mxu0 0.0
  %177 = vmatpush1.msra.mxu0 0.0
  %178 = vmatprep.subr.mxu0 0.0
  %179 = vmatpush1.msra.mxu0 0.0
  %180 = vmatprep.subr.mxu0 0.0
  %181 = vmatpush1.msra.mxu0 0.0
  %182 = vmatprep.subr.mxu0 0.0
  %183 = vmatpush1.msra.mxu0 0.0
  %184 = vmatprep.subr.mxu0 0.0
  %185 = vmatpush1.msra.mxu0 0.0
  %186 = vmatprep.subr.mxu0 0.0
  %187 = vmatpush1.msra.mxu0 0.0
  %188 = vmatprep.subr.mxu0 0.0
  %189 = vmatpush1.msra.mxu0 0.0
  %190 = vmatprep.subr.mxu0 0.0
  %191 = vmatpush1.msra.mxu0 0.0
  %192 = vmatprep.subr.mxu0 0.0
  %193 = vmatpush1.msra.mxu0 0.0
  %194 = vmatprep.subr.mxu0 0.0
  %195 = vmatpush1.msra.mxu0 0.0
  %196 = vmatprep.subr.mxu0 0.0
  %197 = vmatpush1.msra.mxu0 0.0
  %198 = vmatprep.subr.mxu0 0.0
  %199 = vmatpush1.msra.mxu0 0.0
  %200 = vmatprep.subr.mxu0 0.0
  %201 = vmatpush1.msra.mxu0 0.0
  %202 = vmatprep.subr.mxu0 0.0
  %203 = vmatpush1.msra.mxu0 0.0
  %204 = vmatprep.subr.mxu0 0.0
  %205 = vmatpush1.msra.mxu0 0.0
  %206 = vmatprep.subr.mxu0 0.0
  %207 = vmatpush1.msra.mxu0 0.0
  %208 = vmatprep.subr.mxu0 0.0
  %209 = vmatpush1.msra.mxu0 0.0
  %210 = vmatprep.subr.mxu0 0.0
  %211 = vmatpush1.msra.mxu0 0.0
  %212 = vmatprep.subr.mxu0 0.0
  %213 = vmatpush1.msra.mxu0 0.0
  %214 = vmatprep.subr.mxu0 0.0
  %215 = vmatpush1.msra.mxu0 0.0
  %216 = vmatprep.subr.mxu0 0.0
  %217 = vmatpush1.msra.mxu0 0.0
  %218 = vmatprep.mubr.f32.mxu0 0.0
  %219 = vmatmul.mubr.f32.gmra.mrb[0].mxu0 %v149
  %v220 = vpop.f32.mrb[0].mxu0
  %v221 = vadd.f32 0.0, %v220
  %v222 = vpop.f32.mrb[0].mxu0
  %223 = vmatprep.mubr.f32.mxu0 0.0
  %224 = vmatmul.mubr.f32.gmra.mrb[0].mxu0 %v152
  %v225 = vpop.f32.mrb[0].mxu0
  %v226 = vadd.f32 0.0, %v225
  %v227 = vpop.f32.mrb[0].mxu0
  %228 = vdwg.mxu0
  %229 = vmatprep.subr.mxu0 0.0
  %230 = vmatpush1.msra.mxu0 %v114
  %231 = vmatprep.subr.mxu0 0.0
  %232 = vmatpush1.msra.mxu0 %v115
  %233 = vmatprep.subr.mxu0 0.0
  %234 = vmatpush1.msra.mxu0 %v116
  %235 = vmatprep.subr.mxu0 0.0
  %236 = vmatpush1.msra.mxu0 %v117
  %237 = vmatprep.subr.mxu0 0.0
  %238 = vmatpush1.msra.mxu0 0.0
  %239 = vmatprep.subr.mxu0 0.0
  %240 = vmatpush1.msra.mxu0 0.0
  %241 = vmatprep.subr.mxu0 0.0
  %242 = vmatpush1.msra.mxu0 0.0
  %243 = vmatprep.subr.mxu0 0.0
  %244 = vmatpush1.msra.mxu0 0.0
  %245 = vmatprep.subr.mxu0 0.0
  %246 = vmatpush1.msra.mxu0 0.0
  %247 = vmatprep.subr.mxu0 0.0
  %248 = vmatpush1.msra.mxu0 0.0
  %249 = vmatprep.subr.mxu0 0.0
  %250 = vmatpush1.msra.mxu0 0.0
  %251 = vmatprep.subr.mxu0 0.0
  %252 = vmatpush1.msra.mxu0 0.0
  %253 = vmatprep.subr.mxu0 0.0
  %254 = vmatpush1.msra.mxu0 0.0
  %255 = vmatprep.subr.mxu0 0.0
  %256 = vmatpush1.msra.mxu0 0.0
  %257 = vmatprep.subr.mxu0 0.0
  %258 = vmatpush1.msra.mxu0 0.0
  %259 = vmatprep.subr.mxu0 0.0
  %260 = vmatpush1.msra.mxu0 0.0
  %261 = vmatprep.subr.mxu0 0.0
  %262 = vmatpush1.msra.mxu0 0.0
  %263 = vmatprep.subr.mxu0 0.0
  %264 = vmatpush1.msra.mxu0 0.0
  %265 = vmatprep.subr.mxu0 0.0
  %266 = vmatpush1.msra.mxu0 0.0
  %267 = vmatprep.subr.mxu0 0.0
  %268 = vmatpush1.msra.mxu0 0.0
  %269 = vmatprep.subr.mxu0 0.0
  %270 = vmatpush1.msra.mxu0 0.0
  %271 = vmatprep.subr.mxu0 0.0
  %272 = vmatpush1.msra.mxu0 0.0
  %273 = vmatprep.subr.mxu0 0.0
  %274 = vmatpush1.msra.mxu0 0.0
  %275 = vmatprep.subr.mxu0 0.0
  %276 = vmatpush1.msra.mxu0 0.0
  %277 = vmatprep.subr.mxu0 0.0
  %278 = vmatpush1.msra.mxu0 0.0
  %279 = vmatprep.subr.mxu0 0.0
  %280 = vmatpush1.msra.mxu0 0.0
  %281 = vmatprep.subr.mxu0 0.0
  %282 = vmatpush1.msra.mxu0 0.0
  %283 = vmatprep.subr.mxu0 0.0
  %284 = vmatpush1.msra.mxu0 0.0
  %285 = vmatprep.subr.mxu0 0.0
  %286 = vmatpush1.msra.mxu0 0.0
  %287 = vmatprep.subr.mxu0 0.0
  %288 = vmatpush1.msra.mxu0 0.0
  %289 = vmatprep.subr.mxu0 0.0
  %290 = vmatpush1.msra.mxu0 0.0
  %291 = vmatprep.subr.mxu0 0.0
  %292 = vmatpush1.msra.mxu0 0.0
  %293 = vmatprep.mubr.f32.mxu0 0.0
  %294 = vmatmul.mubr.f32.gmra.mrb[0].mxu0 %v149
  %v295 = vpop.f32.mrb[0].mxu0
  %v296 = vadd.f32 0.0, %v295
  %v297 = vpop.f32.mrb[0].mxu0
  %298 = vmatprep.mubr.f32.mxu0 0.0
  %299 = vmatmul.mubr.f32.gmra.mrb[0].mxu0 %v152
  %v300 = vpop.f32.mrb[0].mxu0
  %v301 = vadd.f32 0.0, %v300
  %v302 = vpop.f32.mrb[0].mxu0
  %303 = vdwg.mxu0
  %vm304 = vcmask 64512
  %v306 = vsel %vm304, %v221, 0
  %v309 = vsel %vm304, %v226, 0
  %v312 = vsel %vm304, %v296, 0
  %v315 = vsel %vm304, %v301, 0
  %317 = vmatprep.subr.mxu0 0.0
  %318 = vmatpush1.xpose.msra.mxu0 %v312
  %319 = vmatprep.subr.mxu0 0.0
  %320 = vmatpush1.xpose.msra.mxu0 %v315
  %321 = vmatprep.subr.mxu0 0.0
  %322 = vmatpush1.xpose.msra.mxu0 0.0
  %323 = vmatprep.subr.mxu0 0.0
  %324 = vmatpush1.xpose.msra.mxu0 0.0
  %325 = vmatprep.subr.mxu0 0.0
  %326 = vmatpush1.xpose.msra.mxu0 0.0
  %327 = vmatprep.subr.mxu0 0.0
  %328 = vmatpush1.xpose.msra.mxu0 0.0
  %329 = vmatprep.subr.mxu0 0.0
  %330 = vmatpush1.xpose.msra.mxu0 0.0
  %331 = vmatprep.subr.mxu0 0.0
  %332 = vmatpush1.xpose.msra.mxu0 0.0
  %333 = vmatprep.subr.mxu0 0.0
  %334 = vmatpush1.xpose.msra.mxu0 0.0
  %335 = vmatprep.subr.mxu0 0.0
  %336 = vmatpush1.xpose.msra.mxu0 0.0
  %337 = vmatprep.subr.mxu0 0.0
  %338 = vmatpush1.xpose.msra.mxu0 0.0
  %339 = vmatprep.subr.mxu0 0.0
  %340 = vmatpush1.xpose.msra.mxu0 0.0
  %341 = vmatprep.subr.mxu0 0.0
  %342 = vmatpush1.xpose.msra.mxu0 0.0
  %343 = vmatprep.subr.mxu0 0.0
  %344 = vmatpush1.xpose.msra.mxu0 0.0
  %345 = vmatprep.subr.mxu0 0.0
  %346 = vmatpush1.xpose.msra.mxu0 0.0
  %347 = vmatprep.subr.mxu0 0.0
  %348 = vmatpush1.xpose.msra.mxu0 0.0
  %349 = vmatprep.subr.mxu0 0.0
  %350 = vmatpush1.xpose.msra.mxu0 0.0
  %351 = vmatprep.subr.mxu0 0.0
  %352 = vmatpush1.xpose.msra.mxu0 0.0
  %353 = vmatprep.subr.mxu0 0.0
  %354 = vmatpush1.xpose.msra.mxu0 0.0
  %355 = vmatprep.subr.mxu0 0.0
  %356 = vmatpush1.xpose.msra.mxu0 0.0
  %357 = vmatprep.subr.mxu0 0.0
  %358 = vmatpush1.xpose.msra.mxu0 0.0
  %359 = vmatprep.subr.mxu0 0.0
  %360 = vmatpush1.xpose.msra.mxu0 0.0
  %361 = vmatprep.subr.mxu0 0.0
  %362 = vmatpush1.xpose.msra.mxu0 0.0
  %363 = vmatprep.subr.mxu0 0.0
  %364 = vmatpush1.xpose.msra.mxu0 0.0
  %365 = vmatprep.subr.mxu0 0.0
  %366 = vmatpush1.xpose.msra.mxu0 0.0
  %367 = vmatprep.subr.mxu0 0.0
  %368 = vmatpush1.xpose.msra.mxu0 0.0
  %369 = vmatprep.subr.mxu0 0.0
  %370 = vmatpush1.xpose.msra.mxu0 0.0
  %371 = vmatprep.subr.mxu0 0.0
  %372 = vmatpush1.xpose.msra.mxu0 0.0
  %373 = vmatprep.subr.mxu0 0.0
  %374 = vmatpush1.xpose.msra.mxu0 0.0
  %375 = vmatprep.subr.mxu0 0.0
  %376 = vmatpush1.xpose.msra.mxu0 0.0
  %377 = vmatprep.subr.mxu0 0.0
  %378 = vmatpush1.xpose.msra.mxu0 0.0
  %379 = vmatprep.subr.mxu0 0.0
  %380 = vmatpush1.xpose.msra.mxu0 0.0
  %381 = vmatprep.mubr.f32.mxu0 0.0
  %382 = vmatmul.mubr.f32.gmra.mrb[0].mxu0 %v306
  %v383 = vpop.f32.mrb[0].mxu0
  %v384 = vadd.f32 %v83, %v383
  %v385 = vpop.f32.mrb[0].mxu0
  %386 = vmatprep.mubr.f32.mxu0 0.0
  %387 = vmatmul.mubr.f32.gmra.mrb[0].mxu0 %v309
  %v388 = vpop.f32.mrb[0].mxu0
  %v389 = vadd.f32 %v84, %v388
  %v390 = vpop.f32.mrb[0].mxu0
  %391 = vdwg.mxu0
  %vm392 = vcmask 130048
  %v393 = vsel %vm392, %v384, -inf
  %394 = vmax.xlane.f32.xlu0 %v393
  %v395 = vpop.xlane.xlu0 %394
  %v396 = vsel %vm392, %v389, -inf
  %397 = vmax.xlane.f32.xlu0 %v396
  %v398 = vpop.xlane.xlu0 %397
  %v399 = vsub.f32 %v384, %v395
  %v400 = vsub.f32 %v389, %v398
  %v401 = vmul.f32 %v399, 1.442695
  %v402 = vpow.pop %v401
  %v403 = vmul.f32 %v400, 1.442695
  %v404 = vpow.pop %v403
  %v405 = vsel %vm392, %v402, 0.0
  %406 = vadd.xlane.f32.xlu0 %v405
  %v407 = vpop.xlane.xlu0 %406
  %v408 = vsel %vm392, %v404, 0.0
  %409 = vadd.xlane.f32.xlu0 %v408
  %v410 = vpop.xlane.xlu0 %409
  %v411 = vrcp.pop %v407
  %v412 = vrcp.pop %v410
  %v413 = vmul.f32 %v402, %v411
  %v414 = vmul.f32 %v404, %v412
  %415 = vrot.lane.b32.xlu0 %v296, 96
  %v416 = vpop.permute.xlu0 %415
  %417 = vrot.lane.b32.xlu0 %v301, 96
  %v418 = vpop.permute.xlu0 %417
  %v422 = vsel %vm392, %v413, 0
  %v425 = vsel %vm392, %v414, 0
  %427 = vmatprep.subr.mxu0 0.0
  %428 = vmatpush1.msra.mxu0 %v416
  %429 = vmatprep.subr.mxu0 0.0
  %430 = vmatpush1.msra.mxu0 %v418
  %431 = vmatprep.subr.mxu0 0.0
  %432 = vmatpush1.msra.mxu0 0.0
  %433 = vmatprep.subr.mxu0 0.0
  %434 = vmatpush1.msra.mxu0 0.0
  %435 = vmatprep.subr.mxu0 0.0
  %436 = vmatpush1.msra.mxu0 0.0
  %437 = vmatprep.subr.mxu0 0.0
  %438 = vmatpush1.msra.mxu0 0.0
  %439 = vmatprep.subr.mxu0 0.0
  %440 = vmatpush1.msra.mxu0 0.0
  %441 = vmatprep.subr.mxu0 0.0
  %442 = vmatpush1.msra.mxu0 0.0
  %443 = vmatprep.subr.mxu0 0.0
  %444 = vmatpush1.msra.mxu0 0.0
  %445 = vmatprep.subr.mxu0 0.0
  %446 = vmatpush1.msra.mxu0 0.0
  %447 = vmatprep.subr.mxu0 0.0
  %448 = vmatpush1.msra.mxu0 0.0
  %449 = vmatprep.subr.mxu0 0.0
  %450 = vmatpush1.msra.mxu0 0.0
  %451 = vmatprep.subr.mxu0 0.0
  %452 = vmatpush1.msra.mxu0 0.0
  %453 = vmatprep.subr.mxu0 0.0
  %454 = vmatpush1.msra.mxu0 0.0
  %455 = vmatprep.subr.mxu0 0.0
  %456 = vmatpush1.msra.mxu0 0.0
  %457 = vmatprep.subr.mxu0 0.0
  %458 = vmatpush1.msra.mxu0 0.0
  %459 = vmatprep.subr.mxu0 0.0
  %460 = vmatpush1.msra.mxu0 0.0
  %461 = vmatprep.subr.mxu0 0.0
  %462 = vmatpush1.msra.mxu0 0.0
  %463 = vmatprep.subr.mxu0 0.0
  %464 = vmatpush1.msra.mxu0 0.0
  %465 = vmatprep.subr.mxu0 0.0
  %466 = vmatpush1.msra.mxu0 0.0
  %467 = vmatprep.subr.mxu0 0.0
  %468 = vmatpush1.msra.mxu0 0.0
  %469 = vmatprep.subr.mxu0 0.0
  %470 = vmatpush1.msra.mxu0 0.0
  %471 = vmatprep.subr.mxu0 0.0
  %472 = vmatpush1.msra.mxu0 0.0
  %473 = vmatprep.subr.mxu0 0.0
  %474 = vmatpush1.msra.mxu0 0.0
  %475 = vmatprep.subr.mxu0 0.0
  %476 = vmatpush1.msra.mxu0 0.0
  %477 = vmatprep.subr.mxu0 0.0
  %478 = vmatpush1.msra.mxu0 0.0
  %479 = vmatprep.subr.mxu0 0.0
  %480 = vmatpush1.msra.mxu0 0.0
  %481 = vmatprep.subr.mxu0 0.0
  %482 = vmatpush1.msra.mxu0 0.0
  %483 = vmatprep.subr.mxu0 0.0
  %484 = vmatpush1.msra.mxu0 0.0
  %485 = vmatprep.subr.mxu0 0.0
  %486 = vmatpush1.msra.mxu0 0.0
  %487 = vmatprep.subr.mxu0 0.0
  %488 = vmatpush1.msra.mxu0 0.0
  %489 = vmatprep.subr.mxu0 0.0
  %490 = vmatpush1.msra.mxu0 0.0
  %491 = vmatprep.mubr.f32.mxu0 0.0
  %492 = vmatmul.mubr.f32.gmra.mrb[0].mxu0 %v422
  %v493 = vpop.f32.mrb[0].mxu0
  %v494 = vadd.f32 0.0, %v493
  %v495 = vpop.f32.mrb[0].mxu0
  %496 = vmatprep.mubr.f32.mxu0 0.0
  %497 = vmatmul.mubr.f32.gmra.mrb[0].mxu0 %v425
  %v498 = vpop.f32.mrb[0].mxu0
  %v499 = vadd.f32 0.0, %v498
  %v500 = vpop.f32.mrb[0].mxu0
  %501 = vdwg.mxu0
  %502 = vrot.lane.b32.xlu0 %v221, 120
  %v503 = vpop.permute.xlu0 %502
  %504 = vrot.lane.b32.xlu0 %v226, 120
  %v505 = vpop.permute.xlu0 %504
  %506 = vrot.lane.b32.xlu0 %v296, 120
  %v507 = vpop.permute.xlu0 %506
  %508 = vrot.lane.b32.xlu0 %v301, 120
  %v509 = vpop.permute.xlu0 %508
  %v510 = vsel %vm304, %v503, 0
  %v512 = vsel %vm304, %v505, 0
  %v514 = vsel %vm304, %v507, 0
  %v516 = vsel %vm304, %v509, 0
  %518 = vmatprep.subr.mxu0 0.0
  %519 = vmatpush1.xpose.msra.mxu0 %v514
  %520 = vmatprep.subr.mxu0 0.0
  %521 = vmatpush1.xpose.msra.mxu0 %v516
  %522 = vmatprep.subr.mxu0 0.0
  %523 = vmatpush1.xpose.msra.mxu0 0.0
  %524 = vmatprep.subr.mxu0 0.0
  %525 = vmatpush1.xpose.msra.mxu0 0.0
  %526 = vmatprep.subr.mxu0 0.0
  %527 = vmatpush1.xpose.msra.mxu0 0.0
  %528 = vmatprep.subr.mxu0 0.0
  %529 = vmatpush1.xpose.msra.mxu0 0.0
  %530 = vmatprep.subr.mxu0 0.0
  %531 = vmatpush1.xpose.msra.mxu0 0.0
  %532 = vmatprep.subr.mxu0 0.0
  %533 = vmatpush1.xpose.msra.mxu0 0.0
  %534 = vmatprep.subr.mxu0 0.0
  %535 = vmatpush1.xpose.msra.mxu0 0.0
  %536 = vmatprep.subr.mxu0 0.0
  %537 = vmatpush1.xpose.msra.mxu0 0.0
  %538 = vmatprep.subr.mxu0 0.0
  %539 = vmatpush1.xpose.msra.mxu0 0.0
  %540 = vmatprep.subr.mxu0 0.0
  %541 = vmatpush1.xpose.msra.mxu0 0.0
  %542 = vmatprep.subr.mxu0 0.0
  %543 = vmatpush1.xpose.msra.mxu0 0.0
  %544 = vmatprep.subr.mxu0 0.0
  %545 = vmatpush1.xpose.msra.mxu0 0.0
  %546 = vmatprep.subr.mxu0 0.0
  %547 = vmatpush1.xpose.msra.mxu0 0.0
  %548 = vmatprep.subr.mxu0 0.0
  %549 = vmatpush1.xpose.msra.mxu0 0.0
  %550 = vmatprep.subr.mxu0 0.0
  %551 = vmatpush1.xpose.msra.mxu0 0.0
  %552 = vmatprep.subr.mxu0 0.0
  %553 = vmatpush1.xpose.msra.mxu0 0.0
  %554 = vmatprep.subr.mxu0 0.0
  %555 = vmatpush1.xpose.msra.mxu0 0.0
  %556 = vmatprep.subr.mxu0 0.0
  %557 = vmatpush1.xpose.msra.mxu0 0.0
  %558 = vmatprep.subr.mxu0 0.0
  %559 = vmatpush1.xpose.msra.mxu0 0.0
  %560 = vmatprep.subr.mxu0 0.0
  %561 = vmatpush1.xpose.msra.mxu0 0.0
  %562 = vmatprep.subr.mxu0 0.0
  %563 = vmatpush1.xpose.msra.mxu0 0.0
  %564 = vmatprep.subr.mxu0 0.0
  %565 = vmatpush1.xpose.msra.mxu0 0.0
  %566 = vmatprep.subr.mxu0 0.0
  %567 = vmatpush1.xpose.msra.mxu0 0.0
  %568 = vmatprep.subr.mxu0 0.0
  %569 = vmatpush1.xpose.msra.mxu0 0.0
  %570 = vmatprep.subr.mxu0 0.0
  %571 = vmatpush1.xpose.msra.mxu0 0.0
  %572 = vmatprep.subr.mxu0 0.0
  %573 = vmatpush1.xpose.msra.mxu0 0.0
  %574 = vmatprep.subr.mxu0 0.0
  %575 = vmatpush1.xpose.msra.mxu0 0.0
  %576 = vmatprep.subr.mxu0 0.0
  %577 = vmatpush1.xpose.msra.mxu0 0.0
  %578 = vmatprep.subr.mxu0 0.0
  %579 = vmatpush1.xpose.msra.mxu0 0.0
  %580 = vmatprep.subr.mxu0 0.0
  %581 = vmatpush1.xpose.msra.mxu0 0.0
  %582 = vmatprep.mubr.f32.mxu0 0.0
  %583 = vmatmul.mubr.f32.gmra.mrb[0].mxu0 %v510
  %v584 = vpop.f32.mrb[0].mxu0
  %v585 = vadd.f32 %v85, %v584
  %v586 = vpop.f32.mrb[0].mxu0
  %587 = vmatprep.mubr.f32.mxu0 0.0
  %588 = vmatmul.mubr.f32.gmra.mrb[0].mxu0 %v512
  %v589 = vpop.f32.mrb[0].mxu0
  %v590 = vadd.f32 %v86, %v589
  %v591 = vpop.f32.mrb[0].mxu0
  %592 = vdwg.mxu0
  %v593 = vsel %vm392, %v585, -inf
  %594 = vmax.xlane.f32.xlu0 %v593
  %v595 = vpop.xlane.xlu0 %594
  %v596 = vsel %vm392, %v590, -inf
  %597 = vmax.xlane.f32.xlu0 %v596
  %v598 = vpop.xlane.xlu0 %597
  %v599 = vsub.f32 %v585, %v595
  %v600 = vsub.f32 %v590, %v598
  %v601 = vmul.f32 %v599, 1.442695
  %v602 = vpow.pop %v601
  %v603 = vmul.f32 %v600, 1.442695
  %v604 = vpow.pop %v603
  %v605 = vsel %vm392, %v602, 0.0
  %606 = vadd.xlane.f32.xlu0 %v605
  %v607 = vpop.xlane.xlu0 %606
  %v608 = vsel %vm392, %v604, 0.0
  %609 = vadd.xlane.f32.xlu0 %v608
  %v610 = vpop.xlane.xlu0 %609
  %v611 = vrcp.pop %v607
  %v612 = vrcp.pop %v610
  %v613 = vmul.f32 %v602, %v611
  %v614 = vmul.f32 %v604, %v612
  %615 = vrot.lane.b32.xlu0 %v296, 88
  %v616 = vpop.permute.xlu0 %615
  %617 = vrot.lane.b32.xlu0 %v301, 88
  %v618 = vpop.permute.xlu0 %617
  %v622 = vsel %vm392, %v613, 0
  %v625 = vsel %vm392, %v614, 0
  %627 = vmatprep.subr.mxu0 0.0
  %628 = vmatpush1.msra.mxu0 %v616
  %629 = vmatprep.subr.mxu0 0.0
  %630 = vmatpush1.msra.mxu0 %v618
  %631 = vmatprep.subr.mxu0 0.0
  %632 = vmatpush1.msra.mxu0 0.0
  %633 = vmatprep.subr.mxu0 0.0
  %634 = vmatpush1.msra.mxu0 0.0
  %635 = vmatprep.subr.mxu0 0.0
  %636 = vmatpush1.msra.mxu0 0.0
  %637 = vmatprep.subr.mxu0 0.0
  %638 = vmatpush1.msra.mxu0 0.0
  %639 = vmatprep.subr.mxu0 0.0
  %640 = vmatpush1.msra.mxu0 0.0
  %641 = vmatprep.subr.mxu0 0.0
  %642 = vmatpush1.msra.mxu0 0.0
  %643 = vmatprep.subr.mxu0 0.0
  %644 = vmatpush1.msra.mxu0 0.0
  %645 = vmatprep.subr.mxu0 0.0
  %646 = vmatpush1.msra.mxu0 0.0
  %647 = vmatprep.subr.mxu0 0.0
  %648 = vmatpush1.msra.mxu0 0.0
  %649 = vmatprep.subr.mxu0 0.0
  %650 = vmatpush1.msra.mxu0 0.0
  %651 = vmatprep.subr.mxu0 0.0
  %652 = vmatpush1.msra.mxu0 0.0
  %653 = vmatprep.subr.mxu0 0.0
  %654 = vmatpush1.msra.mxu0 0.0
  %655 = vmatprep.subr.mxu0 0.0
  %656 = vmatpush1.msra.mxu0 0.0
  %657 = vmatprep.subr.mxu0 0.0
  %658 = vmatpush1.msra.mxu0 0.0
  %659 = vmatprep.subr.mxu0 0.0
  %660 = vmatpush1.msra.mxu0 0.0
  %661 = vmatprep.subr.mxu0 0.0
  %662 = vmatpush1.msra.mxu0 0.0
  %663 = vmatprep.subr.mxu0 0.0
  %664 = vmatpush1.msra.mxu0 0.0
  %665 = vmatprep.subr.mxu0 0.0
  %666 = vmatpush1.msra.mxu0 0.0
  %667 = vmatprep.subr.mxu0 0.0
  %668 = vmatpush1.msra.mxu0 0.0
  %669 = vmatprep.subr.mxu0 0.0
  %670 = vmatpush1.msra.mxu0 0.0
  %671 = vmatprep.subr.mxu0 0.0
  %672 = vmatpush1.msra.mxu0 0.0
  %673 = vmatprep.subr.mxu0 0.0
  %674 = vmatpush1.msra.mxu0 0.0
  %675 = vmatprep.subr.mxu0 0.0
  %676 = vmatpush1.msra.mxu0 0.0
  %677 = vmatprep.subr.mxu0 0.0
  %678 = vmatpush1.msra.mxu0 0.0
  %679 = vmatprep.subr.mxu0 0.0
  %680 = vmatpush1.msra.mxu0 0.0
  %681 = vmatprep.subr.mxu0 0.0
  %682 = vmatpush1.msra.mxu0 0.0
  %683 = vmatprep.subr.mxu0 0.0
  %684 = vmatpush1.msra.mxu0 0.0
  %685 = vmatprep.subr.mxu0 0.0
  %686 = vmatpush1.msra.mxu0 0.0
  %687 = vmatprep.subr.mxu0 0.0
  %688 = vmatpush1.msra.mxu0 0.0
  %689 = vmatprep.subr.mxu0 0.0
  %690 = vmatpush1.msra.mxu0 0.0
  %691 = vmatprep.mubr.f32.mxu0 0.0
  %692 = vmatmul.mubr.f32.gmra.mrb[0].mxu0 %v622
  %v693 = vpop.f32.mrb[0].mxu0
  %v694 = vadd.f32 0.0, %v693
  %v695 = vpop.f32.mrb[0].mxu0
  %696 = vmatprep.mubr.f32.mxu0 0.0
  %697 = vmatmul.mubr.f32.gmra.mrb[0].mxu0 %v625
  %v698 = vpop.f32.mrb[0].mxu0
  %v699 = vadd.f32 0.0, %v698
  %v700 = vpop.f32.mrb[0].mxu0
  %701 = vdwg.mxu0
  %v703 = vsel %vm304, %v694, 0
  %v706 = vsel %vm304, %v699, 0
  %708 = vmatprep.subr.mxu0 0.0
  %709 = vmatpush1.msra.mxu0 %v119
  %710 = vmatprep.subr.mxu0 0.0
  %711 = vmatpush1.msra.mxu0 0.0
  %712 = vmatprep.subr.mxu0 0.0
  %713 = vmatpush1.msra.mxu0 0.0
  %714 = vmatprep.subr.mxu0 0.0
  %715 = vmatpush1.msra.mxu0 0.0
  %716 = vmatprep.subr.mxu0 0.0
  %717 = vmatpush1.msra.mxu0 0.0
  %718 = vmatprep.subr.mxu0 0.0
  %719 = vmatpush1.msra.mxu0 0.0
  %720 = vmatprep.subr.mxu0 0.0
  %721 = vmatpush1.msra.mxu0 0.0
  %722 = vmatprep.subr.mxu0 0.0
  %723 = vmatpush1.msra.mxu0 0.0
  %724 = vmatprep.subr.mxu0 0.0
  %725 = vmatpush1.msra.mxu0 0.0
  %726 = vmatprep.subr.mxu0 0.0
  %727 = vmatpush1.msra.mxu0 0.0
  %728 = vmatprep.subr.mxu0 0.0
  %729 = vmatpush1.msra.mxu0 0.0
  %730 = vmatprep.subr.mxu0 0.0
  %731 = vmatpush1.msra.mxu0 0.0
  %732 = vmatprep.subr.mxu0 0.0
  %733 = vmatpush1.msra.mxu0 0.0
  %734 = vmatprep.subr.mxu0 0.0
  %735 = vmatpush1.msra.mxu0 0.0
  %736 = vmatprep.subr.mxu0 0.0
  %737 = vmatpush1.msra.mxu0 0.0
  %738 = vmatprep.subr.mxu0 0.0
  %739 = vmatpush1.msra.mxu0 0.0
  %740 = vmatprep.subr.mxu0 0.0
  %741 = vmatpush1.msra.mxu0 0.0
  %742 = vmatprep.subr.mxu0 0.0
  %743 = vmatpush1.msra.mxu0 0.0
  %744 = vmatprep.subr.mxu0 0.0
  %745 = vmatpush1.msra.mxu0 0.0
  %746 = vmatprep.subr.mxu0 0.0
  %747 = vmatpush1.msra.mxu0 0.0
  %748 = vmatprep.subr.mxu0 0.0
  %749 = vmatpush1.msra.mxu0 0.0
  %750 = vmatprep.subr.mxu0 0.0
  %751 = vmatpush1.msra.mxu0 0.0
  %752 = vmatprep.subr.mxu0 0.0
  %753 = vmatpush1.msra.mxu0 0.0
  %754 = vmatprep.subr.mxu0 0.0
  %755 = vmatpush1.msra.mxu0 0.0
  %756 = vmatprep.subr.mxu0 0.0
  %757 = vmatpush1.msra.mxu0 0.0
  %758 = vmatprep.subr.mxu0 0.0
  %759 = vmatpush1.msra.mxu0 0.0
  %760 = vmatprep.subr.mxu0 0.0
  %761 = vmatpush1.msra.mxu0 0.0
  %762 = vmatprep.subr.mxu0 0.0
  %763 = vmatpush1.msra.mxu0 0.0
  %764 = vmatprep.subr.mxu0 0.0
  %765 = vmatpush1.msra.mxu0 0.0
  %766 = vmatprep.subr.mxu0 0.0
  %767 = vmatpush1.msra.mxu0 0.0
  %768 = vmatprep.subr.mxu0 0.0
  %769 = vmatpush1.msra.mxu0 0.0
  %770 = vmatprep.subr.mxu0 0.0
  %771 = vmatpush1.msra.mxu0 0.0
  %772 = vmatprep.mubr.f32.mxu0 0.0
  %773 = vmatmul.mubr.f32.gmra.mrb[0].mxu0 %v703
  %v774 = vpop.f32.mrb[0].mxu0
  %v775 = vadd.f32 0.0, %v774
  %v776 = vpop.f32.mrb[0].mxu0
  %777 = vmatprep.mubr.f32.mxu0 0.0
  %778 = vmatmul.mubr.f32.gmra.mrb[0].mxu0 %v706
  %v779 = vpop.f32.mrb[0].mxu0
  %v780 = vadd.f32 0.0, %v779
  %v781 = vpop.f32.mrb[0].mxu0
  %782 = vdwg.mxu0
  %v784 = vsel %vm304, %v494, 0
  %v787 = vsel %vm304, %v499, 0
  %789 = vmatprep.subr.mxu0 0.0
  %790 = vmatpush1.msra.mxu0 %v118
  %791 = vmatprep.subr.mxu0 0.0
  %792 = vmatpush1.msra.mxu0 0.0
  %793 = vmatprep.subr.mxu0 0.0
  %794 = vmatpush1.msra.mxu0 0.0
  %795 = vmatprep.subr.mxu0 0.0
  %796 = vmatpush1.msra.mxu0 0.0
  %797 = vmatprep.subr.mxu0 0.0
  %798 = vmatpush1.msra.mxu0 0.0
  %799 = vmatprep.subr.mxu0 0.0
  %800 = vmatpush1.msra.mxu0 0.0
  %801 = vmatprep.subr.mxu0 0.0
  %802 = vmatpush1.msra.mxu0 0.0
  %803 = vmatprep.subr.mxu0 0.0
  %804 = vmatpush1.msra.mxu0 0.0
  %805 = vmatprep.subr.mxu0 0.0
  %806 = vmatpush1.msra.mxu0 0.0
  %807 = vmatprep.subr.mxu0 0.0
  %808 = vmatpush1.msra.mxu0 0.0
  %809 = vmatprep.subr.mxu0 0.0
  %810 = vmatpush1.msra.mxu0 0.0
  %811 = vmatprep.subr.mxu0 0.0
  %812 = vmatpush1.msra.mxu0 0.0
  %813 = vmatprep.subr.mxu0 0.0
  %814 = vmatpush1.msra.mxu0 0.0
  %815 = vmatprep.subr.mxu0 0.0
  %816 = vmatpush1.msra.mxu0 0.0
  %817 = vmatprep.subr.mxu0 0.0
  %818 = vmatpush1.msra.mxu0 0.0
  %819 = vmatprep.subr.mxu0 0.0
  %820 = vmatpush1.msra.mxu0 0.0
  %821 = vmatprep.subr.mxu0 0.0
  %822 = vmatpush1.msra.mxu0 0.0
  %823 = vmatprep.subr.mxu0 0.0
  %824 = vmatpush1.msra.mxu0 0.0
  %825 = vmatprep.subr.mxu0 0.0
  %826 = vmatpush1.msra.mxu0 0.0
  %827 = vmatprep.subr.mxu0 0.0
  %828 = vmatpush1.msra.mxu0 0.0
  %829 = vmatprep.subr.mxu0 0.0
  %830 = vmatpush1.msra.mxu0 0.0
  %831 = vmatprep.subr.mxu0 0.0
  %832 = vmatpush1.msra.mxu0 0.0
  %833 = vmatprep.subr.mxu0 0.0
  %834 = vmatpush1.msra.mxu0 0.0
  %835 = vmatprep.subr.mxu0 0.0
  %836 = vmatpush1.msra.mxu0 0.0
  %837 = vmatprep.subr.mxu0 0.0
  %838 = vmatpush1.msra.mxu0 0.0
  %839 = vmatprep.subr.mxu0 0.0
  %840 = vmatpush1.msra.mxu0 0.0
  %841 = vmatprep.subr.mxu0 0.0
  %842 = vmatpush1.msra.mxu0 0.0
  %843 = vmatprep.subr.mxu0 0.0
  %844 = vmatpush1.msra.mxu0 0.0
  %845 = vmatprep.subr.mxu0 0.0
  %846 = vmatpush1.msra.mxu0 0.0
  %847 = vmatprep.subr.mxu0 0.0
  %848 = vmatpush1.msra.mxu0 0.0
  %849 = vmatprep.subr.mxu0 0.0
  %850 = vmatpush1.msra.mxu0 0.0
  %851 = vmatprep.subr.mxu0 0.0
  %852 = vmatpush1.msra.mxu0 0.0
  %853 = vmatprep.mubr.f32.mxu0 0.0
  %854 = vmatmul.mubr.f32.gmra.mrb[0].mxu0 %v784
  %v855 = vpop.f32.mrb[0].mxu0
  %v856 = vadd.f32 %v775, %v855
  %v857 = vpop.f32.mrb[0].mxu0
  %858 = vmatprep.mubr.f32.mxu0 0.0
  %859 = vmatmul.mubr.f32.gmra.mrb[0].mxu0 %v787
  %v860 = vpop.f32.mrb[0].mxu0
  %v861 = vadd.f32 %v780, %v860
  %v862 = vpop.f32.mrb[0].mxu0
  %863 = vdwg.mxu0
  %864 = vrot.lane.b32.xlu0 %v221, 112
  %v865 = vpop.permute.xlu0 %864
  %866 = vrot.lane.b32.xlu0 %v226, 112
  %v867 = vpop.permute.xlu0 %866
  %868 = vrot.lane.b32.xlu0 %v296, 112
  %v869 = vpop.permute.xlu0 %868
  %870 = vrot.lane.b32.xlu0 %v301, 112
  %v871 = vpop.permute.xlu0 %870
  %v872 = vsel %vm304, %v865, 0
  %v874 = vsel %vm304, %v867, 0
  %v876 = vsel %vm304, %v869, 0
  %v878 = vsel %vm304, %v871, 0
  %880 = vmatprep.subr.mxu0 0.0
  %881 = vmatpush1.xpose.msra.mxu0 %v876
  %882 = vmatprep.subr.mxu0 0.0
  %883 = vmatpush1.xpose.msra.mxu0 %v878
  %884 = vmatprep.subr.mxu0 0.0
  %885 = vmatpush1.xpose.msra.mxu0 0.0
  %886 = vmatprep.subr.mxu0 0.0
  %887 = vmatpush1.xpose.msra.mxu0 0.0
  %888 = vmatprep.subr.mxu0 0.0
  %889 = vmatpush1.xpose.msra.mxu0 0.0
  %890 = vmatprep.subr.mxu0 0.0
  %891 = vmatpush1.xpose.msra.mxu0 0.0
  %892 = vmatprep.subr.mxu0 0.0
  %893 = vmatpush1.xpose.msra.mxu0 0.0
  %894 = vmatprep.subr.mxu0 0.0
  %895 = vmatpush1.xpose.msra.mxu0 0.0
  %896 = vmatprep.subr.mxu0 0.0
  %897 = vmatpush1.xpose.msra.mxu0 0.0
  %898 = vmatprep.subr.mxu0 0.0
  %899 = vmatpush1.xpose.msra.mxu0 0.0
  %900 = vmatprep.subr.mxu0 0.0
  %901 = vmatpush1.xpose.msra.mxu0 0.0
  %902 = vmatprep.subr.mxu0 0.0
  %903 = vmatpush1.xpose.msra.mxu0 0.0
  %904 = vmatprep.subr.mxu0 0.0
  %905 = vmatpush1.xpose.msra.mxu0 0.0
  %906 = vmatprep.subr.mxu0 0.0
  %907 = vmatpush1.xpose.msra.mxu0 0.0
  %908 = vmatprep.subr.mxu0 0.0
  %909 = vmatpush1.xpose.msra.mxu0 0.0
  %910 = vmatprep.subr.mxu0 0.0
  %911 = vmatpush1.xpose.msra.mxu0 0.0
  %912 = vmatprep.subr.mxu0 0.0
  %913 = vmatpush1.xpose.msra.mxu0 0.0
  %914 = vmatprep.subr.mxu0 0.0
  %915 = vmatpush1.xpose.msra.mxu0 0.0
  %916 = vmatprep.subr.mxu0 0.0
  %917 = vmatpush1.xpose.msra.mxu0 0.0
  %918 = vmatprep.subr.mxu0 0.0
  %919 = vmatpush1.xpose.msra.mxu0 0.0
  %920 = vmatprep.subr.mxu0 0.0
  %921 = vmatpush1.xpose.msra.mxu0 0.0
  %922 = vmatprep.subr.mxu0 0.0
  %923 = vmatpush1.xpose.msra.mxu0 0.0
  %924 = vmatprep.subr.mxu0 0.0
  %925 = vmatpush1.xpose.msra.mxu0 0.0
  %926 = vmatprep.subr.mxu0 0.0
  %927 = vmatpush1.xpose.msra.mxu0 0.0
  %928 = vmatprep.subr.mxu0 0.0
  %929 = vmatpush1.xpose.msra.mxu0 0.0
  %930 = vmatprep.subr.mxu0 0.0
  %931 = vmatpush1.xpose.msra.mxu0 0.0
  %932 = vmatprep.subr.mxu0 0.0
  %933 = vmatpush1.xpose.msra.mxu0 0.0
  %934 = vmatprep.subr.mxu0 0.0
  %935 = vmatpush1.xpose.msra.mxu0 0.0
  %936 = vmatprep.subr.mxu0 0.0
  %937 = vmatpush1.xpose.msra.mxu0 0.0
  %938 = vmatprep.subr.mxu0 0.0
  %939 = vmatpush1.xpose.msra.mxu0 0.0
  %940 = vmatprep.subr.mxu0 0.0
  %941 = vmatpush1.xpose.msra.mxu0 0.0
  %942 = vmatprep.subr.mxu0 0.0
  %943 = vmatpush1.xpose.msra.mxu0 0.0
  %944 = vmatprep.mubr.f32.mxu0 0.0
  %945 = vmatmul.mubr.f32.gmra.mrb[0].mxu0 %v872
  %v946 = vpop.f32.mrb[0].mxu0
  %v947 = vadd.f32 %v87, %v946
  %v948 = vpop.f32.mrb[0].mxu0
  %949 = vmatprep.mubr.f32.mxu0 0.0
  %950 = vmatmul.mubr.f32.gmra.mrb[0].mxu0 %v874
  %v951 = vpop.f32.mrb[0].mxu0
  %v952 = vadd.f32 %v88, %v951
  %v953 = vpop.f32.mrb[0].mxu0
  %954 = vdwg.mxu0
  %v955 = vsel %vm392, %v947, -inf
  %956 = vmax.xlane.f32.xlu0 %v955
  %v957 = vpop.xlane.xlu0 %956
  %v958 = vsel %vm392, %v952, -inf
  %959 = vmax.xlane.f32.xlu0 %v958
  %v960 = vpop.xlane.xlu0 %959
  %v961 = vsub.f32 %v947, %v957
  %v962 = vsub.f32 %v952, %v960
  %v963 = vmul.f32 %v961, 1.442695
  %v964 = vpow.pop %v963
  %v965 = vmul.f32 %v962, 1.442695
  %v966 = vpow.pop %v965
  %v967 = vsel %vm392, %v964, 0.0
  %968 = vadd.xlane.f32.xlu0 %v967
  %v969 = vpop.xlane.xlu0 %968
  %v970 = vsel %vm392, %v966, 0.0
  %971 = vadd.xlane.f32.xlu0 %v970
  %v972 = vpop.xlane.xlu0 %971
  %v973 = vrcp.pop %v969
  %v974 = vrcp.pop %v972
  %v975 = vmul.f32 %v964, %v973
  %v976 = vmul.f32 %v966, %v974
  %977 = vrot.lane.b32.xlu0 %v296, 80
  %v978 = vpop.permute.xlu0 %977
  %979 = vrot.lane.b32.xlu0 %v301, 80
  %v980 = vpop.permute.xlu0 %979
  %v984 = vsel %vm392, %v975, 0
  %v987 = vsel %vm392, %v976, 0
  %989 = vmatprep.subr.mxu0 0.0
  %990 = vmatpush1.msra.mxu0 %v978
  %991 = vmatprep.subr.mxu0 0.0
  %992 = vmatpush1.msra.mxu0 %v980
  %993 = vmatprep.subr.mxu0 0.0
  %994 = vmatpush1.msra.mxu0 0.0
  %995 = vmatprep.subr.mxu0 0.0
  %996 = vmatpush1.msra.mxu0 0.0
  %997 = vmatprep.subr.mxu0 0.0
  %998 = vmatpush1.msra.mxu0 0.0
  %999 = vmatprep.subr.mxu0 0.0
  %1000 = vmatpush1.msra.mxu0 0.0
  %1001 = vmatprep.subr.mxu0 0.0
  %1002 = vmatpush1.msra.mxu0 0.0
  %1003 = vmatprep.subr.mxu0 0.0
  %1004 = vmatpush1.msra.mxu0 0.0
  %1005 = vmatprep.subr.mxu0 0.0
  %1006 = vmatpush1.msra.mxu0 0.0
  %1007 = vmatprep.subr.mxu0 0.0
  %1008 = vmatpush1.msra.mxu0 0.0
  %1009 = vmatprep.subr.mxu0 0.0
  %1010 = vmatpush1.msra.mxu0 0.0
  %1011 = vmatprep.subr.mxu0 0.0
  %1012 = vmatpush1.msra.mxu0 0.0
  %1013 = vmatprep.subr.mxu0 0.0
  %1014 = vmatpush1.msra.mxu0 0.0
  %1015 = vmatprep.subr.mxu0 0.0
  %1016 = vmatpush1.msra.mxu0 0.0
  %1017 = vmatprep.subr.mxu0 0.0
  %1018 = vmatpush1.msra.mxu0 0.0
  %1019 = vmatprep.subr.mxu0 0.0
  %1020 = vmatpush1.msra.mxu0 0.0
  %1021 = vmatprep.subr.mxu0 0.0
  %1022 = vmatpush1.msra.mxu0 0.0
  %1023 = vmatprep.subr.mxu0 0.0
  %1024 = vmatpush1.msra.mxu0 0.0
  %1025 = vmatprep.subr.mxu0 0.0
  %1026 = vmatpush1.msra.mxu0 0.0
  %1027 = vmatprep.subr.mxu0 0.0
  %1028 = vmatpush1.msra.mxu0 0.0
  %1029 = vmatprep.subr.mxu0 0.0
  %1030 = vmatpush1.msra.mxu0 0.0
  %1031 = vmatprep.subr.mxu0 0.0
  %1032 = vmatpush1.msra.mxu0 0.0
  %1033 = vmatprep.subr.mxu0 0.0
  %1034 = vmatpush1.msra.mxu0 0.0
  %1035 = vmatprep.subr.mxu0 0.0
  %1036 = vmatpush1.msra.mxu0 0.0
  %1037 = vmatprep.subr.mxu0 0.0
  %1038 = vmatpush1.msra.mxu0 0.0
  %1039 = vmatprep.subr.mxu0 0.0
  %1040 = vmatpush1.msra.mxu0 0.0
  %1041 = vmatprep.subr.mxu0 0.0
  %1042 = vmatpush1.msra.mxu0 0.0
  %1043 = vmatprep.subr.mxu0 0.0
  %1044 = vmatpush1.msra.mxu0 0.0
  %1045 = vmatprep.subr.mxu0 0.0
  %1046 = vmatpush1.msra.mxu0 0.0
  %1047 = vmatprep.subr.mxu0 0.0
  %1048 = vmatpush1.msra.mxu0 0.0
  %1049 = vmatprep.subr.mxu0 0.0
  %1050 = vmatpush1.msra.mxu0 0.0
  %1051 = vmatprep.subr.mxu0 0.0
  %1052 = vmatpush1.msra.mxu0 0.0
  %1053 = vmatprep.mubr.f32.mxu0 0.0
  %1054 = vmatmul.mubr.f32.gmra.mrb[0].mxu0 %v984
  %v1055 = vpop.f32.mrb[0].mxu0
  %v1056 = vadd.f32 0.0, %v1055
  %v1057 = vpop.f32.mrb[0].mxu0
  %1058 = vmatprep.mubr.f32.mxu0 0.0
  %1059 = vmatmul.mubr.f32.gmra.mrb[0].mxu0 %v987
  %v1060 = vpop.f32.mrb[0].mxu0
  %v1061 = vadd.f32 0.0, %v1060
  %v1062 = vpop.f32.mrb[0].mxu0
  %1063 = vdwg.mxu0
  %v1065 = vsel %vm304, %v1056, 0
  %v1068 = vsel %vm304, %v1061, 0
  %1070 = vmatprep.subr.mxu0 0.0
  %1071 = vmatpush1.msra.mxu0 %v120
  %1072 = vmatprep.subr.mxu0 0.0
  %1073 = vmatpush1.msra.mxu0 0.0
  %1074 = vmatprep.subr.mxu0 0.0
  %1075 = vmatpush1.msra.mxu0 0.0
  %1076 = vmatprep.subr.mxu0 0.0
  %1077 = vmatpush1.msra.mxu0 0.0
  %1078 = vmatprep.subr.mxu0 0.0
  %1079 = vmatpush1.msra.mxu0 0.0
  %1080 = vmatprep.subr.mxu0 0.0
  %1081 = vmatpush1.msra.mxu0 0.0
  %1082 = vmatprep.subr.mxu0 0.0
  %1083 = vmatpush1.msra.mxu0 0.0
  %1084 = vmatprep.subr.mxu0 0.0
  %1085 = vmatpush1.msra.mxu0 0.0
  %1086 = vmatprep.subr.mxu0 0.0
  %1087 = vmatpush1.msra.mxu0 0.0
  %1088 = vmatprep.subr.mxu0 0.0
  %1089 = vmatpush1.msra.mxu0 0.0
  %1090 = vmatprep.subr.mxu0 0.0
  %1091 = vmatpush1.msra.mxu0 0.0
  %1092 = vmatprep.subr.mxu0 0.0
  %1093 = vmatpush1.msra.mxu0 0.0
  %1094 = vmatprep.subr.mxu0 0.0
  %1095 = vmatpush1.msra.mxu0 0.0
  %1096 = vmatprep.subr.mxu0 0.0
  %1097 = vmatpush1.msra.mxu0 0.0
  %1098 = vmatprep.subr.mxu0 0.0
  %1099 = vmatpush1.msra.mxu0 0.0
  %1100 = vmatprep.subr.mxu0 0.0
  %1101 = vmatpush1.msra.mxu0 0.0
  %1102 = vmatprep.subr.mxu0 0.0
  %1103 = vmatpush1.msra.mxu0 0.0
  %1104 = vmatprep.subr.mxu0 0.0
  %1105 = vmatpush1.msra.mxu0 0.0
  %1106 = vmatprep.subr.mxu0 0.0
  %1107 = vmatpush1.msra.mxu0 0.0
  %1108 = vmatprep.subr.mxu0 0.0
  %1109 = vmatpush1.msra.mxu0 0.0
  %1110 = vmatprep.subr.mxu0 0.0
  %1111 = vmatpush1.msra.mxu0 0.0
  %1112 = vmatprep.subr.mxu0 0.0
  %1113 = vmatpush1.msra.mxu0 0.0
  %1114 = vmatprep.subr.mxu0 0.0
  %1115 = vmatpush1.msra.mxu0 0.0
  %1116 = vmatprep.subr.mxu0 0.0
  %1117 = vmatpush1.msra.mxu0 0.0
  %1118 = vmatprep.subr.mxu0 0.0
  %1119 = vmatpush1.msra.mxu0 0.0
  %1120 = vmatprep.subr.mxu0 0.0
  %1121 = vmatpush1.msra.mxu0 0.0
  %1122 = vmatprep.subr.mxu0 0.0
  %1123 = vmatpush1.msra.mxu0 0.0
  %1124 = vmatprep.subr.mxu0 0.0
  %1125 = vmatpush1.msra.mxu0 0.0
  %1126 = vmatprep.subr.mxu0 0.0
  %1127 = vmatpush1.msra.mxu0 0.0
  %1128 = vmatprep.subr.mxu0 0.0
  %1129 = vmatpush1.msra.mxu0 0.0
  %1130 = vmatprep.subr.mxu0 0.0
  %1131 = vmatpush1.msra.mxu0 0.0
  %1132 = vmatprep.subr.mxu0 0.0
  %1133 = vmatpush1.msra.mxu0 0.0
  %1134 = vmatprep.mubr.f32.mxu0 0.0
  %1135 = vmatmul.mubr.f32.gmra.mrb[0].mxu0 %v1065
  %v1136 = vpop.f32.mrb[0].mxu0
  %v1137 = vadd.f32 0.0, %v1136
  %v1138 = vpop.f32.mrb[0].mxu0
  %1139 = vmatprep.mubr.f32.mxu0 0.0
  %1140 = vmatmul.mubr.f32.gmra.mrb[0].mxu0 %v1068
  %v1141 = vpop.f32.mrb[0].mxu0
  %v1142 = vadd.f32 0.0, %v1141
  %v1143 = vpop.f32.mrb[0].mxu0
  %1144 = vdwg.mxu0
  %v1145 = vadd.f32 %v856, %v1137
  %v1146 = vadd.f32 %v861, %v1142
  %1147 = vrot.lane.b32.xlu0 %v221, 104
  %v1148 = vpop.permute.xlu0 %1147
  %1149 = vrot.lane.b32.xlu0 %v226, 104
  %v1150 = vpop.permute.xlu0 %1149
  %1151 = vrot.lane.b32.xlu0 %v296, 104
  %v1152 = vpop.permute.xlu0 %1151
  %1153 = vrot.lane.b32.xlu0 %v301, 104
  %v1154 = vpop.permute.xlu0 %1153
  %v1155 = vsel %vm304, %v1148, 0
  %v1157 = vsel %vm304, %v1150, 0
  %v1159 = vsel %vm304, %v1152, 0
  %v1161 = vsel %vm304, %v1154, 0
  %1163 = vmatprep.subr.mxu0 0.0
  %1164 = vmatpush1.xpose.msra.mxu0 %v1159
  %1165 = vmatprep.subr.mxu0 0.0
  %1166 = vmatpush1.xpose.msra.mxu0 %v1161
  %1167 = vmatprep.subr.mxu0 0.0
  %1168 = vmatpush1.xpose.msra.mxu0 0.0
  %1169 = vmatprep.subr.mxu0 0.0
  %1170 = vmatpush1.xpose.msra.mxu0 0.0
  %1171 = vmatprep.subr.mxu0 0.0
  %1172 = vmatpush1.xpose.msra.mxu0 0.0
  %1173 = vmatprep.subr.mxu0 0.0
  %1174 = vmatpush1.xpose.msra.mxu0 0.0
  %1175 = vmatprep.subr.mxu0 0.0
  %1176 = vmatpush1.xpose.msra.mxu0 0.0
  %1177 = vmatprep.subr.mxu0 0.0
  %1178 = vmatpush1.xpose.msra.mxu0 0.0
  %1179 = vmatprep.subr.mxu0 0.0
  %1180 = vmatpush1.xpose.msra.mxu0 0.0
  %1181 = vmatprep.subr.mxu0 0.0
  %1182 = vmatpush1.xpose.msra.mxu0 0.0
  %1183 = vmatprep.subr.mxu0 0.0
  %1184 = vmatpush1.xpose.msra.mxu0 0.0
  %1185 = vmatprep.subr.mxu0 0.0
  %1186 = vmatpush1.xpose.msra.mxu0 0.0
  %1187 = vmatprep.subr.mxu0 0.0
  %1188 = vmatpush1.xpose.msra.mxu0 0.0
  %1189 = vmatprep.subr.mxu0 0.0
  %1190 = vmatpush1.xpose.msra.mxu0 0.0
  %1191 = vmatprep.subr.mxu0 0.0
  %1192 = vmatpush1.xpose.msra.mxu0 0.0
  %1193 = vmatprep.subr.mxu0 0.0
  %1194 = vmatpush1.xpose.msra.mxu0 0.0
  %1195 = vmatprep.subr.mxu0 0.0
  %1196 = vmatpush1.xpose.msra.mxu0 0.0
  %1197 = vmatprep.subr.mxu0 0.0
  %1198 = vmatpush1.xpose.msra.mxu0 0.0
  %1199 = vmatprep.subr.mxu0 0.0
  %1200 = vmatpush1.xpose.msra.mxu0 0.0
  %1201 = vmatprep.subr.mxu0 0.0
  %1202 = vmatpush1.xpose.msra.mxu0 0.0
  %1203 = vmatprep.subr.mxu0 0.0
  %1204 = vmatpush1.xpose.msra.mxu0 0.0
  %1205 = vmatprep.subr.mxu0 0.0
  %1206 = vmatpush1.xpose.msra.mxu0 0.0
  %1207 = vmatprep.subr.mxu0 0.0
  %1208 = vmatpush1.xpose.msra.mxu0 0.0
  %1209 = vmatprep.subr.mxu0 0.0
  %1210 = vmatpush1.xpose.msra.mxu0 0.0
  %1211 = vmatprep.subr.mxu0 0.0
  %1212 = vmatpush1.xpose.msra.mxu0 0.0
  %1213 = vmatprep.subr.mxu0 0.0
  %1214 = vmatpush1.xpose.msra.mxu0 0.0
  %1215 = vmatprep.subr.mxu0 0.0
  %1216 = vmatpush1.xpose.msra.mxu0 0.0
  %1217 = vmatprep.subr.mxu0 0.0
  %1218 = vmatpush1.xpose.msra.mxu0 0.0
  %1219 = vmatprep.subr.mxu0 0.0
  %1220 = vmatpush1.xpose.msra.mxu0 0.0
  %1221 = vmatprep.subr.mxu0 0.0
  %1222 = vmatpush1.xpose.msra.mxu0 0.0
  %1223 = vmatprep.subr.mxu0 0.0
  %1224 = vmatpush1.xpose.msra.mxu0 0.0
  %1225 = vmatprep.subr.mxu0 0.0
  %1226 = vmatpush1.xpose.msra.mxu0 0.0
  %1227 = vmatprep.mubr.f32.mxu0 0.0
  %1228 = vmatmul.mubr.f32.gmra.mrb[0].mxu0 %v1155
  %v1229 = vpop.f32.mrb[0].mxu0
  %v1230 = vadd.f32 %v89, %v1229
  %v1231 = vpop.f32.mrb[0].mxu0
  %1232 = vmatprep.mubr.f32.mxu0 0.0
  %1233 = vmatmul.mubr.f32.gmra.mrb[0].mxu0 %v1157
  %v1234 = vpop.f32.mrb[0].mxu0
  %v1235 = vadd.f32 %v90, %v1234
  %v1236 = vpop.f32.mrb[0].mxu0
  %1237 = vdwg.mxu0
  %v1238 = vsel %vm392, %v1230, -inf
  %1239 = vmax.xlane.f32.xlu0 %v1238
  %v1240 = vpop.xlane.xlu0 %1239
  %v1241 = vsel %vm392, %v1235, -inf
  %1242 = vmax.xlane.f32.xlu0 %v1241
  %v1243 = vpop.xlane.xlu0 %1242
  %v1244 = vsub.f32 %v1230, %v1240
  %v1245 = vsub.f32 %v1235, %v1243
  %v1246 = vmul.f32 %v1244, 1.442695
  %v1247 = vpow.pop %v1246
  %v1248 = vmul.f32 %v1245, 1.442695
  %v1249 = vpow.pop %v1248
  %v1250 = vsel %vm392, %v1247, 0.0
  %1251 = vadd.xlane.f32.xlu0 %v1250
  %v1252 = vpop.xlane.xlu0 %1251
  %v1253 = vsel %vm392, %v1249, 0.0
  %1254 = vadd.xlane.f32.xlu0 %v1253
  %v1255 = vpop.xlane.xlu0 %1254
  %v1256 = vrcp.pop %v1252
  %v1257 = vrcp.pop %v1255
  %v1258 = vmul.f32 %v1247, %v1256
  %v1259 = vmul.f32 %v1249, %v1257
  %1260 = vrot.lane.b32.xlu0 %v296, 72
  %v1261 = vpop.permute.xlu0 %1260
  %1262 = vrot.lane.b32.xlu0 %v301, 72
  %v1263 = vpop.permute.xlu0 %1262
  %v1267 = vsel %vm392, %v1258, 0
  %v1270 = vsel %vm392, %v1259, 0
  %1272 = vmatprep.subr.mxu0 0.0
  %1273 = vmatpush1.msra.mxu0 %v1261
  %1274 = vmatprep.subr.mxu0 0.0
  %1275 = vmatpush1.msra.mxu0 %v1263
  %1276 = vmatprep.subr.mxu0 0.0
  %1277 = vmatpush1.msra.mxu0 0.0
  %1278 = vmatprep.subr.mxu0 0.0
  %1279 = vmatpush1.msra.mxu0 0.0
  %1280 = vmatprep.subr.mxu0 0.0
  %1281 = vmatpush1.msra.mxu0 0.0
  %1282 = vmatprep.subr.mxu0 0.0
  %1283 = vmatpush1.msra.mxu0 0.0
  %1284 = vmatprep.subr.mxu0 0.0
  %1285 = vmatpush1.msra.mxu0 0.0
  %1286 = vmatprep.subr.mxu0 0.0
  %1287 = vmatpush1.msra.mxu0 0.0
  %1288 = vmatprep.subr.mxu0 0.0
  %1289 = vmatpush1.msra.mxu0 0.0
  %1290 = vmatprep.subr.mxu0 0.0
  %1291 = vmatpush1.msra.mxu0 0.0
  %1292 = vmatprep.subr.mxu0 0.0
  %1293 = vmatpush1.msra.mxu0 0.0
  %1294 = vmatprep.subr.mxu0 0.0
  %1295 = vmatpush1.msra.mxu0 0.0
  %1296 = vmatprep.subr.mxu0 0.0
  %1297 = vmatpush1.msra.mxu0 0.0
  %1298 = vmatprep.subr.mxu0 0.0
  %1299 = vmatpush1.msra.mxu0 0.0
  %1300 = vmatprep.subr.mxu0 0.0
  %1301 = vmatpush1.msra.mxu0 0.0
  %1302 = vmatprep.subr.mxu0 0.0
  %1303 = vmatpush1.msra.mxu0 0.0
  %1304 = vmatprep.subr.mxu0 0.0
  %1305 = vmatpush1.msra.mxu0 0.0
  %1306 = vmatprep.subr.mxu0 0.0
  %1307 = vmatpush1.msra.mxu0 0.0
  %1308 = vmatprep.subr.mxu0 0.0
  %1309 = vmatpush1.msra.mxu0 0.0
  %1310 = vmatprep.subr.mxu0 0.0
  %1311 = vmatpush1.msra.mxu0 0.0
  %1312 = vmatprep.subr.mxu0 0.0
  %1313 = vmatpush1.msra.mxu0 0.0
  %1314 = vmatprep.subr.mxu0 0.0
  %1315 = vmatpush1.msra.mxu0 0.0
  %1316 = vmatprep.subr.mxu0 0.0
  %1317 = vmatpush1.msra.mxu0 0.0
  %1318 = vmatprep.subr.mxu0 0.0
  %1319 = vmatpush1.msra.mxu0 0.0
  %1320 = vmatprep.subr.mxu0 0.0
  %1321 = vmatpush1.msra.mxu0 0.0
  %1322 = vmatprep.subr.mxu0 0.0
  %1323 = vmatpush1.msra.mxu0 0.0
  %1324 = vmatprep.subr.mxu0 0.0
  %1325 = vmatpush1.msra.mxu0 0.0
  %1326 = vmatprep.subr.mxu0 0.0
  %1327 = vmatpush1.msra.mxu0 0.0
  %1328 = vmatprep.subr.mxu0 0.0
  %1329 = vmatpush1.msra.mxu0 0.0
  %1330 = vmatprep.subr.mxu0 0.0
  %1331 = vmatpush1.msra.mxu0 0.0
  %1332 = vmatprep.subr.mxu0 0.0
  %1333 = vmatpush1.msra.mxu0 0.0
  %1334 = vmatprep.subr.mxu0 0.0
  %1335 = vmatpush1.msra.mxu0 0.0
  %1336 = vmatprep.mubr.f32.mxu0 0.0
  %1337 = vmatmul.mubr.f32.gmra.mrb[0].mxu0 %v1267
  %v1338 = vpop.f32.mrb[0].mxu0
  %v1339 = vadd.f32 0.0, %v1338
  %v1340 = vpop.f32.mrb[0].mxu0
  %1341 = vmatprep.mubr.f32.mxu0 0.0
  %1342 = vmatmul.mubr.f32.gmra.mrb[0].mxu0 %v1270
  %v1343 = vpop.f32.mrb[0].mxu0
  %v1344 = vadd.f32 0.0, %v1343
  %v1345 = vpop.f32.mrb[0].mxu0
  %1346 = vdwg.mxu0
  %v1348 = vsel %vm304, %v1339, 0
  %v1351 = vsel %vm304, %v1344, 0
  %1353 = vmatprep.subr.mxu0 0.0
  %1354 = vmatpush1.msra.mxu0 %v121
  %1355 = vmatprep.subr.mxu0 0.0
  %1356 = vmatpush1.msra.mxu0 0.0
  %1357 = vmatprep.subr.mxu0 0.0
  %1358 = vmatpush1.msra.mxu0 0.0
  %1359 = vmatprep.subr.mxu0 0.0
  %1360 = vmatpush1.msra.mxu0 0.0
  %1361 = vmatprep.subr.mxu0 0.0
  %1362 = vmatpush1.msra.mxu0 0.0
  %1363 = vmatprep.subr.mxu0 0.0
  %1364 = vmatpush1.msra.mxu0 0.0
  %1365 = vmatprep.subr.mxu0 0.0
  %1366 = vmatpush1.msra.mxu0 0.0
  %1367 = vmatprep.subr.mxu0 0.0
  %1368 = vmatpush1.msra.mxu0 0.0
  %1369 = vmatprep.subr.mxu0 0.0
  %1370 = vmatpush1.msra.mxu0 0.0
  %1371 = vmatprep.subr.mxu0 0.0
  %1372 = vmatpush1.msra.mxu0 0.0
  %1373 = vmatprep.subr.mxu0 0.0
  %1374 = vmatpush1.msra.mxu0 0.0
  %1375 = vmatprep.subr.mxu0 0.0
  %1376 = vmatpush1.msra.mxu0 0.0
  %1377 = vmatprep.subr.mxu0 0.0
  %1378 = vmatpush1.msra.mxu0 0.0
  %1379 = vmatprep.subr.mxu0 0.0
  %1380 = vmatpush1.msra.mxu0 0.0
  %1381 = vmatprep.subr.mxu0 0.0
  %1382 = vmatpush1.msra.mxu0 0.0
  %1383 = vmatprep.subr.mxu0 0.0
  %1384 = vmatpush1.msra.mxu0 0.0
  %1385 = vmatprep.subr.mxu0 0.0
  %1386 = vmatpush1.msra.mxu0 0.0
  %1387 = vmatprep.subr.mxu0 0.0
  %1388 = vmatpush1.msra.mxu0 0.0
  %1389 = vmatprep.subr.mxu0 0.0
  %1390 = vmatpush1.msra.mxu0 0.0
  %1391 = vmatprep.subr.mxu0 0.0
  %1392 = vmatpush1.msra.mxu0 0.0
  %1393 = vmatprep.subr.mxu0 0.0
  %1394 = vmatpush1.msra.mxu0 0.0
  %1395 = vmatprep.subr.mxu0 0.0
  %1396 = vmatpush1.msra.mxu0 0.0
  %1397 = vmatprep.subr.mxu0 0.0
  %1398 = vmatpush1.msra.mxu0 0.0
  %1399 = vmatprep.subr.mxu0 0.0
  %1400 = vmatpush1.msra.mxu0 0.0
  %1401 = vmatprep.subr.mxu0 0.0
  %1402 = vmatpush1.msra.mxu0 0.0
  %1403 = vmatprep.subr.mxu0 0.0
  %1404 = vmatpush1.msra.mxu0 0.0
  %1405 = vmatprep.subr.mxu0 0.0
  %1406 = vmatpush1.msra.mxu0 0.0
  %1407 = vmatprep.subr.mxu0 0.0
  %1408 = vmatpush1.msra.mxu0 0.0
  %1409 = vmatprep.subr.mxu0 0.0
  %1410 = vmatpush1.msra.mxu0 0.0
  %1411 = vmatprep.subr.mxu0 0.0
  %1412 = vmatpush1.msra.mxu0 0.0
  %1413 = vmatprep.subr.mxu0 0.0
  %1414 = vmatpush1.msra.mxu0 0.0
  %1415 = vmatprep.subr.mxu0 0.0
  %1416 = vmatpush1.msra.mxu0 0.0
  %1417 = vmatprep.mubr.f32.mxu0 0.0
  %1418 = vmatmul.mubr.f32.gmra.mrb[0].mxu0 %v1348
  %v1419 = vpop.f32.mrb[0].mxu0
  %v1420 = vadd.f32 0.0, %v1419
  %v1421 = vpop.f32.mrb[0].mxu0
  %1422 = vmatprep.mubr.f32.mxu0 0.0
  %1423 = vmatmul.mubr.f32.gmra.mrb[0].mxu0 %v1351
  %v1424 = vpop.f32.mrb[0].mxu0
  %v1425 = vadd.f32 0.0, %v1424
  %v1426 = vpop.f32.mrb[0].mxu0
  %1427 = vdwg.mxu0
  %v1428 = vadd.f32 %v1145, %v1420
  %v1429 = vadd.f32 %v1146, %v1425
  %v1430 = vadd.f32 %v107, %v1428
  %v1431 = vadd.f32 %v108, %v1429
  %v1432 = vld [vmem:[%s9] sm:$0x1]
  %v1433 = vld [vmem:[%s10] sm:$0xff]
  %v1434 = vld [vmem:[%s10 + $0x8] sm:$0xff]
  %v1435 = vld [vmem:[%s10 + $0x10] sm:$0xff]
  %v1436 = vld [vmem:[%s10 + $0x18] sm:$0xff]
  %v1437 = vld [vmem:[%s11] sm:$0xff]
  %v1438 = vld [vmem:[%s11 + $0x8] sm:$0xff]
  %v1439 = vld [vmem:[%s11 + $0x10] sm:$0xff]
  %v1440 = vld [vmem:[%s11 + $0x18] sm:$0xff]
  %v1441 = vld [vmem:[%s11 + $0x20] sm:$0xff]
  %v1442 = vld [vmem:[%s11 + $0x28] sm:$0xff]
  %v1443 = vld [vmem:[%s11 + $0x30] sm:$0xff]
  %v1444 = vld [vmem:[%s11 + $0x38] sm:$0xff]
  %v1445 = vmul.f32 %v1430, %v1430
  %v1446 = vmul.f32 %v1431, %v1431
  %v1447 = vsel %vm124, %v1445, 0.0
  %1448 = vadd.xlane.f32.xlu0 %v1447
  %v1449 = vpop.xlane.xlu0 %1448
  %v1450 = vsel %vm124, %v1446, 0.0
  %1451 = vadd.xlane.f32.xlu0 %v1450
  %v1452 = vpop.xlane.xlu0 %1451
  %v1453 = vmul.f32 %v1449, %v131
  %v1454 = vmul.f32 %v1452, %v131
  %v1455 = vadd.f32 %v1453, 1e-06
  %v1456 = vadd.f32 %v1454, 1e-06
  %v1457 = vrsqrt.pop %v1455
  %v1458 = vrsqrt.pop %v1456
  %v1459 = vmul.f32 %v1430, %v1457
  %v1460 = vmul.f32 %v1431, %v1458
  %v1462 = vlaneseq
  %v1463 = vshrl.u32 %v1462, 7
  %v1464 = vsub.s32 0, %v1463
  %v1465 = vrot.slane %v1432, %v1464
  %v1467 = vmul.f32 %v1459, %v1465
  %v1468 = vmul.f32 %v1460, %v1465
  %v1470 = vsel %vm124, %v1467, 0
  %v1473 = vsel %vm124, %v1468, 0
  %1475 = vmatprep.subr.mxu0 0.0
  %1476 = vmatpush1.msra.mxu0 %v1433
  %1477 = vmatprep.subr.mxu0 0.0
  %1478 = vmatpush1.msra.mxu0 %v1434
  %1479 = vmatprep.subr.mxu0 0.0
  %1480 = vmatpush1.msra.mxu0 %v1435
  %1481 = vmatprep.subr.mxu0 0.0
  %1482 = vmatpush1.msra.mxu0 %v1436
  %1483 = vmatprep.subr.mxu0 0.0
  %1484 = vmatpush1.msra.mxu0 0.0
  %1485 = vmatprep.subr.mxu0 0.0
  %1486 = vmatpush1.msra.mxu0 0.0
  %1487 = vmatprep.subr.mxu0 0.0
  %1488 = vmatpush1.msra.mxu0 0.0
  %1489 = vmatprep.subr.mxu0 0.0
  %1490 = vmatpush1.msra.mxu0 0.0
  %1491 = vmatprep.subr.mxu0 0.0
  %1492 = vmatpush1.msra.mxu0 0.0
  %1493 = vmatprep.subr.mxu0 0.0
  %1494 = vmatpush1.msra.mxu0 0.0
  %1495 = vmatprep.subr.mxu0 0.0
  %1496 = vmatpush1.msra.mxu0 0.0
  %1497 = vmatprep.subr.mxu0 0.0
  %1498 = vmatpush1.msra.mxu0 0.0
  %1499 = vmatprep.subr.mxu0 0.0
  %1500 = vmatpush1.msra.mxu0 0.0
  %1501 = vmatprep.subr.mxu0 0.0
  %1502 = vmatpush1.msra.mxu0 0.0
  %1503 = vmatprep.subr.mxu0 0.0
  %1504 = vmatpush1.msra.mxu0 0.0
  %1505 = vmatprep.subr.mxu0 0.0
  %1506 = vmatpush1.msra.mxu0 0.0
  %1507 = vmatprep.subr.mxu0 0.0
  %1508 = vmatpush1.msra.mxu0 0.0
  %1509 = vmatprep.subr.mxu0 0.0
  %1510 = vmatpush1.msra.mxu0 0.0
  %1511 = vmatprep.subr.mxu0 0.0
  %1512 = vmatpush1.msra.mxu0 0.0
  %1513 = vmatprep.subr.mxu0 0.0
  %1514 = vmatpush1.msra.mxu0 0.0
  %1515 = vmatprep.subr.mxu0 0.0
  %1516 = vmatpush1.msra.mxu0 0.0
  %1517 = vmatprep.subr.mxu0 0.0
  %1518 = vmatpush1.msra.mxu0 0.0
  %1519 = vmatprep.subr.mxu0 0.0
  %1520 = vmatpush1.msra.mxu0 0.0
  %1521 = vmatprep.subr.mxu0 0.0
  %1522 = vmatpush1.msra.mxu0 0.0
  %1523 = vmatprep.subr.mxu0 0.0
  %1524 = vmatpush1.msra.mxu0 0.0
  %1525 = vmatprep.subr.mxu0 0.0
  %1526 = vmatpush1.msra.mxu0 0.0
  %1527 = vmatprep.subr.mxu0 0.0
  %1528 = vmatpush1.msra.mxu0 0.0
  %1529 = vmatprep.subr.mxu0 0.0
  %1530 = vmatpush1.msra.mxu0 0.0
  %1531 = vmatprep.subr.mxu0 0.0
  %1532 = vmatpush1.msra.mxu0 0.0
  %1533 = vmatprep.subr.mxu0 0.0
  %1534 = vmatpush1.msra.mxu0 0.0
  %1535 = vmatprep.subr.mxu0 0.0
  %1536 = vmatpush1.msra.mxu0 0.0
  %1537 = vmatprep.subr.mxu0 0.0
  %1538 = vmatpush1.msra.mxu0 0.0
  %1539 = vmatprep.mubr.f32.mxu0 0.0
  %1540 = vmatmul.mubr.f32.gmra.mrb[0].mxu0 %v1470
  %v1541 = vpop.f32.mrb[0].mxu0
  %v1542 = vadd.f32 0.0, %v1541
  %v1543 = vpop.f32.mrb[0].mxu0
  %1544 = vmatprep.mubr.f32.mxu0 0.0
  %1545 = vmatmul.mubr.f32.gmra.mrb[0].mxu0 %v1473
  %v1546 = vpop.f32.mrb[0].mxu0
  %v1547 = vadd.f32 0.0, %v1546
  %v1548 = vpop.f32.mrb[0].mxu0
  %1549 = vdwg.mxu0
  %v1550 = vmul.f32 %v1542, 0.5
  %v1551 = vmul.f32 %v1547, 0.5
  %v1552 = vmul.f32 %v1542, 0.044715
  %v1553 = vmul.f32 %v1547, 0.044715
  %v1554 = vmul.f32 %v1552, %v1542
  %v1555 = vmul.f32 %v1553, %v1547
  %v1556 = vmul.f32 %v1554, %v1542
  %v1557 = vmul.f32 %v1555, %v1547
  %v1558 = vadd.f32 %v1542, %v1556
  %v1559 = vadd.f32 %v1547, %v1557
  %v1560 = vmul.f32 %v1558, 0.7978846
  %v1561 = vmul.f32 %v1559, 0.7978846
  %v1562 = vtanh.pop %v1560
  %v1563 = vtanh.pop %v1561
  %v1564 = vadd.f32 %v1562, 1.0
  %v1565 = vadd.f32 %v1563, 1.0
  %v1566 = vmul.f32 %v1550, %v1564
  %v1567 = vmul.f32 %v1551, %v1565
  %1570 = vrot.lane.b32.xlu0 %v1542, 64
  %v1571 = vpop.permute.xlu0 %1570
  %1572 = vrot.lane.b32.xlu0 %v1547, 64
  %v1573 = vpop.permute.xlu0 %1572
  %v1576 = vmul.f32 %v1566, %v1571
  %v1577 = vmul.f32 %v1567, %v1573
  %vm1578 = vcmask 523264
  %v1580 = vsel %vm1578, %v1576, 0
  %v1583 = vsel %vm1578, %v1577, 0
  %1585 = vmatprep.subr.mxu0 0.0
  %1586 = vmatpush1.msra.mxu0 %v1437
  %1587 = vmatprep.subr.mxu0 0.0
  %1588 = vmatpush1.msra.mxu0 %v1438
  %1589 = vmatprep.subr.mxu0 0.0
  %1590 = vmatpush1.msra.mxu0 %v1439
  %1591 = vmatprep.subr.mxu0 0.0
  %1592 = vmatpush1.msra.mxu0 %v1440
  %1593 = vmatprep.subr.mxu0 0.0
  %1594 = vmatpush1.msra.mxu0 %v1441
  %1595 = vmatprep.subr.mxu0 0.0
  %1596 = vmatpush1.msra.mxu0 %v1442
  %1597 = vmatprep.subr.mxu0 0.0
  %1598 = vmatpush1.msra.mxu0 %v1443
  %1599 = vmatprep.subr.mxu0 0.0
  %1600 = vmatpush1.msra.mxu0 %v1444
  %1601 = vmatprep.subr.mxu0 0.0
  %1602 = vmatpush1.msra.mxu0 0.0
  %1603 = vmatprep.subr.mxu0 0.0
  %1604 = vmatpush1.msra.mxu0 0.0
  %1605 = vmatprep.subr.mxu0 0.0
  %1606 = vmatpush1.msra.mxu0 0.0
  %1607 = vmatprep.subr.mxu0 0.0
  %1608 = vmatpush1.msra.mxu0 0.0
  %1609 = vmatprep.subr.mxu0 0.0
  %1610 = vmatpush1.msra.mxu0 0.0
  %1611 = vmatprep.subr.mxu0 0.0
  %1612 = vmatpush1.msra.mxu0 0.0
  %1613 = vmatprep.subr.mxu0 0.0
  %1614 = vmatpush1.msra.mxu0 0.0
  %1615 = vmatprep.subr.mxu0 0.0
  %1616 = vmatpush1.msra.mxu0 0.0
  %1617 = vmatprep.subr.mxu0 0.0
  %1618 = vmatpush1.msra.mxu0 0.0
  %1619 = vmatprep.subr.mxu0 0.0
  %1620 = vmatpush1.msra.mxu0 0.0
  %1621 = vmatprep.subr.mxu0 0.0
  %1622 = vmatpush1.msra.mxu0 0.0
  %1623 = vmatprep.subr.mxu0 0.0
  %1624 = vmatpush1.msra.mxu0 0.0
  %1625 = vmatprep.subr.mxu0 0.0
  %1626 = vmatpush1.msra.mxu0 0.0
  %1627 = vmatprep.subr.mxu0 0.0
  %1628 = vmatpush1.msra.mxu0 0.0
  %1629 = vmatprep.subr.mxu0 0.0
  %1630 = vmatpush1.msra.mxu0 0.0
  %1631 = vmatprep.subr.mxu0 0.0
  %1632 = vmatpush1.msra.mxu0 0.0
  %1633 = vmatprep.subr.mxu0 0.0
  %1634 = vmatpush1.msra.mxu0 0.0
  %1635 = vmatprep.subr.mxu0 0.0
  %1636 = vmatpush1.msra.mxu0 0.0
  %1637 = vmatprep.subr.mxu0 0.0
  %1638 = vmatpush1.msra.mxu0 0.0
  %1639 = vmatprep.subr.mxu0 0.0
  %1640 = vmatpush1.msra.mxu0 0.0
  %1641 = vmatprep.subr.mxu0 0.0
  %1642 = vmatpush1.msra.mxu0 0.0
  %1643 = vmatprep.subr.mxu0 0.0
  %1644 = vmatpush1.msra.mxu0 0.0
  %1645 = vmatprep.subr.mxu0 0.0
  %1646 = vmatpush1.msra.mxu0 0.0
  %1647 = vmatprep.subr.mxu0 0.0
  %1648 = vmatpush1.msra.mxu0 0.0
  %1649 = vmatprep.mubr.f32.mxu0 0.0
  %1650 = vmatmul.mubr.f32.gmra.mrb[0].mxu0 %v1580
  %v1651 = vpop.f32.mrb[0].mxu0
  %v1652 = vadd.f32 0.0, %v1651
  %v1653 = vpop.f32.mrb[0].mxu0
  %1654 = vmatprep.mubr.f32.mxu0 0.0
  %1655 = vmatmul.mubr.f32.gmra.mrb[0].mxu0 %v1583
  %v1656 = vpop.f32.mrb[0].mxu0
  %v1657 = vadd.f32 0.0, %v1656
  %v1658 = vpop.f32.mrb[0].mxu0
  %1659 = vdwg.mxu0
  %v1660 = vadd.f32 %v1430, %v1652
  %v1661 = vadd.f32 %v1431, %v1657
  %s1662 = scalar_lea.vmem %s5, 1
  %v1663 = vld [vmem:[%s1662] sm:$0x1]
  %s1664 = scalar_lea.vmem %s6, 32
  %v1665 = vld [vmem:[%s1664] sm:$0xff]
  %v1666 = vld [vmem:[%s1664 + $0x8] sm:$0xff]
  %v1667 = vld [vmem:[%s1664 + $0x10] sm:$0xff]
  %v1668 = vld [vmem:[%s1664 + $0x18] sm:$0xff]
  %s1669 = scalar_lea.vmem %s7, 32
  %v1670 = vld [vmem:[%s1669] sm:$0xff]
  %v1671 = vld [vmem:[%s1669 + $0x8] sm:$0xff]
  %v1672 = vld [vmem:[%s1669 + $0x10] sm:$0xff]
  %v1673 = vld [vmem:[%s1669 + $0x18] sm:$0xff]
  %s1674 = scalar_lea.vmem %s8, 32
  %v1675 = vld [vmem:[%s1674] sm:$0xff]
  %v1676 = vld [vmem:[%s1674 + $0x8] sm:$0xff]
  %v1677 = vld [vmem:[%s1674 + $0x10] sm:$0xff]
  %v1678 = vld [vmem:[%s1674 + $0x18] sm:$0xff]
  %v1679 = vmul.f32 %v1660, %v1660
  %v1680 = vmul.f32 %v1661, %v1661
  %v1681 = vsel %vm124, %v1679, 0.0
  %1682 = vadd.xlane.f32.xlu0 %v1681
  %v1683 = vpop.xlane.xlu0 %1682
  %v1684 = vsel %vm124, %v1680, 0.0
  %1685 = vadd.xlane.f32.xlu0 %v1684
  %v1686 = vpop.xlane.xlu0 %1685
  %v1687 = vmul.f32 %v1683, %v131
  %v1688 = vmul.f32 %v1686, %v131
  %v1689 = vadd.f32 %v1687, 1e-06
  %v1690 = vadd.f32 %v1688, 1e-06
  %v1691 = vrsqrt.pop %v1689
  %v1692 = vrsqrt.pop %v1690
  %v1693 = vmul.f32 %v1660, %v1691
  %v1694 = vmul.f32 %v1661, %v1692
  %v1696 = vlaneseq
  %v1697 = vshrl.u32 %v1696, 7
  %v1698 = vsub.s32 0, %v1697
  %v1699 = vrot.slane %v1663, %v1698
  %v1701 = vmul.f32 %v1693, %v1699
  %v1702 = vmul.f32 %v1694, %v1699
  %v1704 = vsel %vm124, %v1701, 0
  %v1707 = vsel %vm124, %v1702, 0
  %1709 = vmatprep.subr.mxu0 0.0
  %1710 = vmatpush1.msra.mxu0 %v1665
  %1711 = vmatprep.subr.mxu0 0.0
  %1712 = vmatpush1.msra.mxu0 %v1666
  %1713 = vmatprep.subr.mxu0 0.0
  %1714 = vmatpush1.msra.mxu0 %v1667
  %1715 = vmatprep.subr.mxu0 0.0
  %1716 = vmatpush1.msra.mxu0 %v1668
  %1717 = vmatprep.subr.mxu0 0.0
  %1718 = vmatpush1.msra.mxu0 0.0
  %1719 = vmatprep.subr.mxu0 0.0
  %1720 = vmatpush1.msra.mxu0 0.0
  %1721 = vmatprep.subr.mxu0 0.0
  %1722 = vmatpush1.msra.mxu0 0.0
  %1723 = vmatprep.subr.mxu0 0.0
  %1724 = vmatpush1.msra.mxu0 0.0
  %1725 = vmatprep.subr.mxu0 0.0
  %1726 = vmatpush1.msra.mxu0 0.0
  %1727 = vmatprep.subr.mxu0 0.0
  %1728 = vmatpush1.msra.mxu0 0.0
  %1729 = vmatprep.subr.mxu0 0.0
  %1730 = vmatpush1.msra.mxu0 0.0
  %1731 = vmatprep.subr.mxu0 0.0
  %1732 = vmatpush1.msra.mxu0 0.0
  %1733 = vmatprep.subr.mxu0 0.0
  %1734 = vmatpush1.msra.mxu0 0.0
  %1735 = vmatprep.subr.mxu0 0.0
  %1736 = vmatpush1.msra.mxu0 0.0
  %1737 = vmatprep.subr.mxu0 0.0
  %1738 = vmatpush1.msra.mxu0 0.0
  %1739 = vmatprep.subr.mxu0 0.0
  %1740 = vmatpush1.msra.mxu0 0.0
  %1741 = vmatprep.subr.mxu0 0.0
  %1742 = vmatpush1.msra.mxu0 0.0
  %1743 = vmatprep.subr.mxu0 0.0
  %1744 = vmatpush1.msra.mxu0 0.0
  %1745 = vmatprep.subr.mxu0 0.0
  %1746 = vmatpush1.msra.mxu0 0.0
  %1747 = vmatprep.subr.mxu0 0.0
  %1748 = vmatpush1.msra.mxu0 0.0
  %1749 = vmatprep.subr.mxu0 0.0
  %1750 = vmatpush1.msra.mxu0 0.0
  %1751 = vmatprep.subr.mxu0 0.0
  %1752 = vmatpush1.msra.mxu0 0.0
  %1753 = vmatprep.subr.mxu0 0.0
  %1754 = vmatpush1.msra.mxu0 0.0
  %1755 = vmatprep.subr.mxu0 0.0
  %1756 = vmatpush1.msra.mxu0 0.0
  %1757 = vmatprep.subr.mxu0 0.0
  %1758 = vmatpush1.msra.mxu0 0.0
  %1759 = vmatprep.subr.mxu0 0.0
  %1760 = vmatpush1.msra.mxu0 0.0
  %1761 = vmatprep.subr.mxu0 0.0
  %1762 = vmatpush1.msra.mxu0 0.0
  %1763 = vmatprep.subr.mxu0 0.0
  %1764 = vmatpush1.msra.mxu0 0.0
  %1765 = vmatprep.subr.mxu0 0.0
  %1766 = vmatpush1.msra.mxu0 0.0
  %1767 = vmatprep.subr.mxu0 0.0
  %1768 = vmatpush1.msra.mxu0 0.0
  %1769 = vmatprep.subr.mxu0 0.0
  %1770 = vmatpush1.msra.mxu0 0.0
  %1771 = vmatprep.subr.mxu0 0.0
  %1772 = vmatpush1.msra.mxu0 0.0
  %1773 = vmatprep.mubr.f32.mxu0 0.0
  %1774 = vmatmul.mubr.f32.gmra.mrb[0].mxu0 %v1704
  %v1775 = vpop.f32.mrb[0].mxu0
  %v1776 = vadd.f32 0.0, %v1775
  %v1777 = vpop.f32.mrb[0].mxu0
  %1778 = vmatprep.mubr.f32.mxu0 0.0
  %1779 = vmatmul.mubr.f32.gmra.mrb[0].mxu0 %v1707
  %v1780 = vpop.f32.mrb[0].mxu0
  %v1781 = vadd.f32 0.0, %v1780
  %v1782 = vpop.f32.mrb[0].mxu0
  %1783 = vdwg.mxu0
  %1784 = vmatprep.subr.mxu0 0.0
  %1785 = vmatpush1.msra.mxu0 %v1670
  %1786 = vmatprep.subr.mxu0 0.0
  %1787 = vmatpush1.msra.mxu0 %v1671
  %1788 = vmatprep.subr.mxu0 0.0
  %1789 = vmatpush1.msra.mxu0 %v1672
  %1790 = vmatprep.subr.mxu0 0.0
  %1791 = vmatpush1.msra.mxu0 %v1673
  %1792 = vmatprep.subr.mxu0 0.0
  %1793 = vmatpush1.msra.mxu0 0.0
  %1794 = vmatprep.subr.mxu0 0.0
  %1795 = vmatpush1.msra.mxu0 0.0
  %1796 = vmatprep.subr.mxu0 0.0
  %1797 = vmatpush1.msra.mxu0 0.0
  %1798 = vmatprep.subr.mxu0 0.0
  %1799 = vmatpush1.msra.mxu0 0.0
  %1800 = vmatprep.subr.mxu0 0.0
  %1801 = vmatpush1.msra.mxu0 0.0
  %1802 = vmatprep.subr.mxu0 0.0
  %1803 = vmatpush1.msra.mxu0 0.0
  %1804 = vmatprep.subr.mxu0 0.0
  %1805 = vmatpush1.msra.mxu0 0.0
  %1806 = vmatprep.subr.mxu0 0.0
  %1807 = vmatpush1.msra.mxu0 0.0
  %1808 = vmatprep.subr.mxu0 0.0
  %1809 = vmatpush1.msra.mxu0 0.0
  %1810 = vmatprep.subr.mxu0 0.0
  %1811 = vmatpush1.msra.mxu0 0.0
  %1812 = vmatprep.subr.mxu0 0.0
  %1813 = vmatpush1.msra.mxu0 0.0
  %1814 = vmatprep.subr.mxu0 0.0
  %1815 = vmatpush1.msra.mxu0 0.0
  %1816 = vmatprep.subr.mxu0 0.0
  %1817 = vmatpush1.msra.mxu0 0.0
  %1818 = vmatprep.subr.mxu0 0.0
  %1819 = vmatpush1.msra.mxu0 0.0
  %1820 = vmatprep.subr.mxu0 0.0
  %1821 = vmatpush1.msra.mxu0 0.0
  %1822 = vmatprep.subr.mxu0 0.0
  %1823 = vmatpush1.msra.mxu0 0.0
  %1824 = vmatprep.subr.mxu0 0.0
  %1825 = vmatpush1.msra.mxu0 0.0
  %1826 = vmatprep.subr.mxu0 0.0
  %1827 = vmatpush1.msra.mxu0 0.0
  %1828 = vmatprep.subr.mxu0 0.0
  %1829 = vmatpush1.msra.mxu0 0.0
  %1830 = vmatprep.subr.mxu0 0.0
  %1831 = vmatpush1.msra.mxu0 0.0
  %1832 = vmatprep.subr.mxu0 0.0
  %1833 = vmatpush1.msra.mxu0 0.0
  %1834 = vmatprep.subr.mxu0 0.0
  %1835 = vmatpush1.msra.mxu0 0.0
  %1836 = vmatprep.subr.mxu0 0.0
  %1837 = vmatpush1.msra.mxu0 0.0
  %1838 = vmatprep.subr.mxu0 0.0
  %1839 = vmatpush1.msra.mxu0 0.0
  %1840 = vmatprep.subr.mxu0 0.0
  %1841 = vmatpush1.msra.mxu0 0.0
  %1842 = vmatprep.subr.mxu0 0.0
  %1843 = vmatpush1.msra.mxu0 0.0
  %1844 = vmatprep.subr.mxu0 0.0
  %1845 = vmatpush1.msra.mxu0 0.0
  %1846 = vmatprep.subr.mxu0 0.0
  %1847 = vmatpush1.msra.mxu0 0.0
  %1848 = vmatprep.mubr.f32.mxu0 0.0
  %1849 = vmatmul.mubr.f32.gmra.mrb[0].mxu0 %v1704
  %v1850 = vpop.f32.mrb[0].mxu0
  %v1851 = vadd.f32 0.0, %v1850
  %v1852 = vpop.f32.mrb[0].mxu0
  %1853 = vmatprep.mubr.f32.mxu0 0.0
  %1854 = vmatmul.mubr.f32.gmra.mrb[0].mxu0 %v1707
  %v1855 = vpop.f32.mrb[0].mxu0
  %v1856 = vadd.f32 0.0, %v1855
  %v1857 = vpop.f32.mrb[0].mxu0
  %1858 = vdwg.mxu0
  %v1860 = vsel %vm304, %v1776, 0
  %v1863 = vsel %vm304, %v1781, 0
  %v1866 = vsel %vm304, %v1851, 0
  %v1869 = vsel %vm304, %v1856, 0
  %1871 = vmatprep.subr.mxu0 0.0
  %1872 = vmatpush1.xpose.msra.mxu0 %v1866
  %1873 = vmatprep.subr.mxu0 0.0
  %1874 = vmatpush1.xpose.msra.mxu0 %v1869
  %1875 = vmatprep.subr.mxu0 0.0
  %1876 = vmatpush1.xpose.msra.mxu0 0.0
  %1877 = vmatprep.subr.mxu0 0.0
  %1878 = vmatpush1.xpose.msra.mxu0 0.0
  %1879 = vmatprep.subr.mxu0 0.0
  %1880 = vmatpush1.xpose.msra.mxu0 0.0
  %1881 = vmatprep.subr.mxu0 0.0
  %1882 = vmatpush1.xpose.msra.mxu0 0.0
  %1883 = vmatprep.subr.mxu0 0.0
  %1884 = vmatpush1.xpose.msra.mxu0 0.0
  %1885 = vmatprep.subr.mxu0 0.0
  %1886 = vmatpush1.xpose.msra.mxu0 0.0
  %1887 = vmatprep.subr.mxu0 0.0
  %1888 = vmatpush1.xpose.msra.mxu0 0.0
  %1889 = vmatprep.subr.mxu0 0.0
  %1890 = vmatpush1.xpose.msra.mxu0 0.0
  %1891 = vmatprep.subr.mxu0 0.0
  %1892 = vmatpush1.xpose.msra.mxu0 0.0
  %1893 = vmatprep.subr.mxu0 0.0
  %1894 = vmatpush1.xpose.msra.mxu0 0.0
  %1895 = vmatprep.subr.mxu0 0.0
  %1896 = vmatpush1.xpose.msra.mxu0 0.0
  %1897 = vmatprep.subr.mxu0 0.0
  %1898 = vmatpush1.xpose.msra.mxu0 0.0
  %1899 = vmatprep.subr.mxu0 0.0
  %1900 = vmatpush1.xpose.msra.mxu0 0.0
  %1901 = vmatprep.subr.mxu0 0.0
  %1902 = vmatpush1.xpose.msra.mxu0 0.0
  %1903 = vmatprep.subr.mxu0 0.0
  %1904 = vmatpush1.xpose.msra.mxu0 0.0
  %1905 = vmatprep.subr.mxu0 0.0
  %1906 = vmatpush1.xpose.msra.mxu0 0.0
  %1907 = vmatprep.subr.mxu0 0.0
  %1908 = vmatpush1.xpose.msra.mxu0 0.0
  %1909 = vmatprep.subr.mxu0 0.0
  %1910 = vmatpush1.xpose.msra.mxu0 0.0
  %1911 = vmatprep.subr.mxu0 0.0
  %1912 = vmatpush1.xpose.msra.mxu0 0.0
  %1913 = vmatprep.subr.mxu0 0.0
  %1914 = vmatpush1.xpose.msra.mxu0 0.0
  %1915 = vmatprep.subr.mxu0 0.0
  %1916 = vmatpush1.xpose.msra.mxu0 0.0
  %1917 = vmatprep.subr.mxu0 0.0
  %1918 = vmatpush1.xpose.msra.mxu0 0.0
  %1919 = vmatprep.subr.mxu0 0.0
  %1920 = vmatpush1.xpose.msra.mxu0 0.0
  %1921 = vmatprep.subr.mxu0 0.0
  %1922 = vmatpush1.xpose.msra.mxu0 0.0
  %1923 = vmatprep.subr.mxu0 0.0
  %1924 = vmatpush1.xpose.msra.mxu0 0.0
  %1925 = vmatprep.subr.mxu0 0.0
  %1926 = vmatpush1.xpose.msra.mxu0 0.0
  %1927 = vmatprep.subr.mxu0 0.0
  %1928 = vmatpush1.xpose.msra.mxu0 0.0
  %1929 = vmatprep.subr.mxu0 0.0
  %1930 = vmatpush1.xpose.msra.mxu0 0.0
  %1931 = vmatprep.subr.mxu0 0.0
  %1932 = vmatpush1.xpose.msra.mxu0 0.0
  %1933 = vmatprep.subr.mxu0 0.0
  %1934 = vmatpush1.xpose.msra.mxu0 0.0
  %1935 = vmatprep.mubr.f32.mxu0 0.0
  %1936 = vmatmul.mubr.f32.gmra.mrb[0].mxu0 %v1860
  %v1937 = vpop.f32.mrb[0].mxu0
  %v1938 = vadd.f32 %v83, %v1937
  %v1939 = vpop.f32.mrb[0].mxu0
  %1940 = vmatprep.mubr.f32.mxu0 0.0
  %1941 = vmatmul.mubr.f32.gmra.mrb[0].mxu0 %v1863
  %v1942 = vpop.f32.mrb[0].mxu0
  %v1943 = vadd.f32 %v84, %v1942
  %v1944 = vpop.f32.mrb[0].mxu0
  %1945 = vdwg.mxu0
  %v1946 = vsel %vm392, %v1938, -inf
  %1947 = vmax.xlane.f32.xlu0 %v1946
  %v1948 = vpop.xlane.xlu0 %1947
  %v1949 = vsel %vm392, %v1943, -inf
  %1950 = vmax.xlane.f32.xlu0 %v1949
  %v1951 = vpop.xlane.xlu0 %1950
  %v1952 = vsub.f32 %v1938, %v1948
  %v1953 = vsub.f32 %v1943, %v1951
  %v1954 = vmul.f32 %v1952, 1.442695
  %v1955 = vpow.pop %v1954
  %v1956 = vmul.f32 %v1953, 1.442695
  %v1957 = vpow.pop %v1956
  %v1958 = vsel %vm392, %v1955, 0.0
  %1959 = vadd.xlane.f32.xlu0 %v1958
  %v1960 = vpop.xlane.xlu0 %1959
  %v1961 = vsel %vm392, %v1957, 0.0
  %1962 = vadd.xlane.f32.xlu0 %v1961
  %v1963 = vpop.xlane.xlu0 %1962
  %v1964 = vrcp.pop %v1960
  %v1965 = vrcp.pop %v1963
  %v1966 = vmul.f32 %v1955, %v1964
  %v1967 = vmul.f32 %v1957, %v1965
  %1968 = vrot.lane.b32.xlu0 %v1851, 96
  %v1969 = vpop.permute.xlu0 %1968
  %1970 = vrot.lane.b32.xlu0 %v1856, 96
  %v1971 = vpop.permute.xlu0 %1970
  %v1975 = vsel %vm392, %v1966, 0
  %v1978 = vsel %vm392, %v1967, 0
  %1980 = vmatprep.subr.mxu0 0.0
  %1981 = vmatpush1.msra.mxu0 %v1969
  %1982 = vmatprep.subr.mxu0 0.0
  %1983 = vmatpush1.msra.mxu0 %v1971
  %1984 = vmatprep.subr.mxu0 0.0
  %1985 = vmatpush1.msra.mxu0 0.0
  %1986 = vmatprep.subr.mxu0 0.0
  %1987 = vmatpush1.msra.mxu0 0.0
  %1988 = vmatprep.subr.mxu0 0.0
  %1989 = vmatpush1.msra.mxu0 0.0
  %1990 = vmatprep.subr.mxu0 0.0
  %1991 = vmatpush1.msra.mxu0 0.0
  %1992 = vmatprep.subr.mxu0 0.0
  %1993 = vmatpush1.msra.mxu0 0.0
  %1994 = vmatprep.subr.mxu0 0.0
  %1995 = vmatpush1.msra.mxu0 0.0
  %1996 = vmatprep.subr.mxu0 0.0
  %1997 = vmatpush1.msra.mxu0 0.0
  %1998 = vmatprep.subr.mxu0 0.0
  %1999 = vmatpush1.msra.mxu0 0.0
  %2000 = vmatprep.subr.mxu0 0.0
  %2001 = vmatpush1.msra.mxu0 0.0
  %2002 = vmatprep.subr.mxu0 0.0
  %2003 = vmatpush1.msra.mxu0 0.0
  %2004 = vmatprep.subr.mxu0 0.0
  %2005 = vmatpush1.msra.mxu0 0.0
  %2006 = vmatprep.subr.mxu0 0.0
  %2007 = vmatpush1.msra.mxu0 0.0
  %2008 = vmatprep.subr.mxu0 0.0
  %2009 = vmatpush1.msra.mxu0 0.0
  %2010 = vmatprep.subr.mxu0 0.0
  %2011 = vmatpush1.msra.mxu0 0.0
  %2012 = vmatprep.subr.mxu0 0.0
  %2013 = vmatpush1.msra.mxu0 0.0
  %2014 = vmatprep.subr.mxu0 0.0
  %2015 = vmatpush1.msra.mxu0 0.0
  %2016 = vmatprep.subr.mxu0 0.0
  %2017 = vmatpush1.msra.mxu0 0.0
  %2018 = vmatprep.subr.mxu0 0.0
  %2019 = vmatpush1.msra.mxu0 0.0
  %2020 = vmatprep.subr.mxu0 0.0
  %2021 = vmatpush1.msra.mxu0 0.0
  %2022 = vmatprep.subr.mxu0 0.0
  %2023 = vmatpush1.msra.mxu0 0.0
  %2024 = vmatprep.subr.mxu0 0.0
  %2025 = vmatpush1.msra.mxu0 0.0
  %2026 = vmatprep.subr.mxu0 0.0
  %2027 = vmatpush1.msra.mxu0 0.0
  %2028 = vmatprep.subr.mxu0 0.0
  %2029 = vmatpush1.msra.mxu0 0.0
  %2030 = vmatprep.subr.mxu0 0.0
  %2031 = vmatpush1.msra.mxu0 0.0
  %2032 = vmatprep.subr.mxu0 0.0
  %2033 = vmatpush1.msra.mxu0 0.0
  %2034 = vmatprep.subr.mxu0 0.0
  %2035 = vmatpush1.msra.mxu0 0.0
  %2036 = vmatprep.subr.mxu0 0.0
  %2037 = vmatpush1.msra.mxu0 0.0
  %2038 = vmatprep.subr.mxu0 0.0
  %2039 = vmatpush1.msra.mxu0 0.0
  %2040 = vmatprep.subr.mxu0 0.0
  %2041 = vmatpush1.msra.mxu0 0.0
  %2042 = vmatprep.subr.mxu0 0.0
  %2043 = vmatpush1.msra.mxu0 0.0
  %2044 = vmatprep.mubr.f32.mxu0 0.0
  %2045 = vmatmul.mubr.f32.gmra.mrb[0].mxu0 %v1975
  %v2046 = vpop.f32.mrb[0].mxu0
  %v2047 = vadd.f32 0.0, %v2046
  %v2048 = vpop.f32.mrb[0].mxu0
  %2049 = vmatprep.mubr.f32.mxu0 0.0
  %2050 = vmatmul.mubr.f32.gmra.mrb[0].mxu0 %v1978
  %v2051 = vpop.f32.mrb[0].mxu0
  %v2052 = vadd.f32 0.0, %v2051
  %v2053 = vpop.f32.mrb[0].mxu0
  %2054 = vdwg.mxu0
  %2055 = vrot.lane.b32.xlu0 %v1776, 120
  %v2056 = vpop.permute.xlu0 %2055
  %2057 = vrot.lane.b32.xlu0 %v1781, 120
  %v2058 = vpop.permute.xlu0 %2057
  %2059 = vrot.lane.b32.xlu0 %v1851, 120
  %v2060 = vpop.permute.xlu0 %2059
  %2061 = vrot.lane.b32.xlu0 %v1856, 120
  %v2062 = vpop.permute.xlu0 %2061
  %v2063 = vsel %vm304, %v2056, 0
  %v2065 = vsel %vm304, %v2058, 0
  %v2067 = vsel %vm304, %v2060, 0
  %v2069 = vsel %vm304, %v2062, 0
  %2071 = vmatprep.subr.mxu0 0.0
  %2072 = vmatpush1.xpose.msra.mxu0 %v2067
  %2073 = vmatprep.subr.mxu0 0.0
  %2074 = vmatpush1.xpose.msra.mxu0 %v2069
  %2075 = vmatprep.subr.mxu0 0.0
  %2076 = vmatpush1.xpose.msra.mxu0 0.0
  %2077 = vmatprep.subr.mxu0 0.0
  %2078 = vmatpush1.xpose.msra.mxu0 0.0
  %2079 = vmatprep.subr.mxu0 0.0
  %2080 = vmatpush1.xpose.msra.mxu0 0.0
  %2081 = vmatprep.subr.mxu0 0.0
  %2082 = vmatpush1.xpose.msra.mxu0 0.0
  %2083 = vmatprep.subr.mxu0 0.0
  %2084 = vmatpush1.xpose.msra.mxu0 0.0
  %2085 = vmatprep.subr.mxu0 0.0
  %2086 = vmatpush1.xpose.msra.mxu0 0.0
  %2087 = vmatprep.subr.mxu0 0.0
  %2088 = vmatpush1.xpose.msra.mxu0 0.0
  %2089 = vmatprep.subr.mxu0 0.0
  %2090 = vmatpush1.xpose.msra.mxu0 0.0
  %2091 = vmatprep.subr.mxu0 0.0
  %2092 = vmatpush1.xpose.msra.mxu0 0.0
  %2093 = vmatprep.subr.mxu0 0.0
  %2094 = vmatpush1.xpose.msra.mxu0 0.0
  %2095 = vmatprep.subr.mxu0 0.0
  %2096 = vmatpush1.xpose.msra.mxu0 0.0
  %2097 = vmatprep.subr.mxu0 0.0
  %2098 = vmatpush1.xpose.msra.mxu0 0.0
  %2099 = vmatprep.subr.mxu0 0.0
  %2100 = vmatpush1.xpose.msra.mxu0 0.0
  %2101 = vmatprep.subr.mxu0 0.0
  %2102 = vmatpush1.xpose.msra.mxu0 0.0
  %2103 = vmatprep.subr.mxu0 0.0
  %2104 = vmatpush1.xpose.msra.mxu0 0.0
  %2105 = vmatprep.subr.mxu0 0.0
  %2106 = vmatpush1.xpose.msra.mxu0 0.0
  %2107 = vmatprep.subr.mxu0 0.0
  %2108 = vmatpush1.xpose.msra.mxu0 0.0
  %2109 = vmatprep.subr.mxu0 0.0
  %2110 = vmatpush1.xpose.msra.mxu0 0.0
  %2111 = vmatprep.subr.mxu0 0.0
  %2112 = vmatpush1.xpose.msra.mxu0 0.0
  %2113 = vmatprep.subr.mxu0 0.0
  %2114 = vmatpush1.xpose.msra.mxu0 0.0
  %2115 = vmatprep.subr.mxu0 0.0
  %2116 = vmatpush1.xpose.msra.mxu0 0.0
  %2117 = vmatprep.subr.mxu0 0.0
  %2118 = vmatpush1.xpose.msra.mxu0 0.0
  %2119 = vmatprep.subr.mxu0 0.0
  %2120 = vmatpush1.xpose.msra.mxu0 0.0
  %2121 = vmatprep.subr.mxu0 0.0
  %2122 = vmatpush1.xpose.msra.mxu0 0.0
  %2123 = vmatprep.subr.mxu0 0.0
  %2124 = vmatpush1.xpose.msra.mxu0 0.0
  %2125 = vmatprep.subr.mxu0 0.0
  %2126 = vmatpush1.xpose.msra.mxu0 0.0
  %2127 = vmatprep.subr.mxu0 0.0
  %2128 = vmatpush1.xpose.msra.mxu0 0.0
  %2129 = vmatprep.subr.mxu0 0.0
  %2130 = vmatpush1.xpose.msra.mxu0 0.0
  %2131 = vmatprep.subr.mxu0 0.0
  %2132 = vmatpush1.xpose.msra.mxu0 0.0
  %2133 = vmatprep.subr.mxu0 0.0
  %2134 = vmatpush1.xpose.msra.mxu0 0.0
  %2135 = vmatprep.mubr.f32.mxu0 0.0
  %2136 = vmatmul.mubr.f32.gmra.mrb[0].mxu0 %v2063
  %v2137 = vpop.f32.mrb[0].mxu0
  %v2138 = vadd.f32 %v85, %v2137
  %v2139 = vpop.f32.mrb[0].mxu0
  %2140 = vmatprep.mubr.f32.mxu0 0.0
  %2141 = vmatmul.mubr.f32.gmra.mrb[0].mxu0 %v2065
  %v2142 = vpop.f32.mrb[0].mxu0
  %v2143 = vadd.f32 %v86, %v2142
  %v2144 = vpop.f32.mrb[0].mxu0
  %2145 = vdwg.mxu0
  %v2146 = vsel %vm392, %v2138, -inf
  %2147 = vmax.xlane.f32.xlu0 %v2146
  %v2148 = vpop.xlane.xlu0 %2147
  %v2149 = vsel %vm392, %v2143, -inf
  %2150 = vmax.xlane.f32.xlu0 %v2149
  %v2151 = vpop.xlane.xlu0 %2150
  %v2152 = vsub.f32 %v2138, %v2148
  %v2153 = vsub.f32 %v2143, %v2151
  %v2154 = vmul.f32 %v2152, 1.442695
  %v2155 = vpow.pop %v2154
  %v2156 = vmul.f32 %v2153, 1.442695
  %v2157 = vpow.pop %v2156
  %v2158 = vsel %vm392, %v2155, 0.0
  %2159 = vadd.xlane.f32.xlu0 %v2158
  %v2160 = vpop.xlane.xlu0 %2159
  %v2161 = vsel %vm392, %v2157, 0.0
  %2162 = vadd.xlane.f32.xlu0 %v2161
  %v2163 = vpop.xlane.xlu0 %2162
  %v2164 = vrcp.pop %v2160
  %v2165 = vrcp.pop %v2163
  %v2166 = vmul.f32 %v2155, %v2164
  %v2167 = vmul.f32 %v2157, %v2165
  %2168 = vrot.lane.b32.xlu0 %v1851, 88
  %v2169 = vpop.permute.xlu0 %2168
  %2170 = vrot.lane.b32.xlu0 %v1856, 88
  %v2171 = vpop.permute.xlu0 %2170
  %v2175 = vsel %vm392, %v2166, 0
  %v2178 = vsel %vm392, %v2167, 0
  %2180 = vmatprep.subr.mxu0 0.0
  %2181 = vmatpush1.msra.mxu0 %v2169
  %2182 = vmatprep.subr.mxu0 0.0
  %2183 = vmatpush1.msra.mxu0 %v2171
  %2184 = vmatprep.subr.mxu0 0.0
  %2185 = vmatpush1.msra.mxu0 0.0
  %2186 = vmatprep.subr.mxu0 0.0
  %2187 = vmatpush1.msra.mxu0 0.0
  %2188 = vmatprep.subr.mxu0 0.0
  %2189 = vmatpush1.msra.mxu0 0.0
  %2190 = vmatprep.subr.mxu0 0.0
  %2191 = vmatpush1.msra.mxu0 0.0
  %2192 = vmatprep.subr.mxu0 0.0
  %2193 = vmatpush1.msra.mxu0 0.0
  %2194 = vmatprep.subr.mxu0 0.0
  %2195 = vmatpush1.msra.mxu0 0.0
  %2196 = vmatprep.subr.mxu0 0.0
  %2197 = vmatpush1.msra.mxu0 0.0
  %2198 = vmatprep.subr.mxu0 0.0
  %2199 = vmatpush1.msra.mxu0 0.0
  %2200 = vmatprep.subr.mxu0 0.0
  %2201 = vmatpush1.msra.mxu0 0.0
  %2202 = vmatprep.subr.mxu0 0.0
  %2203 = vmatpush1.msra.mxu0 0.0
  %2204 = vmatprep.subr.mxu0 0.0
  %2205 = vmatpush1.msra.mxu0 0.0
  %2206 = vmatprep.subr.mxu0 0.0
  %2207 = vmatpush1.msra.mxu0 0.0
  %2208 = vmatprep.subr.mxu0 0.0
  %2209 = vmatpush1.msra.mxu0 0.0
  %2210 = vmatprep.subr.mxu0 0.0
  %2211 = vmatpush1.msra.mxu0 0.0
  %2212 = vmatprep.subr.mxu0 0.0
  %2213 = vmatpush1.msra.mxu0 0.0
  %2214 = vmatprep.subr.mxu0 0.0
  %2215 = vmatpush1.msra.mxu0 0.0
  %2216 = vmatprep.subr.mxu0 0.0
  %2217 = vmatpush1.msra.mxu0 0.0
  %2218 = vmatprep.subr.mxu0 0.0
  %2219 = vmatpush1.msra.mxu0 0.0
  %2220 = vmatprep.subr.mxu0 0.0
  %2221 = vmatpush1.msra.mxu0 0.0
  %2222 = vmatprep.subr.mxu0 0.0
  %2223 = vmatpush1.msra.mxu0 0.0
  %2224 = vmatprep.subr.mxu0 0.0
  %2225 = vmatpush1.msra.mxu0 0.0
  %2226 = vmatprep.subr.mxu0 0.0
  %2227 = vmatpush1.msra.mxu0 0.0
  %2228 = vmatprep.subr.mxu0 0.0
  %2229 = vmatpush1.msra.mxu0 0.0
  %2230 = vmatprep.subr.mxu0 0.0
  %2231 = vmatpush1.msra.mxu0 0.0
  %2232 = vmatprep.subr.mxu0 0.0
  %2233 = vmatpush1.msra.mxu0 0.0
  %2234 = vmatprep.subr.mxu0 0.0
  %2235 = vmatpush1.msra.mxu0 0.0
  %2236 = vmatprep.subr.mxu0 0.0
  %2237 = vmatpush1.msra.mxu0 0.0
  %2238 = vmatprep.subr.mxu0 0.0
  %2239 = vmatpush1.msra.mxu0 0.0
  %2240 = vmatprep.subr.mxu0 0.0
  %2241 = vmatpush1.msra.mxu0 0.0
  %2242 = vmatprep.subr.mxu0 0.0
  %2243 = vmatpush1.msra.mxu0 0.0
  %2244 = vmatprep.mubr.f32.mxu0 0.0
  %2245 = vmatmul.mubr.f32.gmra.mrb[0].mxu0 %v2175
  %v2246 = vpop.f32.mrb[0].mxu0
  %v2247 = vadd.f32 0.0, %v2246
  %v2248 = vpop.f32.mrb[0].mxu0
  %2249 = vmatprep.mubr.f32.mxu0 0.0
  %2250 = vmatmul.mubr.f32.gmra.mrb[0].mxu0 %v2178
  %v2251 = vpop.f32.mrb[0].mxu0
  %v2252 = vadd.f32 0.0, %v2251
  %v2253 = vpop.f32.mrb[0].mxu0
  %2254 = vdwg.mxu0
  %v2256 = vsel %vm304, %v2247, 0
  %v2259 = vsel %vm304, %v2252, 0
  %2261 = vmatprep.subr.mxu0 0.0
  %2262 = vmatpush1.msra.mxu0 %v1676
  %2263 = vmatprep.subr.mxu0 0.0
  %2264 = vmatpush1.msra.mxu0 0.0
  %2265 = vmatprep.subr.mxu0 0.0
  %2266 = vmatpush1.msra.mxu0 0.0
  %2267 = vmatprep.subr.mxu0 0.0
  %2268 = vmatpush1.msra.mxu0 0.0
  %2269 = vmatprep.subr.mxu0 0.0
  %2270 = vmatpush1.msra.mxu0 0.0
  %2271 = vmatprep.subr.mxu0 0.0
  %2272 = vmatpush1.msra.mxu0 0.0
  %2273 = vmatprep.subr.mxu0 0.0
  %2274 = vmatpush1.msra.mxu0 0.0
  %2275 = vmatprep.subr.mxu0 0.0
  %2276 = vmatpush1.msra.mxu0 0.0
  %2277 = vmatprep.subr.mxu0 0.0
  %2278 = vmatpush1.msra.mxu0 0.0
  %2279 = vmatprep.subr.mxu0 0.0
  %2280 = vmatpush1.msra.mxu0 0.0
  %2281 = vmatprep.subr.mxu0 0.0
  %2282 = vmatpush1.msra.mxu0 0.0
  %2283 = vmatprep.subr.mxu0 0.0
  %2284 = vmatpush1.msra.mxu0 0.0
  %2285 = vmatprep.subr.mxu0 0.0
  %2286 = vmatpush1.msra.mxu0 0.0
  %2287 = vmatprep.subr.mxu0 0.0
  %2288 = vmatpush1.msra.mxu0 0.0
  %2289 = vmatprep.subr.mxu0 0.0
  %2290 = vmatpush1.msra.mxu0 0.0
  %2291 = vmatprep.subr.mxu0 0.0
  %2292 = vmatpush1.msra.mxu0 0.0
  %2293 = vmatprep.subr.mxu0 0.0
  %2294 = vmatpush1.msra.mxu0 0.0
  %2295 = vmatprep.subr.mxu0 0.0
  %2296 = vmatpush1.msra.mxu0 0.0
  %2297 = vmatprep.subr.mxu0 0.0
  %2298 = vmatpush1.msra.mxu0 0.0
  %2299 = vmatprep.subr.mxu0 0.0
  %2300 = vmatpush1.msra.mxu0 0.0
  %2301 = vmatprep.subr.mxu0 0.0
  %2302 = vmatpush1.msra.mxu0 0.0
  %2303 = vmatprep.subr.mxu0 0.0
  %2304 = vmatpush1.msra.mxu0 0.0
  %2305 = vmatprep.subr.mxu0 0.0
  %2306 = vmatpush1.msra.mxu0 0.0
  %2307 = vmatprep.subr.mxu0 0.0
  %2308 = vmatpush1.msra.mxu0 0.0
  %2309 = vmatprep.subr.mxu0 0.0
  %2310 = vmatpush1.msra.mxu0 0.0
  %2311 = vmatprep.subr.mxu0 0.0
  %2312 = vmatpush1.msra.mxu0 0.0
  %2313 = vmatprep.subr.mxu0 0.0
  %2314 = vmatpush1.msra.mxu0 0.0
  %2315 = vmatprep.subr.mxu0 0.0
  %2316 = vmatpush1.msra.mxu0 0.0
  %2317 = vmatprep.subr.mxu0 0.0
  %2318 = vmatpush1.msra.mxu0 0.0
  %2319 = vmatprep.subr.mxu0 0.0
  %2320 = vmatpush1.msra.mxu0 0.0
  %2321 = vmatprep.subr.mxu0 0.0
  %2322 = vmatpush1.msra.mxu0 0.0
  %2323 = vmatprep.subr.mxu0 0.0
  %2324 = vmatpush1.msra.mxu0 0.0
  %2325 = vmatprep.mubr.f32.mxu0 0.0
  %2326 = vmatmul.mubr.f32.gmra.mrb[0].mxu0 %v2256
  %v2327 = vpop.f32.mrb[0].mxu0
  %v2328 = vadd.f32 0.0, %v2327
  %v2329 = vpop.f32.mrb[0].mxu0
  %2330 = vmatprep.mubr.f32.mxu0 0.0
  %2331 = vmatmul.mubr.f32.gmra.mrb[0].mxu0 %v2259
  %v2332 = vpop.f32.mrb[0].mxu0
  %v2333 = vadd.f32 0.0, %v2332
  %v2334 = vpop.f32.mrb[0].mxu0
  %2335 = vdwg.mxu0
  %v2337 = vsel %vm304, %v2047, 0
  %v2340 = vsel %vm304, %v2052, 0
  %2342 = vmatprep.subr.mxu0 0.0
  %2343 = vmatpush1.msra.mxu0 %v1675
  %2344 = vmatprep.subr.mxu0 0.0
  %2345 = vmatpush1.msra.mxu0 0.0
  %2346 = vmatprep.subr.mxu0 0.0
  %2347 = vmatpush1.msra.mxu0 0.0
  %2348 = vmatprep.subr.mxu0 0.0
  %2349 = vmatpush1.msra.mxu0 0.0
  %2350 = vmatprep.subr.mxu0 0.0
  %2351 = vmatpush1.msra.mxu0 0.0
  %2352 = vmatprep.subr.mxu0 0.0
  %2353 = vmatpush1.msra.mxu0 0.0
  %2354 = vmatprep.subr.mxu0 0.0
  %2355 = vmatpush1.msra.mxu0 0.0
  %2356 = vmatprep.subr.mxu0 0.0
  %2357 = vmatpush1.msra.mxu0 0.0
  %2358 = vmatprep.subr.mxu0 0.0
  %2359 = vmatpush1.msra.mxu0 0.0
  %2360 = vmatprep.subr.mxu0 0.0
  %2361 = vmatpush1.msra.mxu0 0.0
  %2362 = vmatprep.subr.mxu0 0.0
  %2363 = vmatpush1.msra.mxu0 0.0
  %2364 = vmatprep.subr.mxu0 0.0
  %2365 = vmatpush1.msra.mxu0 0.0
  %2366 = vmatprep.subr.mxu0 0.0
  %2367 = vmatpush1.msra.mxu0 0.0
  %2368 = vmatprep.subr.mxu0 0.0
  %2369 = vmatpush1.msra.mxu0 0.0
  %2370 = vmatprep.subr.mxu0 0.0
  %2371 = vmatpush1.msra.mxu0 0.0
  %2372 = vmatprep.subr.mxu0 0.0
  %2373 = vmatpush1.msra.mxu0 0.0
  %2374 = vmatprep.subr.mxu0 0.0
  %2375 = vmatpush1.msra.mxu0 0.0
  %2376 = vmatprep.subr.mxu0 0.0
  %2377 = vmatpush1.msra.mxu0 0.0
  %2378 = vmatprep.subr.mxu0 0.0
  %2379 = vmatpush1.msra.mxu0 0.0
  %2380 = vmatprep.subr.mxu0 0.0
  %2381 = vmatpush1.msra.mxu0 0.0
  %2382 = vmatprep.subr.mxu0 0.0
  %2383 = vmatpush1.msra.mxu0 0.0
  %2384 = vmatprep.subr.mxu0 0.0
  %2385 = vmatpush1.msra.mxu0 0.0
  %2386 = vmatprep.subr.mxu0 0.0
  %2387 = vmatpush1.msra.mxu0 0.0
  %2388 = vmatprep.subr.mxu0 0.0
  %2389 = vmatpush1.msra.mxu0 0.0
  %2390 = vmatprep.subr.mxu0 0.0
  %2391 = vmatpush1.msra.mxu0 0.0
  %2392 = vmatprep.subr.mxu0 0.0
  %2393 = vmatpush1.msra.mxu0 0.0
  %2394 = vmatprep.subr.mxu0 0.0
  %2395 = vmatpush1.msra.mxu0 0.0
  %2396 = vmatprep.subr.mxu0 0.0
  %2397 = vmatpush1.msra.mxu0 0.0
  %2398 = vmatprep.subr.mxu0 0.0
  %2399 = vmatpush1.msra.mxu0 0.0
  %2400 = vmatprep.subr.mxu0 0.0
  %2401 = vmatpush1.msra.mxu0 0.0
  %2402 = vmatprep.subr.mxu0 0.0
  %2403 = vmatpush1.msra.mxu0 0.0
  %2404 = vmatprep.subr.mxu0 0.0
  %2405 = vmatpush1.msra.mxu0 0.0
  %2406 = vmatprep.mubr.f32.mxu0 0.0
  %2407 = vmatmul.mubr.f32.gmra.mrb[0].mxu0 %v2337
  %v2408 = vpop.f32.mrb[0].mxu0
  %v2409 = vadd.f32 %v2328, %v2408
  %v2410 = vpop.f32.mrb[0].mxu0
  %2411 = vmatprep.mubr.f32.mxu0 0.0
  %2412 = vmatmul.mubr.f32.gmra.mrb[0].mxu0 %v2340
  %v2413 = vpop.f32.mrb[0].mxu0
  %v2414 = vadd.f32 %v2333, %v2413
  %v2415 = vpop.f32.mrb[0].mxu0
  %2416 = vdwg.mxu0
  %2417 = vrot.lane.b32.xlu0 %v1776, 112
  %v2418 = vpop.permute.xlu0 %2417
  %2419 = vrot.lane.b32.xlu0 %v1781, 112
  %v2420 = vpop.permute.xlu0 %2419
  %2421 = vrot.lane.b32.xlu0 %v1851, 112
  %v2422 = vpop.permute.xlu0 %2421
  %2423 = vrot.lane.b32.xlu0 %v1856, 112
  %v2424 = vpop.permute.xlu0 %2423
  %v2425 = vsel %vm304, %v2418, 0
  %v2427 = vsel %vm304, %v2420, 0
  %v2429 = vsel %vm304, %v2422, 0
  %v2431 = vsel %vm304, %v2424, 0
  %2433 = vmatprep.subr.mxu0 0.0
  %2434 = vmatpush1.xpose.msra.mxu0 %v2429
  %2435 = vmatprep.subr.mxu0 0.0
  %2436 = vmatpush1.xpose.msra.mxu0 %v2431
  %2437 = vmatprep.subr.mxu0 0.0
  %2438 = vmatpush1.xpose.msra.mxu0 0.0
  %2439 = vmatprep.subr.mxu0 0.0
  %2440 = vmatpush1.xpose.msra.mxu0 0.0
  %2441 = vmatprep.subr.mxu0 0.0
  %2442 = vmatpush1.xpose.msra.mxu0 0.0
  %2443 = vmatprep.subr.mxu0 0.0
  %2444 = vmatpush1.xpose.msra.mxu0 0.0
  %2445 = vmatprep.subr.mxu0 0.0
  %2446 = vmatpush1.xpose.msra.mxu0 0.0
  %2447 = vmatprep.subr.mxu0 0.0
  %2448 = vmatpush1.xpose.msra.mxu0 0.0
  %2449 = vmatprep.subr.mxu0 0.0
  %2450 = vmatpush1.xpose.msra.mxu0 0.0
  %2451 = vmatprep.subr.mxu0 0.0
  %2452 = vmatpush1.xpose.msra.mxu0 0.0
  %2453 = vmatprep.subr.mxu0 0.0
  %2454 = vmatpush1.xpose.msra.mxu0 0.0
  %2455 = vmatprep.subr.mxu0 0.0
  %2456 = vmatpush1.xpose.msra.mxu0 0.0
  %2457 = vmatprep.subr.mxu0 0.0
  %2458 = vmatpush1.xpose.msra.mxu0 0.0
  %2459 = vmatprep.subr.mxu0 0.0
  %2460 = vmatpush1.xpose.msra.mxu0 0.0
  %2461 = vmatprep.subr.mxu0 0.0
  %2462 = vmatpush1.xpose.msra.mxu0 0.0
  %2463 = vmatprep.subr.mxu0 0.0
  %2464 = vmatpush1.xpose.msra.mxu0 0.0
  %2465 = vmatprep.subr.mxu0 0.0
  %2466 = vmatpush1.xpose.msra.mxu0 0.0
  %2467 = vmatprep.subr.mxu0 0.0
  %2468 = vmatpush1.xpose.msra.mxu0 0.0
  %2469 = vmatprep.subr.mxu0 0.0
  %2470 = vmatpush1.xpose.msra.mxu0 0.0
  %2471 = vmatprep.subr.mxu0 0.0
  %2472 = vmatpush1.xpose.msra.mxu0 0.0
  %2473 = vmatprep.subr.mxu0 0.0
  %2474 = vmatpush1.xpose.msra.mxu0 0.0
  %2475 = vmatprep.subr.mxu0 0.0
  %2476 = vmatpush1.xpose.msra.mxu0 0.0
  %2477 = vmatprep.subr.mxu0 0.0
  %2478 = vmatpush1.xpose.msra.mxu0 0.0
  %2479 = vmatprep.subr.mxu0 0.0
  %2480 = vmatpush1.xpose.msra.mxu0 0.0
  %2481 = vmatprep.subr.mxu0 0.0
  %2482 = vmatpush1.xpose.msra.mxu0 0.0
  %2483 = vmatprep.subr.mxu0 0.0
  %2484 = vmatpush1.xpose.msra.mxu0 0.0
  %2485 = vmatprep.subr.mxu0 0.0
  %2486 = vmatpush1.xpose.msra.mxu0 0.0
  %2487 = vmatprep.subr.mxu0 0.0
  %2488 = vmatpush1.xpose.msra.mxu0 0.0
  %2489 = vmatprep.subr.mxu0 0.0
  %2490 = vmatpush1.xpose.msra.mxu0 0.0
  %2491 = vmatprep.subr.mxu0 0.0
  %2492 = vmatpush1.xpose.msra.mxu0 0.0
  %2493 = vmatprep.subr.mxu0 0.0
  %2494 = vmatpush1.xpose.msra.mxu0 0.0
  %2495 = vmatprep.subr.mxu0 0.0
  %2496 = vmatpush1.xpose.msra.mxu0 0.0
  %2497 = vmatprep.mubr.f32.mxu0 0.0
  %2498 = vmatmul.mubr.f32.gmra.mrb[0].mxu0 %v2425
  %v2499 = vpop.f32.mrb[0].mxu0
  %v2500 = vadd.f32 %v87, %v2499
  %v2501 = vpop.f32.mrb[0].mxu0
  %2502 = vmatprep.mubr.f32.mxu0 0.0
  %2503 = vmatmul.mubr.f32.gmra.mrb[0].mxu0 %v2427
  %v2504 = vpop.f32.mrb[0].mxu0
  %v2505 = vadd.f32 %v88, %v2504
  %v2506 = vpop.f32.mrb[0].mxu0
  %2507 = vdwg.mxu0
  %v2508 = vsel %vm392, %v2500, -inf
  %2509 = vmax.xlane.f32.xlu0 %v2508
  %v2510 = vpop.xlane.xlu0 %2509
  %v2511 = vsel %vm392, %v2505, -inf
  %2512 = vmax.xlane.f32.xlu0 %v2511
  %v2513 = vpop.xlane.xlu0 %2512
  %v2514 = vsub.f32 %v2500, %v2510
  %v2515 = vsub.f32 %v2505, %v2513
  %v2516 = vmul.f32 %v2514, 1.442695
  %v2517 = vpow.pop %v2516
  %v2518 = vmul.f32 %v2515, 1.442695
  %v2519 = vpow.pop %v2518
  %v2520 = vsel %vm392, %v2517, 0.0
  %2521 = vadd.xlane.f32.xlu0 %v2520
  %v2522 = vpop.xlane.xlu0 %2521
  %v2523 = vsel %vm392, %v2519, 0.0
  %2524 = vadd.xlane.f32.xlu0 %v2523
  %v2525 = vpop.xlane.xlu0 %2524
  %v2526 = vrcp.pop %v2522
  %v2527 = vrcp.pop %v2525
  %v2528 = vmul.f32 %v2517, %v2526
  %v2529 = vmul.f32 %v2519, %v2527
  %2530 = vrot.lane.b32.xlu0 %v1851, 80
  %v2531 = vpop.permute.xlu0 %2530
  %2532 = vrot.lane.b32.xlu0 %v1856, 80
  %v2533 = vpop.permute.xlu0 %2532
  %v2537 = vsel %vm392, %v2528, 0
  %v2540 = vsel %vm392, %v2529, 0
  %2542 = vmatprep.subr.mxu0 0.0
  %2543 = vmatpush1.msra.mxu0 %v2531
  %2544 = vmatprep.subr.mxu0 0.0
  %2545 = vmatpush1.msra.mxu0 %v2533
  %2546 = vmatprep.subr.mxu0 0.0
  %2547 = vmatpush1.msra.mxu0 0.0
  %2548 = vmatprep.subr.mxu0 0.0
  %2549 = vmatpush1.msra.mxu0 0.0
  %2550 = vmatprep.subr.mxu0 0.0
  %2551 = vmatpush1.msra.mxu0 0.0
  %2552 = vmatprep.subr.mxu0 0.0
  %2553 = vmatpush1.msra.mxu0 0.0
  %2554 = vmatprep.subr.mxu0 0.0
  %2555 = vmatpush1.msra.mxu0 0.0
  %2556 = vmatprep.subr.mxu0 0.0
  %2557 = vmatpush1.msra.mxu0 0.0
  %2558 = vmatprep.subr.mxu0 0.0
  %2559 = vmatpush1.msra.mxu0 0.0
  %2560 = vmatprep.subr.mxu0 0.0
  %2561 = vmatpush1.msra.mxu0 0.0
  %2562 = vmatprep.subr.mxu0 0.0
  %2563 = vmatpush1.msra.mxu0 0.0
  %2564 = vmatprep.subr.mxu0 0.0
  %2565 = vmatpush1.msra.mxu0 0.0
  %2566 = vmatprep.subr.mxu0 0.0
  %2567 = vmatpush1.msra.mxu0 0.0
  %2568 = vmatprep.subr.mxu0 0.0
  %2569 = vmatpush1.msra.mxu0 0.0
  %2570 = vmatprep.subr.mxu0 0.0
  %2571 = vmatpush1.msra.mxu0 0.0
  %2572 = vmatprep.subr.mxu0 0.0
  %2573 = vmatpush1.msra.mxu0 0.0
  %2574 = vmatprep.subr.mxu0 0.0
  %2575 = vmatpush1.msra.mxu0 0.0
  %2576 = vmatprep.subr.mxu0 0.0
  %2577 = vmatpush1.msra.mxu0 0.0
  %2578 = vmatprep.subr.mxu0 0.0
  %2579 = vmatpush1.msra.mxu0 0.0
  %2580 = vmatprep.subr.mxu0 0.0
  %2581 = vmatpush1.msra.mxu0 0.0
  %2582 = vmatprep.subr.mxu0 0.0
  %2583 = vmatpush1.msra.mxu0 0.0
  %2584 = vmatprep.subr.mxu0 0.0
  %2585 = vmatpush1.msra.mxu0 0.0
  %2586 = vmatprep.subr.mxu0 0.0
  %2587 = vmatpush1.msra.mxu0 0.0
  %2588 = vmatprep.subr.mxu0 0.0
  %2589 = vmatpush1.msra.mxu0 0.0
  %2590 = vmatprep.subr.mxu0 0.0
  %2591 = vmatpush1.msra.mxu0 0.0
  %2592 = vmatprep.subr.mxu0 0.0
  %2593 = vmatpush1.msra.mxu0 0.0
  %2594 = vmatprep.subr.mxu0 0.0
  %2595 = vmatpush1.msra.mxu0 0.0
  %2596 = vmatprep.subr.mxu0 0.0
  %2597 = vmatpush1.msra.mxu0 0.0
  %2598 = vmatprep.subr.mxu0 0.0
  %2599 = vmatpush1.msra.mxu0 0.0
  %2600 = vmatprep.subr.mxu0 0.0
  %2601 = vmatpush1.msra.mxu0 0.0
  %2602 = vmatprep.subr.mxu0 0.0
  %2603 = vmatpush1.msra.mxu0 0.0
  %2604 = vmatprep.subr.mxu0 0.0
  %2605 = vmatpush1.msra.mxu0 0.0
  %2606 = vmatprep.mubr.f32.mxu0 0.0
  %2607 = vmatmul.mubr.f32.gmra.mrb[0].mxu0 %v2537
  %v2608 = vpop.f32.mrb[0].mxu0
  %v2609 = vadd.f32 0.0, %v2608
  %v2610 = vpop.f32.mrb[0].mxu0
  %2611 = vmatprep.mubr.f32.mxu0 0.0
  %2612 = vmatmul.mubr.f32.gmra.mrb[0].mxu0 %v2540
  %v2613 = vpop.f32.mrb[0].mxu0
  %v2614 = vadd.f32 0.0, %v2613
  %v2615 = vpop.f32.mrb[0].mxu0
  %2616 = vdwg.mxu0
  %v2618 = vsel %vm304, %v2609, 0
  %v2621 = vsel %vm304, %v2614, 0
  %2623 = vmatprep.subr.mxu0 0.0
  %2624 = vmatpush1.msra.mxu0 %v1677
  %2625 = vmatprep.subr.mxu0 0.0
  %2626 = vmatpush1.msra.mxu0 0.0
  %2627 = vmatprep.subr.mxu0 0.0
  %2628 = vmatpush1.msra.mxu0 0.0
  %2629 = vmatprep.subr.mxu0 0.0
  %2630 = vmatpush1.msra.mxu0 0.0
  %2631 = vmatprep.subr.mxu0 0.0
  %2632 = vmatpush1.msra.mxu0 0.0
  %2633 = vmatprep.subr.mxu0 0.0
  %2634 = vmatpush1.msra.mxu0 0.0
  %2635 = vmatprep.subr.mxu0 0.0
  %2636 = vmatpush1.msra.mxu0 0.0
  %2637 = vmatprep.subr.mxu0 0.0
  %2638 = vmatpush1.msra.mxu0 0.0
  %2639 = vmatprep.subr.mxu0 0.0
  %2640 = vmatpush1.msra.mxu0 0.0
  %2641 = vmatprep.subr.mxu0 0.0
  %2642 = vmatpush1.msra.mxu0 0.0
  %2643 = vmatprep.subr.mxu0 0.0
  %2644 = vmatpush1.msra.mxu0 0.0
  %2645 = vmatprep.subr.mxu0 0.0
  %2646 = vmatpush1.msra.mxu0 0.0
  %2647 = vmatprep.subr.mxu0 0.0
  %2648 = vmatpush1.msra.mxu0 0.0
  %2649 = vmatprep.subr.mxu0 0.0
  %2650 = vmatpush1.msra.mxu0 0.0
  %2651 = vmatprep.subr.mxu0 0.0
  %2652 = vmatpush1.msra.mxu0 0.0
  %2653 = vmatprep.subr.mxu0 0.0
  %2654 = vmatpush1.msra.mxu0 0.0
  %2655 = vmatprep.subr.mxu0 0.0
  %2656 = vmatpush1.msra.mxu0 0.0
  %2657 = vmatprep.subr.mxu0 0.0
  %2658 = vmatpush1.msra.mxu0 0.0
  %2659 = vmatprep.subr.mxu0 0.0
  %2660 = vmatpush1.msra.mxu0 0.0
  %2661 = vmatprep.subr.mxu0 0.0
  %2662 = vmatpush1.msra.mxu0 0.0
  %2663 = vmatprep.subr.mxu0 0.0
  %2664 = vmatpush1.msra.mxu0 0.0
  %2665 = vmatprep.subr.mxu0 0.0
  %2666 = vmatpush1.msra.mxu0 0.0
  %2667 = vmatprep.subr.mxu0 0.0
  %2668 = vmatpush1.msra.mxu0 0.0
  %2669 = vmatprep.subr.mxu0 0.0
  %2670 = vmatpush1.msra.mxu0 0.0
  %2671 = vmatprep.subr.mxu0 0.0
  %2672 = vmatpush1.msra.mxu0 0.0
  %2673 = vmatprep.subr.mxu0 0.0
  %2674 = vmatpush1.msra.mxu0 0.0
  %2675 = vmatprep.subr.mxu0 0.0
  %2676 = vmatpush1.msra.mxu0 0.0
  %2677 = vmatprep.subr.mxu0 0.0
  %2678 = vmatpush1.msra.mxu0 0.0
  %2679 = vmatprep.subr.mxu0 0.0
  %2680 = vmatpush1.msra.mxu0 0.0
  %2681 = vmatprep.subr.mxu0 0.0
  %2682 = vmatpush1.msra.mxu0 0.0
  %2683 = vmatprep.subr.mxu0 0.0
  %2684 = vmatpush1.msra.mxu0 0.0
  %2685 = vmatprep.subr.mxu0 0.0
  %2686 = vmatpush1.msra.mxu0 0.0
  %2687 = vmatprep.mubr.f32.mxu0 0.0
  %2688 = vmatmul.mubr.f32.gmra.mrb[0].mxu0 %v2618
  %v2689 = vpop.f32.mrb[0].mxu0
  %v2690 = vadd.f32 0.0, %v2689
  %v2691 = vpop.f32.mrb[0].mxu0
  %2692 = vmatprep.mubr.f32.mxu0 0.0
  %2693 = vmatmul.mubr.f32.gmra.mrb[0].mxu0 %v2621
  %v2694 = vpop.f32.mrb[0].mxu0
  %v2695 = vadd.f32 0.0, %v2694
  %v2696 = vpop.f32.mrb[0].mxu0
  %2697 = vdwg.mxu0
  %v2698 = vadd.f32 %v2409, %v2690
  %v2699 = vadd.f32 %v2414, %v2695
  %2700 = vrot.lane.b32.xlu0 %v1776, 104
  %v2701 = vpop.permute.xlu0 %2700
  %2702 = vrot.lane.b32.xlu0 %v1781, 104
  %v2703 = vpop.permute.xlu0 %2702
  %2704 = vrot.lane.b32.xlu0 %v1851, 104
  %v2705 = vpop.permute.xlu0 %2704
  %2706 = vrot.lane.b32.xlu0 %v1856, 104
  %v2707 = vpop.permute.xlu0 %2706
  %v2708 = vsel %vm304, %v2701, 0
  %v2710 = vsel %vm304, %v2703, 0
  %v2712 = vsel %vm304, %v2705, 0
  %v2714 = vsel %vm304, %v2707, 0
  %2716 = vmatprep.subr.mxu0 0.0
  %2717 = vmatpush1.xpose.msra.mxu0 %v2712
  %2718 = vmatprep.subr.mxu0 0.0
  %2719 = vmatpush1.xpose.msra.mxu0 %v2714
  %2720 = vmatprep.subr.mxu0 0.0
  %2721 = vmatpush1.xpose.msra.mxu0 0.0
  %2722 = vmatprep.subr.mxu0 0.0
  %2723 = vmatpush1.xpose.msra.mxu0 0.0
  %2724 = vmatprep.subr.mxu0 0.0
  %2725 = vmatpush1.xpose.msra.mxu0 0.0
  %2726 = vmatprep.subr.mxu0 0.0
  %2727 = vmatpush1.xpose.msra.mxu0 0.0
  %2728 = vmatprep.subr.mxu0 0.0
  %2729 = vmatpush1.xpose.msra.mxu0 0.0
  %2730 = vmatprep.subr.mxu0 0.0
  %2731 = vmatpush1.xpose.msra.mxu0 0.0
  %2732 = vmatprep.subr.mxu0 0.0
  %2733 = vmatpush1.xpose.msra.mxu0 0.0
  %2734 = vmatprep.subr.mxu0 0.0
  %2735 = vmatpush1.xpose.msra.mxu0 0.0
  %2736 = vmatprep.subr.mxu0 0.0
  %2737 = vmatpush1.xpose.msra.mxu0 0.0
  %2738 = vmatprep.subr.mxu0 0.0
  %2739 = vmatpush1.xpose.msra.mxu0 0.0
  %2740 = vmatprep.subr.mxu0 0.0
  %2741 = vmatpush1.xpose.msra.mxu0 0.0
  %2742 = vmatprep.subr.mxu0 0.0
  %2743 = vmatpush1.xpose.msra.mxu0 0.0
  %2744 = vmatprep.subr.mxu0 0.0
  %2745 = vmatpush1.xpose.msra.mxu0 0.0
  %2746 = vmatprep.subr.mxu0 0.0
  %2747 = vmatpush1.xpose.msra.mxu0 0.0
  %2748 = vmatprep.subr.mxu0 0.0
  %2749 = vmatpush1.xpose.msra.mxu0 0.0
  %2750 = vmatprep.subr.mxu0 0.0
  %2751 = vmatpush1.xpose.msra.mxu0 0.0
  %2752 = vmatprep.subr.mxu0 0.0
  %2753 = vmatpush1.xpose.msra.mxu0 0.0
  %2754 = vmatprep.subr.mxu0 0.0
  %2755 = vmatpush1.xpose.msra.mxu0 0.0
  %2756 = vmatprep.subr.mxu0 0.0
  %2757 = vmatpush1.xpose.msra.mxu0 0.0
  %2758 = vmatprep.subr.mxu0 0.0
  %2759 = vmatpush1.xpose.msra.mxu0 0.0
  %2760 = vmatprep.subr.mxu0 0.0
  %2761 = vmatpush1.xpose.msra.mxu0 0.0
  %2762 = vmatprep.subr.mxu0 0.0
  %2763 = vmatpush1.xpose.msra.mxu0 0.0
  %2764 = vmatprep.subr.mxu0 0.0
  %2765 = vmatpush1.xpose.msra.mxu0 0.0
  %2766 = vmatprep.subr.mxu0 0.0
  %2767 = vmatpush1.xpose.msra.mxu0 0.0
  %2768 = vmatprep.subr.mxu0 0.0
  %2769 = vmatpush1.xpose.msra.mxu0 0.0
  %2770 = vmatprep.subr.mxu0 0.0
  %2771 = vmatpush1.xpose.msra.mxu0 0.0
  %2772 = vmatprep.subr.mxu0 0.0
  %2773 = vmatpush1.xpose.msra.mxu0 0.0
  %2774 = vmatprep.subr.mxu0 0.0
  %2775 = vmatpush1.xpose.msra.mxu0 0.0
  %2776 = vmatprep.subr.mxu0 0.0
  %2777 = vmatpush1.xpose.msra.mxu0 0.0
  %2778 = vmatprep.subr.mxu0 0.0
  %2779 = vmatpush1.xpose.msra.mxu0 0.0
  %2780 = vmatprep.mubr.f32.mxu0 0.0
  %2781 = vmatmul.mubr.f32.gmra.mrb[0].mxu0 %v2708
  %v2782 = vpop.f32.mrb[0].mxu0
  %v2783 = vadd.f32 %v89, %v2782
  %v2784 = vpop.f32.mrb[0].mxu0
  %2785 = vmatprep.mubr.f32.mxu0 0.0
  %2786 = vmatmul.mubr.f32.gmra.mrb[0].mxu0 %v2710
  %v2787 = vpop.f32.mrb[0].mxu0
  %v2788 = vadd.f32 %v90, %v2787
  %v2789 = vpop.f32.mrb[0].mxu0
  %2790 = vdwg.mxu0
  %v2791 = vsel %vm392, %v2783, -inf
  %2792 = vmax.xlane.f32.xlu0 %v2791
  %v2793 = vpop.xlane.xlu0 %2792
  %v2794 = vsel %vm392, %v2788, -inf
  %2795 = vmax.xlane.f32.xlu0 %v2794
  %v2796 = vpop.xlane.xlu0 %2795
  %v2797 = vsub.f32 %v2783, %v2793
  %v2798 = vsub.f32 %v2788, %v2796
  %v2799 = vmul.f32 %v2797, 1.442695
  %v2800 = vpow.pop %v2799
  %v2801 = vmul.f32 %v2798, 1.442695
  %v2802 = vpow.pop %v2801
  %v2803 = vsel %vm392, %v2800, 0.0
  %2804 = vadd.xlane.f32.xlu0 %v2803
  %v2805 = vpop.xlane.xlu0 %2804
  %v2806 = vsel %vm392, %v2802, 0.0
  %2807 = vadd.xlane.f32.xlu0 %v2806
  %v2808 = vpop.xlane.xlu0 %2807
  %v2809 = vrcp.pop %v2805
  %v2810 = vrcp.pop %v2808
  %v2811 = vmul.f32 %v2800, %v2809
  %v2812 = vmul.f32 %v2802, %v2810
  %2813 = vrot.lane.b32.xlu0 %v1851, 72
  %v2814 = vpop.permute.xlu0 %2813
  %2815 = vrot.lane.b32.xlu0 %v1856, 72
  %v2816 = vpop.permute.xlu0 %2815
  %v2820 = vsel %vm392, %v2811, 0
  %v2823 = vsel %vm392, %v2812, 0
  %2825 = vmatprep.subr.mxu0 0.0
  %2826 = vmatpush1.msra.mxu0 %v2814
  %2827 = vmatprep.subr.mxu0 0.0
  %2828 = vmatpush1.msra.mxu0 %v2816
  %2829 = vmatprep.subr.mxu0 0.0
  %2830 = vmatpush1.msra.mxu0 0.0
  %2831 = vmatprep.subr.mxu0 0.0
  %2832 = vmatpush1.msra.mxu0 0.0
  %2833 = vmatprep.subr.mxu0 0.0
  %2834 = vmatpush1.msra.mxu0 0.0
  %2835 = vmatprep.subr.mxu0 0.0
  %2836 = vmatpush1.msra.mxu0 0.0
  %2837 = vmatprep.subr.mxu0 0.0
  %2838 = vmatpush1.msra.mxu0 0.0
  %2839 = vmatprep.subr.mxu0 0.0
  %2840 = vmatpush1.msra.mxu0 0.0
  %2841 = vmatprep.subr.mxu0 0.0
  %2842 = vmatpush1.msra.mxu0 0.0
  %2843 = vmatprep.subr.mxu0 0.0
  %2844 = vmatpush1.msra.mxu0 0.0
  %2845 = vmatprep.subr.mxu0 0.0
  %2846 = vmatpush1.msra.mxu0 0.0
  %2847 = vmatprep.subr.mxu0 0.0
  %2848 = vmatpush1.msra.mxu0 0.0
  %2849 = vmatprep.subr.mxu0 0.0
  %2850 = vmatpush1.msra.mxu0 0.0
  %2851 = vmatprep.subr.mxu0 0.0
  %2852 = vmatpush1.msra.mxu0 0.0
  %2853 = vmatprep.subr.mxu0 0.0
  %2854 = vmatpush1.msra.mxu0 0.0
  %2855 = vmatprep.subr.mxu0 0.0
  %2856 = vmatpush1.msra.mxu0 0.0
  %2857 = vmatprep.subr.mxu0 0.0
  %2858 = vmatpush1.msra.mxu0 0.0
  %2859 = vmatprep.subr.mxu0 0.0
  %2860 = vmatpush1.msra.mxu0 0.0
  %2861 = vmatprep.subr.mxu0 0.0
  %2862 = vmatpush1.msra.mxu0 0.0
  %2863 = vmatprep.subr.mxu0 0.0
  %2864 = vmatpush1.msra.mxu0 0.0
  %2865 = vmatprep.subr.mxu0 0.0
  %2866 = vmatpush1.msra.mxu0 0.0
  %2867 = vmatprep.subr.mxu0 0.0
  %2868 = vmatpush1.msra.mxu0 0.0
  %2869 = vmatprep.subr.mxu0 0.0
  %2870 = vmatpush1.msra.mxu0 0.0
  %2871 = vmatprep.subr.mxu0 0.0
  %2872 = vmatpush1.msra.mxu0 0.0
  %2873 = vmatprep.subr.mxu0 0.0
  %2874 = vmatpush1.msra.mxu0 0.0
  %2875 = vmatprep.subr.mxu0 0.0
  %2876 = vmatpush1.msra.mxu0 0.0
  %2877 = vmatprep.subr.mxu0 0.0
  %2878 = vmatpush1.msra.mxu0 0.0
  %2879 = vmatprep.subr.mxu0 0.0
  %2880 = vmatpush1.msra.mxu0 0.0
  %2881 = vmatprep.subr.mxu0 0.0
  %2882 = vmatpush1.msra.mxu0 0.0
  %2883 = vmatprep.subr.mxu0 0.0
  %2884 = vmatpush1.msra.mxu0 0.0
  %2885 = vmatprep.subr.mxu0 0.0
  %2886 = vmatpush1.msra.mxu0 0.0
  %2887 = vmatprep.subr.mxu0 0.0
  %2888 = vmatpush1.msra.mxu0 0.0
  %2889 = vmatprep.mubr.f32.mxu0 0.0
  %2890 = vmatmul.mubr.f32.gmra.mrb[0].mxu0 %v2820
  %v2891 = vpop.f32.mrb[0].mxu0
  %v2892 = vadd.f32 0.0, %v2891
  %v2893 = vpop.f32.mrb[0].mxu0
  %2894 = vmatprep.mubr.f32.mxu0 0.0
  %2895 = vmatmul.mubr.f32.gmra.mrb[0].mxu0 %v2823
  %v2896 = vpop.f32.mrb[0].mxu0
  %v2897 = vadd.f32 0.0, %v2896
  %v2898 = vpop.f32.mrb[0].mxu0
  %2899 = vdwg.mxu0
  %v2901 = vsel %vm304, %v2892, 0
  %v2904 = vsel %vm304, %v2897, 0
  %2906 = vmatprep.subr.mxu0 0.0
  %2907 = vmatpush1.msra.mxu0 %v1678
  %2908 = vmatprep.subr.mxu0 0.0
  %2909 = vmatpush1.msra.mxu0 0.0
  %2910 = vmatprep.subr.mxu0 0.0
  %2911 = vmatpush1.msra.mxu0 0.0
  %2912 = vmatprep.subr.mxu0 0.0
  %2913 = vmatpush1.msra.mxu0 0.0
  %2914 = vmatprep.subr.mxu0 0.0
  %2915 = vmatpush1.msra.mxu0 0.0
  %2916 = vmatprep.subr.mxu0 0.0
  %2917 = vmatpush1.msra.mxu0 0.0
  %2918 = vmatprep.subr.mxu0 0.0
  %2919 = vmatpush1.msra.mxu0 0.0
  %2920 = vmatprep.subr.mxu0 0.0
  %2921 = vmatpush1.msra.mxu0 0.0
  %2922 = vmatprep.subr.mxu0 0.0
  %2923 = vmatpush1.msra.mxu0 0.0
  %2924 = vmatprep.subr.mxu0 0.0
  %2925 = vmatpush1.msra.mxu0 0.0
  %2926 = vmatprep.subr.mxu0 0.0
  %2927 = vmatpush1.msra.mxu0 0.0
  %2928 = vmatprep.subr.mxu0 0.0
  %2929 = vmatpush1.msra.mxu0 0.0
  %2930 = vmatprep.subr.mxu0 0.0
  %2931 = vmatpush1.msra.mxu0 0.0
  %2932 = vmatprep.subr.mxu0 0.0
  %2933 = vmatpush1.msra.mxu0 0.0
  %2934 = vmatprep.subr.mxu0 0.0
  %2935 = vmatpush1.msra.mxu0 0.0
  %2936 = vmatprep.subr.mxu0 0.0
  %2937 = vmatpush1.msra.mxu0 0.0
  %2938 = vmatprep.subr.mxu0 0.0
  %2939 = vmatpush1.msra.mxu0 0.0
  %2940 = vmatprep.subr.mxu0 0.0
  %2941 = vmatpush1.msra.mxu0 0.0
  %2942 = vmatprep.subr.mxu0 0.0
  %2943 = vmatpush1.msra.mxu0 0.0
  %2944 = vmatprep.subr.mxu0 0.0
  %2945 = vmatpush1.msra.mxu0 0.0
  %2946 = vmatprep.subr.mxu0 0.0
  %2947 = vmatpush1.msra.mxu0 0.0
  %2948 = vmatprep.subr.mxu0 0.0
  %2949 = vmatpush1.msra.mxu0 0.0
  %2950 = vmatprep.subr.mxu0 0.0
  %2951 = vmatpush1.msra.mxu0 0.0
  %2952 = vmatprep.subr.mxu0 0.0
  %2953 = vmatpush1.msra.mxu0 0.0
  %2954 = vmatprep.subr.mxu0 0.0
  %2955 = vmatpush1.msra.mxu0 0.0
  %2956 = vmatprep.subr.mxu0 0.0
  %2957 = vmatpush1.msra.mxu0 0.0
  %2958 = vmatprep.subr.mxu0 0.0
  %2959 = vmatpush1.msra.mxu0 0.0
  %2960 = vmatprep.subr.mxu0 0.0
  %2961 = vmatpush1.msra.mxu0 0.0
  %2962 = vmatprep.subr.mxu0 0.0
  %2963 = vmatpush1.msra.mxu0 0.0
  %2964 = vmatprep.subr.mxu0 0.0
  %2965 = vmatpush1.msra.mxu0 0.0
  %2966 = vmatprep.subr.mxu0 0.0
  %2967 = vmatpush1.msra.mxu0 0.0
  %2968 = vmatprep.subr.mxu0 0.0
  %2969 = vmatpush1.msra.mxu0 0.0
  %2970 = vmatprep.mubr.f32.mxu0 0.0
  %2971 = vmatmul.mubr.f32.gmra.mrb[0].mxu0 %v2901
  %v2972 = vpop.f32.mrb[0].mxu0
  %v2973 = vadd.f32 0.0, %v2972
  %v2974 = vpop.f32.mrb[0].mxu0
  %2975 = vmatprep.mubr.f32.mxu0 0.0
  %2976 = vmatmul.mubr.f32.gmra.mrb[0].mxu0 %v2904
  %v2977 = vpop.f32.mrb[0].mxu0
  %v2978 = vadd.f32 0.0, %v2977
  %v2979 = vpop.f32.mrb[0].mxu0
  %2980 = vdwg.mxu0
  %v2981 = vadd.f32 %v2698, %v2973
  %v2982 = vadd.f32 %v2699, %v2978
  %v2983 = vadd.f32 %v1660, %v2981
  %v2984 = vadd.f32 %v1661, %v2982
  %s2985 = scalar_lea.vmem %s9, 1
  %v2986 = vld [vmem:[%s2985] sm:$0x1]
  %s2987 = scalar_lea.vmem %s10, 32
  %v2988 = vld [vmem:[%s2987] sm:$0xff]
  %v2989 = vld [vmem:[%s2987 + $0x8] sm:$0xff]
  %v2990 = vld [vmem:[%s2987 + $0x10] sm:$0xff]
  %v2991 = vld [vmem:[%s2987 + $0x18] sm:$0xff]
  %s2992 = scalar_lea.vmem %s11, 64
  %v2993 = vld [vmem:[%s2992] sm:$0xff]
  %v2994 = vld [vmem:[%s2992 + $0x8] sm:$0xff]
  %v2995 = vld [vmem:[%s2992 + $0x10] sm:$0xff]
  %v2996 = vld [vmem:[%s2992 + $0x18] sm:$0xff]
  %v2997 = vld [vmem:[%s2992 + $0x20] sm:$0xff]
  %v2998 = vld [vmem:[%s2992 + $0x28] sm:$0xff]
  %v2999 = vld [vmem:[%s2992 + $0x30] sm:$0xff]
  %v3000 = vld [vmem:[%s2992 + $0x38] sm:$0xff]
  %v3001 = vmul.f32 %v2983, %v2983
  %v3002 = vmul.f32 %v2984, %v2984
  %v3003 = vsel %vm124, %v3001, 0.0
  %3004 = vadd.xlane.f32.xlu0 %v3003
  %v3005 = vpop.xlane.xlu0 %3004
  %v3006 = vsel %vm124, %v3002, 0.0
  %3007 = vadd.xlane.f32.xlu0 %v3006
  %v3008 = vpop.xlane.xlu0 %3007
  %v3009 = vmul.f32 %v3005, %v131
  %v3010 = vmul.f32 %v3008, %v131
  %v3011 = vadd.f32 %v3009, 1e-06
  %v3012 = vadd.f32 %v3010, 1e-06
  %v3013 = vrsqrt.pop %v3011
  %v3014 = vrsqrt.pop %v3012
  %v3015 = vmul.f32 %v2983, %v3013
  %v3016 = vmul.f32 %v2984, %v3014
  %v3018 = vlaneseq
  %v3019 = vshrl.u32 %v3018, 7
  %v3020 = vsub.s32 0, %v3019
  %v3021 = vrot.slane %v2986, %v3020
  %v3023 = vmul.f32 %v3015, %v3021
  %v3024 = vmul.f32 %v3016, %v3021
  %v3026 = vsel %vm124, %v3023, 0
  %v3029 = vsel %vm124, %v3024, 0
  %3031 = vmatprep.subr.mxu0 0.0
  %3032 = vmatpush1.msra.mxu0 %v2988
  %3033 = vmatprep.subr.mxu0 0.0
  %3034 = vmatpush1.msra.mxu0 %v2989
  %3035 = vmatprep.subr.mxu0 0.0
  %3036 = vmatpush1.msra.mxu0 %v2990
  %3037 = vmatprep.subr.mxu0 0.0
  %3038 = vmatpush1.msra.mxu0 %v2991
  %3039 = vmatprep.subr.mxu0 0.0
  %3040 = vmatpush1.msra.mxu0 0.0
  %3041 = vmatprep.subr.mxu0 0.0
  %3042 = vmatpush1.msra.mxu0 0.0
  %3043 = vmatprep.subr.mxu0 0.0
  %3044 = vmatpush1.msra.mxu0 0.0
  %3045 = vmatprep.subr.mxu0 0.0
  %3046 = vmatpush1.msra.mxu0 0.0
  %3047 = vmatprep.subr.mxu0 0.0
  %3048 = vmatpush1.msra.mxu0 0.0
  %3049 = vmatprep.subr.mxu0 0.0
  %3050 = vmatpush1.msra.mxu0 0.0
  %3051 = vmatprep.subr.mxu0 0.0
  %3052 = vmatpush1.msra.mxu0 0.0
  %3053 = vmatprep.subr.mxu0 0.0
  %3054 = vmatpush1.msra.mxu0 0.0
  %3055 = vmatprep.subr.mxu0 0.0
  %3056 = vmatpush1.msra.mxu0 0.0
  %3057 = vmatprep.subr.mxu0 0.0
  %3058 = vmatpush1.msra.mxu0 0.0
  %3059 = vmatprep.subr.mxu0 0.0
  %3060 = vmatpush1.msra.mxu0 0.0
  %3061 = vmatprep.subr.mxu0 0.0
  %3062 = vmatpush1.msra.mxu0 0.0
  %3063 = vmatprep.subr.mxu0 0.0
  %3064 = vmatpush1.msra.mxu0 0.0
  %3065 = vmatprep.subr.mxu0 0.0
  %3066 = vmatpush1.msra.mxu0 0.0
  %3067 = vmatprep.subr.mxu0 0.0
  %3068 = vmatpush1.msra.mxu0 0.0
  %3069 = vmatprep.subr.mxu0 0.0
  %3070 = vmatpush1.msra.mxu0 0.0
  %3071 = vmatprep.subr.mxu0 0.0
  %3072 = vmatpush1.msra.mxu0 0.0
  %3073 = vmatprep.subr.mxu0 0.0
  %3074 = vmatpush1.msra.mxu0 0.0
  %3075 = vmatprep.subr.mxu0 0.0
  %3076 = vmatpush1.msra.mxu0 0.0
  %3077 = vmatprep.subr.mxu0 0.0
  %3078 = vmatpush1.msra.mxu0 0.0
  %3079 = vmatprep.subr.mxu0 0.0
  %3080 = vmatpush1.msra.mxu0 0.0
  %3081 = vmatprep.subr.mxu0 0.0
  %3082 = vmatpush1.msra.mxu0 0.0
  %3083 = vmatprep.subr.mxu0 0.0
  %3084 = vmatpush1.msra.mxu0 0.0
  %3085 = vmatprep.subr.mxu0 0.0
  %3086 = vmatpush1.msra.mxu0 0.0
  %3087 = vmatprep.subr.mxu0 0.0
  %3088 = vmatpush1.msra.mxu0 0.0
  %3089 = vmatprep.subr.mxu0 0.0
  %3090 = vmatpush1.msra.mxu0 0.0
  %3091 = vmatprep.subr.mxu0 0.0
  %3092 = vmatpush1.msra.mxu0 0.0
  %3093 = vmatprep.subr.mxu0 0.0
  %3094 = vmatpush1.msra.mxu0 0.0
  %3095 = vmatprep.mubr.f32.mxu0 0.0
  %3096 = vmatmul.mubr.f32.gmra.mrb[0].mxu0 %v3026
  %v3097 = vpop.f32.mrb[0].mxu0
  %v3098 = vadd.f32 0.0, %v3097
  %v3099 = vpop.f32.mrb[0].mxu0
  %3100 = vmatprep.mubr.f32.mxu0 0.0
  %3101 = vmatmul.mubr.f32.gmra.mrb[0].mxu0 %v3029
  %v3102 = vpop.f32.mrb[0].mxu0
  %v3103 = vadd.f32 0.0, %v3102
  %v3104 = vpop.f32.mrb[0].mxu0
  %3105 = vdwg.mxu0
  %v3106 = vmul.f32 %v3098, 0.5
  %v3107 = vmul.f32 %v3103, 0.5
  %v3108 = vmul.f32 %v3098, 0.044715
  %v3109 = vmul.f32 %v3103, 0.044715
  %v3110 = vmul.f32 %v3108, %v3098
  %v3111 = vmul.f32 %v3109, %v3103
  %v3112 = vmul.f32 %v3110, %v3098
  %v3113 = vmul.f32 %v3111, %v3103
  %v3114 = vadd.f32 %v3098, %v3112
  %v3115 = vadd.f32 %v3103, %v3113
  %v3116 = vmul.f32 %v3114, 0.7978846
  %v3117 = vmul.f32 %v3115, 0.7978846
  %v3118 = vtanh.pop %v3116
  %v3119 = vtanh.pop %v3117
  %v3120 = vadd.f32 %v3118, 1.0
  %v3121 = vadd.f32 %v3119, 1.0
  %v3122 = vmul.f32 %v3106, %v3120
  %v3123 = vmul.f32 %v3107, %v3121
  %3126 = vrot.lane.b32.xlu0 %v3098, 64
  %v3127 = vpop.permute.xlu0 %3126
  %3128 = vrot.lane.b32.xlu0 %v3103, 64
  %v3129 = vpop.permute.xlu0 %3128
  %v3132 = vmul.f32 %v3122, %v3127
  %v3133 = vmul.f32 %v3123, %v3129
  %v3135 = vsel %vm1578, %v3132, 0
  %v3138 = vsel %vm1578, %v3133, 0
  %3140 = vmatprep.subr.mxu0 0.0
  %3141 = vmatpush1.msra.mxu0 %v2993
  %3142 = vmatprep.subr.mxu0 0.0
  %3143 = vmatpush1.msra.mxu0 %v2994
  %3144 = vmatprep.subr.mxu0 0.0
  %3145 = vmatpush1.msra.mxu0 %v2995
  %3146 = vmatprep.subr.mxu0 0.0
  %3147 = vmatpush1.msra.mxu0 %v2996
  %3148 = vmatprep.subr.mxu0 0.0
  %3149 = vmatpush1.msra.mxu0 %v2997
  %3150 = vmatprep.subr.mxu0 0.0
  %3151 = vmatpush1.msra.mxu0 %v2998
  %3152 = vmatprep.subr.mxu0 0.0
  %3153 = vmatpush1.msra.mxu0 %v2999
  %3154 = vmatprep.subr.mxu0 0.0
  %3155 = vmatpush1.msra.mxu0 %v3000
  %3156 = vmatprep.subr.mxu0 0.0
  %3157 = vmatpush1.msra.mxu0 0.0
  %3158 = vmatprep.subr.mxu0 0.0
  %3159 = vmatpush1.msra.mxu0 0.0
  %3160 = vmatprep.subr.mxu0 0.0
  %3161 = vmatpush1.msra.mxu0 0.0
  %3162 = vmatprep.subr.mxu0 0.0
  %3163 = vmatpush1.msra.mxu0 0.0
  %3164 = vmatprep.subr.mxu0 0.0
  %3165 = vmatpush1.msra.mxu0 0.0
  %3166 = vmatprep.subr.mxu0 0.0
  %3167 = vmatpush1.msra.mxu0 0.0
  %3168 = vmatprep.subr.mxu0 0.0
  %3169 = vmatpush1.msra.mxu0 0.0
  %3170 = vmatprep.subr.mxu0 0.0
  %3171 = vmatpush1.msra.mxu0 0.0
  %3172 = vmatprep.subr.mxu0 0.0
  %3173 = vmatpush1.msra.mxu0 0.0
  %3174 = vmatprep.subr.mxu0 0.0
  %3175 = vmatpush1.msra.mxu0 0.0
  %3176 = vmatprep.subr.mxu0 0.0
  %3177 = vmatpush1.msra.mxu0 0.0
  %3178 = vmatprep.subr.mxu0 0.0
  %3179 = vmatpush1.msra.mxu0 0.0
  %3180 = vmatprep.subr.mxu0 0.0
  %3181 = vmatpush1.msra.mxu0 0.0
  %3182 = vmatprep.subr.mxu0 0.0
  %3183 = vmatpush1.msra.mxu0 0.0
  %3184 = vmatprep.subr.mxu0 0.0
  %3185 = vmatpush1.msra.mxu0 0.0
  %3186 = vmatprep.subr.mxu0 0.0
  %3187 = vmatpush1.msra.mxu0 0.0
  %3188 = vmatprep.subr.mxu0 0.0
  %3189 = vmatpush1.msra.mxu0 0.0
  %3190 = vmatprep.subr.mxu0 0.0
  %3191 = vmatpush1.msra.mxu0 0.0
  %3192 = vmatprep.subr.mxu0 0.0
  %3193 = vmatpush1.msra.mxu0 0.0
  %3194 = vmatprep.subr.mxu0 0.0
  %3195 = vmatpush1.msra.mxu0 0.0
  %3196 = vmatprep.subr.mxu0 0.0
  %3197 = vmatpush1.msra.mxu0 0.0
  %3198 = vmatprep.subr.mxu0 0.0
  %3199 = vmatpush1.msra.mxu0 0.0
  %3200 = vmatprep.subr.mxu0 0.0
  %3201 = vmatpush1.msra.mxu0 0.0
  %3202 = vmatprep.subr.mxu0 0.0
  %3203 = vmatpush1.msra.mxu0 0.0
  %3204 = vmatprep.mubr.f32.mxu0 0.0
  %3205 = vmatmul.mubr.f32.gmra.mrb[0].mxu0 %v3135
  %v3206 = vpop.f32.mrb[0].mxu0
  %v3207 = vadd.f32 0.0, %v3206
  %v3208 = vpop.f32.mrb[0].mxu0
  %3209 = vmatprep.mubr.f32.mxu0 0.0
  %3210 = vmatmul.mubr.f32.gmra.mrb[0].mxu0 %v3138
  %v3211 = vpop.f32.mrb[0].mxu0
  %v3212 = vadd.f32 0.0, %v3211
  %v3213 = vpop.f32.mrb[0].mxu0
  %3214 = vdwg.mxu0
  %v3215 = vadd.f32 %v2983, %v3207
  %v3216 = vadd.f32 %v2984, %v3212
  %v3217 = vld [vmem:[%s23] sm:$0x1]
  %v3218 = vmul.f32 %v3215, %v3215
  %v3219 = vmul.f32 %v3216, %v3216
  %v3220 = vsel %vm124, %v3218, 0.0
  %3221 = vadd.xlane.f32.xlu0 %v3220
  %v3222 = vpop.xlane.xlu0 %3221
  %v3223 = vsel %vm124, %v3219, 0.0
  %3224 = vadd.xlane.f32.xlu0 %v3223
  %v3225 = vpop.xlane.xlu0 %3224
  %v3226 = vmul.f32 %v3222, %v131
  %v3227 = vmul.f32 %v3225, %v131
  %v3228 = vadd.f32 %v3226, 1e-06
  %v3229 = vadd.f32 %v3227, 1e-06
  %v3230 = vrsqrt.pop %v3228
  %v3231 = vrsqrt.pop %v3229
  %v3232 = vmul.f32 %v3215, %v3230
  %v3233 = vmul.f32 %v3216, %v3231
  %v3235 = vlaneseq
  %v3236 = vshrl.u32 %v3235, 7
  %v3237 = vsub.s32 0, %v3236
  %v3238 = vrot.slane %v3217, %v3237
  %v3240 = vmul.f32 %v3232, %v3238
  %v3241 = vmul.f32 %v3233, %v3238
  %v3242 = vld [vmem:[%s1] sm:$0xff]
  %v3243 = vld [vmem:[%s1 + $0x8] sm:$0xff]
  %v3244 = vld [vmem:[%s12] sm:$0x1]
  %v3245 = vld [vmem:[%s13] sm:$0xff]
  %v3246 = vld [vmem:[%s13 + $0x8] sm:$0xff]
  %v3247 = vld [vmem:[%s13 + $0x10] sm:$0xff]
  %v3248 = vld [vmem:[%s13 + $0x18] sm:$0xff]
  %v3249 = vld [vmem:[%s14] sm:$0xff]
  %v3250 = vld [vmem:[%s14 + $0x8] sm:$0xff]
  %v3251 = vld [vmem:[%s14 + $0x10] sm:$0xff]
  %v3252 = vld [vmem:[%s14 + $0x18] sm:$0xff]
  %v3253 = vld [vmem:[%s15] sm:$0xff]
  %v3254 = vld [vmem:[%s15 + $0x8] sm:$0xff]
  %v3255 = vld [vmem:[%s15 + $0x10] sm:$0xff]
  %v3256 = vld [vmem:[%s15 + $0x18] sm:$0xff]
  %v3257 = vmul.f32 %v3242, %v3242
  %v3258 = vmul.f32 %v3243, %v3243
  %v3259 = vsel %vm124, %v3257, 0.0
  %3260 = vadd.xlane.f32.xlu0 %v3259
  %v3261 = vpop.xlane.xlu0 %3260
  %v3262 = vsel %vm124, %v3258, 0.0
  %3263 = vadd.xlane.f32.xlu0 %v3262
  %v3264 = vpop.xlane.xlu0 %3263
  %v3265 = vmul.f32 %v3261, %v131
  %v3266 = vmul.f32 %v3264, %v131
  %v3267 = vadd.f32 %v3265, 1e-06
  %v3268 = vadd.f32 %v3266, 1e-06
  %v3269 = vrsqrt.pop %v3267
  %v3270 = vrsqrt.pop %v3268
  %v3271 = vmul.f32 %v3242, %v3269
  %v3272 = vmul.f32 %v3243, %v3270
  %v3274 = vlaneseq
  %v3275 = vshrl.u32 %v3274, 7
  %v3276 = vsub.s32 0, %v3275
  %v3277 = vrot.slane %v3244, %v3276
  %v3279 = vmul.f32 %v3271, %v3277
  %v3280 = vmul.f32 %v3272, %v3277
  %v3282 = vsel %vm124, %v3279, 0
  %v3285 = vsel %vm124, %v3280, 0
  %3287 = vmatprep.subr.mxu0 0.0
  %3288 = vmatpush1.msra.mxu0 %v3245
  %3289 = vmatprep.subr.mxu0 0.0
  %3290 = vmatpush1.msra.mxu0 %v3246
  %3291 = vmatprep.subr.mxu0 0.0
  %3292 = vmatpush1.msra.mxu0 %v3247
  %3293 = vmatprep.subr.mxu0 0.0
  %3294 = vmatpush1.msra.mxu0 %v3248
  %3295 = vmatprep.subr.mxu0 0.0
  %3296 = vmatpush1.msra.mxu0 0.0
  %3297 = vmatprep.subr.mxu0 0.0
  %3298 = vmatpush1.msra.mxu0 0.0
  %3299 = vmatprep.subr.mxu0 0.0
  %3300 = vmatpush1.msra.mxu0 0.0
  %3301 = vmatprep.subr.mxu0 0.0
  %3302 = vmatpush1.msra.mxu0 0.0
  %3303 = vmatprep.subr.mxu0 0.0
  %3304 = vmatpush1.msra.mxu0 0.0
  %3305 = vmatprep.subr.mxu0 0.0
  %3306 = vmatpush1.msra.mxu0 0.0
  %3307 = vmatprep.subr.mxu0 0.0
  %3308 = vmatpush1.msra.mxu0 0.0
  %3309 = vmatprep.subr.mxu0 0.0
  %3310 = vmatpush1.msra.mxu0 0.0
  %3311 = vmatprep.subr.mxu0 0.0
  %3312 = vmatpush1.msra.mxu0 0.0
  %3313 = vmatprep.subr.mxu0 0.0
  %3314 = vmatpush1.msra.mxu0 0.0
  %3315 = vmatprep.subr.mxu0 0.0
  %3316 = vmatpush1.msra.mxu0 0.0
  %3317 = vmatprep.subr.mxu0 0.0
  %3318 = vmatpush1.msra.mxu0 0.0
  %3319 = vmatprep.subr.mxu0 0.0
  %3320 = vmatpush1.msra.mxu0 0.0
  %3321 = vmatprep.subr.mxu0 0.0
  %3322 = vmatpush1.msra.mxu0 0.0
  %3323 = vmatprep.subr.mxu0 0.0
  %3324 = vmatpush1.msra.mxu0 0.0
  %3325 = vmatprep.subr.mxu0 0.0
  %3326 = vmatpush1.msra.mxu0 0.0
  %3327 = vmatprep.subr.mxu0 0.0
  %3328 = vmatpush1.msra.mxu0 0.0
  %3329 = vmatprep.subr.mxu0 0.0
  %3330 = vmatpush1.msra.mxu0 0.0
  %3331 = vmatprep.subr.mxu0 0.0
  %3332 = vmatpush1.msra.mxu0 0.0
  %3333 = vmatprep.subr.mxu0 0.0
  %3334 = vmatpush1.msra.mxu0 0.0
  %3335 = vmatprep.subr.mxu0 0.0
  %3336 = vmatpush1.msra.mxu0 0.0
  %3337 = vmatprep.subr.mxu0 0.0
  %3338 = vmatpush1.msra.mxu0 0.0
  %3339 = vmatprep.subr.mxu0 0.0
  %3340 = vmatpush1.msra.mxu0 0.0
  %3341 = vmatprep.subr.mxu0 0.0
  %3342 = vmatpush1.msra.mxu0 0.0
  %3343 = vmatprep.subr.mxu0 0.0
  %3344 = vmatpush1.msra.mxu0 0.0
  %3345 = vmatprep.subr.mxu0 0.0
  %3346 = vmatpush1.msra.mxu0 0.0
  %3347 = vmatprep.subr.mxu0 0.0
  %3348 = vmatpush1.msra.mxu0 0.0
  %3349 = vmatprep.subr.mxu0 0.0
  %3350 = vmatpush1.msra.mxu0 0.0
  %3351 = vmatprep.mubr.f32.mxu0 0.0
  %3352 = vmatmul.mubr.f32.gmra.mrb[0].mxu0 %v3282
  %v3353 = vpop.f32.mrb[0].mxu0
  %v3354 = vadd.f32 0.0, %v3353
  %v3355 = vpop.f32.mrb[0].mxu0
  %3356 = vmatprep.mubr.f32.mxu0 0.0
  %3357 = vmatmul.mubr.f32.gmra.mrb[0].mxu0 %v3285
  %v3358 = vpop.f32.mrb[0].mxu0
  %v3359 = vadd.f32 0.0, %v3358
  %v3360 = vpop.f32.mrb[0].mxu0
  %3361 = vdwg.mxu0
  %3362 = vmatprep.subr.mxu0 0.0
  %3363 = vmatpush1.msra.mxu0 %v3249
  %3364 = vmatprep.subr.mxu0 0.0
  %3365 = vmatpush1.msra.mxu0 %v3250
  %3366 = vmatprep.subr.mxu0 0.0
  %3367 = vmatpush1.msra.mxu0 %v3251
  %3368 = vmatprep.subr.mxu0 0.0
  %3369 = vmatpush1.msra.mxu0 %v3252
  %3370 = vmatprep.subr.mxu0 0.0
  %3371 = vmatpush1.msra.mxu0 0.0
  %3372 = vmatprep.subr.mxu0 0.0
  %3373 = vmatpush1.msra.mxu0 0.0
  %3374 = vmatprep.subr.mxu0 0.0
  %3375 = vmatpush1.msra.mxu0 0.0
  %3376 = vmatprep.subr.mxu0 0.0
  %3377 = vmatpush1.msra.mxu0 0.0
  %3378 = vmatprep.subr.mxu0 0.0
  %3379 = vmatpush1.msra.mxu0 0.0
  %3380 = vmatprep.subr.mxu0 0.0
  %3381 = vmatpush1.msra.mxu0 0.0
  %3382 = vmatprep.subr.mxu0 0.0
  %3383 = vmatpush1.msra.mxu0 0.0
  %3384 = vmatprep.subr.mxu0 0.0
  %3385 = vmatpush1.msra.mxu0 0.0
  %3386 = vmatprep.subr.mxu0 0.0
  %3387 = vmatpush1.msra.mxu0 0.0
  %3388 = vmatprep.subr.mxu0 0.0
  %3389 = vmatpush1.msra.mxu0 0.0
  %3390 = vmatprep.subr.mxu0 0.0
  %3391 = vmatpush1.msra.mxu0 0.0
  %3392 = vmatprep.subr.mxu0 0.0
  %3393 = vmatpush1.msra.mxu0 0.0
  %3394 = vmatprep.subr.mxu0 0.0
  %3395 = vmatpush1.msra.mxu0 0.0
  %3396 = vmatprep.subr.mxu0 0.0
  %3397 = vmatpush1.msra.mxu0 0.0
  %3398 = vmatprep.subr.mxu0 0.0
  %3399 = vmatpush1.msra.mxu0 0.0
  %3400 = vmatprep.subr.mxu0 0.0
  %3401 = vmatpush1.msra.mxu0 0.0
  %3402 = vmatprep.subr.mxu0 0.0
  %3403 = vmatpush1.msra.mxu0 0.0
  %3404 = vmatprep.subr.mxu0 0.0
  %3405 = vmatpush1.msra.mxu0 0.0
  %3406 = vmatprep.subr.mxu0 0.0
  %3407 = vmatpush1.msra.mxu0 0.0
  %3408 = vmatprep.subr.mxu0 0.0
  %3409 = vmatpush1.msra.mxu0 0.0
  %3410 = vmatprep.subr.mxu0 0.0
  %3411 = vmatpush1.msra.mxu0 0.0
  %3412 = vmatprep.subr.mxu0 0.0
  %3413 = vmatpush1.msra.mxu0 0.0
  %3414 = vmatprep.subr.mxu0 0.0
  %3415 = vmatpush1.msra.mxu0 0.0
  %3416 = vmatprep.subr.mxu0 0.0
  %3417 = vmatpush1.msra.mxu0 0.0
  %3418 = vmatprep.subr.mxu0 0.0
  %3419 = vmatpush1.msra.mxu0 0.0
  %3420 = vmatprep.subr.mxu0 0.0
  %3421 = vmatpush1.msra.mxu0 0.0
  %3422 = vmatprep.subr.mxu0 0.0
  %3423 = vmatpush1.msra.mxu0 0.0
  %3424 = vmatprep.subr.mxu0 0.0
  %3425 = vmatpush1.msra.mxu0 0.0
  %3426 = vmatprep.mubr.f32.mxu0 0.0
  %3427 = vmatmul.mubr.f32.gmra.mrb[0].mxu0 %v3282
  %v3428 = vpop.f32.mrb[0].mxu0
  %v3429 = vadd.f32 0.0, %v3428
  %v3430 = vpop.f32.mrb[0].mxu0
  %3431 = vmatprep.mubr.f32.mxu0 0.0
  %3432 = vmatmul.mubr.f32.gmra.mrb[0].mxu0 %v3285
  %v3433 = vpop.f32.mrb[0].mxu0
  %v3434 = vadd.f32 0.0, %v3433
  %v3435 = vpop.f32.mrb[0].mxu0
  %3436 = vdwg.mxu0
  %v3438 = vsel %vm304, %v3354, 0
  %v3441 = vsel %vm304, %v3359, 0
  %v3444 = vsel %vm304, %v3429, 0
  %v3447 = vsel %vm304, %v3434, 0
  %3449 = vmatprep.subr.mxu0 0.0
  %3450 = vmatpush1.xpose.msra.mxu0 %v3444
  %3451 = vmatprep.subr.mxu0 0.0
  %3452 = vmatpush1.xpose.msra.mxu0 %v3447
  %3453 = vmatprep.subr.mxu0 0.0
  %3454 = vmatpush1.xpose.msra.mxu0 0.0
  %3455 = vmatprep.subr.mxu0 0.0
  %3456 = vmatpush1.xpose.msra.mxu0 0.0
  %3457 = vmatprep.subr.mxu0 0.0
  %3458 = vmatpush1.xpose.msra.mxu0 0.0
  %3459 = vmatprep.subr.mxu0 0.0
  %3460 = vmatpush1.xpose.msra.mxu0 0.0
  %3461 = vmatprep.subr.mxu0 0.0
  %3462 = vmatpush1.xpose.msra.mxu0 0.0
  %3463 = vmatprep.subr.mxu0 0.0
  %3464 = vmatpush1.xpose.msra.mxu0 0.0
  %3465 = vmatprep.subr.mxu0 0.0
  %3466 = vmatpush1.xpose.msra.mxu0 0.0
  %3467 = vmatprep.subr.mxu0 0.0
  %3468 = vmatpush1.xpose.msra.mxu0 0.0
  %3469 = vmatprep.subr.mxu0 0.0
  %3470 = vmatpush1.xpose.msra.mxu0 0.0
  %3471 = vmatprep.subr.mxu0 0.0
  %3472 = vmatpush1.xpose.msra.mxu0 0.0
  %3473 = vmatprep.subr.mxu0 0.0
  %3474 = vmatpush1.xpose.msra.mxu0 0.0
  %3475 = vmatprep.subr.mxu0 0.0
  %3476 = vmatpush1.xpose.msra.mxu0 0.0
  %3477 = vmatprep.subr.mxu0 0.0
  %3478 = vmatpush1.xpose.msra.mxu0 0.0
  %3479 = vmatprep.subr.mxu0 0.0
  %3480 = vmatpush1.xpose.msra.mxu0 0.0
  %3481 = vmatprep.subr.mxu0 0.0
  %3482 = vmatpush1.xpose.msra.mxu0 0.0
  %3483 = vmatprep.subr.mxu0 0.0
  %3484 = vmatpush1.xpose.msra.mxu0 0.0
  %3485 = vmatprep.subr.mxu0 0.0
  %3486 = vmatpush1.xpose.msra.mxu0 0.0
  %3487 = vmatprep.subr.mxu0 0.0
  %3488 = vmatpush1.xpose.msra.mxu0 0.0
  %3489 = vmatprep.subr.mxu0 0.0
  %3490 = vmatpush1.xpose.msra.mxu0 0.0
  %3491 = vmatprep.subr.mxu0 0.0
  %3492 = vmatpush1.xpose.msra.mxu0 0.0
  %3493 = vmatprep.subr.mxu0 0.0
  %3494 = vmatpush1.xpose.msra.mxu0 0.0
  %3495 = vmatprep.subr.mxu0 0.0
  %3496 = vmatpush1.xpose.msra.mxu0 0.0
  %3497 = vmatprep.subr.mxu0 0.0
  %3498 = vmatpush1.xpose.msra.mxu0 0.0
  %3499 = vmatprep.subr.mxu0 0.0
  %3500 = vmatpush1.xpose.msra.mxu0 0.0
  %3501 = vmatprep.subr.mxu0 0.0
  %3502 = vmatpush1.xpose.msra.mxu0 0.0
  %3503 = vmatprep.subr.mxu0 0.0
  %3504 = vmatpush1.xpose.msra.mxu0 0.0
  %3505 = vmatprep.subr.mxu0 0.0
  %3506 = vmatpush1.xpose.msra.mxu0 0.0
  %3507 = vmatprep.subr.mxu0 0.0
  %3508 = vmatpush1.xpose.msra.mxu0 0.0
  %3509 = vmatprep.subr.mxu0 0.0
  %3510 = vmatpush1.xpose.msra.mxu0 0.0
  %3511 = vmatprep.subr.mxu0 0.0
  %3512 = vmatpush1.xpose.msra.mxu0 0.0
  %3513 = vmatprep.mubr.f32.mxu0 0.0
  %3514 = vmatmul.mubr.f32.gmra.mrb[0].mxu0 %v3438
  %v3515 = vpop.f32.mrb[0].mxu0
  %v3516 = vadd.f32 %v91, %v3515
  %v3517 = vpop.f32.mrb[0].mxu0
  %3518 = vmatprep.mubr.f32.mxu0 0.0
  %3519 = vmatmul.mubr.f32.gmra.mrb[0].mxu0 %v3441
  %v3520 = vpop.f32.mrb[0].mxu0
  %v3521 = vadd.f32 %v92, %v3520
  %v3522 = vpop.f32.mrb[0].mxu0
  %3523 = vdwg.mxu0
  %v3524 = vsel %vm392, %v3516, -inf
  %3525 = vmax.xlane.f32.xlu0 %v3524
  %v3526 = vpop.xlane.xlu0 %3525
  %v3527 = vsel %vm392, %v3521, -inf
  %3528 = vmax.xlane.f32.xlu0 %v3527
  %v3529 = vpop.xlane.xlu0 %3528
  %v3530 = vsub.f32 %v3516, %v3526
  %v3531 = vsub.f32 %v3521, %v3529
  %v3532 = vmul.f32 %v3530, 1.442695
  %v3533 = vpow.pop %v3532
  %v3534 = vmul.f32 %v3531, 1.442695
  %v3535 = vpow.pop %v3534
  %v3536 = vsel %vm392, %v3533, 0.0
  %3537 = vadd.xlane.f32.xlu0 %v3536
  %v3538 = vpop.xlane.xlu0 %3537
  %v3539 = vsel %vm392, %v3535, 0.0
  %3540 = vadd.xlane.f32.xlu0 %v3539
  %v3541 = vpop.xlane.xlu0 %3540
  %v3542 = vrcp.pop %v3538
  %v3543 = vrcp.pop %v3541
  %v3544 = vmul.f32 %v3533, %v3542
  %v3545 = vmul.f32 %v3535, %v3543
  %3546 = vrot.lane.b32.xlu0 %v3429, 96
  %v3547 = vpop.permute.xlu0 %3546
  %3548 = vrot.lane.b32.xlu0 %v3434, 96
  %v3549 = vpop.permute.xlu0 %3548
  %v3553 = vsel %vm392, %v3544, 0
  %v3556 = vsel %vm392, %v3545, 0
  %3558 = vmatprep.subr.mxu0 0.0
  %3559 = vmatpush1.msra.mxu0 %v3547
  %3560 = vmatprep.subr.mxu0 0.0
  %3561 = vmatpush1.msra.mxu0 %v3549
  %3562 = vmatprep.subr.mxu0 0.0
  %3563 = vmatpush1.msra.mxu0 0.0
  %3564 = vmatprep.subr.mxu0 0.0
  %3565 = vmatpush1.msra.mxu0 0.0
  %3566 = vmatprep.subr.mxu0 0.0
  %3567 = vmatpush1.msra.mxu0 0.0
  %3568 = vmatprep.subr.mxu0 0.0
  %3569 = vmatpush1.msra.mxu0 0.0
  %3570 = vmatprep.subr.mxu0 0.0
  %3571 = vmatpush1.msra.mxu0 0.0
  %3572 = vmatprep.subr.mxu0 0.0
  %3573 = vmatpush1.msra.mxu0 0.0
  %3574 = vmatprep.subr.mxu0 0.0
  %3575 = vmatpush1.msra.mxu0 0.0
  %3576 = vmatprep.subr.mxu0 0.0
  %3577 = vmatpush1.msra.mxu0 0.0
  %3578 = vmatprep.subr.mxu0 0.0
  %3579 = vmatpush1.msra.mxu0 0.0
  %3580 = vmatprep.subr.mxu0 0.0
  %3581 = vmatpush1.msra.mxu0 0.0
  %3582 = vmatprep.subr.mxu0 0.0
  %3583 = vmatpush1.msra.mxu0 0.0
  %3584 = vmatprep.subr.mxu0 0.0
  %3585 = vmatpush1.msra.mxu0 0.0
  %3586 = vmatprep.subr.mxu0 0.0
  %3587 = vmatpush1.msra.mxu0 0.0
  %3588 = vmatprep.subr.mxu0 0.0
  %3589 = vmatpush1.msra.mxu0 0.0
  %3590 = vmatprep.subr.mxu0 0.0
  %3591 = vmatpush1.msra.mxu0 0.0
  %3592 = vmatprep.subr.mxu0 0.0
  %3593 = vmatpush1.msra.mxu0 0.0
  %3594 = vmatprep.subr.mxu0 0.0
  %3595 = vmatpush1.msra.mxu0 0.0
  %3596 = vmatprep.subr.mxu0 0.0
  %3597 = vmatpush1.msra.mxu0 0.0
  %3598 = vmatprep.subr.mxu0 0.0
  %3599 = vmatpush1.msra.mxu0 0.0
  %3600 = vmatprep.subr.mxu0 0.0
  %3601 = vmatpush1.msra.mxu0 0.0
  %3602 = vmatprep.subr.mxu0 0.0
  %3603 = vmatpush1.msra.mxu0 0.0
  %3604 = vmatprep.subr.mxu0 0.0
  %3605 = vmatpush1.msra.mxu0 0.0
  %3606 = vmatprep.subr.mxu0 0.0
  %3607 = vmatpush1.msra.mxu0 0.0
  %3608 = vmatprep.subr.mxu0 0.0
  %3609 = vmatpush1.msra.mxu0 0.0
  %3610 = vmatprep.subr.mxu0 0.0
  %3611 = vmatpush1.msra.mxu0 0.0
  %3612 = vmatprep.subr.mxu0 0.0
  %3613 = vmatpush1.msra.mxu0 0.0
  %3614 = vmatprep.subr.mxu0 0.0
  %3615 = vmatpush1.msra.mxu0 0.0
  %3616 = vmatprep.subr.mxu0 0.0
  %3617 = vmatpush1.msra.mxu0 0.0
  %3618 = vmatprep.subr.mxu0 0.0
  %3619 = vmatpush1.msra.mxu0 0.0
  %3620 = vmatprep.subr.mxu0 0.0
  %3621 = vmatpush1.msra.mxu0 0.0
  %3622 = vmatprep.mubr.f32.mxu0 0.0
  %3623 = vmatmul.mubr.f32.gmra.mrb[0].mxu0 %v3553
  %v3624 = vpop.f32.mrb[0].mxu0
  %v3625 = vadd.f32 0.0, %v3624
  %v3626 = vpop.f32.mrb[0].mxu0
  %3627 = vmatprep.mubr.f32.mxu0 0.0
  %3628 = vmatmul.mubr.f32.gmra.mrb[0].mxu0 %v3556
  %v3629 = vpop.f32.mrb[0].mxu0
  %v3630 = vadd.f32 0.0, %v3629
  %v3631 = vpop.f32.mrb[0].mxu0
  %3632 = vdwg.mxu0
  %3633 = vrot.lane.b32.xlu0 %v3354, 120
  %v3634 = vpop.permute.xlu0 %3633
  %3635 = vrot.lane.b32.xlu0 %v3359, 120
  %v3636 = vpop.permute.xlu0 %3635
  %3637 = vrot.lane.b32.xlu0 %v3429, 120
  %v3638 = vpop.permute.xlu0 %3637
  %3639 = vrot.lane.b32.xlu0 %v3434, 120
  %v3640 = vpop.permute.xlu0 %3639
  %v3641 = vsel %vm304, %v3634, 0
  %v3643 = vsel %vm304, %v3636, 0
  %v3645 = vsel %vm304, %v3638, 0
  %v3647 = vsel %vm304, %v3640, 0
  %3649 = vmatprep.subr.mxu0 0.0
  %3650 = vmatpush1.xpose.msra.mxu0 %v3645
  %3651 = vmatprep.subr.mxu0 0.0
  %3652 = vmatpush1.xpose.msra.mxu0 %v3647
  %3653 = vmatprep.subr.mxu0 0.0
  %3654 = vmatpush1.xpose.msra.mxu0 0.0
  %3655 = vmatprep.subr.mxu0 0.0
  %3656 = vmatpush1.xpose.msra.mxu0 0.0
  %3657 = vmatprep.subr.mxu0 0.0
  %3658 = vmatpush1.xpose.msra.mxu0 0.0
  %3659 = vmatprep.subr.mxu0 0.0
  %3660 = vmatpush1.xpose.msra.mxu0 0.0
  %3661 = vmatprep.subr.mxu0 0.0
  %3662 = vmatpush1.xpose.msra.mxu0 0.0
  %3663 = vmatprep.subr.mxu0 0.0
  %3664 = vmatpush1.xpose.msra.mxu0 0.0
  %3665 = vmatprep.subr.mxu0 0.0
  %3666 = vmatpush1.xpose.msra.mxu0 0.0
  %3667 = vmatprep.subr.mxu0 0.0
  %3668 = vmatpush1.xpose.msra.mxu0 0.0
  %3669 = vmatprep.subr.mxu0 0.0
  %3670 = vmatpush1.xpose.msra.mxu0 0.0
  %3671 = vmatprep.subr.mxu0 0.0
  %3672 = vmatpush1.xpose.msra.mxu0 0.0
  %3673 = vmatprep.subr.mxu0 0.0
  %3674 = vmatpush1.xpose.msra.mxu0 0.0
  %3675 = vmatprep.subr.mxu0 0.0
  %3676 = vmatpush1.xpose.msra.mxu0 0.0
  %3677 = vmatprep.subr.mxu0 0.0
  %3678 = vmatpush1.xpose.msra.mxu0 0.0
  %3679 = vmatprep.subr.mxu0 0.0
  %3680 = vmatpush1.xpose.msra.mxu0 0.0
  %3681 = vmatprep.subr.mxu0 0.0
  %3682 = vmatpush1.xpose.msra.mxu0 0.0
  %3683 = vmatprep.subr.mxu0 0.0
  %3684 = vmatpush1.xpose.msra.mxu0 0.0
  %3685 = vmatprep.subr.mxu0 0.0
  %3686 = vmatpush1.xpose.msra.mxu0 0.0
  %3687 = vmatprep.subr.mxu0 0.0
  %3688 = vmatpush1.xpose.msra.mxu0 0.0
  %3689 = vmatprep.subr.mxu0 0.0
  %3690 = vmatpush1.xpose.msra.mxu0 0.0
  %3691 = vmatprep.subr.mxu0 0.0
  %3692 = vmatpush1.xpose.msra.mxu0 0.0
  %3693 = vmatprep.subr.mxu0 0.0
  %3694 = vmatpush1.xpose.msra.mxu0 0.0
  %3695 = vmatprep.subr.mxu0 0.0
  %3696 = vmatpush1.xpose.msra.mxu0 0.0
  %3697 = vmatprep.subr.mxu0 0.0
  %3698 = vmatpush1.xpose.msra.mxu0 0.0
  %3699 = vmatprep.subr.mxu0 0.0
  %3700 = vmatpush1.xpose.msra.mxu0 0.0
  %3701 = vmatprep.subr.mxu0 0.0
  %3702 = vmatpush1.xpose.msra.mxu0 0.0
  %3703 = vmatprep.subr.mxu0 0.0
  %3704 = vmatpush1.xpose.msra.mxu0 0.0
  %3705 = vmatprep.subr.mxu0 0.0
  %3706 = vmatpush1.xpose.msra.mxu0 0.0
  %3707 = vmatprep.subr.mxu0 0.0
  %3708 = vmatpush1.xpose.msra.mxu0 0.0
  %3709 = vmatprep.subr.mxu0 0.0
  %3710 = vmatpush1.xpose.msra.mxu0 0.0
  %3711 = vmatprep.subr.mxu0 0.0
  %3712 = vmatpush1.xpose.msra.mxu0 0.0
  %3713 = vmatprep.mubr.f32.mxu0 0.0
  %3714 = vmatmul.mubr.f32.gmra.mrb[0].mxu0 %v3641
  %v3715 = vpop.f32.mrb[0].mxu0
  %v3716 = vadd.f32 %v93, %v3715
  %v3717 = vpop.f32.mrb[0].mxu0
  %3718 = vmatprep.mubr.f32.mxu0 0.0
  %3719 = vmatmul.mubr.f32.gmra.mrb[0].mxu0 %v3643
  %v3720 = vpop.f32.mrb[0].mxu0
  %v3721 = vadd.f32 %v94, %v3720
  %v3722 = vpop.f32.mrb[0].mxu0
  %3723 = vdwg.mxu0
  %v3724 = vsel %vm392, %v3716, -inf
  %3725 = vmax.xlane.f32.xlu0 %v3724
  %v3726 = vpop.xlane.xlu0 %3725
  %v3727 = vsel %vm392, %v3721, -inf
  %3728 = vmax.xlane.f32.xlu0 %v3727
  %v3729 = vpop.xlane.xlu0 %3728
  %v3730 = vsub.f32 %v3716, %v3726
  %v3731 = vsub.f32 %v3721, %v3729
  %v3732 = vmul.f32 %v3730, 1.442695
  %v3733 = vpow.pop %v3732
  %v3734 = vmul.f32 %v3731, 1.442695
  %v3735 = vpow.pop %v3734
  %v3736 = vsel %vm392, %v3733, 0.0
  %3737 = vadd.xlane.f32.xlu0 %v3736
  %v3738 = vpop.xlane.xlu0 %3737
  %v3739 = vsel %vm392, %v3735, 0.0
  %3740 = vadd.xlane.f32.xlu0 %v3739
  %v3741 = vpop.xlane.xlu0 %3740
  %v3742 = vrcp.pop %v3738
  %v3743 = vrcp.pop %v3741
  %v3744 = vmul.f32 %v3733, %v3742
  %v3745 = vmul.f32 %v3735, %v3743
  %3746 = vrot.lane.b32.xlu0 %v3429, 88
  %v3747 = vpop.permute.xlu0 %3746
  %3748 = vrot.lane.b32.xlu0 %v3434, 88
  %v3749 = vpop.permute.xlu0 %3748
  %v3753 = vsel %vm392, %v3744, 0
  %v3756 = vsel %vm392, %v3745, 0
  %3758 = vmatprep.subr.mxu0 0.0
  %3759 = vmatpush1.msra.mxu0 %v3747
  %3760 = vmatprep.subr.mxu0 0.0
  %3761 = vmatpush1.msra.mxu0 %v3749
  %3762 = vmatprep.subr.mxu0 0.0
  %3763 = vmatpush1.msra.mxu0 0.0
  %3764 = vmatprep.subr.mxu0 0.0
  %3765 = vmatpush1.msra.mxu0 0.0
  %3766 = vmatprep.subr.mxu0 0.0
  %3767 = vmatpush1.msra.mxu0 0.0
  %3768 = vmatprep.subr.mxu0 0.0
  %3769 = vmatpush1.msra.mxu0 0.0
  %3770 = vmatprep.subr.mxu0 0.0
  %3771 = vmatpush1.msra.mxu0 0.0
  %3772 = vmatprep.subr.mxu0 0.0
  %3773 = vmatpush1.msra.mxu0 0.0
  %3774 = vmatprep.subr.mxu0 0.0
  %3775 = vmatpush1.msra.mxu0 0.0
  %3776 = vmatprep.subr.mxu0 0.0
  %3777 = vmatpush1.msra.mxu0 0.0
  %3778 = vmatprep.subr.mxu0 0.0
  %3779 = vmatpush1.msra.mxu0 0.0
  %3780 = vmatprep.subr.mxu0 0.0
  %3781 = vmatpush1.msra.mxu0 0.0
  %3782 = vmatprep.subr.mxu0 0.0
  %3783 = vmatpush1.msra.mxu0 0.0
  %3784 = vmatprep.subr.mxu0 0.0
  %3785 = vmatpush1.msra.mxu0 0.0
  %3786 = vmatprep.subr.mxu0 0.0
  %3787 = vmatpush1.msra.mxu0 0.0
  %3788 = vmatprep.subr.mxu0 0.0
  %3789 = vmatpush1.msra.mxu0 0.0
  %3790 = vmatprep.subr.mxu0 0.0
  %3791 = vmatpush1.msra.mxu0 0.0
  %3792 = vmatprep.subr.mxu0 0.0
  %3793 = vmatpush1.msra.mxu0 0.0
  %3794 = vmatprep.subr.mxu0 0.0
  %3795 = vmatpush1.msra.mxu0 0.0
  %3796 = vmatprep.subr.mxu0 0.0
  %3797 = vmatpush1.msra.mxu0 0.0
  %3798 = vmatprep.subr.mxu0 0.0
  %3799 = vmatpush1.msra.mxu0 0.0
  %3800 = vmatprep.subr.mxu0 0.0
  %3801 = vmatpush1.msra.mxu0 0.0
  %3802 = vmatprep.subr.mxu0 0.0
  %3803 = vmatpush1.msra.mxu0 0.0
  %3804 = vmatprep.subr.mxu0 0.0
  %3805 = vmatpush1.msra.mxu0 0.0
  %3806 = vmatprep.subr.mxu0 0.0
  %3807 = vmatpush1.msra.mxu0 0.0
  %3808 = vmatprep.subr.mxu0 0.0
  %3809 = vmatpush1.msra.mxu0 0.0
  %3810 = vmatprep.subr.mxu0 0.0
  %3811 = vmatpush1.msra.mxu0 0.0
  %3812 = vmatprep.subr.mxu0 0.0
  %3813 = vmatpush1.msra.mxu0 0.0
  %3814 = vmatprep.subr.mxu0 0.0
  %3815 = vmatpush1.msra.mxu0 0.0
  %3816 = vmatprep.subr.mxu0 0.0
  %3817 = vmatpush1.msra.mxu0 0.0
  %3818 = vmatprep.subr.mxu0 0.0
  %3819 = vmatpush1.msra.mxu0 0.0
  %3820 = vmatprep.subr.mxu0 0.0
  %3821 = vmatpush1.msra.mxu0 0.0
  %3822 = vmatprep.mubr.f32.mxu0 0.0
  %3823 = vmatmul.mubr.f32.gmra.mrb[0].mxu0 %v3753
  %v3824 = vpop.f32.mrb[0].mxu0
  %v3825 = vadd.f32 0.0, %v3824
  %v3826 = vpop.f32.mrb[0].mxu0
  %3827 = vmatprep.mubr.f32.mxu0 0.0
  %3828 = vmatmul.mubr.f32.gmra.mrb[0].mxu0 %v3756
  %v3829 = vpop.f32.mrb[0].mxu0
  %v3830 = vadd.f32 0.0, %v3829
  %v3831 = vpop.f32.mrb[0].mxu0
  %3832 = vdwg.mxu0
  %v3834 = vsel %vm304, %v3825, 0
  %v3837 = vsel %vm304, %v3830, 0
  %3839 = vmatprep.subr.mxu0 0.0
  %3840 = vmatpush1.msra.mxu0 %v3254
  %3841 = vmatprep.subr.mxu0 0.0
  %3842 = vmatpush1.msra.mxu0 0.0
  %3843 = vmatprep.subr.mxu0 0.0
  %3844 = vmatpush1.msra.mxu0 0.0
  %3845 = vmatprep.subr.mxu0 0.0
  %3846 = vmatpush1.msra.mxu0 0.0
  %3847 = vmatprep.subr.mxu0 0.0
  %3848 = vmatpush1.msra.mxu0 0.0
  %3849 = vmatprep.subr.mxu0 0.0
  %3850 = vmatpush1.msra.mxu0 0.0
  %3851 = vmatprep.subr.mxu0 0.0
  %3852 = vmatpush1.msra.mxu0 0.0
  %3853 = vmatprep.subr.mxu0 0.0
  %3854 = vmatpush1.msra.mxu0 0.0
  %3855 = vmatprep.subr.mxu0 0.0
  %3856 = vmatpush1.msra.mxu0 0.0
  %3857 = vmatprep.subr.mxu0 0.0
  %3858 = vmatpush1.msra.mxu0 0.0
  %3859 = vmatprep.subr.mxu0 0.0
  %3860 = vmatpush1.msra.mxu0 0.0
  %3861 = vmatprep.subr.mxu0 0.0
  %3862 = vmatpush1.msra.mxu0 0.0
  %3863 = vmatprep.subr.mxu0 0.0
  %3864 = vmatpush1.msra.mxu0 0.0
  %3865 = vmatprep.subr.mxu0 0.0
  %3866 = vmatpush1.msra.mxu0 0.0
  %3867 = vmatprep.subr.mxu0 0.0
  %3868 = vmatpush1.msra.mxu0 0.0
  %3869 = vmatprep.subr.mxu0 0.0
  %3870 = vmatpush1.msra.mxu0 0.0
  %3871 = vmatprep.subr.mxu0 0.0
  %3872 = vmatpush1.msra.mxu0 0.0
  %3873 = vmatprep.subr.mxu0 0.0
  %3874 = vmatpush1.msra.mxu0 0.0
  %3875 = vmatprep.subr.mxu0 0.0
  %3876 = vmatpush1.msra.mxu0 0.0
  %3877 = vmatprep.subr.mxu0 0.0
  %3878 = vmatpush1.msra.mxu0 0.0
  %3879 = vmatprep.subr.mxu0 0.0
  %3880 = vmatpush1.msra.mxu0 0.0
  %3881 = vmatprep.subr.mxu0 0.0
  %3882 = vmatpush1.msra.mxu0 0.0
  %3883 = vmatprep.subr.mxu0 0.0
  %3884 = vmatpush1.msra.mxu0 0.0
  %3885 = vmatprep.subr.mxu0 0.0
  %3886 = vmatpush1.msra.mxu0 0.0
  %3887 = vmatprep.subr.mxu0 0.0
  %3888 = vmatpush1.msra.mxu0 0.0
  %3889 = vmatprep.subr.mxu0 0.0
  %3890 = vmatpush1.msra.mxu0 0.0
  %3891 = vmatprep.subr.mxu0 0.0
  %3892 = vmatpush1.msra.mxu0 0.0
  %3893 = vmatprep.subr.mxu0 0.0
  %3894 = vmatpush1.msra.mxu0 0.0
  %3895 = vmatprep.subr.mxu0 0.0
  %3896 = vmatpush1.msra.mxu0 0.0
  %3897 = vmatprep.subr.mxu0 0.0
  %3898 = vmatpush1.msra.mxu0 0.0
  %3899 = vmatprep.subr.mxu0 0.0
  %3900 = vmatpush1.msra.mxu0 0.0
  %3901 = vmatprep.subr.mxu0 0.0
  %3902 = vmatpush1.msra.mxu0 0.0
  %3903 = vmatprep.mubr.f32.mxu0 0.0
  %3904 = vmatmul.mubr.f32.gmra.mrb[0].mxu0 %v3834
  %v3905 = vpop.f32.mrb[0].mxu0
  %v3906 = vadd.f32 0.0, %v3905
  %v3907 = vpop.f32.mrb[0].mxu0
  %3908 = vmatprep.mubr.f32.mxu0 0.0
  %3909 = vmatmul.mubr.f32.gmra.mrb[0].mxu0 %v3837
  %v3910 = vpop.f32.mrb[0].mxu0
  %v3911 = vadd.f32 0.0, %v3910
  %v3912 = vpop.f32.mrb[0].mxu0
  %3913 = vdwg.mxu0
  %v3915 = vsel %vm304, %v3625, 0
  %v3918 = vsel %vm304, %v3630, 0
  %3920 = vmatprep.subr.mxu0 0.0
  %3921 = vmatpush1.msra.mxu0 %v3253
  %3922 = vmatprep.subr.mxu0 0.0
  %3923 = vmatpush1.msra.mxu0 0.0
  %3924 = vmatprep.subr.mxu0 0.0
  %3925 = vmatpush1.msra.mxu0 0.0
  %3926 = vmatprep.subr.mxu0 0.0
  %3927 = vmatpush1.msra.mxu0 0.0
  %3928 = vmatprep.subr.mxu0 0.0
  %3929 = vmatpush1.msra.mxu0 0.0
  %3930 = vmatprep.subr.mxu0 0.0
  %3931 = vmatpush1.msra.mxu0 0.0
  %3932 = vmatprep.subr.mxu0 0.0
  %3933 = vmatpush1.msra.mxu0 0.0
  %3934 = vmatprep.subr.mxu0 0.0
  %3935 = vmatpush1.msra.mxu0 0.0
  %3936 = vmatprep.subr.mxu0 0.0
  %3937 = vmatpush1.msra.mxu0 0.0
  %3938 = vmatprep.subr.mxu0 0.0
  %3939 = vmatpush1.msra.mxu0 0.0
  %3940 = vmatprep.subr.mxu0 0.0
  %3941 = vmatpush1.msra.mxu0 0.0
  %3942 = vmatprep.subr.mxu0 0.0
  %3943 = vmatpush1.msra.mxu0 0.0
  %3944 = vmatprep.subr.mxu0 0.0
  %3945 = vmatpush1.msra.mxu0 0.0
  %3946 = vmatprep.subr.mxu0 0.0
  %3947 = vmatpush1.msra.mxu0 0.0
  %3948 = vmatprep.subr.mxu0 0.0
  %3949 = vmatpush1.msra.mxu0 0.0
  %3950 = vmatprep.subr.mxu0 0.0
  %3951 = vmatpush1.msra.mxu0 0.0
  %3952 = vmatprep.subr.mxu0 0.0
  %3953 = vmatpush1.msra.mxu0 0.0
  %3954 = vmatprep.subr.mxu0 0.0
  %3955 = vmatpush1.msra.mxu0 0.0
  %3956 = vmatprep.subr.mxu0 0.0
  %3957 = vmatpush1.msra.mxu0 0.0
  %3958 = vmatprep.subr.mxu0 0.0
  %3959 = vmatpush1.msra.mxu0 0.0
  %3960 = vmatprep.subr.mxu0 0.0
  %3961 = vmatpush1.msra.mxu0 0.0
  %3962 = vmatprep.subr.mxu0 0.0
  %3963 = vmatpush1.msra.mxu0 0.0
  %3964 = vmatprep.subr.mxu0 0.0
  %3965 = vmatpush1.msra.mxu0 0.0
  %3966 = vmatprep.subr.mxu0 0.0
  %3967 = vmatpush1.msra.mxu0 0.0
  %3968 = vmatprep.subr.mxu0 0.0
  %3969 = vmatpush1.msra.mxu0 0.0
  %3970 = vmatprep.subr.mxu0 0.0
  %3971 = vmatpush1.msra.mxu0 0.0
  %3972 = vmatprep.subr.mxu0 0.0
  %3973 = vmatpush1.msra.mxu0 0.0
  %3974 = vmatprep.subr.mxu0 0.0
  %3975 = vmatpush1.msra.mxu0 0.0
  %3976 = vmatprep.subr.mxu0 0.0
  %3977 = vmatpush1.msra.mxu0 0.0
  %3978 = vmatprep.subr.mxu0 0.0
  %3979 = vmatpush1.msra.mxu0 0.0
  %3980 = vmatprep.subr.mxu0 0.0
  %3981 = vmatpush1.msra.mxu0 0.0
  %3982 = vmatprep.subr.mxu0 0.0
  %3983 = vmatpush1.msra.mxu0 0.0
  %3984 = vmatprep.mubr.f32.mxu0 0.0
  %3985 = vmatmul.mubr.f32.gmra.mrb[0].mxu0 %v3915
  %v3986 = vpop.f32.mrb[0].mxu0
  %v3987 = vadd.f32 %v3906, %v3986
  %v3988 = vpop.f32.mrb[0].mxu0
  %3989 = vmatprep.mubr.f32.mxu0 0.0
  %3990 = vmatmul.mubr.f32.gmra.mrb[0].mxu0 %v3918
  %v3991 = vpop.f32.mrb[0].mxu0
  %v3992 = vadd.f32 %v3911, %v3991
  %v3993 = vpop.f32.mrb[0].mxu0
  %3994 = vdwg.mxu0
  %3995 = vrot.lane.b32.xlu0 %v3354, 112
  %v3996 = vpop.permute.xlu0 %3995
  %3997 = vrot.lane.b32.xlu0 %v3359, 112
  %v3998 = vpop.permute.xlu0 %3997
  %3999 = vrot.lane.b32.xlu0 %v3429, 112
  %v4000 = vpop.permute.xlu0 %3999
  %4001 = vrot.lane.b32.xlu0 %v3434, 112
  %v4002 = vpop.permute.xlu0 %4001
  %v4003 = vsel %vm304, %v3996, 0
  %v4005 = vsel %vm304, %v3998, 0
  %v4007 = vsel %vm304, %v4000, 0
  %v4009 = vsel %vm304, %v4002, 0
  %4011 = vmatprep.subr.mxu0 0.0
  %4012 = vmatpush1.xpose.msra.mxu0 %v4007
  %4013 = vmatprep.subr.mxu0 0.0
  %4014 = vmatpush1.xpose.msra.mxu0 %v4009
  %4015 = vmatprep.subr.mxu0 0.0
  %4016 = vmatpush1.xpose.msra.mxu0 0.0
  %4017 = vmatprep.subr.mxu0 0.0
  %4018 = vmatpush1.xpose.msra.mxu0 0.0
  %4019 = vmatprep.subr.mxu0 0.0
  %4020 = vmatpush1.xpose.msra.mxu0 0.0
  %4021 = vmatprep.subr.mxu0 0.0
  %4022 = vmatpush1.xpose.msra.mxu0 0.0
  %4023 = vmatprep.subr.mxu0 0.0
  %4024 = vmatpush1.xpose.msra.mxu0 0.0
  %4025 = vmatprep.subr.mxu0 0.0
  %4026 = vmatpush1.xpose.msra.mxu0 0.0
  %4027 = vmatprep.subr.mxu0 0.0
  %4028 = vmatpush1.xpose.msra.mxu0 0.0
  %4029 = vmatprep.subr.mxu0 0.0
  %4030 = vmatpush1.xpose.msra.mxu0 0.0
  %4031 = vmatprep.subr.mxu0 0.0
  %4032 = vmatpush1.xpose.msra.mxu0 0.0
  %4033 = vmatprep.subr.mxu0 0.0
  %4034 = vmatpush1.xpose.msra.mxu0 0.0
  %4035 = vmatprep.subr.mxu0 0.0
  %4036 = vmatpush1.xpose.msra.mxu0 0.0
  %4037 = vmatprep.subr.mxu0 0.0
  %4038 = vmatpush1.xpose.msra.mxu0 0.0
  %4039 = vmatprep.subr.mxu0 0.0
  %4040 = vmatpush1.xpose.msra.mxu0 0.0
  %4041 = vmatprep.subr.mxu0 0.0
  %4042 = vmatpush1.xpose.msra.mxu0 0.0
  %4043 = vmatprep.subr.mxu0 0.0
  %4044 = vmatpush1.xpose.msra.mxu0 0.0
  %4045 = vmatprep.subr.mxu0 0.0
  %4046 = vmatpush1.xpose.msra.mxu0 0.0
  %4047 = vmatprep.subr.mxu0 0.0
  %4048 = vmatpush1.xpose.msra.mxu0 0.0
  %4049 = vmatprep.subr.mxu0 0.0
  %4050 = vmatpush1.xpose.msra.mxu0 0.0
  %4051 = vmatprep.subr.mxu0 0.0
  %4052 = vmatpush1.xpose.msra.mxu0 0.0
  %4053 = vmatprep.subr.mxu0 0.0
  %4054 = vmatpush1.xpose.msra.mxu0 0.0
  %4055 = vmatprep.subr.mxu0 0.0
  %4056 = vmatpush1.xpose.msra.mxu0 0.0
  %4057 = vmatprep.subr.mxu0 0.0
  %4058 = vmatpush1.xpose.msra.mxu0 0.0
  %4059 = vmatprep.subr.mxu0 0.0
  %4060 = vmatpush1.xpose.msra.mxu0 0.0
  %4061 = vmatprep.subr.mxu0 0.0
  %4062 = vmatpush1.xpose.msra.mxu0 0.0
  %4063 = vmatprep.subr.mxu0 0.0
  %4064 = vmatpush1.xpose.msra.mxu0 0.0
  %4065 = vmatprep.subr.mxu0 0.0
  %4066 = vmatpush1.xpose.msra.mxu0 0.0
  %4067 = vmatprep.subr.mxu0 0.0
  %4068 = vmatpush1.xpose.msra.mxu0 0.0
  %4069 = vmatprep.subr.mxu0 0.0
  %4070 = vmatpush1.xpose.msra.mxu0 0.0
  %4071 = vmatprep.subr.mxu0 0.0
  %4072 = vmatpush1.xpose.msra.mxu0 0.0
  %4073 = vmatprep.subr.mxu0 0.0
  %4074 = vmatpush1.xpose.msra.mxu0 0.0
  %4075 = vmatprep.mubr.f32.mxu0 0.0
  %4076 = vmatmul.mubr.f32.gmra.mrb[0].mxu0 %v4003
  %v4077 = vpop.f32.mrb[0].mxu0
  %v4078 = vadd.f32 %v95, %v4077
  %v4079 = vpop.f32.mrb[0].mxu0
  %4080 = vmatprep.mubr.f32.mxu0 0.0
  %4081 = vmatmul.mubr.f32.gmra.mrb[0].mxu0 %v4005
  %v4082 = vpop.f32.mrb[0].mxu0
  %v4083 = vadd.f32 %v96, %v4082
  %v4084 = vpop.f32.mrb[0].mxu0
  %4085 = vdwg.mxu0
  %v4086 = vsel %vm392, %v4078, -inf
  %4087 = vmax.xlane.f32.xlu0 %v4086
  %v4088 = vpop.xlane.xlu0 %4087
  %v4089 = vsel %vm392, %v4083, -inf
  %4090 = vmax.xlane.f32.xlu0 %v4089
  %v4091 = vpop.xlane.xlu0 %4090
  %v4092 = vsub.f32 %v4078, %v4088
  %v4093 = vsub.f32 %v4083, %v4091
  %v4094 = vmul.f32 %v4092, 1.442695
  %v4095 = vpow.pop %v4094
  %v4096 = vmul.f32 %v4093, 1.442695
  %v4097 = vpow.pop %v4096
  %v4098 = vsel %vm392, %v4095, 0.0
  %4099 = vadd.xlane.f32.xlu0 %v4098
  %v4100 = vpop.xlane.xlu0 %4099
  %v4101 = vsel %vm392, %v4097, 0.0
  %4102 = vadd.xlane.f32.xlu0 %v4101
  %v4103 = vpop.xlane.xlu0 %4102
  %v4104 = vrcp.pop %v4100
  %v4105 = vrcp.pop %v4103
  %v4106 = vmul.f32 %v4095, %v4104
  %v4107 = vmul.f32 %v4097, %v4105
  %4108 = vrot.lane.b32.xlu0 %v3429, 80
  %v4109 = vpop.permute.xlu0 %4108
  %4110 = vrot.lane.b32.xlu0 %v3434, 80
  %v4111 = vpop.permute.xlu0 %4110
  %v4115 = vsel %vm392, %v4106, 0
  %v4118 = vsel %vm392, %v4107, 0
  %4120 = vmatprep.subr.mxu0 0.0
  %4121 = vmatpush1.msra.mxu0 %v4109
  %4122 = vmatprep.subr.mxu0 0.0
  %4123 = vmatpush1.msra.mxu0 %v4111
  %4124 = vmatprep.subr.mxu0 0.0
  %4125 = vmatpush1.msra.mxu0 0.0
  %4126 = vmatprep.subr.mxu0 0.0
  %4127 = vmatpush1.msra.mxu0 0.0
  %4128 = vmatprep.subr.mxu0 0.0
  %4129 = vmatpush1.msra.mxu0 0.0
  %4130 = vmatprep.subr.mxu0 0.0
  %4131 = vmatpush1.msra.mxu0 0.0
  %4132 = vmatprep.subr.mxu0 0.0
  %4133 = vmatpush1.msra.mxu0 0.0
  %4134 = vmatprep.subr.mxu0 0.0
  %4135 = vmatpush1.msra.mxu0 0.0
  %4136 = vmatprep.subr.mxu0 0.0
  %4137 = vmatpush1.msra.mxu0 0.0
  %4138 = vmatprep.subr.mxu0 0.0
  %4139 = vmatpush1.msra.mxu0 0.0
  %4140 = vmatprep.subr.mxu0 0.0
  %4141 = vmatpush1.msra.mxu0 0.0
  %4142 = vmatprep.subr.mxu0 0.0
  %4143 = vmatpush1.msra.mxu0 0.0
  %4144 = vmatprep.subr.mxu0 0.0
  %4145 = vmatpush1.msra.mxu0 0.0
  %4146 = vmatprep.subr.mxu0 0.0
  %4147 = vmatpush1.msra.mxu0 0.0
  %4148 = vmatprep.subr.mxu0 0.0
  %4149 = vmatpush1.msra.mxu0 0.0
  %4150 = vmatprep.subr.mxu0 0.0
  %4151 = vmatpush1.msra.mxu0 0.0
  %4152 = vmatprep.subr.mxu0 0.0
  %4153 = vmatpush1.msra.mxu0 0.0
  %4154 = vmatprep.subr.mxu0 0.0
  %4155 = vmatpush1.msra.mxu0 0.0
  %4156 = vmatprep.subr.mxu0 0.0
  %4157 = vmatpush1.msra.mxu0 0.0
  %4158 = vmatprep.subr.mxu0 0.0
  %4159 = vmatpush1.msra.mxu0 0.0
  %4160 = vmatprep.subr.mxu0 0.0
  %4161 = vmatpush1.msra.mxu0 0.0
  %4162 = vmatprep.subr.mxu0 0.0
  %4163 = vmatpush1.msra.mxu0 0.0
  %4164 = vmatprep.subr.mxu0 0.0
  %4165 = vmatpush1.msra.mxu0 0.0
  %4166 = vmatprep.subr.mxu0 0.0
  %4167 = vmatpush1.msra.mxu0 0.0
  %4168 = vmatprep.subr.mxu0 0.0
  %4169 = vmatpush1.msra.mxu0 0.0
  %4170 = vmatprep.subr.mxu0 0.0
  %4171 = vmatpush1.msra.mxu0 0.0
  %4172 = vmatprep.subr.mxu0 0.0
  %4173 = vmatpush1.msra.mxu0 0.0
  %4174 = vmatprep.subr.mxu0 0.0
  %4175 = vmatpush1.msra.mxu0 0.0
  %4176 = vmatprep.subr.mxu0 0.0
  %4177 = vmatpush1.msra.mxu0 0.0
  %4178 = vmatprep.subr.mxu0 0.0
  %4179 = vmatpush1.msra.mxu0 0.0
  %4180 = vmatprep.subr.mxu0 0.0
  %4181 = vmatpush1.msra.mxu0 0.0
  %4182 = vmatprep.subr.mxu0 0.0
  %4183 = vmatpush1.msra.mxu0 0.0
  %4184 = vmatprep.mubr.f32.mxu0 0.0
  %4185 = vmatmul.mubr.f32.gmra.mrb[0].mxu0 %v4115
  %v4186 = vpop.f32.mrb[0].mxu0
  %v4187 = vadd.f32 0.0, %v4186
  %v4188 = vpop.f32.mrb[0].mxu0
  %4189 = vmatprep.mubr.f32.mxu0 0.0
  %4190 = vmatmul.mubr.f32.gmra.mrb[0].mxu0 %v4118
  %v4191 = vpop.f32.mrb[0].mxu0
  %v4192 = vadd.f32 0.0, %v4191
  %v4193 = vpop.f32.mrb[0].mxu0
  %4194 = vdwg.mxu0
  %v4196 = vsel %vm304, %v4187, 0
  %v4199 = vsel %vm304, %v4192, 0
  %4201 = vmatprep.subr.mxu0 0.0
  %4202 = vmatpush1.msra.mxu0 %v3255
  %4203 = vmatprep.subr.mxu0 0.0
  %4204 = vmatpush1.msra.mxu0 0.0
  %4205 = vmatprep.subr.mxu0 0.0
  %4206 = vmatpush1.msra.mxu0 0.0
  %4207 = vmatprep.subr.mxu0 0.0
  %4208 = vmatpush1.msra.mxu0 0.0
  %4209 = vmatprep.subr.mxu0 0.0
  %4210 = vmatpush1.msra.mxu0 0.0
  %4211 = vmatprep.subr.mxu0 0.0
  %4212 = vmatpush1.msra.mxu0 0.0
  %4213 = vmatprep.subr.mxu0 0.0
  %4214 = vmatpush1.msra.mxu0 0.0
  %4215 = vmatprep.subr.mxu0 0.0
  %4216 = vmatpush1.msra.mxu0 0.0
  %4217 = vmatprep.subr.mxu0 0.0
  %4218 = vmatpush1.msra.mxu0 0.0
  %4219 = vmatprep.subr.mxu0 0.0
  %4220 = vmatpush1.msra.mxu0 0.0
  %4221 = vmatprep.subr.mxu0 0.0
  %4222 = vmatpush1.msra.mxu0 0.0
  %4223 = vmatprep.subr.mxu0 0.0
  %4224 = vmatpush1.msra.mxu0 0.0
  %4225 = vmatprep.subr.mxu0 0.0
  %4226 = vmatpush1.msra.mxu0 0.0
  %4227 = vmatprep.subr.mxu0 0.0
  %4228 = vmatpush1.msra.mxu0 0.0
  %4229 = vmatprep.subr.mxu0 0.0
  %4230 = vmatpush1.msra.mxu0 0.0
  %4231 = vmatprep.subr.mxu0 0.0
  %4232 = vmatpush1.msra.mxu0 0.0
  %4233 = vmatprep.subr.mxu0 0.0
  %4234 = vmatpush1.msra.mxu0 0.0
  %4235 = vmatprep.subr.mxu0 0.0
  %4236 = vmatpush1.msra.mxu0 0.0
  %4237 = vmatprep.subr.mxu0 0.0
  %4238 = vmatpush1.msra.mxu0 0.0
  %4239 = vmatprep.subr.mxu0 0.0
  %4240 = vmatpush1.msra.mxu0 0.0
  %4241 = vmatprep.subr.mxu0 0.0
  %4242 = vmatpush1.msra.mxu0 0.0
  %4243 = vmatprep.subr.mxu0 0.0
  %4244 = vmatpush1.msra.mxu0 0.0
  %4245 = vmatprep.subr.mxu0 0.0
  %4246 = vmatpush1.msra.mxu0 0.0
  %4247 = vmatprep.subr.mxu0 0.0
  %4248 = vmatpush1.msra.mxu0 0.0
  %4249 = vmatprep.subr.mxu0 0.0
  %4250 = vmatpush1.msra.mxu0 0.0
  %4251 = vmatprep.subr.mxu0 0.0
  %4252 = vmatpush1.msra.mxu0 0.0
  %4253 = vmatprep.subr.mxu0 0.0
  %4254 = vmatpush1.msra.mxu0 0.0
  %4255 = vmatprep.subr.mxu0 0.0
  %4256 = vmatpush1.msra.mxu0 0.0
  %4257 = vmatprep.subr.mxu0 0.0
  %4258 = vmatpush1.msra.mxu0 0.0
  %4259 = vmatprep.subr.mxu0 0.0
  %4260 = vmatpush1.msra.mxu0 0.0
  %4261 = vmatprep.subr.mxu0 0.0
  %4262 = vmatpush1.msra.mxu0 0.0
  %4263 = vmatprep.subr.mxu0 0.0
  %4264 = vmatpush1.msra.mxu0 0.0
  %4265 = vmatprep.mubr.f32.mxu0 0.0
  %4266 = vmatmul.mubr.f32.gmra.mrb[0].mxu0 %v4196
  %v4267 = vpop.f32.mrb[0].mxu0
  %v4268 = vadd.f32 0.0, %v4267
  %v4269 = vpop.f32.mrb[0].mxu0
  %4270 = vmatprep.mubr.f32.mxu0 0.0
  %4271 = vmatmul.mubr.f32.gmra.mrb[0].mxu0 %v4199
  %v4272 = vpop.f32.mrb[0].mxu0
  %v4273 = vadd.f32 0.0, %v4272
  %v4274 = vpop.f32.mrb[0].mxu0
  %4275 = vdwg.mxu0
  %v4276 = vadd.f32 %v3987, %v4268
  %v4277 = vadd.f32 %v3992, %v4273
  %4278 = vrot.lane.b32.xlu0 %v3354, 104
  %v4279 = vpop.permute.xlu0 %4278
  %4280 = vrot.lane.b32.xlu0 %v3359, 104
  %v4281 = vpop.permute.xlu0 %4280
  %4282 = vrot.lane.b32.xlu0 %v3429, 104
  %v4283 = vpop.permute.xlu0 %4282
  %4284 = vrot.lane.b32.xlu0 %v3434, 104
  %v4285 = vpop.permute.xlu0 %4284
  %v4286 = vsel %vm304, %v4279, 0
  %v4288 = vsel %vm304, %v4281, 0
  %v4290 = vsel %vm304, %v4283, 0
  %v4292 = vsel %vm304, %v4285, 0
  %4294 = vmatprep.subr.mxu0 0.0
  %4295 = vmatpush1.xpose.msra.mxu0 %v4290
  %4296 = vmatprep.subr.mxu0 0.0
  %4297 = vmatpush1.xpose.msra.mxu0 %v4292
  %4298 = vmatprep.subr.mxu0 0.0
  %4299 = vmatpush1.xpose.msra.mxu0 0.0
  %4300 = vmatprep.subr.mxu0 0.0
  %4301 = vmatpush1.xpose.msra.mxu0 0.0
  %4302 = vmatprep.subr.mxu0 0.0
  %4303 = vmatpush1.xpose.msra.mxu0 0.0
  %4304 = vmatprep.subr.mxu0 0.0
  %4305 = vmatpush1.xpose.msra.mxu0 0.0
  %4306 = vmatprep.subr.mxu0 0.0
  %4307 = vmatpush1.xpose.msra.mxu0 0.0
  %4308 = vmatprep.subr.mxu0 0.0
  %4309 = vmatpush1.xpose.msra.mxu0 0.0
  %4310 = vmatprep.subr.mxu0 0.0
  %4311 = vmatpush1.xpose.msra.mxu0 0.0
  %4312 = vmatprep.subr.mxu0 0.0
  %4313 = vmatpush1.xpose.msra.mxu0 0.0
  %4314 = vmatprep.subr.mxu0 0.0
  %4315 = vmatpush1.xpose.msra.mxu0 0.0
  %4316 = vmatprep.subr.mxu0 0.0
  %4317 = vmatpush1.xpose.msra.mxu0 0.0
  %4318 = vmatprep.subr.mxu0 0.0
  %4319 = vmatpush1.xpose.msra.mxu0 0.0
  %4320 = vmatprep.subr.mxu0 0.0
  %4321 = vmatpush1.xpose.msra.mxu0 0.0
  %4322 = vmatprep.subr.mxu0 0.0
  %4323 = vmatpush1.xpose.msra.mxu0 0.0
  %4324 = vmatprep.subr.mxu0 0.0
  %4325 = vmatpush1.xpose.msra.mxu0 0.0
  %4326 = vmatprep.subr.mxu0 0.0
  %4327 = vmatpush1.xpose.msra.mxu0 0.0
  %4328 = vmatprep.subr.mxu0 0.0
  %4329 = vmatpush1.xpose.msra.mxu0 0.0
  %4330 = vmatprep.subr.mxu0 0.0
  %4331 = vmatpush1.xpose.msra.mxu0 0.0
  %4332 = vmatprep.subr.mxu0 0.0
  %4333 = vmatpush1.xpose.msra.mxu0 0.0
  %4334 = vmatprep.subr.mxu0 0.0
  %4335 = vmatpush1.xpose.msra.mxu0 0.0
  %4336 = vmatprep.subr.mxu0 0.0
  %4337 = vmatpush1.xpose.msra.mxu0 0.0
  %4338 = vmatprep.subr.mxu0 0.0
  %4339 = vmatpush1.xpose.msra.mxu0 0.0
  %4340 = vmatprep.subr.mxu0 0.0
  %4341 = vmatpush1.xpose.msra.mxu0 0.0
  %4342 = vmatprep.subr.mxu0 0.0
  %4343 = vmatpush1.xpose.msra.mxu0 0.0
  %4344 = vmatprep.subr.mxu0 0.0
  %4345 = vmatpush1.xpose.msra.mxu0 0.0
  %4346 = vmatprep.subr.mxu0 0.0
  %4347 = vmatpush1.xpose.msra.mxu0 0.0
  %4348 = vmatprep.subr.mxu0 0.0
  %4349 = vmatpush1.xpose.msra.mxu0 0.0
  %4350 = vmatprep.subr.mxu0 0.0
  %4351 = vmatpush1.xpose.msra.mxu0 0.0
  %4352 = vmatprep.subr.mxu0 0.0
  %4353 = vmatpush1.xpose.msra.mxu0 0.0
  %4354 = vmatprep.subr.mxu0 0.0
  %4355 = vmatpush1.xpose.msra.mxu0 0.0
  %4356 = vmatprep.subr.mxu0 0.0
  %4357 = vmatpush1.xpose.msra.mxu0 0.0
  %4358 = vmatprep.mubr.f32.mxu0 0.0
  %4359 = vmatmul.mubr.f32.gmra.mrb[0].mxu0 %v4286
  %v4360 = vpop.f32.mrb[0].mxu0
  %v4361 = vadd.f32 %v97, %v4360
  %v4362 = vpop.f32.mrb[0].mxu0
  %4363 = vmatprep.mubr.f32.mxu0 0.0
  %4364 = vmatmul.mubr.f32.gmra.mrb[0].mxu0 %v4288
  %v4365 = vpop.f32.mrb[0].mxu0
  %v4366 = vadd.f32 %v98, %v4365
  %v4367 = vpop.f32.mrb[0].mxu0
  %4368 = vdwg.mxu0
  %v4369 = vsel %vm392, %v4361, -inf
  %4370 = vmax.xlane.f32.xlu0 %v4369
  %v4371 = vpop.xlane.xlu0 %4370
  %v4372 = vsel %vm392, %v4366, -inf
  %4373 = vmax.xlane.f32.xlu0 %v4372
  %v4374 = vpop.xlane.xlu0 %4373
  %v4375 = vsub.f32 %v4361, %v4371
  %v4376 = vsub.f32 %v4366, %v4374
  %v4377 = vmul.f32 %v4375, 1.442695
  %v4378 = vpow.pop %v4377
  %v4379 = vmul.f32 %v4376, 1.442695
  %v4380 = vpow.pop %v4379
  %v4381 = vsel %vm392, %v4378, 0.0
  %4382 = vadd.xlane.f32.xlu0 %v4381
  %v4383 = vpop.xlane.xlu0 %4382
  %v4384 = vsel %vm392, %v4380, 0.0
  %4385 = vadd.xlane.f32.xlu0 %v4384
  %v4386 = vpop.xlane.xlu0 %4385
  %v4387 = vrcp.pop %v4383
  %v4388 = vrcp.pop %v4386
  %v4389 = vmul.f32 %v4378, %v4387
  %v4390 = vmul.f32 %v4380, %v4388
  %4391 = vrot.lane.b32.xlu0 %v3429, 72
  %v4392 = vpop.permute.xlu0 %4391
  %4393 = vrot.lane.b32.xlu0 %v3434, 72
  %v4394 = vpop.permute.xlu0 %4393
  %v4398 = vsel %vm392, %v4389, 0
  %v4401 = vsel %vm392, %v4390, 0
  %4403 = vmatprep.subr.mxu0 0.0
  %4404 = vmatpush1.msra.mxu0 %v4392
  %4405 = vmatprep.subr.mxu0 0.0
  %4406 = vmatpush1.msra.mxu0 %v4394
  %4407 = vmatprep.subr.mxu0 0.0
  %4408 = vmatpush1.msra.mxu0 0.0
  %4409 = vmatprep.subr.mxu0 0.0
  %4410 = vmatpush1.msra.mxu0 0.0
  %4411 = vmatprep.subr.mxu0 0.0
  %4412 = vmatpush1.msra.mxu0 0.0
  %4413 = vmatprep.subr.mxu0 0.0
  %4414 = vmatpush1.msra.mxu0 0.0
  %4415 = vmatprep.subr.mxu0 0.0
  %4416 = vmatpush1.msra.mxu0 0.0
  %4417 = vmatprep.subr.mxu0 0.0
  %4418 = vmatpush1.msra.mxu0 0.0
  %4419 = vmatprep.subr.mxu0 0.0
  %4420 = vmatpush1.msra.mxu0 0.0
  %4421 = vmatprep.subr.mxu0 0.0
  %4422 = vmatpush1.msra.mxu0 0.0
  %4423 = vmatprep.subr.mxu0 0.0
  %4424 = vmatpush1.msra.mxu0 0.0
  %4425 = vmatprep.subr.mxu0 0.0
  %4426 = vmatpush1.msra.mxu0 0.0
  %4427 = vmatprep.subr.mxu0 0.0
  %4428 = vmatpush1.msra.mxu0 0.0
  %4429 = vmatprep.subr.mxu0 0.0
  %4430 = vmatpush1.msra.mxu0 0.0
  %4431 = vmatprep.subr.mxu0 0.0
  %4432 = vmatpush1.msra.mxu0 0.0
  %4433 = vmatprep.subr.mxu0 0.0
  %4434 = vmatpush1.msra.mxu0 0.0
  %4435 = vmatprep.subr.mxu0 0.0
  %4436 = vmatpush1.msra.mxu0 0.0
  %4437 = vmatprep.subr.mxu0 0.0
  %4438 = vmatpush1.msra.mxu0 0.0
  %4439 = vmatprep.subr.mxu0 0.0
  %4440 = vmatpush1.msra.mxu0 0.0
  %4441 = vmatprep.subr.mxu0 0.0
  %4442 = vmatpush1.msra.mxu0 0.0
  %4443 = vmatprep.subr.mxu0 0.0
  %4444 = vmatpush1.msra.mxu0 0.0
  %4445 = vmatprep.subr.mxu0 0.0
  %4446 = vmatpush1.msra.mxu0 0.0
  %4447 = vmatprep.subr.mxu0 0.0
  %4448 = vmatpush1.msra.mxu0 0.0
  %4449 = vmatprep.subr.mxu0 0.0
  %4450 = vmatpush1.msra.mxu0 0.0
  %4451 = vmatprep.subr.mxu0 0.0
  %4452 = vmatpush1.msra.mxu0 0.0
  %4453 = vmatprep.subr.mxu0 0.0
  %4454 = vmatpush1.msra.mxu0 0.0
  %4455 = vmatprep.subr.mxu0 0.0
  %4456 = vmatpush1.msra.mxu0 0.0
  %4457 = vmatprep.subr.mxu0 0.0
  %4458 = vmatpush1.msra.mxu0 0.0
  %4459 = vmatprep.subr.mxu0 0.0
  %4460 = vmatpush1.msra.mxu0 0.0
  %4461 = vmatprep.subr.mxu0 0.0
  %4462 = vmatpush1.msra.mxu0 0.0
  %4463 = vmatprep.subr.mxu0 0.0
  %4464 = vmatpush1.msra.mxu0 0.0
  %4465 = vmatprep.subr.mxu0 0.0
  %4466 = vmatpush1.msra.mxu0 0.0
  %4467 = vmatprep.mubr.f32.mxu0 0.0
  %4468 = vmatmul.mubr.f32.gmra.mrb[0].mxu0 %v4398
  %v4469 = vpop.f32.mrb[0].mxu0
  %v4470 = vadd.f32 0.0, %v4469
  %v4471 = vpop.f32.mrb[0].mxu0
  %4472 = vmatprep.mubr.f32.mxu0 0.0
  %4473 = vmatmul.mubr.f32.gmra.mrb[0].mxu0 %v4401
  %v4474 = vpop.f32.mrb[0].mxu0
  %v4475 = vadd.f32 0.0, %v4474
  %v4476 = vpop.f32.mrb[0].mxu0
  %4477 = vdwg.mxu0
  %v4479 = vsel %vm304, %v4470, 0
  %v4482 = vsel %vm304, %v4475, 0
  %4484 = vmatprep.subr.mxu0 0.0
  %4485 = vmatpush1.msra.mxu0 %v3256
  %4486 = vmatprep.subr.mxu0 0.0
  %4487 = vmatpush1.msra.mxu0 0.0
  %4488 = vmatprep.subr.mxu0 0.0
  %4489 = vmatpush1.msra.mxu0 0.0
  %4490 = vmatprep.subr.mxu0 0.0
  %4491 = vmatpush1.msra.mxu0 0.0
  %4492 = vmatprep.subr.mxu0 0.0
  %4493 = vmatpush1.msra.mxu0 0.0
  %4494 = vmatprep.subr.mxu0 0.0
  %4495 = vmatpush1.msra.mxu0 0.0
  %4496 = vmatprep.subr.mxu0 0.0
  %4497 = vmatpush1.msra.mxu0 0.0
  %4498 = vmatprep.subr.mxu0 0.0
  %4499 = vmatpush1.msra.mxu0 0.0
  %4500 = vmatprep.subr.mxu0 0.0
  %4501 = vmatpush1.msra.mxu0 0.0
  %4502 = vmatprep.subr.mxu0 0.0
  %4503 = vmatpush1.msra.mxu0 0.0
  %4504 = vmatprep.subr.mxu0 0.0
  %4505 = vmatpush1.msra.mxu0 0.0
  %4506 = vmatprep.subr.mxu0 0.0
  %4507 = vmatpush1.msra.mxu0 0.0
  %4508 = vmatprep.subr.mxu0 0.0
  %4509 = vmatpush1.msra.mxu0 0.0
  %4510 = vmatprep.subr.mxu0 0.0
  %4511 = vmatpush1.msra.mxu0 0.0
  %4512 = vmatprep.subr.mxu0 0.0
  %4513 = vmatpush1.msra.mxu0 0.0
  %4514 = vmatprep.subr.mxu0 0.0
  %4515 = vmatpush1.msra.mxu0 0.0
  %4516 = vmatprep.subr.mxu0 0.0
  %4517 = vmatpush1.msra.mxu0 0.0
  %4518 = vmatprep.subr.mxu0 0.0
  %4519 = vmatpush1.msra.mxu0 0.0
  %4520 = vmatprep.subr.mxu0 0.0
  %4521 = vmatpush1.msra.mxu0 0.0
  %4522 = vmatprep.subr.mxu0 0.0
  %4523 = vmatpush1.msra.mxu0 0.0
  %4524 = vmatprep.subr.mxu0 0.0
  %4525 = vmatpush1.msra.mxu0 0.0
  %4526 = vmatprep.subr.mxu0 0.0
  %4527 = vmatpush1.msra.mxu0 0.0
  %4528 = vmatprep.subr.mxu0 0.0
  %4529 = vmatpush1.msra.mxu0 0.0
  %4530 = vmatprep.subr.mxu0 0.0
  %4531 = vmatpush1.msra.mxu0 0.0
  %4532 = vmatprep.subr.mxu0 0.0
  %4533 = vmatpush1.msra.mxu0 0.0
  %4534 = vmatprep.subr.mxu0 0.0
  %4535 = vmatpush1.msra.mxu0 0.0
  %4536 = vmatprep.subr.mxu0 0.0
  %4537 = vmatpush1.msra.mxu0 0.0
  %4538 = vmatprep.subr.mxu0 0.0
  %4539 = vmatpush1.msra.mxu0 0.0
  %4540 = vmatprep.subr.mxu0 0.0
  %4541 = vmatpush1.msra.mxu0 0.0
  %4542 = vmatprep.subr.mxu0 0.0
  %4543 = vmatpush1.msra.mxu0 0.0
  %4544 = vmatprep.subr.mxu0 0.0
  %4545 = vmatpush1.msra.mxu0 0.0
  %4546 = vmatprep.subr.mxu0 0.0
  %4547 = vmatpush1.msra.mxu0 0.0
  %4548 = vmatprep.mubr.f32.mxu0 0.0
  %4549 = vmatmul.mubr.f32.gmra.mrb[0].mxu0 %v4479
  %v4550 = vpop.f32.mrb[0].mxu0
  %v4551 = vadd.f32 0.0, %v4550
  %v4552 = vpop.f32.mrb[0].mxu0
  %4553 = vmatprep.mubr.f32.mxu0 0.0
  %4554 = vmatmul.mubr.f32.gmra.mrb[0].mxu0 %v4482
  %v4555 = vpop.f32.mrb[0].mxu0
  %v4556 = vadd.f32 0.0, %v4555
  %v4557 = vpop.f32.mrb[0].mxu0
  %4558 = vdwg.mxu0
  %v4559 = vadd.f32 %v4276, %v4551
  %v4560 = vadd.f32 %v4277, %v4556
  %v4561 = vadd.f32 %v3242, %v4559
  %v4562 = vadd.f32 %v3243, %v4560
  %v4563 = vld [vmem:[%s16] sm:$0x1]
  %v4564 = vld [vmem:[%s17] sm:$0xff]
  %v4565 = vld [vmem:[%s17 + $0x8] sm:$0xff]
  %v4566 = vld [vmem:[%s17 + $0x10] sm:$0xff]
  %v4567 = vld [vmem:[%s17 + $0x18] sm:$0xff]
  %v4568 = vld [vmem:[%s18] sm:$0xff]
  %v4569 = vld [vmem:[%s18 + $0x8] sm:$0xff]
  %v4570 = vld [vmem:[%s18 + $0x10] sm:$0xff]
  %v4571 = vld [vmem:[%s18 + $0x18] sm:$0xff]
  %v4572 = vld [vmem:[%s19] sm:$0xff]
  %v4573 = vld [vmem:[%s19 + $0x8] sm:$0xff]
  %v4574 = vld [vmem:[%s19 + $0x10] sm:$0xff]
  %v4575 = vld [vmem:[%s19 + $0x18] sm:$0xff]
  %v4576 = vmul.f32 %v4561, %v4561
  %v4577 = vmul.f32 %v4562, %v4562
  %v4578 = vsel %vm124, %v4576, 0.0
  %4579 = vadd.xlane.f32.xlu0 %v4578
  %v4580 = vpop.xlane.xlu0 %4579
  %v4581 = vsel %vm124, %v4577, 0.0
  %4582 = vadd.xlane.f32.xlu0 %v4581
  %v4583 = vpop.xlane.xlu0 %4582
  %v4584 = vmul.f32 %v4580, %v131
  %v4585 = vmul.f32 %v4583, %v131
  %v4586 = vadd.f32 %v4584, 1e-06
  %v4587 = vadd.f32 %v4585, 1e-06
  %v4588 = vrsqrt.pop %v4586
  %v4589 = vrsqrt.pop %v4587
  %v4590 = vmul.f32 %v4561, %v4588
  %v4591 = vmul.f32 %v4562, %v4589
  %v4593 = vlaneseq
  %v4594 = vshrl.u32 %v4593, 7
  %v4595 = vsub.s32 0, %v4594
  %v4596 = vrot.slane %v4563, %v4595
  %v4598 = vmul.f32 %v4590, %v4596
  %v4599 = vmul.f32 %v4591, %v4596
  %v4601 = vsel %vm124, %v4598, 0
  %v4604 = vsel %vm124, %v4599, 0
  %4606 = vmatprep.subr.mxu0 0.0
  %4607 = vmatpush1.msra.mxu0 %v4564
  %4608 = vmatprep.subr.mxu0 0.0
  %4609 = vmatpush1.msra.mxu0 %v4565
  %4610 = vmatprep.subr.mxu0 0.0
  %4611 = vmatpush1.msra.mxu0 %v4566
  %4612 = vmatprep.subr.mxu0 0.0
  %4613 = vmatpush1.msra.mxu0 %v4567
  %4614 = vmatprep.subr.mxu0 0.0
  %4615 = vmatpush1.msra.mxu0 0.0
  %4616 = vmatprep.subr.mxu0 0.0
  %4617 = vmatpush1.msra.mxu0 0.0
  %4618 = vmatprep.subr.mxu0 0.0
  %4619 = vmatpush1.msra.mxu0 0.0
  %4620 = vmatprep.subr.mxu0 0.0
  %4621 = vmatpush1.msra.mxu0 0.0
  %4622 = vmatprep.subr.mxu0 0.0
  %4623 = vmatpush1.msra.mxu0 0.0
  %4624 = vmatprep.subr.mxu0 0.0
  %4625 = vmatpush1.msra.mxu0 0.0
  %4626 = vmatprep.subr.mxu0 0.0
  %4627 = vmatpush1.msra.mxu0 0.0
  %4628 = vmatprep.subr.mxu0 0.0
  %4629 = vmatpush1.msra.mxu0 0.0
  %4630 = vmatprep.subr.mxu0 0.0
  %4631 = vmatpush1.msra.mxu0 0.0
  %4632 = vmatprep.subr.mxu0 0.0
  %4633 = vmatpush1.msra.mxu0 0.0
  %4634 = vmatprep.subr.mxu0 0.0
  %4635 = vmatpush1.msra.mxu0 0.0
  %4636 = vmatprep.subr.mxu0 0.0
  %4637 = vmatpush1.msra.mxu0 0.0
  %4638 = vmatprep.subr.mxu0 0.0
  %4639 = vmatpush1.msra.mxu0 0.0
  %4640 = vmatprep.subr.mxu0 0.0
  %4641 = vmatpush1.msra.mxu0 0.0
  %4642 = vmatprep.subr.mxu0 0.0
  %4643 = vmatpush1.msra.mxu0 0.0
  %4644 = vmatprep.subr.mxu0 0.0
  %4645 = vmatpush1.msra.mxu0 0.0
  %4646 = vmatprep.subr.mxu0 0.0
  %4647 = vmatpush1.msra.mxu0 0.0
  %4648 = vmatprep.subr.mxu0 0.0
  %4649 = vmatpush1.msra.mxu0 0.0
  %4650 = vmatprep.subr.mxu0 0.0
  %4651 = vmatpush1.msra.mxu0 0.0
  %4652 = vmatprep.subr.mxu0 0.0
  %4653 = vmatpush1.msra.mxu0 0.0
  %4654 = vmatprep.subr.mxu0 0.0
  %4655 = vmatpush1.msra.mxu0 0.0
  %4656 = vmatprep.subr.mxu0 0.0
  %4657 = vmatpush1.msra.mxu0 0.0
  %4658 = vmatprep.subr.mxu0 0.0
  %4659 = vmatpush1.msra.mxu0 0.0
  %4660 = vmatprep.subr.mxu0 0.0
  %4661 = vmatpush1.msra.mxu0 0.0
  %4662 = vmatprep.subr.mxu0 0.0
  %4663 = vmatpush1.msra.mxu0 0.0
  %4664 = vmatprep.subr.mxu0 0.0
  %4665 = vmatpush1.msra.mxu0 0.0
  %4666 = vmatprep.subr.mxu0 0.0
  %4667 = vmatpush1.msra.mxu0 0.0
  %4668 = vmatprep.subr.mxu0 0.0
  %4669 = vmatpush1.msra.mxu0 0.0
  %4670 = vmatprep.mubr.f32.mxu0 0.0
  %4671 = vmatmul.mubr.f32.gmra.mrb[0].mxu0 %v4601
  %v4672 = vpop.f32.mrb[0].mxu0
  %v4673 = vadd.f32 0.0, %v4672
  %v4674 = vpop.f32.mrb[0].mxu0
  %4675 = vmatprep.mubr.f32.mxu0 0.0
  %4676 = vmatmul.mubr.f32.gmra.mrb[0].mxu0 %v4604
  %v4677 = vpop.f32.mrb[0].mxu0
  %v4678 = vadd.f32 0.0, %v4677
  %v4679 = vpop.f32.mrb[0].mxu0
  %4680 = vdwg.mxu0
  %v4682 = vsel %vm124, %v3240, 0
  %v4685 = vsel %vm124, %v3241, 0
  %4687 = vmatprep.subr.mxu0 0.0
  %4688 = vmatpush1.msra.mxu0 %v4568
  %4689 = vmatprep.subr.mxu0 0.0
  %4690 = vmatpush1.msra.mxu0 %v4569
  %4691 = vmatprep.subr.mxu0 0.0
  %4692 = vmatpush1.msra.mxu0 %v4570
  %4693 = vmatprep.subr.mxu0 0.0
  %4694 = vmatpush1.msra.mxu0 %v4571
  %4695 = vmatprep.subr.mxu0 0.0
  %4696 = vmatpush1.msra.mxu0 0.0
  %4697 = vmatprep.subr.mxu0 0.0
  %4698 = vmatpush1.msra.mxu0 0.0
  %4699 = vmatprep.subr.mxu0 0.0
  %4700 = vmatpush1.msra.mxu0 0.0
  %4701 = vmatprep.subr.mxu0 0.0
  %4702 = vmatpush1.msra.mxu0 0.0
  %4703 = vmatprep.subr.mxu0 0.0
  %4704 = vmatpush1.msra.mxu0 0.0
  %4705 = vmatprep.subr.mxu0 0.0
  %4706 = vmatpush1.msra.mxu0 0.0
  %4707 = vmatprep.subr.mxu0 0.0
  %4708 = vmatpush1.msra.mxu0 0.0
  %4709 = vmatprep.subr.mxu0 0.0
  %4710 = vmatpush1.msra.mxu0 0.0
  %4711 = vmatprep.subr.mxu0 0.0
  %4712 = vmatpush1.msra.mxu0 0.0
  %4713 = vmatprep.subr.mxu0 0.0
  %4714 = vmatpush1.msra.mxu0 0.0
  %4715 = vmatprep.subr.mxu0 0.0
  %4716 = vmatpush1.msra.mxu0 0.0
  %4717 = vmatprep.subr.mxu0 0.0
  %4718 = vmatpush1.msra.mxu0 0.0
  %4719 = vmatprep.subr.mxu0 0.0
  %4720 = vmatpush1.msra.mxu0 0.0
  %4721 = vmatprep.subr.mxu0 0.0
  %4722 = vmatpush1.msra.mxu0 0.0
  %4723 = vmatprep.subr.mxu0 0.0
  %4724 = vmatpush1.msra.mxu0 0.0
  %4725 = vmatprep.subr.mxu0 0.0
  %4726 = vmatpush1.msra.mxu0 0.0
  %4727 = vmatprep.subr.mxu0 0.0
  %4728 = vmatpush1.msra.mxu0 0.0
  %4729 = vmatprep.subr.mxu0 0.0
  %4730 = vmatpush1.msra.mxu0 0.0
  %4731 = vmatprep.subr.mxu0 0.0
  %4732 = vmatpush1.msra.mxu0 0.0
  %4733 = vmatprep.subr.mxu0 0.0
  %4734 = vmatpush1.msra.mxu0 0.0
  %4735 = vmatprep.subr.mxu0 0.0
  %4736 = vmatpush1.msra.mxu0 0.0
  %4737 = vmatprep.subr.mxu0 0.0
  %4738 = vmatpush1.msra.mxu0 0.0
  %4739 = vmatprep.subr.mxu0 0.0
  %4740 = vmatpush1.msra.mxu0 0.0
  %4741 = vmatprep.subr.mxu0 0.0
  %4742 = vmatpush1.msra.mxu0 0.0
  %4743 = vmatprep.subr.mxu0 0.0
  %4744 = vmatpush1.msra.mxu0 0.0
  %4745 = vmatprep.subr.mxu0 0.0
  %4746 = vmatpush1.msra.mxu0 0.0
  %4747 = vmatprep.subr.mxu0 0.0
  %4748 = vmatpush1.msra.mxu0 0.0
  %4749 = vmatprep.subr.mxu0 0.0
  %4750 = vmatpush1.msra.mxu0 0.0
  %4751 = vmatprep.mubr.f32.mxu0 0.0
  %4752 = vmatmul.mubr.f32.gmra.mrb[0].mxu0 %v4682
  %v4753 = vpop.f32.mrb[0].mxu0
  %v4754 = vadd.f32 0.0, %v4753
  %v4755 = vpop.f32.mrb[0].mxu0
  %4756 = vmatprep.mubr.f32.mxu0 0.0
  %4757 = vmatmul.mubr.f32.gmra.mrb[0].mxu0 %v4685
  %v4758 = vpop.f32.mrb[0].mxu0
  %v4759 = vadd.f32 0.0, %v4758
  %v4760 = vpop.f32.mrb[0].mxu0
  %4761 = vdwg.mxu0
  %v4763 = vsel %vm304, %v4673, 0
  %v4766 = vsel %vm304, %v4678, 0
  %v4769 = vsel %vm304, %v4754, 0
  %v4772 = vsel %vm304, %v4759, 0
  %4774 = vmatprep.subr.mxu0 0.0
  %4775 = vmatpush1.xpose.msra.mxu0 %v4769
  %4776 = vmatprep.subr.mxu0 0.0
  %4777 = vmatpush1.xpose.msra.mxu0 %v4772
  %4778 = vmatprep.subr.mxu0 0.0
  %4779 = vmatpush1.xpose.msra.mxu0 0.0
  %4780 = vmatprep.subr.mxu0 0.0
  %4781 = vmatpush1.xpose.msra.mxu0 0.0
  %4782 = vmatprep.subr.mxu0 0.0
  %4783 = vmatpush1.xpose.msra.mxu0 0.0
  %4784 = vmatprep.subr.mxu0 0.0
  %4785 = vmatpush1.xpose.msra.mxu0 0.0
  %4786 = vmatprep.subr.mxu0 0.0
  %4787 = vmatpush1.xpose.msra.mxu0 0.0
  %4788 = vmatprep.subr.mxu0 0.0
  %4789 = vmatpush1.xpose.msra.mxu0 0.0
  %4790 = vmatprep.subr.mxu0 0.0
  %4791 = vmatpush1.xpose.msra.mxu0 0.0
  %4792 = vmatprep.subr.mxu0 0.0
  %4793 = vmatpush1.xpose.msra.mxu0 0.0
  %4794 = vmatprep.subr.mxu0 0.0
  %4795 = vmatpush1.xpose.msra.mxu0 0.0
  %4796 = vmatprep.subr.mxu0 0.0
  %4797 = vmatpush1.xpose.msra.mxu0 0.0
  %4798 = vmatprep.subr.mxu0 0.0
  %4799 = vmatpush1.xpose.msra.mxu0 0.0
  %4800 = vmatprep.subr.mxu0 0.0
  %4801 = vmatpush1.xpose.msra.mxu0 0.0
  %4802 = vmatprep.subr.mxu0 0.0
  %4803 = vmatpush1.xpose.msra.mxu0 0.0
  %4804 = vmatprep.subr.mxu0 0.0
  %4805 = vmatpush1.xpose.msra.mxu0 0.0
  %4806 = vmatprep.subr.mxu0 0.0
  %4807 = vmatpush1.xpose.msra.mxu0 0.0
  %4808 = vmatprep.subr.mxu0 0.0
  %4809 = vmatpush1.xpose.msra.mxu0 0.0
  %4810 = vmatprep.subr.mxu0 0.0
  %4811 = vmatpush1.xpose.msra.mxu0 0.0
  %4812 = vmatprep.subr.mxu0 0.0
  %4813 = vmatpush1.xpose.msra.mxu0 0.0
  %4814 = vmatprep.subr.mxu0 0.0
  %4815 = vmatpush1.xpose.msra.mxu0 0.0
  %4816 = vmatprep.subr.mxu0 0.0
  %4817 = vmatpush1.xpose.msra.mxu0 0.0
  %4818 = vmatprep.subr.mxu0 0.0
  %4819 = vmatpush1.xpose.msra.mxu0 0.0
  %4820 = vmatprep.subr.mxu0 0.0
  %4821 = vmatpush1.xpose.msra.mxu0 0.0
  %4822 = vmatprep.subr.mxu0 0.0
  %4823 = vmatpush1.xpose.msra.mxu0 0.0
  %4824 = vmatprep.subr.mxu0 0.0
  %4825 = vmatpush1.xpose.msra.mxu0 0.0
  %4826 = vmatprep.subr.mxu0 0.0
  %4827 = vmatpush1.xpose.msra.mxu0 0.0
  %4828 = vmatprep.subr.mxu0 0.0
  %4829 = vmatpush1.xpose.msra.mxu0 0.0
  %4830 = vmatprep.subr.mxu0 0.0
  %4831 = vmatpush1.xpose.msra.mxu0 0.0
  %4832 = vmatprep.subr.mxu0 0.0
  %4833 = vmatpush1.xpose.msra.mxu0 0.0
  %4834 = vmatprep.subr.mxu0 0.0
  %4835 = vmatpush1.xpose.msra.mxu0 0.0
  %4836 = vmatprep.subr.mxu0 0.0
  %4837 = vmatpush1.xpose.msra.mxu0 0.0
  %4838 = vmatprep.mubr.f32.mxu0 0.0
  %4839 = vmatmul.mubr.f32.gmra.mrb[0].mxu0 %v4763
  %v4840 = vpop.f32.mrb[0].mxu0
  %v4841 = vadd.f32 %v99, %v4840
  %v4842 = vpop.f32.mrb[0].mxu0
  %4843 = vmatprep.mubr.f32.mxu0 0.0
  %4844 = vmatmul.mubr.f32.gmra.mrb[0].mxu0 %v4766
  %v4845 = vpop.f32.mrb[0].mxu0
  %v4846 = vadd.f32 %v100, %v4845
  %v4847 = vpop.f32.mrb[0].mxu0
  %4848 = vdwg.mxu0
  %v4849 = vsel %vm392, %v4841, -inf
  %4850 = vmax.xlane.f32.xlu0 %v4849
  %v4851 = vpop.xlane.xlu0 %4850
  %v4852 = vsel %vm392, %v4846, -inf
  %4853 = vmax.xlane.f32.xlu0 %v4852
  %v4854 = vpop.xlane.xlu0 %4853
  %v4855 = vsub.f32 %v4841, %v4851
  %v4856 = vsub.f32 %v4846, %v4854
  %v4857 = vmul.f32 %v4855, 1.442695
  %v4858 = vpow.pop %v4857
  %v4859 = vmul.f32 %v4856, 1.442695
  %v4860 = vpow.pop %v4859
  %v4861 = vsel %vm392, %v4858, 0.0
  %4862 = vadd.xlane.f32.xlu0 %v4861
  %v4863 = vpop.xlane.xlu0 %4862
  %v4864 = vsel %vm392, %v4860, 0.0
  %4865 = vadd.xlane.f32.xlu0 %v4864
  %v4866 = vpop.xlane.xlu0 %4865
  %v4867 = vrcp.pop %v4863
  %v4868 = vrcp.pop %v4866
  %v4869 = vmul.f32 %v4858, %v4867
  %v4870 = vmul.f32 %v4860, %v4868
  %4871 = vrot.lane.b32.xlu0 %v4754, 96
  %v4872 = vpop.permute.xlu0 %4871
  %4873 = vrot.lane.b32.xlu0 %v4759, 96
  %v4874 = vpop.permute.xlu0 %4873
  %v4878 = vsel %vm392, %v4869, 0
  %v4881 = vsel %vm392, %v4870, 0
  %4883 = vmatprep.subr.mxu0 0.0
  %4884 = vmatpush1.msra.mxu0 %v4872
  %4885 = vmatprep.subr.mxu0 0.0
  %4886 = vmatpush1.msra.mxu0 %v4874
  %4887 = vmatprep.subr.mxu0 0.0
  %4888 = vmatpush1.msra.mxu0 0.0
  %4889 = vmatprep.subr.mxu0 0.0
  %4890 = vmatpush1.msra.mxu0 0.0
  %4891 = vmatprep.subr.mxu0 0.0
  %4892 = vmatpush1.msra.mxu0 0.0
  %4893 = vmatprep.subr.mxu0 0.0
  %4894 = vmatpush1.msra.mxu0 0.0
  %4895 = vmatprep.subr.mxu0 0.0
  %4896 = vmatpush1.msra.mxu0 0.0
  %4897 = vmatprep.subr.mxu0 0.0
  %4898 = vmatpush1.msra.mxu0 0.0
  %4899 = vmatprep.subr.mxu0 0.0
  %4900 = vmatpush1.msra.mxu0 0.0
  %4901 = vmatprep.subr.mxu0 0.0
  %4902 = vmatpush1.msra.mxu0 0.0
  %4903 = vmatprep.subr.mxu0 0.0
  %4904 = vmatpush1.msra.mxu0 0.0
  %4905 = vmatprep.subr.mxu0 0.0
  %4906 = vmatpush1.msra.mxu0 0.0
  %4907 = vmatprep.subr.mxu0 0.0
  %4908 = vmatpush1.msra.mxu0 0.0
  %4909 = vmatprep.subr.mxu0 0.0
  %4910 = vmatpush1.msra.mxu0 0.0
  %4911 = vmatprep.subr.mxu0 0.0
  %4912 = vmatpush1.msra.mxu0 0.0
  %4913 = vmatprep.subr.mxu0 0.0
  %4914 = vmatpush1.msra.mxu0 0.0
  %4915 = vmatprep.subr.mxu0 0.0
  %4916 = vmatpush1.msra.mxu0 0.0
  %4917 = vmatprep.subr.mxu0 0.0
  %4918 = vmatpush1.msra.mxu0 0.0
  %4919 = vmatprep.subr.mxu0 0.0
  %4920 = vmatpush1.msra.mxu0 0.0
  %4921 = vmatprep.subr.mxu0 0.0
  %4922 = vmatpush1.msra.mxu0 0.0
  %4923 = vmatprep.subr.mxu0 0.0
  %4924 = vmatpush1.msra.mxu0 0.0
  %4925 = vmatprep.subr.mxu0 0.0
  %4926 = vmatpush1.msra.mxu0 0.0
  %4927 = vmatprep.subr.mxu0 0.0
  %4928 = vmatpush1.msra.mxu0 0.0
  %4929 = vmatprep.subr.mxu0 0.0
  %4930 = vmatpush1.msra.mxu0 0.0
  %4931 = vmatprep.subr.mxu0 0.0
  %4932 = vmatpush1.msra.mxu0 0.0
  %4933 = vmatprep.subr.mxu0 0.0
  %4934 = vmatpush1.msra.mxu0 0.0
  %4935 = vmatprep.subr.mxu0 0.0
  %4936 = vmatpush1.msra.mxu0 0.0
  %4937 = vmatprep.subr.mxu0 0.0
  %4938 = vmatpush1.msra.mxu0 0.0
  %4939 = vmatprep.subr.mxu0 0.0
  %4940 = vmatpush1.msra.mxu0 0.0
  %4941 = vmatprep.subr.mxu0 0.0
  %4942 = vmatpush1.msra.mxu0 0.0
  %4943 = vmatprep.subr.mxu0 0.0
  %4944 = vmatpush1.msra.mxu0 0.0
  %4945 = vmatprep.subr.mxu0 0.0
  %4946 = vmatpush1.msra.mxu0 0.0
  %4947 = vmatprep.mubr.f32.mxu0 0.0
  %4948 = vmatmul.mubr.f32.gmra.mrb[0].mxu0 %v4878
  %v4949 = vpop.f32.mrb[0].mxu0
  %v4950 = vadd.f32 0.0, %v4949
  %v4951 = vpop.f32.mrb[0].mxu0
  %4952 = vmatprep.mubr.f32.mxu0 0.0
  %4953 = vmatmul.mubr.f32.gmra.mrb[0].mxu0 %v4881
  %v4954 = vpop.f32.mrb[0].mxu0
  %v4955 = vadd.f32 0.0, %v4954
  %v4956 = vpop.f32.mrb[0].mxu0
  %4957 = vdwg.mxu0
  %4958 = vrot.lane.b32.xlu0 %v4673, 120
  %v4959 = vpop.permute.xlu0 %4958
  %4960 = vrot.lane.b32.xlu0 %v4678, 120
  %v4961 = vpop.permute.xlu0 %4960
  %4962 = vrot.lane.b32.xlu0 %v4754, 120
  %v4963 = vpop.permute.xlu0 %4962
  %4964 = vrot.lane.b32.xlu0 %v4759, 120
  %v4965 = vpop.permute.xlu0 %4964
  %v4966 = vsel %vm304, %v4959, 0
  %v4968 = vsel %vm304, %v4961, 0
  %v4970 = vsel %vm304, %v4963, 0
  %v4972 = vsel %vm304, %v4965, 0
  %4974 = vmatprep.subr.mxu0 0.0
  %4975 = vmatpush1.xpose.msra.mxu0 %v4970
  %4976 = vmatprep.subr.mxu0 0.0
  %4977 = vmatpush1.xpose.msra.mxu0 %v4972
  %4978 = vmatprep.subr.mxu0 0.0
  %4979 = vmatpush1.xpose.msra.mxu0 0.0
  %4980 = vmatprep.subr.mxu0 0.0
  %4981 = vmatpush1.xpose.msra.mxu0 0.0
  %4982 = vmatprep.subr.mxu0 0.0
  %4983 = vmatpush1.xpose.msra.mxu0 0.0
  %4984 = vmatprep.subr.mxu0 0.0
  %4985 = vmatpush1.xpose.msra.mxu0 0.0
  %4986 = vmatprep.subr.mxu0 0.0
  %4987 = vmatpush1.xpose.msra.mxu0 0.0
  %4988 = vmatprep.subr.mxu0 0.0
  %4989 = vmatpush1.xpose.msra.mxu0 0.0
  %4990 = vmatprep.subr.mxu0 0.0
  %4991 = vmatpush1.xpose.msra.mxu0 0.0
  %4992 = vmatprep.subr.mxu0 0.0
  %4993 = vmatpush1.xpose.msra.mxu0 0.0
  %4994 = vmatprep.subr.mxu0 0.0
  %4995 = vmatpush1.xpose.msra.mxu0 0.0
  %4996 = vmatprep.subr.mxu0 0.0
  %4997 = vmatpush1.xpose.msra.mxu0 0.0
  %4998 = vmatprep.subr.mxu0 0.0
  %4999 = vmatpush1.xpose.msra.mxu0 0.0
  %5000 = vmatprep.subr.mxu0 0.0
  %5001 = vmatpush1.xpose.msra.mxu0 0.0
  %5002 = vmatprep.subr.mxu0 0.0
  %5003 = vmatpush1.xpose.msra.mxu0 0.0
  %5004 = vmatprep.subr.mxu0 0.0
  %5005 = vmatpush1.xpose.msra.mxu0 0.0
  %5006 = vmatprep.subr.mxu0 0.0
  %5007 = vmatpush1.xpose.msra.mxu0 0.0
  %5008 = vmatprep.subr.mxu0 0.0
  %5009 = vmatpush1.xpose.msra.mxu0 0.0
  %5010 = vmatprep.subr.mxu0 0.0
  %5011 = vmatpush1.xpose.msra.mxu0 0.0
  %5012 = vmatprep.subr.mxu0 0.0
  %5013 = vmatpush1.xpose.msra.mxu0 0.0
  %5014 = vmatprep.subr.mxu0 0.0
  %5015 = vmatpush1.xpose.msra.mxu0 0.0
  %5016 = vmatprep.subr.mxu0 0.0
  %5017 = vmatpush1.xpose.msra.mxu0 0.0
  %5018 = vmatprep.subr.mxu0 0.0
  %5019 = vmatpush1.xpose.msra.mxu0 0.0
  %5020 = vmatprep.subr.mxu0 0.0
  %5021 = vmatpush1.xpose.msra.mxu0 0.0
  %5022 = vmatprep.subr.mxu0 0.0
  %5023 = vmatpush1.xpose.msra.mxu0 0.0
  %5024 = vmatprep.subr.mxu0 0.0
  %5025 = vmatpush1.xpose.msra.mxu0 0.0
  %5026 = vmatprep.subr.mxu0 0.0
  %5027 = vmatpush1.xpose.msra.mxu0 0.0
  %5028 = vmatprep.subr.mxu0 0.0
  %5029 = vmatpush1.xpose.msra.mxu0 0.0
  %5030 = vmatprep.subr.mxu0 0.0
  %5031 = vmatpush1.xpose.msra.mxu0 0.0
  %5032 = vmatprep.subr.mxu0 0.0
  %5033 = vmatpush1.xpose.msra.mxu0 0.0
  %5034 = vmatprep.subr.mxu0 0.0
  %5035 = vmatpush1.xpose.msra.mxu0 0.0
  %5036 = vmatprep.subr.mxu0 0.0
  %5037 = vmatpush1.xpose.msra.mxu0 0.0
  %5038 = vmatprep.mubr.f32.mxu0 0.0
  %5039 = vmatmul.mubr.f32.gmra.mrb[0].mxu0 %v4966
  %v5040 = vpop.f32.mrb[0].mxu0
  %v5041 = vadd.f32 %v101, %v5040
  %v5042 = vpop.f32.mrb[0].mxu0
  %5043 = vmatprep.mubr.f32.mxu0 0.0
  %5044 = vmatmul.mubr.f32.gmra.mrb[0].mxu0 %v4968
  %v5045 = vpop.f32.mrb[0].mxu0
  %v5046 = vadd.f32 %v102, %v5045
  %v5047 = vpop.f32.mrb[0].mxu0
  %5048 = vdwg.mxu0
  %v5049 = vsel %vm392, %v5041, -inf
  %5050 = vmax.xlane.f32.xlu0 %v5049
  %v5051 = vpop.xlane.xlu0 %5050
  %v5052 = vsel %vm392, %v5046, -inf
  %5053 = vmax.xlane.f32.xlu0 %v5052
  %v5054 = vpop.xlane.xlu0 %5053
  %v5055 = vsub.f32 %v5041, %v5051
  %v5056 = vsub.f32 %v5046, %v5054
  %v5057 = vmul.f32 %v5055, 1.442695
  %v5058 = vpow.pop %v5057
  %v5059 = vmul.f32 %v5056, 1.442695
  %v5060 = vpow.pop %v5059
  %v5061 = vsel %vm392, %v5058, 0.0
  %5062 = vadd.xlane.f32.xlu0 %v5061
  %v5063 = vpop.xlane.xlu0 %5062
  %v5064 = vsel %vm392, %v5060, 0.0
  %5065 = vadd.xlane.f32.xlu0 %v5064
  %v5066 = vpop.xlane.xlu0 %5065
  %v5067 = vrcp.pop %v5063
  %v5068 = vrcp.pop %v5066
  %v5069 = vmul.f32 %v5058, %v5067
  %v5070 = vmul.f32 %v5060, %v5068
  %5071 = vrot.lane.b32.xlu0 %v4754, 88
  %v5072 = vpop.permute.xlu0 %5071
  %5073 = vrot.lane.b32.xlu0 %v4759, 88
  %v5074 = vpop.permute.xlu0 %5073
  %v5078 = vsel %vm392, %v5069, 0
  %v5081 = vsel %vm392, %v5070, 0
  %5083 = vmatprep.subr.mxu0 0.0
  %5084 = vmatpush1.msra.mxu0 %v5072
  %5085 = vmatprep.subr.mxu0 0.0
  %5086 = vmatpush1.msra.mxu0 %v5074
  %5087 = vmatprep.subr.mxu0 0.0
  %5088 = vmatpush1.msra.mxu0 0.0
  %5089 = vmatprep.subr.mxu0 0.0
  %5090 = vmatpush1.msra.mxu0 0.0
  %5091 = vmatprep.subr.mxu0 0.0
  %5092 = vmatpush1.msra.mxu0 0.0
  %5093 = vmatprep.subr.mxu0 0.0
  %5094 = vmatpush1.msra.mxu0 0.0
  %5095 = vmatprep.subr.mxu0 0.0
  %5096 = vmatpush1.msra.mxu0 0.0
  %5097 = vmatprep.subr.mxu0 0.0
  %5098 = vmatpush1.msra.mxu0 0.0
  %5099 = vmatprep.subr.mxu0 0.0
  %5100 = vmatpush1.msra.mxu0 0.0
  %5101 = vmatprep.subr.mxu0 0.0
  %5102 = vmatpush1.msra.mxu0 0.0
  %5103 = vmatprep.subr.mxu0 0.0
  %5104 = vmatpush1.msra.mxu0 0.0
  %5105 = vmatprep.subr.mxu0 0.0
  %5106 = vmatpush1.msra.mxu0 0.0
  %5107 = vmatprep.subr.mxu0 0.0
  %5108 = vmatpush1.msra.mxu0 0.0
  %5109 = vmatprep.subr.mxu0 0.0
  %5110 = vmatpush1.msra.mxu0 0.0
  %5111 = vmatprep.subr.mxu0 0.0
  %5112 = vmatpush1.msra.mxu0 0.0
  %5113 = vmatprep.subr.mxu0 0.0
  %5114 = vmatpush1.msra.mxu0 0.0
  %5115 = vmatprep.subr.mxu0 0.0
  %5116 = vmatpush1.msra.mxu0 0.0
  %5117 = vmatprep.subr.mxu0 0.0
  %5118 = vmatpush1.msra.mxu0 0.0
  %5119 = vmatprep.subr.mxu0 0.0
  %5120 = vmatpush1.msra.mxu0 0.0
  %5121 = vmatprep.subr.mxu0 0.0
  %5122 = vmatpush1.msra.mxu0 0.0
  %5123 = vmatprep.subr.mxu0 0.0
  %5124 = vmatpush1.msra.mxu0 0.0
  %5125 = vmatprep.subr.mxu0 0.0
  %5126 = vmatpush1.msra.mxu0 0.0
  %5127 = vmatprep.subr.mxu0 0.0
  %5128 = vmatpush1.msra.mxu0 0.0
  %5129 = vmatprep.subr.mxu0 0.0
  %5130 = vmatpush1.msra.mxu0 0.0
  %5131 = vmatprep.subr.mxu0 0.0
  %5132 = vmatpush1.msra.mxu0 0.0
  %5133 = vmatprep.subr.mxu0 0.0
  %5134 = vmatpush1.msra.mxu0 0.0
  %5135 = vmatprep.subr.mxu0 0.0
  %5136 = vmatpush1.msra.mxu0 0.0
  %5137 = vmatprep.subr.mxu0 0.0
  %5138 = vmatpush1.msra.mxu0 0.0
  %5139 = vmatprep.subr.mxu0 0.0
  %5140 = vmatpush1.msra.mxu0 0.0
  %5141 = vmatprep.subr.mxu0 0.0
  %5142 = vmatpush1.msra.mxu0 0.0
  %5143 = vmatprep.subr.mxu0 0.0
  %5144 = vmatpush1.msra.mxu0 0.0
  %5145 = vmatprep.subr.mxu0 0.0
  %5146 = vmatpush1.msra.mxu0 0.0
  %5147 = vmatprep.mubr.f32.mxu0 0.0
  %5148 = vmatmul.mubr.f32.gmra.mrb[0].mxu0 %v5078
  %v5149 = vpop.f32.mrb[0].mxu0
  %v5150 = vadd.f32 0.0, %v5149
  %v5151 = vpop.f32.mrb[0].mxu0
  %5152 = vmatprep.mubr.f32.mxu0 0.0
  %5153 = vmatmul.mubr.f32.gmra.mrb[0].mxu0 %v5081
  %v5154 = vpop.f32.mrb[0].mxu0
  %v5155 = vadd.f32 0.0, %v5154
  %v5156 = vpop.f32.mrb[0].mxu0
  %5157 = vdwg.mxu0
  %v5159 = vsel %vm304, %v5150, 0
  %v5162 = vsel %vm304, %v5155, 0
  %5164 = vmatprep.subr.mxu0 0.0
  %5165 = vmatpush1.msra.mxu0 %v4573
  %5166 = vmatprep.subr.mxu0 0.0
  %5167 = vmatpush1.msra.mxu0 0.0
  %5168 = vmatprep.subr.mxu0 0.0
  %5169 = vmatpush1.msra.mxu0 0.0
  %5170 = vmatprep.subr.mxu0 0.0
  %5171 = vmatpush1.msra.mxu0 0.0
  %5172 = vmatprep.subr.mxu0 0.0
  %5173 = vmatpush1.msra.mxu0 0.0
  %5174 = vmatprep.subr.mxu0 0.0
  %5175 = vmatpush1.msra.mxu0 0.0
  %5176 = vmatprep.subr.mxu0 0.0
  %5177 = vmatpush1.msra.mxu0 0.0
  %5178 = vmatprep.subr.mxu0 0.0
  %5179 = vmatpush1.msra.mxu0 0.0
  %5180 = vmatprep.subr.mxu0 0.0
  %5181 = vmatpush1.msra.mxu0 0.0
  %5182 = vmatprep.subr.mxu0 0.0
  %5183 = vmatpush1.msra.mxu0 0.0
  %5184 = vmatprep.subr.mxu0 0.0
  %5185 = vmatpush1.msra.mxu0 0.0
  %5186 = vmatprep.subr.mxu0 0.0
  %5187 = vmatpush1.msra.mxu0 0.0
  %5188 = vmatprep.subr.mxu0 0.0
  %5189 = vmatpush1.msra.mxu0 0.0
  %5190 = vmatprep.subr.mxu0 0.0
  %5191 = vmatpush1.msra.mxu0 0.0
  %5192 = vmatprep.subr.mxu0 0.0
  %5193 = vmatpush1.msra.mxu0 0.0
  %5194 = vmatprep.subr.mxu0 0.0
  %5195 = vmatpush1.msra.mxu0 0.0
  %5196 = vmatprep.subr.mxu0 0.0
  %5197 = vmatpush1.msra.mxu0 0.0
  %5198 = vmatprep.subr.mxu0 0.0
  %5199 = vmatpush1.msra.mxu0 0.0
  %5200 = vmatprep.subr.mxu0 0.0
  %5201 = vmatpush1.msra.mxu0 0.0
  %5202 = vmatprep.subr.mxu0 0.0
  %5203 = vmatpush1.msra.mxu0 0.0
  %5204 = vmatprep.subr.mxu0 0.0
  %5205 = vmatpush1.msra.mxu0 0.0
  %5206 = vmatprep.subr.mxu0 0.0
  %5207 = vmatpush1.msra.mxu0 0.0
  %5208 = vmatprep.subr.mxu0 0.0
  %5209 = vmatpush1.msra.mxu0 0.0
  %5210 = vmatprep.subr.mxu0 0.0
  %5211 = vmatpush1.msra.mxu0 0.0
  %5212 = vmatprep.subr.mxu0 0.0
  %5213 = vmatpush1.msra.mxu0 0.0
  %5214 = vmatprep.subr.mxu0 0.0
  %5215 = vmatpush1.msra.mxu0 0.0
  %5216 = vmatprep.subr.mxu0 0.0
  %5217 = vmatpush1.msra.mxu0 0.0
  %5218 = vmatprep.subr.mxu0 0.0
  %5219 = vmatpush1.msra.mxu0 0.0
  %5220 = vmatprep.subr.mxu0 0.0
  %5221 = vmatpush1.msra.mxu0 0.0
  %5222 = vmatprep.subr.mxu0 0.0
  %5223 = vmatpush1.msra.mxu0 0.0
  %5224 = vmatprep.subr.mxu0 0.0
  %5225 = vmatpush1.msra.mxu0 0.0
  %5226 = vmatprep.subr.mxu0 0.0
  %5227 = vmatpush1.msra.mxu0 0.0
  %5228 = vmatprep.mubr.f32.mxu0 0.0
  %5229 = vmatmul.mubr.f32.gmra.mrb[0].mxu0 %v5159
  %v5230 = vpop.f32.mrb[0].mxu0
  %v5231 = vadd.f32 0.0, %v5230
  %v5232 = vpop.f32.mrb[0].mxu0
  %5233 = vmatprep.mubr.f32.mxu0 0.0
  %5234 = vmatmul.mubr.f32.gmra.mrb[0].mxu0 %v5162
  %v5235 = vpop.f32.mrb[0].mxu0
  %v5236 = vadd.f32 0.0, %v5235
  %v5237 = vpop.f32.mrb[0].mxu0
  %5238 = vdwg.mxu0
  %v5240 = vsel %vm304, %v4950, 0
  %v5243 = vsel %vm304, %v4955, 0
  %5245 = vmatprep.subr.mxu0 0.0
  %5246 = vmatpush1.msra.mxu0 %v4572
  %5247 = vmatprep.subr.mxu0 0.0
  %5248 = vmatpush1.msra.mxu0 0.0
  %5249 = vmatprep.subr.mxu0 0.0
  %5250 = vmatpush1.msra.mxu0 0.0
  %5251 = vmatprep.subr.mxu0 0.0
  %5252 = vmatpush1.msra.mxu0 0.0
  %5253 = vmatprep.subr.mxu0 0.0
  %5254 = vmatpush1.msra.mxu0 0.0
  %5255 = vmatprep.subr.mxu0 0.0
  %5256 = vmatpush1.msra.mxu0 0.0
  %5257 = vmatprep.subr.mxu0 0.0
  %5258 = vmatpush1.msra.mxu0 0.0
  %5259 = vmatprep.subr.mxu0 0.0
  %5260 = vmatpush1.msra.mxu0 0.0
  %5261 = vmatprep.subr.mxu0 0.0
  %5262 = vmatpush1.msra.mxu0 0.0
  %5263 = vmatprep.subr.mxu0 0.0
  %5264 = vmatpush1.msra.mxu0 0.0
  %5265 = vmatprep.subr.mxu0 0.0
  %5266 = vmatpush1.msra.mxu0 0.0
  %5267 = vmatprep.subr.mxu0 0.0
  %5268 = vmatpush1.msra.mxu0 0.0
  %5269 = vmatprep.subr.mxu0 0.0
  %5270 = vmatpush1.msra.mxu0 0.0
  %5271 = vmatprep.subr.mxu0 0.0
  %5272 = vmatpush1.msra.mxu0 0.0
  %5273 = vmatprep.subr.mxu0 0.0
  %5274 = vmatpush1.msra.mxu0 0.0
  %5275 = vmatprep.subr.mxu0 0.0
  %5276 = vmatpush1.msra.mxu0 0.0
  %5277 = vmatprep.subr.mxu0 0.0
  %5278 = vmatpush1.msra.mxu0 0.0
  %5279 = vmatprep.subr.mxu0 0.0
  %5280 = vmatpush1.msra.mxu0 0.0
  %5281 = vmatprep.subr.mxu0 0.0
  %5282 = vmatpush1.msra.mxu0 0.0
  %5283 = vmatprep.subr.mxu0 0.0
  %5284 = vmatpush1.msra.mxu0 0.0
  %5285 = vmatprep.subr.mxu0 0.0
  %5286 = vmatpush1.msra.mxu0 0.0
  %5287 = vmatprep.subr.mxu0 0.0
  %5288 = vmatpush1.msra.mxu0 0.0
  %5289 = vmatprep.subr.mxu0 0.0
  %5290 = vmatpush1.msra.mxu0 0.0
  %5291 = vmatprep.subr.mxu0 0.0
  %5292 = vmatpush1.msra.mxu0 0.0
  %5293 = vmatprep.subr.mxu0 0.0
  %5294 = vmatpush1.msra.mxu0 0.0
  %5295 = vmatprep.subr.mxu0 0.0
  %5296 = vmatpush1.msra.mxu0 0.0
  %5297 = vmatprep.subr.mxu0 0.0
  %5298 = vmatpush1.msra.mxu0 0.0
  %5299 = vmatprep.subr.mxu0 0.0
  %5300 = vmatpush1.msra.mxu0 0.0
  %5301 = vmatprep.subr.mxu0 0.0
  %5302 = vmatpush1.msra.mxu0 0.0
  %5303 = vmatprep.subr.mxu0 0.0
  %5304 = vmatpush1.msra.mxu0 0.0
  %5305 = vmatprep.subr.mxu0 0.0
  %5306 = vmatpush1.msra.mxu0 0.0
  %5307 = vmatprep.subr.mxu0 0.0
  %5308 = vmatpush1.msra.mxu0 0.0
  %5309 = vmatprep.mubr.f32.mxu0 0.0
  %5310 = vmatmul.mubr.f32.gmra.mrb[0].mxu0 %v5240
  %v5311 = vpop.f32.mrb[0].mxu0
  %v5312 = vadd.f32 %v5231, %v5311
  %v5313 = vpop.f32.mrb[0].mxu0
  %5314 = vmatprep.mubr.f32.mxu0 0.0
  %5315 = vmatmul.mubr.f32.gmra.mrb[0].mxu0 %v5243
  %v5316 = vpop.f32.mrb[0].mxu0
  %v5317 = vadd.f32 %v5236, %v5316
  %v5318 = vpop.f32.mrb[0].mxu0
  %5319 = vdwg.mxu0
  %5320 = vrot.lane.b32.xlu0 %v4673, 112
  %v5321 = vpop.permute.xlu0 %5320
  %5322 = vrot.lane.b32.xlu0 %v4678, 112
  %v5323 = vpop.permute.xlu0 %5322
  %5324 = vrot.lane.b32.xlu0 %v4754, 112
  %v5325 = vpop.permute.xlu0 %5324
  %5326 = vrot.lane.b32.xlu0 %v4759, 112
  %v5327 = vpop.permute.xlu0 %5326
  %v5328 = vsel %vm304, %v5321, 0
  %v5330 = vsel %vm304, %v5323, 0
  %v5332 = vsel %vm304, %v5325, 0
  %v5334 = vsel %vm304, %v5327, 0
  %5336 = vmatprep.subr.mxu0 0.0
  %5337 = vmatpush1.xpose.msra.mxu0 %v5332
  %5338 = vmatprep.subr.mxu0 0.0
  %5339 = vmatpush1.xpose.msra.mxu0 %v5334
  %5340 = vmatprep.subr.mxu0 0.0
  %5341 = vmatpush1.xpose.msra.mxu0 0.0
  %5342 = vmatprep.subr.mxu0 0.0
  %5343 = vmatpush1.xpose.msra.mxu0 0.0
  %5344 = vmatprep.subr.mxu0 0.0
  %5345 = vmatpush1.xpose.msra.mxu0 0.0
  %5346 = vmatprep.subr.mxu0 0.0
  %5347 = vmatpush1.xpose.msra.mxu0 0.0
  %5348 = vmatprep.subr.mxu0 0.0
  %5349 = vmatpush1.xpose.msra.mxu0 0.0
  %5350 = vmatprep.subr.mxu0 0.0
  %5351 = vmatpush1.xpose.msra.mxu0 0.0
  %5352 = vmatprep.subr.mxu0 0.0
  %5353 = vmatpush1.xpose.msra.mxu0 0.0
  %5354 = vmatprep.subr.mxu0 0.0
  %5355 = vmatpush1.xpose.msra.mxu0 0.0
  %5356 = vmatprep.subr.mxu0 0.0
  %5357 = vmatpush1.xpose.msra.mxu0 0.0
  %5358 = vmatprep.subr.mxu0 0.0
  %5359 = vmatpush1.xpose.msra.mxu0 0.0
  %5360 = vmatprep.subr.mxu0 0.0
  %5361 = vmatpush1.xpose.msra.mxu0 0.0
  %5362 = vmatprep.subr.mxu0 0.0
  %5363 = vmatpush1.xpose.msra.mxu0 0.0
  %5364 = vmatprep.subr.mxu0 0.0
  %5365 = vmatpush1.xpose.msra.mxu0 0.0
  %5366 = vmatprep.subr.mxu0 0.0
  %5367 = vmatpush1.xpose.msra.mxu0 0.0
  %5368 = vmatprep.subr.mxu0 0.0
  %5369 = vmatpush1.xpose.msra.mxu0 0.0
  %5370 = vmatprep.subr.mxu0 0.0
  %5371 = vmatpush1.xpose.msra.mxu0 0.0
  %5372 = vmatprep.subr.mxu0 0.0
  %5373 = vmatpush1.xpose.msra.mxu0 0.0
  %5374 = vmatprep.subr.mxu0 0.0
  %5375 = vmatpush1.xpose.msra.mxu0 0.0
  %5376 = vmatprep.subr.mxu0 0.0
  %5377 = vmatpush1.xpose.msra.mxu0 0.0
  %5378 = vmatprep.subr.mxu0 0.0
  %5379 = vmatpush1.xpose.msra.mxu0 0.0
  %5380 = vmatprep.subr.mxu0 0.0
  %5381 = vmatpush1.xpose.msra.mxu0 0.0
  %5382 = vmatprep.subr.mxu0 0.0
  %5383 = vmatpush1.xpose.msra.mxu0 0.0
  %5384 = vmatprep.subr.mxu0 0.0
  %5385 = vmatpush1.xpose.msra.mxu0 0.0
  %5386 = vmatprep.subr.mxu0 0.0
  %5387 = vmatpush1.xpose.msra.mxu0 0.0
  %5388 = vmatprep.subr.mxu0 0.0
  %5389 = vmatpush1.xpose.msra.mxu0 0.0
  %5390 = vmatprep.subr.mxu0 0.0
  %5391 = vmatpush1.xpose.msra.mxu0 0.0
  %5392 = vmatprep.subr.mxu0 0.0
  %5393 = vmatpush1.xpose.msra.mxu0 0.0
  %5394 = vmatprep.subr.mxu0 0.0
  %5395 = vmatpush1.xpose.msra.mxu0 0.0
  %5396 = vmatprep.subr.mxu0 0.0
  %5397 = vmatpush1.xpose.msra.mxu0 0.0
  %5398 = vmatprep.subr.mxu0 0.0
  %5399 = vmatpush1.xpose.msra.mxu0 0.0
  %5400 = vmatprep.mubr.f32.mxu0 0.0
  %5401 = vmatmul.mubr.f32.gmra.mrb[0].mxu0 %v5328
  %v5402 = vpop.f32.mrb[0].mxu0
  %v5403 = vadd.f32 %v103, %v5402
  %v5404 = vpop.f32.mrb[0].mxu0
  %5405 = vmatprep.mubr.f32.mxu0 0.0
  %5406 = vmatmul.mubr.f32.gmra.mrb[0].mxu0 %v5330
  %v5407 = vpop.f32.mrb[0].mxu0
  %v5408 = vadd.f32 %v104, %v5407
  %v5409 = vpop.f32.mrb[0].mxu0
  %5410 = vdwg.mxu0
  %v5411 = vsel %vm392, %v5403, -inf
  %5412 = vmax.xlane.f32.xlu0 %v5411
  %v5413 = vpop.xlane.xlu0 %5412
  %v5414 = vsel %vm392, %v5408, -inf
  %5415 = vmax.xlane.f32.xlu0 %v5414
  %v5416 = vpop.xlane.xlu0 %5415
  %v5417 = vsub.f32 %v5403, %v5413
  %v5418 = vsub.f32 %v5408, %v5416
  %v5419 = vmul.f32 %v5417, 1.442695
  %v5420 = vpow.pop %v5419
  %v5421 = vmul.f32 %v5418, 1.442695
  %v5422 = vpow.pop %v5421
  %v5423 = vsel %vm392, %v5420, 0.0
  %5424 = vadd.xlane.f32.xlu0 %v5423
  %v5425 = vpop.xlane.xlu0 %5424
  %v5426 = vsel %vm392, %v5422, 0.0
  %5427 = vadd.xlane.f32.xlu0 %v5426
  %v5428 = vpop.xlane.xlu0 %5427
  %v5429 = vrcp.pop %v5425
  %v5430 = vrcp.pop %v5428
  %v5431 = vmul.f32 %v5420, %v5429
  %v5432 = vmul.f32 %v5422, %v5430
  %5433 = vrot.lane.b32.xlu0 %v4754, 80
  %v5434 = vpop.permute.xlu0 %5433
  %5435 = vrot.lane.b32.xlu0 %v4759, 80
  %v5436 = vpop.permute.xlu0 %5435
  %v5440 = vsel %vm392, %v5431, 0
  %v5443 = vsel %vm392, %v5432, 0
  %5445 = vmatprep.subr.mxu0 0.0
  %5446 = vmatpush1.msra.mxu0 %v5434
  %5447 = vmatprep.subr.mxu0 0.0
  %5448 = vmatpush1.msra.mxu0 %v5436
  %5449 = vmatprep.subr.mxu0 0.0
  %5450 = vmatpush1.msra.mxu0 0.0
  %5451 = vmatprep.subr.mxu0 0.0
  %5452 = vmatpush1.msra.mxu0 0.0
  %5453 = vmatprep.subr.mxu0 0.0
  %5454 = vmatpush1.msra.mxu0 0.0
  %5455 = vmatprep.subr.mxu0 0.0
  %5456 = vmatpush1.msra.mxu0 0.0
  %5457 = vmatprep.subr.mxu0 0.0
  %5458 = vmatpush1.msra.mxu0 0.0
  %5459 = vmatprep.subr.mxu0 0.0
  %5460 = vmatpush1.msra.mxu0 0.0
  %5461 = vmatprep.subr.mxu0 0.0
  %5462 = vmatpush1.msra.mxu0 0.0
  %5463 = vmatprep.subr.mxu0 0.0
  %5464 = vmatpush1.msra.mxu0 0.0
  %5465 = vmatprep.subr.mxu0 0.0
  %5466 = vmatpush1.msra.mxu0 0.0
  %5467 = vmatprep.subr.mxu0 0.0
  %5468 = vmatpush1.msra.mxu0 0.0
  %5469 = vmatprep.subr.mxu0 0.0
  %5470 = vmatpush1.msra.mxu0 0.0
  %5471 = vmatprep.subr.mxu0 0.0
  %5472 = vmatpush1.msra.mxu0 0.0
  %5473 = vmatprep.subr.mxu0 0.0
  %5474 = vmatpush1.msra.mxu0 0.0
  %5475 = vmatprep.subr.mxu0 0.0
  %5476 = vmatpush1.msra.mxu0 0.0
  %5477 = vmatprep.subr.mxu0 0.0
  %5478 = vmatpush1.msra.mxu0 0.0
  %5479 = vmatprep.subr.mxu0 0.0
  %5480 = vmatpush1.msra.mxu0 0.0
  %5481 = vmatprep.subr.mxu0 0.0
  %5482 = vmatpush1.msra.mxu0 0.0
  %5483 = vmatprep.subr.mxu0 0.0
  %5484 = vmatpush1.msra.mxu0 0.0
  %5485 = vmatprep.subr.mxu0 0.0
  %5486 = vmatpush1.msra.mxu0 0.0
  %5487 = vmatprep.subr.mxu0 0.0
  %5488 = vmatpush1.msra.mxu0 0.0
  %5489 = vmatprep.subr.mxu0 0.0
  %5490 = vmatpush1.msra.mxu0 0.0
  %5491 = vmatprep.subr.mxu0 0.0
  %5492 = vmatpush1.msra.mxu0 0.0
  %5493 = vmatprep.subr.mxu0 0.0
  %5494 = vmatpush1.msra.mxu0 0.0
  %5495 = vmatprep.subr.mxu0 0.0
  %5496 = vmatpush1.msra.mxu0 0.0
  %5497 = vmatprep.subr.mxu0 0.0
  %5498 = vmatpush1.msra.mxu0 0.0
  %5499 = vmatprep.subr.mxu0 0.0
  %5500 = vmatpush1.msra.mxu0 0.0
  %5501 = vmatprep.subr.mxu0 0.0
  %5502 = vmatpush1.msra.mxu0 0.0
  %5503 = vmatprep.subr.mxu0 0.0
  %5504 = vmatpush1.msra.mxu0 0.0
  %5505 = vmatprep.subr.mxu0 0.0
  %5506 = vmatpush1.msra.mxu0 0.0
  %5507 = vmatprep.subr.mxu0 0.0
  %5508 = vmatpush1.msra.mxu0 0.0
  %5509 = vmatprep.mubr.f32.mxu0 0.0
  %5510 = vmatmul.mubr.f32.gmra.mrb[0].mxu0 %v5440
  %v5511 = vpop.f32.mrb[0].mxu0
  %v5512 = vadd.f32 0.0, %v5511
  %v5513 = vpop.f32.mrb[0].mxu0
  %5514 = vmatprep.mubr.f32.mxu0 0.0
  %5515 = vmatmul.mubr.f32.gmra.mrb[0].mxu0 %v5443
  %v5516 = vpop.f32.mrb[0].mxu0
  %v5517 = vadd.f32 0.0, %v5516
  %v5518 = vpop.f32.mrb[0].mxu0
  %5519 = vdwg.mxu0
  %v5521 = vsel %vm304, %v5512, 0
  %v5524 = vsel %vm304, %v5517, 0
  %5526 = vmatprep.subr.mxu0 0.0
  %5527 = vmatpush1.msra.mxu0 %v4574
  %5528 = vmatprep.subr.mxu0 0.0
  %5529 = vmatpush1.msra.mxu0 0.0
  %5530 = vmatprep.subr.mxu0 0.0
  %5531 = vmatpush1.msra.mxu0 0.0
  %5532 = vmatprep.subr.mxu0 0.0
  %5533 = vmatpush1.msra.mxu0 0.0
  %5534 = vmatprep.subr.mxu0 0.0
  %5535 = vmatpush1.msra.mxu0 0.0
  %5536 = vmatprep.subr.mxu0 0.0
  %5537 = vmatpush1.msra.mxu0 0.0
  %5538 = vmatprep.subr.mxu0 0.0
  %5539 = vmatpush1.msra.mxu0 0.0
  %5540 = vmatprep.subr.mxu0 0.0
  %5541 = vmatpush1.msra.mxu0 0.0
  %5542 = vmatprep.subr.mxu0 0.0
  %5543 = vmatpush1.msra.mxu0 0.0
  %5544 = vmatprep.subr.mxu0 0.0
  %5545 = vmatpush1.msra.mxu0 0.0
  %5546 = vmatprep.subr.mxu0 0.0
  %5547 = vmatpush1.msra.mxu0 0.0
  %5548 = vmatprep.subr.mxu0 0.0
  %5549 = vmatpush1.msra.mxu0 0.0
  %5550 = vmatprep.subr.mxu0 0.0
  %5551 = vmatpush1.msra.mxu0 0.0
  %5552 = vmatprep.subr.mxu0 0.0
  %5553 = vmatpush1.msra.mxu0 0.0
  %5554 = vmatprep.subr.mxu0 0.0
  %5555 = vmatpush1.msra.mxu0 0.0
  %5556 = vmatprep.subr.mxu0 0.0
  %5557 = vmatpush1.msra.mxu0 0.0
  %5558 = vmatprep.subr.mxu0 0.0
  %5559 = vmatpush1.msra.mxu0 0.0
  %5560 = vmatprep.subr.mxu0 0.0
  %5561 = vmatpush1.msra.mxu0 0.0
  %5562 = vmatprep.subr.mxu0 0.0
  %5563 = vmatpush1.msra.mxu0 0.0
  %5564 = vmatprep.subr.mxu0 0.0
  %5565 = vmatpush1.msra.mxu0 0.0
  %5566 = vmatprep.subr.mxu0 0.0
  %5567 = vmatpush1.msra.mxu0 0.0
  %5568 = vmatprep.subr.mxu0 0.0
  %5569 = vmatpush1.msra.mxu0 0.0
  %5570 = vmatprep.subr.mxu0 0.0
  %5571 = vmatpush1.msra.mxu0 0.0
  %5572 = vmatprep.subr.mxu0 0.0
  %5573 = vmatpush1.msra.mxu0 0.0
  %5574 = vmatprep.subr.mxu0 0.0
  %5575 = vmatpush1.msra.mxu0 0.0
  %5576 = vmatprep.subr.mxu0 0.0
  %5577 = vmatpush1.msra.mxu0 0.0
  %5578 = vmatprep.subr.mxu0 0.0
  %5579 = vmatpush1.msra.mxu0 0.0
  %5580 = vmatprep.subr.mxu0 0.0
  %5581 = vmatpush1.msra.mxu0 0.0
  %5582 = vmatprep.subr.mxu0 0.0
  %5583 = vmatpush1.msra.mxu0 0.0
  %5584 = vmatprep.subr.mxu0 0.0
  %5585 = vmatpush1.msra.mxu0 0.0
  %5586 = vmatprep.subr.mxu0 0.0
  %5587 = vmatpush1.msra.mxu0 0.0
  %5588 = vmatprep.subr.mxu0 0.0
  %5589 = vmatpush1.msra.mxu0 0.0
  %5590 = vmatprep.mubr.f32.mxu0 0.0
  %5591 = vmatmul.mubr.f32.gmra.mrb[0].mxu0 %v5521
  %v5592 = vpop.f32.mrb[0].mxu0
  %v5593 = vadd.f32 0.0, %v5592
  %v5594 = vpop.f32.mrb[0].mxu0
  %5595 = vmatprep.mubr.f32.mxu0 0.0
  %5596 = vmatmul.mubr.f32.gmra.mrb[0].mxu0 %v5524
  %v5597 = vpop.f32.mrb[0].mxu0
  %v5598 = vadd.f32 0.0, %v5597
  %v5599 = vpop.f32.mrb[0].mxu0
  %5600 = vdwg.mxu0
  %v5601 = vadd.f32 %v5312, %v5593
  %v5602 = vadd.f32 %v5317, %v5598
  %5603 = vrot.lane.b32.xlu0 %v4673, 104
  %v5604 = vpop.permute.xlu0 %5603
  %5605 = vrot.lane.b32.xlu0 %v4678, 104
  %v5606 = vpop.permute.xlu0 %5605
  %5607 = vrot.lane.b32.xlu0 %v4754, 104
  %v5608 = vpop.permute.xlu0 %5607
  %5609 = vrot.lane.b32.xlu0 %v4759, 104
  %v5610 = vpop.permute.xlu0 %5609
  %v5611 = vsel %vm304, %v5604, 0
  %v5613 = vsel %vm304, %v5606, 0
  %v5615 = vsel %vm304, %v5608, 0
  %v5617 = vsel %vm304, %v5610, 0
  %5619 = vmatprep.subr.mxu0 0.0
  %5620 = vmatpush1.xpose.msra.mxu0 %v5615
  %5621 = vmatprep.subr.mxu0 0.0
  %5622 = vmatpush1.xpose.msra.mxu0 %v5617
  %5623 = vmatprep.subr.mxu0 0.0
  %5624 = vmatpush1.xpose.msra.mxu0 0.0
  %5625 = vmatprep.subr.mxu0 0.0
  %5626 = vmatpush1.xpose.msra.mxu0 0.0
  %5627 = vmatprep.subr.mxu0 0.0
  %5628 = vmatpush1.xpose.msra.mxu0 0.0
  %5629 = vmatprep.subr.mxu0 0.0
  %5630 = vmatpush1.xpose.msra.mxu0 0.0
  %5631 = vmatprep.subr.mxu0 0.0
  %5632 = vmatpush1.xpose.msra.mxu0 0.0
  %5633 = vmatprep.subr.mxu0 0.0
  %5634 = vmatpush1.xpose.msra.mxu0 0.0
  %5635 = vmatprep.subr.mxu0 0.0
  %5636 = vmatpush1.xpose.msra.mxu0 0.0
  %5637 = vmatprep.subr.mxu0 0.0
  %5638 = vmatpush1.xpose.msra.mxu0 0.0
  %5639 = vmatprep.subr.mxu0 0.0
  %5640 = vmatpush1.xpose.msra.mxu0 0.0
  %5641 = vmatprep.subr.mxu0 0.0
  %5642 = vmatpush1.xpose.msra.mxu0 0.0
  %5643 = vmatprep.subr.mxu0 0.0
  %5644 = vmatpush1.xpose.msra.mxu0 0.0
  %5645 = vmatprep.subr.mxu0 0.0
  %5646 = vmatpush1.xpose.msra.mxu0 0.0
  %5647 = vmatprep.subr.mxu0 0.0
  %5648 = vmatpush1.xpose.msra.mxu0 0.0
  %5649 = vmatprep.subr.mxu0 0.0
  %5650 = vmatpush1.xpose.msra.mxu0 0.0
  %5651 = vmatprep.subr.mxu0 0.0
  %5652 = vmatpush1.xpose.msra.mxu0 0.0
  %5653 = vmatprep.subr.mxu0 0.0
  %5654 = vmatpush1.xpose.msra.mxu0 0.0
  %5655 = vmatprep.subr.mxu0 0.0
  %5656 = vmatpush1.xpose.msra.mxu0 0.0
  %5657 = vmatprep.subr.mxu0 0.0
  %5658 = vmatpush1.xpose.msra.mxu0 0.0
  %5659 = vmatprep.subr.mxu0 0.0
  %5660 = vmatpush1.xpose.msra.mxu0 0.0
  %5661 = vmatprep.subr.mxu0 0.0
  %5662 = vmatpush1.xpose.msra.mxu0 0.0
  %5663 = vmatprep.subr.mxu0 0.0
  %5664 = vmatpush1.xpose.msra.mxu0 0.0
  %5665 = vmatprep.subr.mxu0 0.0
  %5666 = vmatpush1.xpose.msra.mxu0 0.0
  %5667 = vmatprep.subr.mxu0 0.0
  %5668 = vmatpush1.xpose.msra.mxu0 0.0
  %5669 = vmatprep.subr.mxu0 0.0
  %5670 = vmatpush1.xpose.msra.mxu0 0.0
  %5671 = vmatprep.subr.mxu0 0.0
  %5672 = vmatpush1.xpose.msra.mxu0 0.0
  %5673 = vmatprep.subr.mxu0 0.0
  %5674 = vmatpush1.xpose.msra.mxu0 0.0
  %5675 = vmatprep.subr.mxu0 0.0
  %5676 = vmatpush1.xpose.msra.mxu0 0.0
  %5677 = vmatprep.subr.mxu0 0.0
  %5678 = vmatpush1.xpose.msra.mxu0 0.0
  %5679 = vmatprep.subr.mxu0 0.0
  %5680 = vmatpush1.xpose.msra.mxu0 0.0
  %5681 = vmatprep.subr.mxu0 0.0
  %5682 = vmatpush1.xpose.msra.mxu0 0.0
  %5683 = vmatprep.mubr.f32.mxu0 0.0
  %5684 = vmatmul.mubr.f32.gmra.mrb[0].mxu0 %v5611
  %v5685 = vpop.f32.mrb[0].mxu0
  %v5686 = vadd.f32 %v105, %v5685
  %v5687 = vpop.f32.mrb[0].mxu0
  %5688 = vmatprep.mubr.f32.mxu0 0.0
  %5689 = vmatmul.mubr.f32.gmra.mrb[0].mxu0 %v5613
  %v5690 = vpop.f32.mrb[0].mxu0
  %v5691 = vadd.f32 %v106, %v5690
  %v5692 = vpop.f32.mrb[0].mxu0
  %5693 = vdwg.mxu0
  %v5694 = vsel %vm392, %v5686, -inf
  %5695 = vmax.xlane.f32.xlu0 %v5694
  %v5696 = vpop.xlane.xlu0 %5695
  %v5697 = vsel %vm392, %v5691, -inf
  %5698 = vmax.xlane.f32.xlu0 %v5697
  %v5699 = vpop.xlane.xlu0 %5698
  %v5700 = vsub.f32 %v5686, %v5696
  %v5701 = vsub.f32 %v5691, %v5699
  %v5702 = vmul.f32 %v5700, 1.442695
  %v5703 = vpow.pop %v5702
  %v5704 = vmul.f32 %v5701, 1.442695
  %v5705 = vpow.pop %v5704
  %v5706 = vsel %vm392, %v5703, 0.0
  %5707 = vadd.xlane.f32.xlu0 %v5706
  %v5708 = vpop.xlane.xlu0 %5707
  %v5709 = vsel %vm392, %v5705, 0.0
  %5710 = vadd.xlane.f32.xlu0 %v5709
  %v5711 = vpop.xlane.xlu0 %5710
  %v5712 = vrcp.pop %v5708
  %v5713 = vrcp.pop %v5711
  %v5714 = vmul.f32 %v5703, %v5712
  %v5715 = vmul.f32 %v5705, %v5713
  %5716 = vrot.lane.b32.xlu0 %v4754, 72
  %v5717 = vpop.permute.xlu0 %5716
  %5718 = vrot.lane.b32.xlu0 %v4759, 72
  %v5719 = vpop.permute.xlu0 %5718
  %v5723 = vsel %vm392, %v5714, 0
  %v5726 = vsel %vm392, %v5715, 0
  %5728 = vmatprep.subr.mxu0 0.0
  %5729 = vmatpush1.msra.mxu0 %v5717
  %5730 = vmatprep.subr.mxu0 0.0
  %5731 = vmatpush1.msra.mxu0 %v5719
  %5732 = vmatprep.subr.mxu0 0.0
  %5733 = vmatpush1.msra.mxu0 0.0
  %5734 = vmatprep.subr.mxu0 0.0
  %5735 = vmatpush1.msra.mxu0 0.0
  %5736 = vmatprep.subr.mxu0 0.0
  %5737 = vmatpush1.msra.mxu0 0.0
  %5738 = vmatprep.subr.mxu0 0.0
  %5739 = vmatpush1.msra.mxu0 0.0
  %5740 = vmatprep.subr.mxu0 0.0
  %5741 = vmatpush1.msra.mxu0 0.0
  %5742 = vmatprep.subr.mxu0 0.0
  %5743 = vmatpush1.msra.mxu0 0.0
  %5744 = vmatprep.subr.mxu0 0.0
  %5745 = vmatpush1.msra.mxu0 0.0
  %5746 = vmatprep.subr.mxu0 0.0
  %5747 = vmatpush1.msra.mxu0 0.0
  %5748 = vmatprep.subr.mxu0 0.0
  %5749 = vmatpush1.msra.mxu0 0.0
  %5750 = vmatprep.subr.mxu0 0.0
  %5751 = vmatpush1.msra.mxu0 0.0
  %5752 = vmatprep.subr.mxu0 0.0
  %5753 = vmatpush1.msra.mxu0 0.0
  %5754 = vmatprep.subr.mxu0 0.0
  %5755 = vmatpush1.msra.mxu0 0.0
  %5756 = vmatprep.subr.mxu0 0.0
  %5757 = vmatpush1.msra.mxu0 0.0
  %5758 = vmatprep.subr.mxu0 0.0
  %5759 = vmatpush1.msra.mxu0 0.0
  %5760 = vmatprep.subr.mxu0 0.0
  %5761 = vmatpush1.msra.mxu0 0.0
  %5762 = vmatprep.subr.mxu0 0.0
  %5763 = vmatpush1.msra.mxu0 0.0
  %5764 = vmatprep.subr.mxu0 0.0
  %5765 = vmatpush1.msra.mxu0 0.0
  %5766 = vmatprep.subr.mxu0 0.0
  %5767 = vmatpush1.msra.mxu0 0.0
  %5768 = vmatprep.subr.mxu0 0.0
  %5769 = vmatpush1.msra.mxu0 0.0
  %5770 = vmatprep.subr.mxu0 0.0
  %5771 = vmatpush1.msra.mxu0 0.0
  %5772 = vmatprep.subr.mxu0 0.0
  %5773 = vmatpush1.msra.mxu0 0.0
  %5774 = vmatprep.subr.mxu0 0.0
  %5775 = vmatpush1.msra.mxu0 0.0
  %5776 = vmatprep.subr.mxu0 0.0
  %5777 = vmatpush1.msra.mxu0 0.0
  %5778 = vmatprep.subr.mxu0 0.0
  %5779 = vmatpush1.msra.mxu0 0.0
  %5780 = vmatprep.subr.mxu0 0.0
  %5781 = vmatpush1.msra.mxu0 0.0
  %5782 = vmatprep.subr.mxu0 0.0
  %5783 = vmatpush1.msra.mxu0 0.0
  %5784 = vmatprep.subr.mxu0 0.0
  %5785 = vmatpush1.msra.mxu0 0.0
  %5786 = vmatprep.subr.mxu0 0.0
  %5787 = vmatpush1.msra.mxu0 0.0
  %5788 = vmatprep.subr.mxu0 0.0
  %5789 = vmatpush1.msra.mxu0 0.0
  %5790 = vmatprep.subr.mxu0 0.0
  %5791 = vmatpush1.msra.mxu0 0.0
  %5792 = vmatprep.mubr.f32.mxu0 0.0
  %5793 = vmatmul.mubr.f32.gmra.mrb[0].mxu0 %v5723
  %v5794 = vpop.f32.mrb[0].mxu0
  %v5795 = vadd.f32 0.0, %v5794
  %v5796 = vpop.f32.mrb[0].mxu0
  %5797 = vmatprep.mubr.f32.mxu0 0.0
  %5798 = vmatmul.mubr.f32.gmra.mrb[0].mxu0 %v5726
  %v5799 = vpop.f32.mrb[0].mxu0
  %v5800 = vadd.f32 0.0, %v5799
  %v5801 = vpop.f32.mrb[0].mxu0
  %5802 = vdwg.mxu0
  %v5804 = vsel %vm304, %v5795, 0
  %v5807 = vsel %vm304, %v5800, 0
  %5809 = vmatprep.subr.mxu0 0.0
  %5810 = vmatpush1.msra.mxu0 %v4575
  %5811 = vmatprep.subr.mxu0 0.0
  %5812 = vmatpush1.msra.mxu0 0.0
  %5813 = vmatprep.subr.mxu0 0.0
  %5814 = vmatpush1.msra.mxu0 0.0
  %5815 = vmatprep.subr.mxu0 0.0
  %5816 = vmatpush1.msra.mxu0 0.0
  %5817 = vmatprep.subr.mxu0 0.0
  %5818 = vmatpush1.msra.mxu0 0.0
  %5819 = vmatprep.subr.mxu0 0.0
  %5820 = vmatpush1.msra.mxu0 0.0
  %5821 = vmatprep.subr.mxu0 0.0
  %5822 = vmatpush1.msra.mxu0 0.0
  %5823 = vmatprep.subr.mxu0 0.0
  %5824 = vmatpush1.msra.mxu0 0.0
  %5825 = vmatprep.subr.mxu0 0.0
  %5826 = vmatpush1.msra.mxu0 0.0
  %5827 = vmatprep.subr.mxu0 0.0
  %5828 = vmatpush1.msra.mxu0 0.0
  %5829 = vmatprep.subr.mxu0 0.0
  %5830 = vmatpush1.msra.mxu0 0.0
  %5831 = vmatprep.subr.mxu0 0.0
  %5832 = vmatpush1.msra.mxu0 0.0
  %5833 = vmatprep.subr.mxu0 0.0
  %5834 = vmatpush1.msra.mxu0 0.0
  %5835 = vmatprep.subr.mxu0 0.0
  %5836 = vmatpush1.msra.mxu0 0.0
  %5837 = vmatprep.subr.mxu0 0.0
  %5838 = vmatpush1.msra.mxu0 0.0
  %5839 = vmatprep.subr.mxu0 0.0
  %5840 = vmatpush1.msra.mxu0 0.0
  %5841 = vmatprep.subr.mxu0 0.0
  %5842 = vmatpush1.msra.mxu0 0.0
  %5843 = vmatprep.subr.mxu0 0.0
  %5844 = vmatpush1.msra.mxu0 0.0
  %5845 = vmatprep.subr.mxu0 0.0
  %5846 = vmatpush1.msra.mxu0 0.0
  %5847 = vmatprep.subr.mxu0 0.0
  %5848 = vmatpush1.msra.mxu0 0.0
  %5849 = vmatprep.subr.mxu0 0.0
  %5850 = vmatpush1.msra.mxu0 0.0
  %5851 = vmatprep.subr.mxu0 0.0
  %5852 = vmatpush1.msra.mxu0 0.0
  %5853 = vmatprep.subr.mxu0 0.0
  %5854 = vmatpush1.msra.mxu0 0.0
  %5855 = vmatprep.subr.mxu0 0.0
  %5856 = vmatpush1.msra.mxu0 0.0
  %5857 = vmatprep.subr.mxu0 0.0
  %5858 = vmatpush1.msra.mxu0 0.0
  %5859 = vmatprep.subr.mxu0 0.0
  %5860 = vmatpush1.msra.mxu0 0.0
  %5861 = vmatprep.subr.mxu0 0.0
  %5862 = vmatpush1.msra.mxu0 0.0
  %5863 = vmatprep.subr.mxu0 0.0
  %5864 = vmatpush1.msra.mxu0 0.0
  %5865 = vmatprep.subr.mxu0 0.0
  %5866 = vmatpush1.msra.mxu0 0.0
  %5867 = vmatprep.subr.mxu0 0.0
  %5868 = vmatpush1.msra.mxu0 0.0
  %5869 = vmatprep.subr.mxu0 0.0
  %5870 = vmatpush1.msra.mxu0 0.0
  %5871 = vmatprep.subr.mxu0 0.0
  %5872 = vmatpush1.msra.mxu0 0.0
  %5873 = vmatprep.mubr.f32.mxu0 0.0
  %5874 = vmatmul.mubr.f32.gmra.mrb[0].mxu0 %v5804
  %v5875 = vpop.f32.mrb[0].mxu0
  %v5876 = vadd.f32 0.0, %v5875
  %v5877 = vpop.f32.mrb[0].mxu0
  %5878 = vmatprep.mubr.f32.mxu0 0.0
  %5879 = vmatmul.mubr.f32.gmra.mrb[0].mxu0 %v5807
  %v5880 = vpop.f32.mrb[0].mxu0
  %v5881 = vadd.f32 0.0, %v5880
  %v5882 = vpop.f32.mrb[0].mxu0
  %5883 = vdwg.mxu0
  %v5884 = vadd.f32 %v5601, %v5876
  %v5885 = vadd.f32 %v5602, %v5881
  %v5886 = vadd.f32 %v4561, %v5884
  %v5887 = vadd.f32 %v4562, %v5885
  %v5888 = vld [vmem:[%s20] sm:$0x1]
  %v5889 = vld [vmem:[%s21] sm:$0xff]
  %v5890 = vld [vmem:[%s21 + $0x8] sm:$0xff]
  %v5891 = vld [vmem:[%s21 + $0x10] sm:$0xff]
  %v5892 = vld [vmem:[%s21 + $0x18] sm:$0xff]
  %v5893 = vld [vmem:[%s22] sm:$0xff]
  %v5894 = vld [vmem:[%s22 + $0x8] sm:$0xff]
  %v5895 = vld [vmem:[%s22 + $0x10] sm:$0xff]
  %v5896 = vld [vmem:[%s22 + $0x18] sm:$0xff]
  %v5897 = vld [vmem:[%s22 + $0x20] sm:$0xff]
  %v5898 = vld [vmem:[%s22 + $0x28] sm:$0xff]
  %v5899 = vld [vmem:[%s22 + $0x30] sm:$0xff]
  %v5900 = vld [vmem:[%s22 + $0x38] sm:$0xff]
  %v5901 = vmul.f32 %v5886, %v5886
  %v5902 = vmul.f32 %v5887, %v5887
  %v5903 = vsel %vm124, %v5901, 0.0
  %5904 = vadd.xlane.f32.xlu0 %v5903
  %v5905 = vpop.xlane.xlu0 %5904
  %v5906 = vsel %vm124, %v5902, 0.0
  %5907 = vadd.xlane.f32.xlu0 %v5906
  %v5908 = vpop.xlane.xlu0 %5907
  %v5909 = vmul.f32 %v5905, %v131
  %v5910 = vmul.f32 %v5908, %v131
  %v5911 = vadd.f32 %v5909, 1e-06
  %v5912 = vadd.f32 %v5910, 1e-06
  %v5913 = vrsqrt.pop %v5911
  %v5914 = vrsqrt.pop %v5912
  %v5915 = vmul.f32 %v5886, %v5913
  %v5916 = vmul.f32 %v5887, %v5914
  %v5918 = vlaneseq
  %v5919 = vshrl.u32 %v5918, 7
  %v5920 = vsub.s32 0, %v5919
  %v5921 = vrot.slane %v5888, %v5920
  %v5923 = vmul.f32 %v5915, %v5921
  %v5924 = vmul.f32 %v5916, %v5921
  %v5926 = vsel %vm124, %v5923, 0
  %v5929 = vsel %vm124, %v5924, 0
  %5931 = vmatprep.subr.mxu0 0.0
  %5932 = vmatpush1.msra.mxu0 %v5889
  %5933 = vmatprep.subr.mxu0 0.0
  %5934 = vmatpush1.msra.mxu0 %v5890
  %5935 = vmatprep.subr.mxu0 0.0
  %5936 = vmatpush1.msra.mxu0 %v5891
  %5937 = vmatprep.subr.mxu0 0.0
  %5938 = vmatpush1.msra.mxu0 %v5892
  %5939 = vmatprep.subr.mxu0 0.0
  %5940 = vmatpush1.msra.mxu0 0.0
  %5941 = vmatprep.subr.mxu0 0.0
  %5942 = vmatpush1.msra.mxu0 0.0
  %5943 = vmatprep.subr.mxu0 0.0
  %5944 = vmatpush1.msra.mxu0 0.0
  %5945 = vmatprep.subr.mxu0 0.0
  %5946 = vmatpush1.msra.mxu0 0.0
  %5947 = vmatprep.subr.mxu0 0.0
  %5948 = vmatpush1.msra.mxu0 0.0
  %5949 = vmatprep.subr.mxu0 0.0
  %5950 = vmatpush1.msra.mxu0 0.0
  %5951 = vmatprep.subr.mxu0 0.0
  %5952 = vmatpush1.msra.mxu0 0.0
  %5953 = vmatprep.subr.mxu0 0.0
  %5954 = vmatpush1.msra.mxu0 0.0
  %5955 = vmatprep.subr.mxu0 0.0
  %5956 = vmatpush1.msra.mxu0 0.0
  %5957 = vmatprep.subr.mxu0 0.0
  %5958 = vmatpush1.msra.mxu0 0.0
  %5959 = vmatprep.subr.mxu0 0.0
  %5960 = vmatpush1.msra.mxu0 0.0
  %5961 = vmatprep.subr.mxu0 0.0
  %5962 = vmatpush1.msra.mxu0 0.0
  %5963 = vmatprep.subr.mxu0 0.0
  %5964 = vmatpush1.msra.mxu0 0.0
  %5965 = vmatprep.subr.mxu0 0.0
  %5966 = vmatpush1.msra.mxu0 0.0
  %5967 = vmatprep.subr.mxu0 0.0
  %5968 = vmatpush1.msra.mxu0 0.0
  %5969 = vmatprep.subr.mxu0 0.0
  %5970 = vmatpush1.msra.mxu0 0.0
  %5971 = vmatprep.subr.mxu0 0.0
  %5972 = vmatpush1.msra.mxu0 0.0
  %5973 = vmatprep.subr.mxu0 0.0
  %5974 = vmatpush1.msra.mxu0 0.0
  %5975 = vmatprep.subr.mxu0 0.0
  %5976 = vmatpush1.msra.mxu0 0.0
  %5977 = vmatprep.subr.mxu0 0.0
  %5978 = vmatpush1.msra.mxu0 0.0
  %5979 = vmatprep.subr.mxu0 0.0
  %5980 = vmatpush1.msra.mxu0 0.0
  %5981 = vmatprep.subr.mxu0 0.0
  %5982 = vmatpush1.msra.mxu0 0.0
  %5983 = vmatprep.subr.mxu0 0.0
  %5984 = vmatpush1.msra.mxu0 0.0
  %5985 = vmatprep.subr.mxu0 0.0
  %5986 = vmatpush1.msra.mxu0 0.0
  %5987 = vmatprep.subr.mxu0 0.0
  %5988 = vmatpush1.msra.mxu0 0.0
  %5989 = vmatprep.subr.mxu0 0.0
  %5990 = vmatpush1.msra.mxu0 0.0
  %5991 = vmatprep.subr.mxu0 0.0
  %5992 = vmatpush1.msra.mxu0 0.0
  %5993 = vmatprep.subr.mxu0 0.0
  %5994 = vmatpush1.msra.mxu0 0.0
  %5995 = vmatprep.mubr.f32.mxu0 0.0
  %5996 = vmatmul.mubr.f32.gmra.mrb[0].mxu0 %v5926
  %v5997 = vpop.f32.mrb[0].mxu0
  %v5998 = vadd.f32 0.0, %v5997
  %v5999 = vpop.f32.mrb[0].mxu0
  %6000 = vmatprep.mubr.f32.mxu0 0.0
  %6001 = vmatmul.mubr.f32.gmra.mrb[0].mxu0 %v5929
  %v6002 = vpop.f32.mrb[0].mxu0
  %v6003 = vadd.f32 0.0, %v6002
  %v6004 = vpop.f32.mrb[0].mxu0
  %6005 = vdwg.mxu0
  %v6006 = vmul.f32 %v5998, 0.5
  %v6007 = vmul.f32 %v6003, 0.5
  %v6008 = vmul.f32 %v5998, 0.044715
  %v6009 = vmul.f32 %v6003, 0.044715
  %v6010 = vmul.f32 %v6008, %v5998
  %v6011 = vmul.f32 %v6009, %v6003
  %v6012 = vmul.f32 %v6010, %v5998
  %v6013 = vmul.f32 %v6011, %v6003
  %v6014 = vadd.f32 %v5998, %v6012
  %v6015 = vadd.f32 %v6003, %v6013
  %v6016 = vmul.f32 %v6014, 0.7978846
  %v6017 = vmul.f32 %v6015, 0.7978846
  %v6018 = vtanh.pop %v6016
  %v6019 = vtanh.pop %v6017
  %v6020 = vadd.f32 %v6018, 1.0
  %v6021 = vadd.f32 %v6019, 1.0
  %v6022 = vmul.f32 %v6006, %v6020
  %v6023 = vmul.f32 %v6007, %v6021
  %6026 = vrot.lane.b32.xlu0 %v5998, 64
  %v6027 = vpop.permute.xlu0 %6026
  %6028 = vrot.lane.b32.xlu0 %v6003, 64
  %v6029 = vpop.permute.xlu0 %6028
  %v6032 = vmul.f32 %v6022, %v6027
  %v6033 = vmul.f32 %v6023, %v6029
  %v6035 = vsel %vm1578, %v6032, 0
  %v6038 = vsel %vm1578, %v6033, 0
  %6040 = vmatprep.subr.mxu0 0.0
  %6041 = vmatpush1.msra.mxu0 %v5893
  %6042 = vmatprep.subr.mxu0 0.0
  %6043 = vmatpush1.msra.mxu0 %v5894
  %6044 = vmatprep.subr.mxu0 0.0
  %6045 = vmatpush1.msra.mxu0 %v5895
  %6046 = vmatprep.subr.mxu0 0.0
  %6047 = vmatpush1.msra.mxu0 %v5896
  %6048 = vmatprep.subr.mxu0 0.0
  %6049 = vmatpush1.msra.mxu0 %v5897
  %6050 = vmatprep.subr.mxu0 0.0
  %6051 = vmatpush1.msra.mxu0 %v5898
  %6052 = vmatprep.subr.mxu0 0.0
  %6053 = vmatpush1.msra.mxu0 %v5899
  %6054 = vmatprep.subr.mxu0 0.0
  %6055 = vmatpush1.msra.mxu0 %v5900
  %6056 = vmatprep.subr.mxu0 0.0
  %6057 = vmatpush1.msra.mxu0 0.0
  %6058 = vmatprep.subr.mxu0 0.0
  %6059 = vmatpush1.msra.mxu0 0.0
  %6060 = vmatprep.subr.mxu0 0.0
  %6061 = vmatpush1.msra.mxu0 0.0
  %6062 = vmatprep.subr.mxu0 0.0
  %6063 = vmatpush1.msra.mxu0 0.0
  %6064 = vmatprep.subr.mxu0 0.0
  %6065 = vmatpush1.msra.mxu0 0.0
  %6066 = vmatprep.subr.mxu0 0.0
  %6067 = vmatpush1.msra.mxu0 0.0
  %6068 = vmatprep.subr.mxu0 0.0
  %6069 = vmatpush1.msra.mxu0 0.0
  %6070 = vmatprep.subr.mxu0 0.0
  %6071 = vmatpush1.msra.mxu0 0.0
  %6072 = vmatprep.subr.mxu0 0.0
  %6073 = vmatpush1.msra.mxu0 0.0
  %6074 = vmatprep.subr.mxu0 0.0
  %6075 = vmatpush1.msra.mxu0 0.0
  %6076 = vmatprep.subr.mxu0 0.0
  %6077 = vmatpush1.msra.mxu0 0.0
  %6078 = vmatprep.subr.mxu0 0.0
  %6079 = vmatpush1.msra.mxu0 0.0
  %6080 = vmatprep.subr.mxu0 0.0
  %6081 = vmatpush1.msra.mxu0 0.0
  %6082 = vmatprep.subr.mxu0 0.0
  %6083 = vmatpush1.msra.mxu0 0.0
  %6084 = vmatprep.subr.mxu0 0.0
  %6085 = vmatpush1.msra.mxu0 0.0
  %6086 = vmatprep.subr.mxu0 0.0
  %6087 = vmatpush1.msra.mxu0 0.0
  %6088 = vmatprep.subr.mxu0 0.0
  %6089 = vmatpush1.msra.mxu0 0.0
  %6090 = vmatprep.subr.mxu0 0.0
  %6091 = vmatpush1.msra.mxu0 0.0
  %6092 = vmatprep.subr.mxu0 0.0
  %6093 = vmatpush1.msra.mxu0 0.0
  %6094 = vmatprep.subr.mxu0 0.0
  %6095 = vmatpush1.msra.mxu0 0.0
  %6096 = vmatprep.subr.mxu0 0.0
  %6097 = vmatpush1.msra.mxu0 0.0
  %6098 = vmatprep.subr.mxu0 0.0
  %6099 = vmatpush1.msra.mxu0 0.0
  %6100 = vmatprep.subr.mxu0 0.0
  %6101 = vmatpush1.msra.mxu0 0.0
  %6102 = vmatprep.subr.mxu0 0.0
  %6103 = vmatpush1.msra.mxu0 0.0
  %6104 = vmatprep.mubr.f32.mxu0 0.0
  %6105 = vmatmul.mubr.f32.gmra.mrb[0].mxu0 %v6035
  %v6106 = vpop.f32.mrb[0].mxu0
  %v6107 = vadd.f32 0.0, %v6106
  %v6108 = vpop.f32.mrb[0].mxu0
  %6109 = vmatprep.mubr.f32.mxu0 0.0
  %6110 = vmatmul.mubr.f32.gmra.mrb[0].mxu0 %v6038
  %v6111 = vpop.f32.mrb[0].mxu0
  %v6112 = vadd.f32 0.0, %v6111
  %v6113 = vpop.f32.mrb[0].mxu0
  %6114 = vdwg.mxu0
  %v6115 = vadd.f32 %v5886, %v6107
  %v6116 = vadd.f32 %v5887, %v6112
  %s6117 = scalar_lea.vmem %s12, 1
  %v6118 = vld [vmem:[%s6117] sm:$0x1]
  %s6119 = scalar_lea.vmem %s13, 32
  %v6120 = vld [vmem:[%s6119] sm:$0xff]
  %v6121 = vld [vmem:[%s6119 + $0x8] sm:$0xff]
  %v6122 = vld [vmem:[%s6119 + $0x10] sm:$0xff]
  %v6123 = vld [vmem:[%s6119 + $0x18] sm:$0xff]
  %s6124 = scalar_lea.vmem %s14, 32
  %v6125 = vld [vmem:[%s6124] sm:$0xff]
  %v6126 = vld [vmem:[%s6124 + $0x8] sm:$0xff]
  %v6127 = vld [vmem:[%s6124 + $0x10] sm:$0xff]
  %v6128 = vld [vmem:[%s6124 + $0x18] sm:$0xff]
  %s6129 = scalar_lea.vmem %s15, 32
  %v6130 = vld [vmem:[%s6129] sm:$0xff]
  %v6131 = vld [vmem:[%s6129 + $0x8] sm:$0xff]
  %v6132 = vld [vmem:[%s6129 + $0x10] sm:$0xff]
  %v6133 = vld [vmem:[%s6129 + $0x18] sm:$0xff]
  %v6134 = vmul.f32 %v6115, %v6115
  %v6135 = vmul.f32 %v6116, %v6116
  %v6136 = vsel %vm124, %v6134, 0.0
  %6137 = vadd.xlane.f32.xlu0 %v6136
  %v6138 = vpop.xlane.xlu0 %6137
  %v6139 = vsel %vm124, %v6135, 0.0
  %6140 = vadd.xlane.f32.xlu0 %v6139
  %v6141 = vpop.xlane.xlu0 %6140
  %v6142 = vmul.f32 %v6138, %v131
  %v6143 = vmul.f32 %v6141, %v131
  %v6144 = vadd.f32 %v6142, 1e-06
  %v6145 = vadd.f32 %v6143, 1e-06
  %v6146 = vrsqrt.pop %v6144
  %v6147 = vrsqrt.pop %v6145
  %v6148 = vmul.f32 %v6115, %v6146
  %v6149 = vmul.f32 %v6116, %v6147
  %v6151 = vlaneseq
  %v6152 = vshrl.u32 %v6151, 7
  %v6153 = vsub.s32 0, %v6152
  %v6154 = vrot.slane %v6118, %v6153
  %v6156 = vmul.f32 %v6148, %v6154
  %v6157 = vmul.f32 %v6149, %v6154
  %v6159 = vsel %vm124, %v6156, 0
  %v6162 = vsel %vm124, %v6157, 0
  %6164 = vmatprep.subr.mxu0 0.0
  %6165 = vmatpush1.msra.mxu0 %v6120
  %6166 = vmatprep.subr.mxu0 0.0
  %6167 = vmatpush1.msra.mxu0 %v6121
  %6168 = vmatprep.subr.mxu0 0.0
  %6169 = vmatpush1.msra.mxu0 %v6122
  %6170 = vmatprep.subr.mxu0 0.0
  %6171 = vmatpush1.msra.mxu0 %v6123
  %6172 = vmatprep.subr.mxu0 0.0
  %6173 = vmatpush1.msra.mxu0 0.0
  %6174 = vmatprep.subr.mxu0 0.0
  %6175 = vmatpush1.msra.mxu0 0.0
  %6176 = vmatprep.subr.mxu0 0.0
  %6177 = vmatpush1.msra.mxu0 0.0
  %6178 = vmatprep.subr.mxu0 0.0
  %6179 = vmatpush1.msra.mxu0 0.0
  %6180 = vmatprep.subr.mxu0 0.0
  %6181 = vmatpush1.msra.mxu0 0.0
  %6182 = vmatprep.subr.mxu0 0.0
  %6183 = vmatpush1.msra.mxu0 0.0
  %6184 = vmatprep.subr.mxu0 0.0
  %6185 = vmatpush1.msra.mxu0 0.0
  %6186 = vmatprep.subr.mxu0 0.0
  %6187 = vmatpush1.msra.mxu0 0.0
  %6188 = vmatprep.subr.mxu0 0.0
  %6189 = vmatpush1.msra.mxu0 0.0
  %6190 = vmatprep.subr.mxu0 0.0
  %6191 = vmatpush1.msra.mxu0 0.0
  %6192 = vmatprep.subr.mxu0 0.0
  %6193 = vmatpush1.msra.mxu0 0.0
  %6194 = vmatprep.subr.mxu0 0.0
  %6195 = vmatpush1.msra.mxu0 0.0
  %6196 = vmatprep.subr.mxu0 0.0
  %6197 = vmatpush1.msra.mxu0 0.0
  %6198 = vmatprep.subr.mxu0 0.0
  %6199 = vmatpush1.msra.mxu0 0.0
  %6200 = vmatprep.subr.mxu0 0.0
  %6201 = vmatpush1.msra.mxu0 0.0
  %6202 = vmatprep.subr.mxu0 0.0
  %6203 = vmatpush1.msra.mxu0 0.0
  %6204 = vmatprep.subr.mxu0 0.0
  %6205 = vmatpush1.msra.mxu0 0.0
  %6206 = vmatprep.subr.mxu0 0.0
  %6207 = vmatpush1.msra.mxu0 0.0
  %6208 = vmatprep.subr.mxu0 0.0
  %6209 = vmatpush1.msra.mxu0 0.0
  %6210 = vmatprep.subr.mxu0 0.0
  %6211 = vmatpush1.msra.mxu0 0.0
  %6212 = vmatprep.subr.mxu0 0.0
  %6213 = vmatpush1.msra.mxu0 0.0
  %6214 = vmatprep.subr.mxu0 0.0
  %6215 = vmatpush1.msra.mxu0 0.0
  %6216 = vmatprep.subr.mxu0 0.0
  %6217 = vmatpush1.msra.mxu0 0.0
  %6218 = vmatprep.subr.mxu0 0.0
  %6219 = vmatpush1.msra.mxu0 0.0
  %6220 = vmatprep.subr.mxu0 0.0
  %6221 = vmatpush1.msra.mxu0 0.0
  %6222 = vmatprep.subr.mxu0 0.0
  %6223 = vmatpush1.msra.mxu0 0.0
  %6224 = vmatprep.subr.mxu0 0.0
  %6225 = vmatpush1.msra.mxu0 0.0
  %6226 = vmatprep.subr.mxu0 0.0
  %6227 = vmatpush1.msra.mxu0 0.0
  %6228 = vmatprep.mubr.f32.mxu0 0.0
  %6229 = vmatmul.mubr.f32.gmra.mrb[0].mxu0 %v6159
  %v6230 = vpop.f32.mrb[0].mxu0
  %v6231 = vadd.f32 0.0, %v6230
  %v6232 = vpop.f32.mrb[0].mxu0
  %6233 = vmatprep.mubr.f32.mxu0 0.0
  %6234 = vmatmul.mubr.f32.gmra.mrb[0].mxu0 %v6162
  %v6235 = vpop.f32.mrb[0].mxu0
  %v6236 = vadd.f32 0.0, %v6235
  %v6237 = vpop.f32.mrb[0].mxu0
  %6238 = vdwg.mxu0
  %6239 = vmatprep.subr.mxu0 0.0
  %6240 = vmatpush1.msra.mxu0 %v6125
  %6241 = vmatprep.subr.mxu0 0.0
  %6242 = vmatpush1.msra.mxu0 %v6126
  %6243 = vmatprep.subr.mxu0 0.0
  %6244 = vmatpush1.msra.mxu0 %v6127
  %6245 = vmatprep.subr.mxu0 0.0
  %6246 = vmatpush1.msra.mxu0 %v6128
  %6247 = vmatprep.subr.mxu0 0.0
  %6248 = vmatpush1.msra.mxu0 0.0
  %6249 = vmatprep.subr.mxu0 0.0
  %6250 = vmatpush1.msra.mxu0 0.0
  %6251 = vmatprep.subr.mxu0 0.0
  %6252 = vmatpush1.msra.mxu0 0.0
  %6253 = vmatprep.subr.mxu0 0.0
  %6254 = vmatpush1.msra.mxu0 0.0
  %6255 = vmatprep.subr.mxu0 0.0
  %6256 = vmatpush1.msra.mxu0 0.0
  %6257 = vmatprep.subr.mxu0 0.0
  %6258 = vmatpush1.msra.mxu0 0.0
  %6259 = vmatprep.subr.mxu0 0.0
  %6260 = vmatpush1.msra.mxu0 0.0
  %6261 = vmatprep.subr.mxu0 0.0
  %6262 = vmatpush1.msra.mxu0 0.0
  %6263 = vmatprep.subr.mxu0 0.0
  %6264 = vmatpush1.msra.mxu0 0.0
  %6265 = vmatprep.subr.mxu0 0.0
  %6266 = vmatpush1.msra.mxu0 0.0
  %6267 = vmatprep.subr.mxu0 0.0
  %6268 = vmatpush1.msra.mxu0 0.0
  %6269 = vmatprep.subr.mxu0 0.0
  %6270 = vmatpush1.msra.mxu0 0.0
  %6271 = vmatprep.subr.mxu0 0.0
  %6272 = vmatpush1.msra.mxu0 0.0
  %6273 = vmatprep.subr.mxu0 0.0
  %6274 = vmatpush1.msra.mxu0 0.0
  %6275 = vmatprep.subr.mxu0 0.0
  %6276 = vmatpush1.msra.mxu0 0.0
  %6277 = vmatprep.subr.mxu0 0.0
  %6278 = vmatpush1.msra.mxu0 0.0
  %6279 = vmatprep.subr.mxu0 0.0
  %6280 = vmatpush1.msra.mxu0 0.0
  %6281 = vmatprep.subr.mxu0 0.0
  %6282 = vmatpush1.msra.mxu0 0.0
  %6283 = vmatprep.subr.mxu0 0.0
  %6284 = vmatpush1.msra.mxu0 0.0
  %6285 = vmatprep.subr.mxu0 0.0
  %6286 = vmatpush1.msra.mxu0 0.0
  %6287 = vmatprep.subr.mxu0 0.0
  %6288 = vmatpush1.msra.mxu0 0.0
  %6289 = vmatprep.subr.mxu0 0.0
  %6290 = vmatpush1.msra.mxu0 0.0
  %6291 = vmatprep.subr.mxu0 0.0
  %6292 = vmatpush1.msra.mxu0 0.0
  %6293 = vmatprep.subr.mxu0 0.0
  %6294 = vmatpush1.msra.mxu0 0.0
  %6295 = vmatprep.subr.mxu0 0.0
  %6296 = vmatpush1.msra.mxu0 0.0
  %6297 = vmatprep.subr.mxu0 0.0
  %6298 = vmatpush1.msra.mxu0 0.0
  %6299 = vmatprep.subr.mxu0 0.0
  %6300 = vmatpush1.msra.mxu0 0.0
  %6301 = vmatprep.subr.mxu0 0.0
  %6302 = vmatpush1.msra.mxu0 0.0
  %6303 = vmatprep.mubr.f32.mxu0 0.0
  %6304 = vmatmul.mubr.f32.gmra.mrb[0].mxu0 %v6159
  %v6305 = vpop.f32.mrb[0].mxu0
  %v6306 = vadd.f32 0.0, %v6305
  %v6307 = vpop.f32.mrb[0].mxu0
  %6308 = vmatprep.mubr.f32.mxu0 0.0
  %6309 = vmatmul.mubr.f32.gmra.mrb[0].mxu0 %v6162
  %v6310 = vpop.f32.mrb[0].mxu0
  %v6311 = vadd.f32 0.0, %v6310
  %v6312 = vpop.f32.mrb[0].mxu0
  %6313 = vdwg.mxu0
  %v6315 = vsel %vm304, %v6231, 0
  %v6318 = vsel %vm304, %v6236, 0
  %v6321 = vsel %vm304, %v6306, 0
  %v6324 = vsel %vm304, %v6311, 0
  %6326 = vmatprep.subr.mxu0 0.0
  %6327 = vmatpush1.xpose.msra.mxu0 %v6321
  %6328 = vmatprep.subr.mxu0 0.0
  %6329 = vmatpush1.xpose.msra.mxu0 %v6324
  %6330 = vmatprep.subr.mxu0 0.0
  %6331 = vmatpush1.xpose.msra.mxu0 0.0
  %6332 = vmatprep.subr.mxu0 0.0
  %6333 = vmatpush1.xpose.msra.mxu0 0.0
  %6334 = vmatprep.subr.mxu0 0.0
  %6335 = vmatpush1.xpose.msra.mxu0 0.0
  %6336 = vmatprep.subr.mxu0 0.0
  %6337 = vmatpush1.xpose.msra.mxu0 0.0
  %6338 = vmatprep.subr.mxu0 0.0
  %6339 = vmatpush1.xpose.msra.mxu0 0.0
  %6340 = vmatprep.subr.mxu0 0.0
  %6341 = vmatpush1.xpose.msra.mxu0 0.0
  %6342 = vmatprep.subr.mxu0 0.0
  %6343 = vmatpush1.xpose.msra.mxu0 0.0
  %6344 = vmatprep.subr.mxu0 0.0
  %6345 = vmatpush1.xpose.msra.mxu0 0.0
  %6346 = vmatprep.subr.mxu0 0.0
  %6347 = vmatpush1.xpose.msra.mxu0 0.0
  %6348 = vmatprep.subr.mxu0 0.0
  %6349 = vmatpush1.xpose.msra.mxu0 0.0
  %6350 = vmatprep.subr.mxu0 0.0
  %6351 = vmatpush1.xpose.msra.mxu0 0.0
  %6352 = vmatprep.subr.mxu0 0.0
  %6353 = vmatpush1.xpose.msra.mxu0 0.0
  %6354 = vmatprep.subr.mxu0 0.0
  %6355 = vmatpush1.xpose.msra.mxu0 0.0
  %6356 = vmatprep.subr.mxu0 0.0
  %6357 = vmatpush1.xpose.msra.mxu0 0.0
  %6358 = vmatprep.subr.mxu0 0.0
  %6359 = vmatpush1.xpose.msra.mxu0 0.0
  %6360 = vmatprep.subr.mxu0 0.0
  %6361 = vmatpush1.xpose.msra.mxu0 0.0
  %6362 = vmatprep.subr.mxu0 0.0
  %6363 = vmatpush1.xpose.msra.mxu0 0.0
  %6364 = vmatprep.subr.mxu0 0.0
  %6365 = vmatpush1.xpose.msra.mxu0 0.0
  %6366 = vmatprep.subr.mxu0 0.0
  %6367 = vmatpush1.xpose.msra.mxu0 0.0
  %6368 = vmatprep.subr.mxu0 0.0
  %6369 = vmatpush1.xpose.msra.mxu0 0.0
  %6370 = vmatprep.subr.mxu0 0.0
  %6371 = vmatpush1.xpose.msra.mxu0 0.0
  %6372 = vmatprep.subr.mxu0 0.0
  %6373 = vmatpush1.xpose.msra.mxu0 0.0
  %6374 = vmatprep.subr.mxu0 0.0
  %6375 = vmatpush1.xpose.msra.mxu0 0.0
  %6376 = vmatprep.subr.mxu0 0.0
  %6377 = vmatpush1.xpose.msra.mxu0 0.0
  %6378 = vmatprep.subr.mxu0 0.0
  %6379 = vmatpush1.xpose.msra.mxu0 0.0
  %6380 = vmatprep.subr.mxu0 0.0
  %6381 = vmatpush1.xpose.msra.mxu0 0.0
  %6382 = vmatprep.subr.mxu0 0.0
  %6383 = vmatpush1.xpose.msra.mxu0 0.0
  %6384 = vmatprep.subr.mxu0 0.0
  %6385 = vmatpush1.xpose.msra.mxu0 0.0
  %6386 = vmatprep.subr.mxu0 0.0
  %6387 = vmatpush1.xpose.msra.mxu0 0.0
  %6388 = vmatprep.subr.mxu0 0.0
  %6389 = vmatpush1.xpose.msra.mxu0 0.0
  %6390 = vmatprep.mubr.f32.mxu0 0.0
  %6391 = vmatmul.mubr.f32.gmra.mrb[0].mxu0 %v6315
  %v6392 = vpop.f32.mrb[0].mxu0
  %v6393 = vadd.f32 %v91, %v6392
  %v6394 = vpop.f32.mrb[0].mxu0
  %6395 = vmatprep.mubr.f32.mxu0 0.0
  %6396 = vmatmul.mubr.f32.gmra.mrb[0].mxu0 %v6318
  %v6397 = vpop.f32.mrb[0].mxu0
  %v6398 = vadd.f32 %v92, %v6397
  %v6399 = vpop.f32.mrb[0].mxu0
  %6400 = vdwg.mxu0
  %v6401 = vsel %vm392, %v6393, -inf
  %6402 = vmax.xlane.f32.xlu0 %v6401
  %v6403 = vpop.xlane.xlu0 %6402
  %v6404 = vsel %vm392, %v6398, -inf
  %6405 = vmax.xlane.f32.xlu0 %v6404
  %v6406 = vpop.xlane.xlu0 %6405
  %v6407 = vsub.f32 %v6393, %v6403
  %v6408 = vsub.f32 %v6398, %v6406
  %v6409 = vmul.f32 %v6407, 1.442695
  %v6410 = vpow.pop %v6409
  %v6411 = vmul.f32 %v6408, 1.442695
  %v6412 = vpow.pop %v6411
  %v6413 = vsel %vm392, %v6410, 0.0
  %6414 = vadd.xlane.f32.xlu0 %v6413
  %v6415 = vpop.xlane.xlu0 %6414
  %v6416 = vsel %vm392, %v6412, 0.0
  %6417 = vadd.xlane.f32.xlu0 %v6416
  %v6418 = vpop.xlane.xlu0 %6417
  %v6419 = vrcp.pop %v6415
  %v6420 = vrcp.pop %v6418
  %v6421 = vmul.f32 %v6410, %v6419
  %v6422 = vmul.f32 %v6412, %v6420
  %6423 = vrot.lane.b32.xlu0 %v6306, 96
  %v6424 = vpop.permute.xlu0 %6423
  %6425 = vrot.lane.b32.xlu0 %v6311, 96
  %v6426 = vpop.permute.xlu0 %6425
  %v6430 = vsel %vm392, %v6421, 0
  %v6433 = vsel %vm392, %v6422, 0
  %6435 = vmatprep.subr.mxu0 0.0
  %6436 = vmatpush1.msra.mxu0 %v6424
  %6437 = vmatprep.subr.mxu0 0.0
  %6438 = vmatpush1.msra.mxu0 %v6426
  %6439 = vmatprep.subr.mxu0 0.0
  %6440 = vmatpush1.msra.mxu0 0.0
  %6441 = vmatprep.subr.mxu0 0.0
  %6442 = vmatpush1.msra.mxu0 0.0
  %6443 = vmatprep.subr.mxu0 0.0
  %6444 = vmatpush1.msra.mxu0 0.0
  %6445 = vmatprep.subr.mxu0 0.0
  %6446 = vmatpush1.msra.mxu0 0.0
  %6447 = vmatprep.subr.mxu0 0.0
  %6448 = vmatpush1.msra.mxu0 0.0
  %6449 = vmatprep.subr.mxu0 0.0
  %6450 = vmatpush1.msra.mxu0 0.0
  %6451 = vmatprep.subr.mxu0 0.0
  %6452 = vmatpush1.msra.mxu0 0.0
  %6453 = vmatprep.subr.mxu0 0.0
  %6454 = vmatpush1.msra.mxu0 0.0
  %6455 = vmatprep.subr.mxu0 0.0
  %6456 = vmatpush1.msra.mxu0 0.0
  %6457 = vmatprep.subr.mxu0 0.0
  %6458 = vmatpush1.msra.mxu0 0.0
  %6459 = vmatprep.subr.mxu0 0.0
  %6460 = vmatpush1.msra.mxu0 0.0
  %6461 = vmatprep.subr.mxu0 0.0
  %6462 = vmatpush1.msra.mxu0 0.0
  %6463 = vmatprep.subr.mxu0 0.0
  %6464 = vmatpush1.msra.mxu0 0.0
  %6465 = vmatprep.subr.mxu0 0.0
  %6466 = vmatpush1.msra.mxu0 0.0
  %6467 = vmatprep.subr.mxu0 0.0
  %6468 = vmatpush1.msra.mxu0 0.0
  %6469 = vmatprep.subr.mxu0 0.0
  %6470 = vmatpush1.msra.mxu0 0.0
  %6471 = vmatprep.subr.mxu0 0.0
  %6472 = vmatpush1.msra.mxu0 0.0
  %6473 = vmatprep.subr.mxu0 0.0
  %6474 = vmatpush1.msra.mxu0 0.0
  %6475 = vmatprep.subr.mxu0 0.0
  %6476 = vmatpush1.msra.mxu0 0.0
  %6477 = vmatprep.subr.mxu0 0.0
  %6478 = vmatpush1.msra.mxu0 0.0
  %6479 = vmatprep.subr.mxu0 0.0
  %6480 = vmatpush1.msra.mxu0 0.0
  %6481 = vmatprep.subr.mxu0 0.0
  %6482 = vmatpush1.msra.mxu0 0.0
  %6483 = vmatprep.subr.mxu0 0.0
  %6484 = vmatpush1.msra.mxu0 0.0
  %6485 = vmatprep.subr.mxu0 0.0
  %6486 = vmatpush1.msra.mxu0 0.0
  %6487 = vmatprep.subr.mxu0 0.0
  %6488 = vmatpush1.msra.mxu0 0.0
  %6489 = vmatprep.subr.mxu0 0.0
  %6490 = vmatpush1.msra.mxu0 0.0
  %6491 = vmatprep.subr.mxu0 0.0
  %6492 = vmatpush1.msra.mxu0 0.0
  %6493 = vmatprep.subr.mxu0 0.0
  %6494 = vmatpush1.msra.mxu0 0.0
  %6495 = vmatprep.subr.mxu0 0.0
  %6496 = vmatpush1.msra.mxu0 0.0
  %6497 = vmatprep.subr.mxu0 0.0
  %6498 = vmatpush1.msra.mxu0 0.0
  %6499 = vmatprep.mubr.f32.mxu0 0.0
  %6500 = vmatmul.mubr.f32.gmra.mrb[0].mxu0 %v6430
  %v6501 = vpop.f32.mrb[0].mxu0
  %v6502 = vadd.f32 0.0, %v6501
  %v6503 = vpop.f32.mrb[0].mxu0
  %6504 = vmatprep.mubr.f32.mxu0 0.0
  %6505 = vmatmul.mubr.f32.gmra.mrb[0].mxu0 %v6433
  %v6506 = vpop.f32.mrb[0].mxu0
  %v6507 = vadd.f32 0.0, %v6506
  %v6508 = vpop.f32.mrb[0].mxu0
  %6509 = vdwg.mxu0
  %6510 = vrot.lane.b32.xlu0 %v6231, 120
  %v6511 = vpop.permute.xlu0 %6510
  %6512 = vrot.lane.b32.xlu0 %v6236, 120
  %v6513 = vpop.permute.xlu0 %6512
  %6514 = vrot.lane.b32.xlu0 %v6306, 120
  %v6515 = vpop.permute.xlu0 %6514
  %6516 = vrot.lane.b32.xlu0 %v6311, 120
  %v6517 = vpop.permute.xlu0 %6516
  %v6518 = vsel %vm304, %v6511, 0
  %v6520 = vsel %vm304, %v6513, 0
  %v6522 = vsel %vm304, %v6515, 0
  %v6524 = vsel %vm304, %v6517, 0
  %6526 = vmatprep.subr.mxu0 0.0
  %6527 = vmatpush1.xpose.msra.mxu0 %v6522
  %6528 = vmatprep.subr.mxu0 0.0
  %6529 = vmatpush1.xpose.msra.mxu0 %v6524
  %6530 = vmatprep.subr.mxu0 0.0
  %6531 = vmatpush1.xpose.msra.mxu0 0.0
  %6532 = vmatprep.subr.mxu0 0.0
  %6533 = vmatpush1.xpose.msra.mxu0 0.0
  %6534 = vmatprep.subr.mxu0 0.0
  %6535 = vmatpush1.xpose.msra.mxu0 0.0
  %6536 = vmatprep.subr.mxu0 0.0
  %6537 = vmatpush1.xpose.msra.mxu0 0.0
  %6538 = vmatprep.subr.mxu0 0.0
  %6539 = vmatpush1.xpose.msra.mxu0 0.0
  %6540 = vmatprep.subr.mxu0 0.0
  %6541 = vmatpush1.xpose.msra.mxu0 0.0
  %6542 = vmatprep.subr.mxu0 0.0
  %6543 = vmatpush1.xpose.msra.mxu0 0.0
  %6544 = vmatprep.subr.mxu0 0.0
  %6545 = vmatpush1.xpose.msra.mxu0 0.0
  %6546 = vmatprep.subr.mxu0 0.0
  %6547 = vmatpush1.xpose.msra.mxu0 0.0
  %6548 = vmatprep.subr.mxu0 0.0
  %6549 = vmatpush1.xpose.msra.mxu0 0.0
  %6550 = vmatprep.subr.mxu0 0.0
  %6551 = vmatpush1.xpose.msra.mxu0 0.0
  %6552 = vmatprep.subr.mxu0 0.0
  %6553 = vmatpush1.xpose.msra.mxu0 0.0
  %6554 = vmatprep.subr.mxu0 0.0
  %6555 = vmatpush1.xpose.msra.mxu0 0.0
  %6556 = vmatprep.subr.mxu0 0.0
  %6557 = vmatpush1.xpose.msra.mxu0 0.0
  %6558 = vmatprep.subr.mxu0 0.0
  %6559 = vmatpush1.xpose.msra.mxu0 0.0
  %6560 = vmatprep.subr.mxu0 0.0
  %6561 = vmatpush1.xpose.msra.mxu0 0.0
  %6562 = vmatprep.subr.mxu0 0.0
  %6563 = vmatpush1.xpose.msra.mxu0 0.0
  %6564 = vmatprep.subr.mxu0 0.0
  %6565 = vmatpush1.xpose.msra.mxu0 0.0
  %6566 = vmatprep.subr.mxu0 0.0
  %6567 = vmatpush1.xpose.msra.mxu0 0.0
  %6568 = vmatprep.subr.mxu0 0.0
  %6569 = vmatpush1.xpose.msra.mxu0 0.0
  %6570 = vmatprep.subr.mxu0 0.0
  %6571 = vmatpush1.xpose.msra.mxu0 0.0
  %6572 = vmatprep.subr.mxu0 0.0
  %6573 = vmatpush1.xpose.msra.mxu0 0.0
  %6574 = vmatprep.subr.mxu0 0.0
  %6575 = vmatpush1.xpose.msra.mxu0 0.0
  %6576 = vmatprep.subr.mxu0 0.0
  %6577 = vmatpush1.xpose.msra.mxu0 0.0
  %6578 = vmatprep.subr.mxu0 0.0
  %6579 = vmatpush1.xpose.msra.mxu0 0.0
  %6580 = vmatprep.subr.mxu0 0.0
  %6581 = vmatpush1.xpose.msra.mxu0 0.0
  %6582 = vmatprep.subr.mxu0 0.0
  %6583 = vmatpush1.xpose.msra.mxu0 0.0
  %6584 = vmatprep.subr.mxu0 0.0
  %6585 = vmatpush1.xpose.msra.mxu0 0.0
  %6586 = vmatprep.subr.mxu0 0.0
  %6587 = vmatpush1.xpose.msra.mxu0 0.0
  %6588 = vmatprep.subr.mxu0 0.0
  %6589 = vmatpush1.xpose.msra.mxu0 0.0
  %6590 = vmatprep.mubr.f32.mxu0 0.0
  %6591 = vmatmul.mubr.f32.gmra.mrb[0].mxu0 %v6518
  %v6592 = vpop.f32.mrb[0].mxu0
  %v6593 = vadd.f32 %v93, %v6592
  %v6594 = vpop.f32.mrb[0].mxu0
  %6595 = vmatprep.mubr.f32.mxu0 0.0
  %6596 = vmatmul.mubr.f32.gmra.mrb[0].mxu0 %v6520
  %v6597 = vpop.f32.mrb[0].mxu0
  %v6598 = vadd.f32 %v94, %v6597
  %v6599 = vpop.f32.mrb[0].mxu0
  %6600 = vdwg.mxu0
  %v6601 = vsel %vm392, %v6593, -inf
  %6602 = vmax.xlane.f32.xlu0 %v6601
  %v6603 = vpop.xlane.xlu0 %6602
  %v6604 = vsel %vm392, %v6598, -inf
  %6605 = vmax.xlane.f32.xlu0 %v6604
  %v6606 = vpop.xlane.xlu0 %6605
  %v6607 = vsub.f32 %v6593, %v6603
  %v6608 = vsub.f32 %v6598, %v6606
  %v6609 = vmul.f32 %v6607, 1.442695
  %v6610 = vpow.pop %v6609
  %v6611 = vmul.f32 %v6608, 1.442695
  %v6612 = vpow.pop %v6611
  %v6613 = vsel %vm392, %v6610, 0.0
  %6614 = vadd.xlane.f32.xlu0 %v6613
  %v6615 = vpop.xlane.xlu0 %6614
  %v6616 = vsel %vm392, %v6612, 0.0
  %6617 = vadd.xlane.f32.xlu0 %v6616
  %v6618 = vpop.xlane.xlu0 %6617
  %v6619 = vrcp.pop %v6615
  %v6620 = vrcp.pop %v6618
  %v6621 = vmul.f32 %v6610, %v6619
  %v6622 = vmul.f32 %v6612, %v6620
  %6623 = vrot.lane.b32.xlu0 %v6306, 88
  %v6624 = vpop.permute.xlu0 %6623
  %6625 = vrot.lane.b32.xlu0 %v6311, 88
  %v6626 = vpop.permute.xlu0 %6625
  %v6630 = vsel %vm392, %v6621, 0
  %v6633 = vsel %vm392, %v6622, 0
  %6635 = vmatprep.subr.mxu0 0.0
  %6636 = vmatpush1.msra.mxu0 %v6624
  %6637 = vmatprep.subr.mxu0 0.0
  %6638 = vmatpush1.msra.mxu0 %v6626
  %6639 = vmatprep.subr.mxu0 0.0
  %6640 = vmatpush1.msra.mxu0 0.0
  %6641 = vmatprep.subr.mxu0 0.0
  %6642 = vmatpush1.msra.mxu0 0.0
  %6643 = vmatprep.subr.mxu0 0.0
  %6644 = vmatpush1.msra.mxu0 0.0
  %6645 = vmatprep.subr.mxu0 0.0
  %6646 = vmatpush1.msra.mxu0 0.0
  %6647 = vmatprep.subr.mxu0 0.0
  %6648 = vmatpush1.msra.mxu0 0.0
  %6649 = vmatprep.subr.mxu0 0.0
  %6650 = vmatpush1.msra.mxu0 0.0
  %6651 = vmatprep.subr.mxu0 0.0
  %6652 = vmatpush1.msra.mxu0 0.0
  %6653 = vmatprep.subr.mxu0 0.0
  %6654 = vmatpush1.msra.mxu0 0.0
  %6655 = vmatprep.subr.mxu0 0.0
  %6656 = vmatpush1.msra.mxu0 0.0
  %6657 = vmatprep.subr.mxu0 0.0
  %6658 = vmatpush1.msra.mxu0 0.0
  %6659 = vmatprep.subr.mxu0 0.0
  %6660 = vmatpush1.msra.mxu0 0.0
  %6661 = vmatprep.subr.mxu0 0.0
  %6662 = vmatpush1.msra.mxu0 0.0
  %6663 = vmatprep.subr.mxu0 0.0
  %6664 = vmatpush1.msra.mxu0 0.0
  %6665 = vmatprep.subr.mxu0 0.0
  %6666 = vmatpush1.msra.mxu0 0.0
  %6667 = vmatprep.subr.mxu0 0.0
  %6668 = vmatpush1.msra.mxu0 0.0
  %6669 = vmatprep.subr.mxu0 0.0
  %6670 = vmatpush1.msra.mxu0 0.0
  %6671 = vmatprep.subr.mxu0 0.0
  %6672 = vmatpush1.msra.mxu0 0.0
  %6673 = vmatprep.subr.mxu0 0.0
  %6674 = vmatpush1.msra.mxu0 0.0
  %6675 = vmatprep.subr.mxu0 0.0
  %6676 = vmatpush1.msra.mxu0 0.0
  %6677 = vmatprep.subr.mxu0 0.0
  %6678 = vmatpush1.msra.mxu0 0.0
  %6679 = vmatprep.subr.mxu0 0.0
  %6680 = vmatpush1.msra.mxu0 0.0
  %6681 = vmatprep.subr.mxu0 0.0
  %6682 = vmatpush1.msra.mxu0 0.0
  %6683 = vmatprep.subr.mxu0 0.0
  %6684 = vmatpush1.msra.mxu0 0.0
  %6685 = vmatprep.subr.mxu0 0.0
  %6686 = vmatpush1.msra.mxu0 0.0
  %6687 = vmatprep.subr.mxu0 0.0
  %6688 = vmatpush1.msra.mxu0 0.0
  %6689 = vmatprep.subr.mxu0 0.0
  %6690 = vmatpush1.msra.mxu0 0.0
  %6691 = vmatprep.subr.mxu0 0.0
  %6692 = vmatpush1.msra.mxu0 0.0
  %6693 = vmatprep.subr.mxu0 0.0
  %6694 = vmatpush1.msra.mxu0 0.0
  %6695 = vmatprep.subr.mxu0 0.0
  %6696 = vmatpush1.msra.mxu0 0.0
  %6697 = vmatprep.subr.mxu0 0.0
  %6698 = vmatpush1.msra.mxu0 0.0
  %6699 = vmatprep.mubr.f32.mxu0 0.0
  %6700 = vmatmul.mubr.f32.gmra.mrb[0].mxu0 %v6630
  %v6701 = vpop.f32.mrb[0].mxu0
  %v6702 = vadd.f32 0.0, %v6701
  %v6703 = vpop.f32.mrb[0].mxu0
  %6704 = vmatprep.mubr.f32.mxu0 0.0
  %6705 = vmatmul.mubr.f32.gmra.mrb[0].mxu0 %v6633
  %v6706 = vpop.f32.mrb[0].mxu0
  %v6707 = vadd.f32 0.0, %v6706
  %v6708 = vpop.f32.mrb[0].mxu0
  %6709 = vdwg.mxu0
  %v6711 = vsel %vm304, %v6702, 0
  %v6714 = vsel %vm304, %v6707, 0
  %6716 = vmatprep.subr.mxu0 0.0
  %6717 = vmatpush1.msra.mxu0 %v6131
  %6718 = vmatprep.subr.mxu0 0.0
  %6719 = vmatpush1.msra.mxu0 0.0
  %6720 = vmatprep.subr.mxu0 0.0
  %6721 = vmatpush1.msra.mxu0 0.0
  %6722 = vmatprep.subr.mxu0 0.0
  %6723 = vmatpush1.msra.mxu0 0.0
  %6724 = vmatprep.subr.mxu0 0.0
  %6725 = vmatpush1.msra.mxu0 0.0
  %6726 = vmatprep.subr.mxu0 0.0
  %6727 = vmatpush1.msra.mxu0 0.0
  %6728 = vmatprep.subr.mxu0 0.0
  %6729 = vmatpush1.msra.mxu0 0.0
  %6730 = vmatprep.subr.mxu0 0.0
  %6731 = vmatpush1.msra.mxu0 0.0
  %6732 = vmatprep.subr.mxu0 0.0
  %6733 = vmatpush1.msra.mxu0 0.0
  %6734 = vmatprep.subr.mxu0 0.0
  %6735 = vmatpush1.msra.mxu0 0.0
  %6736 = vmatprep.subr.mxu0 0.0
  %6737 = vmatpush1.msra.mxu0 0.0
  %6738 = vmatprep.subr.mxu0 0.0
  %6739 = vmatpush1.msra.mxu0 0.0
  %6740 = vmatprep.subr.mxu0 0.0
  %6741 = vmatpush1.msra.mxu0 0.0
  %6742 = vmatprep.subr.mxu0 0.0
  %6743 = vmatpush1.msra.mxu0 0.0
  %6744 = vmatprep.subr.mxu0 0.0
  %6745 = vmatpush1.msra.mxu0 0.0
  %6746 = vmatprep.subr.mxu0 0.0
  %6747 = vmatpush1.msra.mxu0 0.0
  %6748 = vmatprep.subr.mxu0 0.0
  %6749 = vmatpush1.msra.mxu0 0.0
  %6750 = vmatprep.subr.mxu0 0.0
  %6751 = vmatpush1.msra.mxu0 0.0
  %6752 = vmatprep.subr.mxu0 0.0
  %6753 = vmatpush1.msra.mxu0 0.0
  %6754 = vmatprep.subr.mxu0 0.0
  %6755 = vmatpush1.msra.mxu0 0.0
  %6756 = vmatprep.subr.mxu0 0.0
  %6757 = vmatpush1.msra.mxu0 0.0
  %6758 = vmatprep.subr.mxu0 0.0
  %6759 = vmatpush1.msra.mxu0 0.0
  %6760 = vmatprep.subr.mxu0 0.0
  %6761 = vmatpush1.msra.mxu0 0.0
  %6762 = vmatprep.subr.mxu0 0.0
  %6763 = vmatpush1.msra.mxu0 0.0
  %6764 = vmatprep.subr.mxu0 0.0
  %6765 = vmatpush1.msra.mxu0 0.0
  %6766 = vmatprep.subr.mxu0 0.0
  %6767 = vmatpush1.msra.mxu0 0.0
  %6768 = vmatprep.subr.mxu0 0.0
  %6769 = vmatpush1.msra.mxu0 0.0
  %6770 = vmatprep.subr.mxu0 0.0
  %6771 = vmatpush1.msra.mxu0 0.0
  %6772 = vmatprep.subr.mxu0 0.0
  %6773 = vmatpush1.msra.mxu0 0.0
  %6774 = vmatprep.subr.mxu0 0.0
  %6775 = vmatpush1.msra.mxu0 0.0
  %6776 = vmatprep.subr.mxu0 0.0
  %6777 = vmatpush1.msra.mxu0 0.0
  %6778 = vmatprep.subr.mxu0 0.0
  %6779 = vmatpush1.msra.mxu0 0.0
  %6780 = vmatprep.mubr.f32.mxu0 0.0
  %6781 = vmatmul.mubr.f32.gmra.mrb[0].mxu0 %v6711
  %v6782 = vpop.f32.mrb[0].mxu0
  %v6783 = vadd.f32 0.0, %v6782
  %v6784 = vpop.f32.mrb[0].mxu0
  %6785 = vmatprep.mubr.f32.mxu0 0.0
  %6786 = vmatmul.mubr.f32.gmra.mrb[0].mxu0 %v6714
  %v6787 = vpop.f32.mrb[0].mxu0
  %v6788 = vadd.f32 0.0, %v6787
  %v6789 = vpop.f32.mrb[0].mxu0
  %6790 = vdwg.mxu0
  %v6792 = vsel %vm304, %v6502, 0
  %v6795 = vsel %vm304, %v6507, 0
  %6797 = vmatprep.subr.mxu0 0.0
  %6798 = vmatpush1.msra.mxu0 %v6130
  %6799 = vmatprep.subr.mxu0 0.0
  %6800 = vmatpush1.msra.mxu0 0.0
  %6801 = vmatprep.subr.mxu0 0.0
  %6802 = vmatpush1.msra.mxu0 0.0
  %6803 = vmatprep.subr.mxu0 0.0
  %6804 = vmatpush1.msra.mxu0 0.0
  %6805 = vmatprep.subr.mxu0 0.0
  %6806 = vmatpush1.msra.mxu0 0.0
  %6807 = vmatprep.subr.mxu0 0.0
  %6808 = vmatpush1.msra.mxu0 0.0
  %6809 = vmatprep.subr.mxu0 0.0
  %6810 = vmatpush1.msra.mxu0 0.0
  %6811 = vmatprep.subr.mxu0 0.0
  %6812 = vmatpush1.msra.mxu0 0.0
  %6813 = vmatprep.subr.mxu0 0.0
  %6814 = vmatpush1.msra.mxu0 0.0
  %6815 = vmatprep.subr.mxu0 0.0
  %6816 = vmatpush1.msra.mxu0 0.0
  %6817 = vmatprep.subr.mxu0 0.0
  %6818 = vmatpush1.msra.mxu0 0.0
  %6819 = vmatprep.subr.mxu0 0.0
  %6820 = vmatpush1.msra.mxu0 0.0
  %6821 = vmatprep.subr.mxu0 0.0
  %6822 = vmatpush1.msra.mxu0 0.0
  %6823 = vmatprep.subr.mxu0 0.0
  %6824 = vmatpush1.msra.mxu0 0.0
  %6825 = vmatprep.subr.mxu0 0.0
  %6826 = vmatpush1.msra.mxu0 0.0
  %6827 = vmatprep.subr.mxu0 0.0
  %6828 = vmatpush1.msra.mxu0 0.0
  %6829 = vmatprep.subr.mxu0 0.0
  %6830 = vmatpush1.msra.mxu0 0.0
  %6831 = vmatprep.subr.mxu0 0.0
  %6832 = vmatpush1.msra.mxu0 0.0
  %6833 = vmatprep.subr.mxu0 0.0
  %6834 = vmatpush1.msra.mxu0 0.0
  %6835 = vmatprep.subr.mxu0 0.0
  %6836 = vmatpush1.msra.mxu0 0.0
  %6837 = vmatprep.subr.mxu0 0.0
  %6838 = vmatpush1.msra.mxu0 0.0
  %6839 = vmatprep.subr.mxu0 0.0
  %6840 = vmatpush1.msra.mxu0 0.0
  %6841 = vmatprep.subr.mxu0 0.0
  %6842 = vmatpush1.msra.mxu0 0.0
  %6843 = vmatprep.subr.mxu0 0.0
  %6844 = vmatpush1.msra.mxu0 0.0
  %6845 = vmatprep.subr.mxu0 0.0
  %6846 = vmatpush1.msra.mxu0 0.0
  %6847 = vmatprep.subr.mxu0 0.0
  %6848 = vmatpush1.msra.mxu0 0.0
  %6849 = vmatprep.subr.mxu0 0.0
  %6850 = vmatpush1.msra.mxu0 0.0
  %6851 = vmatprep.subr.mxu0 0.0
  %6852 = vmatpush1.msra.mxu0 0.0
  %6853 = vmatprep.subr.mxu0 0.0
  %6854 = vmatpush1.msra.mxu0 0.0
  %6855 = vmatprep.subr.mxu0 0.0
  %6856 = vmatpush1.msra.mxu0 0.0
  %6857 = vmatprep.subr.mxu0 0.0
  %6858 = vmatpush1.msra.mxu0 0.0
  %6859 = vmatprep.subr.mxu0 0.0
  %6860 = vmatpush1.msra.mxu0 0.0
  %6861 = vmatprep.mubr.f32.mxu0 0.0
  %6862 = vmatmul.mubr.f32.gmra.mrb[0].mxu0 %v6792
  %v6863 = vpop.f32.mrb[0].mxu0
  %v6864 = vadd.f32 %v6783, %v6863
  %v6865 = vpop.f32.mrb[0].mxu0
  %6866 = vmatprep.mubr.f32.mxu0 0.0
  %6867 = vmatmul.mubr.f32.gmra.mrb[0].mxu0 %v6795
  %v6868 = vpop.f32.mrb[0].mxu0
  %v6869 = vadd.f32 %v6788, %v6868
  %v6870 = vpop.f32.mrb[0].mxu0
  %6871 = vdwg.mxu0
  %6872 = vrot.lane.b32.xlu0 %v6231, 112
  %v6873 = vpop.permute.xlu0 %6872
  %6874 = vrot.lane.b32.xlu0 %v6236, 112
  %v6875 = vpop.permute.xlu0 %6874
  %6876 = vrot.lane.b32.xlu0 %v6306, 112
  %v6877 = vpop.permute.xlu0 %6876
  %6878 = vrot.lane.b32.xlu0 %v6311, 112
  %v6879 = vpop.permute.xlu0 %6878
  %v6880 = vsel %vm304, %v6873, 0
  %v6882 = vsel %vm304, %v6875, 0
  %v6884 = vsel %vm304, %v6877, 0
  %v6886 = vsel %vm304, %v6879, 0
  %6888 = vmatprep.subr.mxu0 0.0
  %6889 = vmatpush1.xpose.msra.mxu0 %v6884
  %6890 = vmatprep.subr.mxu0 0.0
  %6891 = vmatpush1.xpose.msra.mxu0 %v6886
  %6892 = vmatprep.subr.mxu0 0.0
  %6893 = vmatpush1.xpose.msra.mxu0 0.0
  %6894 = vmatprep.subr.mxu0 0.0
  %6895 = vmatpush1.xpose.msra.mxu0 0.0
  %6896 = vmatprep.subr.mxu0 0.0
  %6897 = vmatpush1.xpose.msra.mxu0 0.0
  %6898 = vmatprep.subr.mxu0 0.0
  %6899 = vmatpush1.xpose.msra.mxu0 0.0
  %6900 = vmatprep.subr.mxu0 0.0
  %6901 = vmatpush1.xpose.msra.mxu0 0.0
  %6902 = vmatprep.subr.mxu0 0.0
  %6903 = vmatpush1.xpose.msra.mxu0 0.0
  %6904 = vmatprep.subr.mxu0 0.0
  %6905 = vmatpush1.xpose.msra.mxu0 0.0
  %6906 = vmatprep.subr.mxu0 0.0
  %6907 = vmatpush1.xpose.msra.mxu0 0.0
  %6908 = vmatprep.subr.mxu0 0.0
  %6909 = vmatpush1.xpose.msra.mxu0 0.0
  %6910 = vmatprep.subr.mxu0 0.0
  %6911 = vmatpush1.xpose.msra.mxu0 0.0
  %6912 = vmatprep.subr.mxu0 0.0
  %6913 = vmatpush1.xpose.msra.mxu0 0.0
  %6914 = vmatprep.subr.mxu0 0.0
  %6915 = vmatpush1.xpose.msra.mxu0 0.0
  %6916 = vmatprep.subr.mxu0 0.0
  %6917 = vmatpush1.xpose.msra.mxu0 0.0
  %6918 = vmatprep.subr.mxu0 0.0
  %6919 = vmatpush1.xpose.msra.mxu0 0.0
  %6920 = vmatprep.subr.mxu0 0.0
  %6921 = vmatpush1.xpose.msra.mxu0 0.0
  %6922 = vmatprep.subr.mxu0 0.0
  %6923 = vmatpush1.xpose.msra.mxu0 0.0
  %6924 = vmatprep.subr.mxu0 0.0
  %6925 = vmatpush1.xpose.msra.mxu0 0.0
  %6926 = vmatprep.subr.mxu0 0.0
  %6927 = vmatpush1.xpose.msra.mxu0 0.0
  %6928 = vmatprep.subr.mxu0 0.0
  %6929 = vmatpush1.xpose.msra.mxu0 0.0
  %6930 = vmatprep.subr.mxu0 0.0
  %6931 = vmatpush1.xpose.msra.mxu0 0.0
  %6932 = vmatprep.subr.mxu0 0.0
  %6933 = vmatpush1.xpose.msra.mxu0 0.0
  %6934 = vmatprep.subr.mxu0 0.0
  %6935 = vmatpush1.xpose.msra.mxu0 0.0
  %6936 = vmatprep.subr.mxu0 0.0
  %6937 = vmatpush1.xpose.msra.mxu0 0.0
  %6938 = vmatprep.subr.mxu0 0.0
  %6939 = vmatpush1.xpose.msra.mxu0 0.0
  %6940 = vmatprep.subr.mxu0 0.0
  %6941 = vmatpush1.xpose.msra.mxu0 0.0
  %6942 = vmatprep.subr.mxu0 0.0
  %6943 = vmatpush1.xpose.msra.mxu0 0.0
  %6944 = vmatprep.subr.mxu0 0.0
  %6945 = vmatpush1.xpose.msra.mxu0 0.0
  %6946 = vmatprep.subr.mxu0 0.0
  %6947 = vmatpush1.xpose.msra.mxu0 0.0
  %6948 = vmatprep.subr.mxu0 0.0
  %6949 = vmatpush1.xpose.msra.mxu0 0.0
  %6950 = vmatprep.subr.mxu0 0.0
  %6951 = vmatpush1.xpose.msra.mxu0 0.0
  %6952 = vmatprep.mubr.f32.mxu0 0.0
  %6953 = vmatmul.mubr.f32.gmra.mrb[0].mxu0 %v6880
  %v6954 = vpop.f32.mrb[0].mxu0
  %v6955 = vadd.f32 %v95, %v6954
  %v6956 = vpop.f32.mrb[0].mxu0
  %6957 = vmatprep.mubr.f32.mxu0 0.0
  %6958 = vmatmul.mubr.f32.gmra.mrb[0].mxu0 %v6882
  %v6959 = vpop.f32.mrb[0].mxu0
  %v6960 = vadd.f32 %v96, %v6959
  %v6961 = vpop.f32.mrb[0].mxu0
  %6962 = vdwg.mxu0
  %v6963 = vsel %vm392, %v6955, -inf
  %6964 = vmax.xlane.f32.xlu0 %v6963
  %v6965 = vpop.xlane.xlu0 %6964
  %v6966 = vsel %vm392, %v6960, -inf
  %6967 = vmax.xlane.f32.xlu0 %v6966
  %v6968 = vpop.xlane.xlu0 %6967
  %v6969 = vsub.f32 %v6955, %v6965
  %v6970 = vsub.f32 %v6960, %v6968
  %v6971 = vmul.f32 %v6969, 1.442695
  %v6972 = vpow.pop %v6971
  %v6973 = vmul.f32 %v6970, 1.442695
  %v6974 = vpow.pop %v6973
  %v6975 = vsel %vm392, %v6972, 0.0
  %6976 = vadd.xlane.f32.xlu0 %v6975
  %v6977 = vpop.xlane.xlu0 %6976
  %v6978 = vsel %vm392, %v6974, 0.0
  %6979 = vadd.xlane.f32.xlu0 %v6978
  %v6980 = vpop.xlane.xlu0 %6979
  %v6981 = vrcp.pop %v6977
  %v6982 = vrcp.pop %v6980
  %v6983 = vmul.f32 %v6972, %v6981
  %v6984 = vmul.f32 %v6974, %v6982
  %6985 = vrot.lane.b32.xlu0 %v6306, 80
  %v6986 = vpop.permute.xlu0 %6985
  %6987 = vrot.lane.b32.xlu0 %v6311, 80
  %v6988 = vpop.permute.xlu0 %6987
  %v6992 = vsel %vm392, %v6983, 0
  %v6995 = vsel %vm392, %v6984, 0
  %6997 = vmatprep.subr.mxu0 0.0
  %6998 = vmatpush1.msra.mxu0 %v6986
  %6999 = vmatprep.subr.mxu0 0.0
  %7000 = vmatpush1.msra.mxu0 %v6988
  %7001 = vmatprep.subr.mxu0 0.0
  %7002 = vmatpush1.msra.mxu0 0.0
  %7003 = vmatprep.subr.mxu0 0.0
  %7004 = vmatpush1.msra.mxu0 0.0
  %7005 = vmatprep.subr.mxu0 0.0
  %7006 = vmatpush1.msra.mxu0 0.0
  %7007 = vmatprep.subr.mxu0 0.0
  %7008 = vmatpush1.msra.mxu0 0.0
  %7009 = vmatprep.subr.mxu0 0.0
  %7010 = vmatpush1.msra.mxu0 0.0
  %7011 = vmatprep.subr.mxu0 0.0
  %7012 = vmatpush1.msra.mxu0 0.0
  %7013 = vmatprep.subr.mxu0 0.0
  %7014 = vmatpush1.msra.mxu0 0.0
  %7015 = vmatprep.subr.mxu0 0.0
  %7016 = vmatpush1.msra.mxu0 0.0
  %7017 = vmatprep.subr.mxu0 0.0
  %7018 = vmatpush1.msra.mxu0 0.0
  %7019 = vmatprep.subr.mxu0 0.0
  %7020 = vmatpush1.msra.mxu0 0.0
  %7021 = vmatprep.subr.mxu0 0.0
  %7022 = vmatpush1.msra.mxu0 0.0
  %7023 = vmatprep.subr.mxu0 0.0
  %7024 = vmatpush1.msra.mxu0 0.0
  %7025 = vmatprep.subr.mxu0 0.0
  %7026 = vmatpush1.msra.mxu0 0.0
  %7027 = vmatprep.subr.mxu0 0.0
  %7028 = vmatpush1.msra.mxu0 0.0
  %7029 = vmatprep.subr.mxu0 0.0
  %7030 = vmatpush1.msra.mxu0 0.0
  %7031 = vmatprep.subr.mxu0 0.0
  %7032 = vmatpush1.msra.mxu0 0.0
  %7033 = vmatprep.subr.mxu0 0.0
  %7034 = vmatpush1.msra.mxu0 0.0
  %7035 = vmatprep.subr.mxu0 0.0
  %7036 = vmatpush1.msra.mxu0 0.0
  %7037 = vmatprep.subr.mxu0 0.0
  %7038 = vmatpush1.msra.mxu0 0.0
  %7039 = vmatprep.subr.mxu0 0.0
  %7040 = vmatpush1.msra.mxu0 0.0
  %7041 = vmatprep.subr.mxu0 0.0
  %7042 = vmatpush1.msra.mxu0 0.0
  %7043 = vmatprep.subr.mxu0 0.0
  %7044 = vmatpush1.msra.mxu0 0.0
  %7045 = vmatprep.subr.mxu0 0.0
  %7046 = vmatpush1.msra.mxu0 0.0
  %7047 = vmatprep.subr.mxu0 0.0
  %7048 = vmatpush1.msra.mxu0 0.0
  %7049 = vmatprep.subr.mxu0 0.0
  %7050 = vmatpush1.msra.mxu0 0.0
  %7051 = vmatprep.subr.mxu0 0.0
  %7052 = vmatpush1.msra.mxu0 0.0
  %7053 = vmatprep.subr.mxu0 0.0
  %7054 = vmatpush1.msra.mxu0 0.0
  %7055 = vmatprep.subr.mxu0 0.0
  %7056 = vmatpush1.msra.mxu0 0.0
  %7057 = vmatprep.subr.mxu0 0.0
  %7058 = vmatpush1.msra.mxu0 0.0
  %7059 = vmatprep.subr.mxu0 0.0
  %7060 = vmatpush1.msra.mxu0 0.0
  %7061 = vmatprep.mubr.f32.mxu0 0.0
  %7062 = vmatmul.mubr.f32.gmra.mrb[0].mxu0 %v6992
  %v7063 = vpop.f32.mrb[0].mxu0
  %v7064 = vadd.f32 0.0, %v7063
  %v7065 = vpop.f32.mrb[0].mxu0
  %7066 = vmatprep.mubr.f32.mxu0 0.0
  %7067 = vmatmul.mubr.f32.gmra.mrb[0].mxu0 %v6995
  %v7068 = vpop.f32.mrb[0].mxu0
  %v7069 = vadd.f32 0.0, %v7068
  %v7070 = vpop.f32.mrb[0].mxu0
  %7071 = vdwg.mxu0
  %v7073 = vsel %vm304, %v7064, 0
  %v7076 = vsel %vm304, %v7069, 0
  %7078 = vmatprep.subr.mxu0 0.0
  %7079 = vmatpush1.msra.mxu0 %v6132
  %7080 = vmatprep.subr.mxu0 0.0
  %7081 = vmatpush1.msra.mxu0 0.0
  %7082 = vmatprep.subr.mxu0 0.0
  %7083 = vmatpush1.msra.mxu0 0.0
  %7084 = vmatprep.subr.mxu0 0.0
  %7085 = vmatpush1.msra.mxu0 0.0
  %7086 = vmatprep.subr.mxu0 0.0
  %7087 = vmatpush1.msra.mxu0 0.0
  %7088 = vmatprep.subr.mxu0 0.0
  %7089 = vmatpush1.msra.mxu0 0.0
  %7090 = vmatprep.subr.mxu0 0.0
  %7091 = vmatpush1.msra.mxu0 0.0
  %7092 = vmatprep.subr.mxu0 0.0
  %7093 = vmatpush1.msra.mxu0 0.0
  %7094 = vmatprep.subr.mxu0 0.0
  %7095 = vmatpush1.msra.mxu0 0.0
  %7096 = vmatprep.subr.mxu0 0.0
  %7097 = vmatpush1.msra.mxu0 0.0
  %7098 = vmatprep.subr.mxu0 0.0
  %7099 = vmatpush1.msra.mxu0 0.0
  %7100 = vmatprep.subr.mxu0 0.0
  %7101 = vmatpush1.msra.mxu0 0.0
  %7102 = vmatprep.subr.mxu0 0.0
  %7103 = vmatpush1.msra.mxu0 0.0
  %7104 = vmatprep.subr.mxu0 0.0
  %7105 = vmatpush1.msra.mxu0 0.0
  %7106 = vmatprep.subr.mxu0 0.0
  %7107 = vmatpush1.msra.mxu0 0.0
  %7108 = vmatprep.subr.mxu0 0.0
  %7109 = vmatpush1.msra.mxu0 0.0
  %7110 = vmatprep.subr.mxu0 0.0
  %7111 = vmatpush1.msra.mxu0 0.0
  %7112 = vmatprep.subr.mxu0 0.0
  %7113 = vmatpush1.msra.mxu0 0.0
  %7114 = vmatprep.subr.mxu0 0.0
  %7115 = vmatpush1.msra.mxu0 0.0
  %7116 = vmatprep.subr.mxu0 0.0
  %7117 = vmatpush1.msra.mxu0 0.0
  %7118 = vmatprep.subr.mxu0 0.0
  %7119 = vmatpush1.msra.mxu0 0.0
  %7120 = vmatprep.subr.mxu0 0.0
  %7121 = vmatpush1.msra.mxu0 0.0
  %7122 = vmatprep.subr.mxu0 0.0
  %7123 = vmatpush1.msra.mxu0 0.0
  %7124 = vmatprep.subr.mxu0 0.0
  %7125 = vmatpush1.msra.mxu0 0.0
  %7126 = vmatprep.subr.mxu0 0.0
  %7127 = vmatpush1.msra.mxu0 0.0
  %7128 = vmatprep.subr.mxu0 0.0
  %7129 = vmatpush1.msra.mxu0 0.0
  %7130 = vmatprep.subr.mxu0 0.0
  %7131 = vmatpush1.msra.mxu0 0.0
  %7132 = vmatprep.subr.mxu0 0.0
  %7133 = vmatpush1.msra.mxu0 0.0
  %7134 = vmatprep.subr.mxu0 0.0
  %7135 = vmatpush1.msra.mxu0 0.0
  %7136 = vmatprep.subr.mxu0 0.0
  %7137 = vmatpush1.msra.mxu0 0.0
  %7138 = vmatprep.subr.mxu0 0.0
  %7139 = vmatpush1.msra.mxu0 0.0
  %7140 = vmatprep.subr.mxu0 0.0
  %7141 = vmatpush1.msra.mxu0 0.0
  %7142 = vmatprep.mubr.f32.mxu0 0.0
  %7143 = vmatmul.mubr.f32.gmra.mrb[0].mxu0 %v7073
  %v7144 = vpop.f32.mrb[0].mxu0
  %v7145 = vadd.f32 0.0, %v7144
  %v7146 = vpop.f32.mrb[0].mxu0
  %7147 = vmatprep.mubr.f32.mxu0 0.0
  %7148 = vmatmul.mubr.f32.gmra.mrb[0].mxu0 %v7076
  %v7149 = vpop.f32.mrb[0].mxu0
  %v7150 = vadd.f32 0.0, %v7149
  %v7151 = vpop.f32.mrb[0].mxu0
  %7152 = vdwg.mxu0
  %v7153 = vadd.f32 %v6864, %v7145
  %v7154 = vadd.f32 %v6869, %v7150
  %7155 = vrot.lane.b32.xlu0 %v6231, 104
  %v7156 = vpop.permute.xlu0 %7155
  %7157 = vrot.lane.b32.xlu0 %v6236, 104
  %v7158 = vpop.permute.xlu0 %7157
  %7159 = vrot.lane.b32.xlu0 %v6306, 104
  %v7160 = vpop.permute.xlu0 %7159
  %7161 = vrot.lane.b32.xlu0 %v6311, 104
  %v7162 = vpop.permute.xlu0 %7161
  %v7163 = vsel %vm304, %v7156, 0
  %v7165 = vsel %vm304, %v7158, 0
  %v7167 = vsel %vm304, %v7160, 0
  %v7169 = vsel %vm304, %v7162, 0
  %7171 = vmatprep.subr.mxu0 0.0
  %7172 = vmatpush1.xpose.msra.mxu0 %v7167
  %7173 = vmatprep.subr.mxu0 0.0
  %7174 = vmatpush1.xpose.msra.mxu0 %v7169
  %7175 = vmatprep.subr.mxu0 0.0
  %7176 = vmatpush1.xpose.msra.mxu0 0.0
  %7177 = vmatprep.subr.mxu0 0.0
  %7178 = vmatpush1.xpose.msra.mxu0 0.0
  %7179 = vmatprep.subr.mxu0 0.0
  %7180 = vmatpush1.xpose.msra.mxu0 0.0
  %7181 = vmatprep.subr.mxu0 0.0
  %7182 = vmatpush1.xpose.msra.mxu0 0.0
  %7183 = vmatprep.subr.mxu0 0.0
  %7184 = vmatpush1.xpose.msra.mxu0 0.0
  %7185 = vmatprep.subr.mxu0 0.0
  %7186 = vmatpush1.xpose.msra.mxu0 0.0
  %7187 = vmatprep.subr.mxu0 0.0
  %7188 = vmatpush1.xpose.msra.mxu0 0.0
  %7189 = vmatprep.subr.mxu0 0.0
  %7190 = vmatpush1.xpose.msra.mxu0 0.0
  %7191 = vmatprep.subr.mxu0 0.0
  %7192 = vmatpush1.xpose.msra.mxu0 0.0
  %7193 = vmatprep.subr.mxu0 0.0
  %7194 = vmatpush1.xpose.msra.mxu0 0.0
  %7195 = vmatprep.subr.mxu0 0.0
  %7196 = vmatpush1.xpose.msra.mxu0 0.0
  %7197 = vmatprep.subr.mxu0 0.0
  %7198 = vmatpush1.xpose.msra.mxu0 0.0
  %7199 = vmatprep.subr.mxu0 0.0
  %7200 = vmatpush1.xpose.msra.mxu0 0.0
  %7201 = vmatprep.subr.mxu0 0.0
  %7202 = vmatpush1.xpose.msra.mxu0 0.0
  %7203 = vmatprep.subr.mxu0 0.0
  %7204 = vmatpush1.xpose.msra.mxu0 0.0
  %7205 = vmatprep.subr.mxu0 0.0
  %7206 = vmatpush1.xpose.msra.mxu0 0.0
  %7207 = vmatprep.subr.mxu0 0.0
  %7208 = vmatpush1.xpose.msra.mxu0 0.0
  %7209 = vmatprep.subr.mxu0 0.0
  %7210 = vmatpush1.xpose.msra.mxu0 0.0
  %7211 = vmatprep.subr.mxu0 0.0
  %7212 = vmatpush1.xpose.msra.mxu0 0.0
  %7213 = vmatprep.subr.mxu0 0.0
  %7214 = vmatpush1.xpose.msra.mxu0 0.0
  %7215 = vmatprep.subr.mxu0 0.0
  %7216 = vmatpush1.xpose.msra.mxu0 0.0
  %7217 = vmatprep.subr.mxu0 0.0
  %7218 = vmatpush1.xpose.msra.mxu0 0.0
  %7219 = vmatprep.subr.mxu0 0.0
  %7220 = vmatpush1.xpose.msra.mxu0 0.0
  %7221 = vmatprep.subr.mxu0 0.0
  %7222 = vmatpush1.xpose.msra.mxu0 0.0
  %7223 = vmatprep.subr.mxu0 0.0
  %7224 = vmatpush1.xpose.msra.mxu0 0.0
  %7225 = vmatprep.subr.mxu0 0.0
  %7226 = vmatpush1.xpose.msra.mxu0 0.0
  %7227 = vmatprep.subr.mxu0 0.0
  %7228 = vmatpush1.xpose.msra.mxu0 0.0
  %7229 = vmatprep.subr.mxu0 0.0
  %7230 = vmatpush1.xpose.msra.mxu0 0.0
  %7231 = vmatprep.subr.mxu0 0.0
  %7232 = vmatpush1.xpose.msra.mxu0 0.0
  %7233 = vmatprep.subr.mxu0 0.0
  %7234 = vmatpush1.xpose.msra.mxu0 0.0
  %7235 = vmatprep.mubr.f32.mxu0 0.0
  %7236 = vmatmul.mubr.f32.gmra.mrb[0].mxu0 %v7163
  %v7237 = vpop.f32.mrb[0].mxu0
  %v7238 = vadd.f32 %v97, %v7237
  %v7239 = vpop.f32.mrb[0].mxu0
  %7240 = vmatprep.mubr.f32.mxu0 0.0
  %7241 = vmatmul.mubr.f32.gmra.mrb[0].mxu0 %v7165
  %v7242 = vpop.f32.mrb[0].mxu0
  %v7243 = vadd.f32 %v98, %v7242
  %v7244 = vpop.f32.mrb[0].mxu0
  %7245 = vdwg.mxu0
  %v7246 = vsel %vm392, %v7238, -inf
  %7247 = vmax.xlane.f32.xlu0 %v7246
  %v7248 = vpop.xlane.xlu0 %7247
  %v7249 = vsel %vm392, %v7243, -inf
  %7250 = vmax.xlane.f32.xlu0 %v7249
  %v7251 = vpop.xlane.xlu0 %7250
  %v7252 = vsub.f32 %v7238, %v7248
  %v7253 = vsub.f32 %v7243, %v7251
  %v7254 = vmul.f32 %v7252, 1.442695
  %v7255 = vpow.pop %v7254
  %v7256 = vmul.f32 %v7253, 1.442695
  %v7257 = vpow.pop %v7256
  %v7258 = vsel %vm392, %v7255, 0.0
  %7259 = vadd.xlane.f32.xlu0 %v7258
  %v7260 = vpop.xlane.xlu0 %7259
  %v7261 = vsel %vm392, %v7257, 0.0
  %7262 = vadd.xlane.f32.xlu0 %v7261
  %v7263 = vpop.xlane.xlu0 %7262
  %v7264 = vrcp.pop %v7260
  %v7265 = vrcp.pop %v7263
  %v7266 = vmul.f32 %v7255, %v7264
  %v7267 = vmul.f32 %v7257, %v7265
  %7268 = vrot.lane.b32.xlu0 %v6306, 72
  %v7269 = vpop.permute.xlu0 %7268
  %7270 = vrot.lane.b32.xlu0 %v6311, 72
  %v7271 = vpop.permute.xlu0 %7270
  %v7275 = vsel %vm392, %v7266, 0
  %v7278 = vsel %vm392, %v7267, 0
  %7280 = vmatprep.subr.mxu0 0.0
  %7281 = vmatpush1.msra.mxu0 %v7269
  %7282 = vmatprep.subr.mxu0 0.0
  %7283 = vmatpush1.msra.mxu0 %v7271
  %7284 = vmatprep.subr.mxu0 0.0
  %7285 = vmatpush1.msra.mxu0 0.0
  %7286 = vmatprep.subr.mxu0 0.0
  %7287 = vmatpush1.msra.mxu0 0.0
  %7288 = vmatprep.subr.mxu0 0.0
  %7289 = vmatpush1.msra.mxu0 0.0
  %7290 = vmatprep.subr.mxu0 0.0
  %7291 = vmatpush1.msra.mxu0 0.0
  %7292 = vmatprep.subr.mxu0 0.0
  %7293 = vmatpush1.msra.mxu0 0.0
  %7294 = vmatprep.subr.mxu0 0.0
  %7295 = vmatpush1.msra.mxu0 0.0
  %7296 = vmatprep.subr.mxu0 0.0
  %7297 = vmatpush1.msra.mxu0 0.0
  %7298 = vmatprep.subr.mxu0 0.0
  %7299 = vmatpush1.msra.mxu0 0.0
  %7300 = vmatprep.subr.mxu0 0.0
  %7301 = vmatpush1.msra.mxu0 0.0
  %7302 = vmatprep.subr.mxu0 0.0
  %7303 = vmatpush1.msra.mxu0 0.0
  %7304 = vmatprep.subr.mxu0 0.0
  %7305 = vmatpush1.msra.mxu0 0.0
  %7306 = vmatprep.subr.mxu0 0.0
  %7307 = vmatpush1.msra.mxu0 0.0
  %7308 = vmatprep.subr.mxu0 0.0
  %7309 = vmatpush1.msra.mxu0 0.0
  %7310 = vmatprep.subr.mxu0 0.0
  %7311 = vmatpush1.msra.mxu0 0.0
  %7312 = vmatprep.subr.mxu0 0.0
  %7313 = vmatpush1.msra.mxu0 0.0
  %7314 = vmatprep.subr.mxu0 0.0
  %7315 = vmatpush1.msra.mxu0 0.0
  %7316 = vmatprep.subr.mxu0 0.0
  %7317 = vmatpush1.msra.mxu0 0.0
  %7318 = vmatprep.subr.mxu0 0.0
  %7319 = vmatpush1.msra.mxu0 0.0
  %7320 = vmatprep.subr.mxu0 0.0
  %7321 = vmatpush1.msra.mxu0 0.0
  %7322 = vmatprep.subr.mxu0 0.0
  %7323 = vmatpush1.msra.mxu0 0.0
  %7324 = vmatprep.subr.mxu0 0.0
  %7325 = vmatpush1.msra.mxu0 0.0
  %7326 = vmatprep.subr.mxu0 0.0
  %7327 = vmatpush1.msra.mxu0 0.0
  %7328 = vmatprep.subr.mxu0 0.0
  %7329 = vmatpush1.msra.mxu0 0.0
  %7330 = vmatprep.subr.mxu0 0.0
  %7331 = vmatpush1.msra.mxu0 0.0
  %7332 = vmatprep.subr.mxu0 0.0
  %7333 = vmatpush1.msra.mxu0 0.0
  %7334 = vmatprep.subr.mxu0 0.0
  %7335 = vmatpush1.msra.mxu0 0.0
  %7336 = vmatprep.subr.mxu0 0.0
  %7337 = vmatpush1.msra.mxu0 0.0
  %7338 = vmatprep.subr.mxu0 0.0
  %7339 = vmatpush1.msra.mxu0 0.0
  %7340 = vmatprep.subr.mxu0 0.0
  %7341 = vmatpush1.msra.mxu0 0.0
  %7342 = vmatprep.subr.mxu0 0.0
  %7343 = vmatpush1.msra.mxu0 0.0
  %7344 = vmatprep.mubr.f32.mxu0 0.0
  %7345 = vmatmul.mubr.f32.gmra.mrb[0].mxu0 %v7275
  %v7346 = vpop.f32.mrb[0].mxu0
  %v7347 = vadd.f32 0.0, %v7346
  %v7348 = vpop.f32.mrb[0].mxu0
  %7349 = vmatprep.mubr.f32.mxu0 0.0
  %7350 = vmatmul.mubr.f32.gmra.mrb[0].mxu0 %v7278
  %v7351 = vpop.f32.mrb[0].mxu0
  %v7352 = vadd.f32 0.0, %v7351
  %v7353 = vpop.f32.mrb[0].mxu0
  %7354 = vdwg.mxu0
  %v7356 = vsel %vm304, %v7347, 0
  %v7359 = vsel %vm304, %v7352, 0
  %7361 = vmatprep.subr.mxu0 0.0
  %7362 = vmatpush1.msra.mxu0 %v6133
  %7363 = vmatprep.subr.mxu0 0.0
  %7364 = vmatpush1.msra.mxu0 0.0
  %7365 = vmatprep.subr.mxu0 0.0
  %7366 = vmatpush1.msra.mxu0 0.0
  %7367 = vmatprep.subr.mxu0 0.0
  %7368 = vmatpush1.msra.mxu0 0.0
  %7369 = vmatprep.subr.mxu0 0.0
  %7370 = vmatpush1.msra.mxu0 0.0
  %7371 = vmatprep.subr.mxu0 0.0
  %7372 = vmatpush1.msra.mxu0 0.0
  %7373 = vmatprep.subr.mxu0 0.0
  %7374 = vmatpush1.msra.mxu0 0.0
  %7375 = vmatprep.subr.mxu0 0.0
  %7376 = vmatpush1.msra.mxu0 0.0
  %7377 = vmatprep.subr.mxu0 0.0
  %7378 = vmatpush1.msra.mxu0 0.0
  %7379 = vmatprep.subr.mxu0 0.0
  %7380 = vmatpush1.msra.mxu0 0.0
  %7381 = vmatprep.subr.mxu0 0.0
  %7382 = vmatpush1.msra.mxu0 0.0
  %7383 = vmatprep.subr.mxu0 0.0
  %7384 = vmatpush1.msra.mxu0 0.0
  %7385 = vmatprep.subr.mxu0 0.0
  %7386 = vmatpush1.msra.mxu0 0.0
  %7387 = vmatprep.subr.mxu0 0.0
  %7388 = vmatpush1.msra.mxu0 0.0
  %7389 = vmatprep.subr.mxu0 0.0
  %7390 = vmatpush1.msra.mxu0 0.0
  %7391 = vmatprep.subr.mxu0 0.0
  %7392 = vmatpush1.msra.mxu0 0.0
  %7393 = vmatprep.subr.mxu0 0.0
  %7394 = vmatpush1.msra.mxu0 0.0
  %7395 = vmatprep.subr.mxu0 0.0
  %7396 = vmatpush1.msra.mxu0 0.0
  %7397 = vmatprep.subr.mxu0 0.0
  %7398 = vmatpush1.msra.mxu0 0.0
  %7399 = vmatprep.subr.mxu0 0.0
  %7400 = vmatpush1.msra.mxu0 0.0
  %7401 = vmatprep.subr.mxu0 0.0
  %7402 = vmatpush1.msra.mxu0 0.0
  %7403 = vmatprep.subr.mxu0 0.0
  %7404 = vmatpush1.msra.mxu0 0.0
  %7405 = vmatprep.subr.mxu0 0.0
  %7406 = vmatpush1.msra.mxu0 0.0
  %7407 = vmatprep.subr.mxu0 0.0
  %7408 = vmatpush1.msra.mxu0 0.0
  %7409 = vmatprep.subr.mxu0 0.0
  %7410 = vmatpush1.msra.mxu0 0.0
  %7411 = vmatprep.subr.mxu0 0.0
  %7412 = vmatpush1.msra.mxu0 0.0
  %7413 = vmatprep.subr.mxu0 0.0
  %7414 = vmatpush1.msra.mxu0 0.0
  %7415 = vmatprep.subr.mxu0 0.0
  %7416 = vmatpush1.msra.mxu0 0.0
  %7417 = vmatprep.subr.mxu0 0.0
  %7418 = vmatpush1.msra.mxu0 0.0
  %7419 = vmatprep.subr.mxu0 0.0
  %7420 = vmatpush1.msra.mxu0 0.0
  %7421 = vmatprep.subr.mxu0 0.0
  %7422 = vmatpush1.msra.mxu0 0.0
  %7423 = vmatprep.subr.mxu0 0.0
  %7424 = vmatpush1.msra.mxu0 0.0
  %7425 = vmatprep.mubr.f32.mxu0 0.0
  %7426 = vmatmul.mubr.f32.gmra.mrb[0].mxu0 %v7356
  %v7427 = vpop.f32.mrb[0].mxu0
  %v7428 = vadd.f32 0.0, %v7427
  %v7429 = vpop.f32.mrb[0].mxu0
  %7430 = vmatprep.mubr.f32.mxu0 0.0
  %7431 = vmatmul.mubr.f32.gmra.mrb[0].mxu0 %v7359
  %v7432 = vpop.f32.mrb[0].mxu0
  %v7433 = vadd.f32 0.0, %v7432
  %v7434 = vpop.f32.mrb[0].mxu0
  %7435 = vdwg.mxu0
  %v7436 = vadd.f32 %v7153, %v7428
  %v7437 = vadd.f32 %v7154, %v7433
  %v7438 = vadd.f32 %v6115, %v7436
  %v7439 = vadd.f32 %v6116, %v7437
  %s7440 = scalar_lea.vmem %s16, 1
  %v7441 = vld [vmem:[%s7440] sm:$0x1]
  %s7442 = scalar_lea.vmem %s17, 32
  %v7443 = vld [vmem:[%s7442] sm:$0xff]
  %v7444 = vld [vmem:[%s7442 + $0x8] sm:$0xff]
  %v7445 = vld [vmem:[%s7442 + $0x10] sm:$0xff]
  %v7446 = vld [vmem:[%s7442 + $0x18] sm:$0xff]
  %s7447 = scalar_lea.vmem %s18, 32
  %v7448 = vld [vmem:[%s7447] sm:$0xff]
  %v7449 = vld [vmem:[%s7447 + $0x8] sm:$0xff]
  %v7450 = vld [vmem:[%s7447 + $0x10] sm:$0xff]
  %v7451 = vld [vmem:[%s7447 + $0x18] sm:$0xff]
  %s7452 = scalar_lea.vmem %s19, 32
  %v7453 = vld [vmem:[%s7452] sm:$0xff]
  %v7454 = vld [vmem:[%s7452 + $0x8] sm:$0xff]
  %v7455 = vld [vmem:[%s7452 + $0x10] sm:$0xff]
  %v7456 = vld [vmem:[%s7452 + $0x18] sm:$0xff]
  %v7457 = vmul.f32 %v7438, %v7438
  %v7458 = vmul.f32 %v7439, %v7439
  %v7459 = vsel %vm124, %v7457, 0.0
  %7460 = vadd.xlane.f32.xlu0 %v7459
  %v7461 = vpop.xlane.xlu0 %7460
  %v7462 = vsel %vm124, %v7458, 0.0
  %7463 = vadd.xlane.f32.xlu0 %v7462
  %v7464 = vpop.xlane.xlu0 %7463
  %v7465 = vmul.f32 %v7461, %v131
  %v7466 = vmul.f32 %v7464, %v131
  %v7467 = vadd.f32 %v7465, 1e-06
  %v7468 = vadd.f32 %v7466, 1e-06
  %v7469 = vrsqrt.pop %v7467
  %v7470 = vrsqrt.pop %v7468
  %v7471 = vmul.f32 %v7438, %v7469
  %v7472 = vmul.f32 %v7439, %v7470
  %v7474 = vlaneseq
  %v7475 = vshrl.u32 %v7474, 7
  %v7476 = vsub.s32 0, %v7475
  %v7477 = vrot.slane %v7441, %v7476
  %v7479 = vmul.f32 %v7471, %v7477
  %v7480 = vmul.f32 %v7472, %v7477
  %v7482 = vsel %vm124, %v7479, 0
  %v7485 = vsel %vm124, %v7480, 0
  %7487 = vmatprep.subr.mxu0 0.0
  %7488 = vmatpush1.msra.mxu0 %v7443
  %7489 = vmatprep.subr.mxu0 0.0
  %7490 = vmatpush1.msra.mxu0 %v7444
  %7491 = vmatprep.subr.mxu0 0.0
  %7492 = vmatpush1.msra.mxu0 %v7445
  %7493 = vmatprep.subr.mxu0 0.0
  %7494 = vmatpush1.msra.mxu0 %v7446
  %7495 = vmatprep.subr.mxu0 0.0
  %7496 = vmatpush1.msra.mxu0 0.0
  %7497 = vmatprep.subr.mxu0 0.0
  %7498 = vmatpush1.msra.mxu0 0.0
  %7499 = vmatprep.subr.mxu0 0.0
  %7500 = vmatpush1.msra.mxu0 0.0
  %7501 = vmatprep.subr.mxu0 0.0
  %7502 = vmatpush1.msra.mxu0 0.0
  %7503 = vmatprep.subr.mxu0 0.0
  %7504 = vmatpush1.msra.mxu0 0.0
  %7505 = vmatprep.subr.mxu0 0.0
  %7506 = vmatpush1.msra.mxu0 0.0
  %7507 = vmatprep.subr.mxu0 0.0
  %7508 = vmatpush1.msra.mxu0 0.0
  %7509 = vmatprep.subr.mxu0 0.0
  %7510 = vmatpush1.msra.mxu0 0.0
  %7511 = vmatprep.subr.mxu0 0.0
  %7512 = vmatpush1.msra.mxu0 0.0
  %7513 = vmatprep.subr.mxu0 0.0
  %7514 = vmatpush1.msra.mxu0 0.0
  %7515 = vmatprep.subr.mxu0 0.0
  %7516 = vmatpush1.msra.mxu0 0.0
  %7517 = vmatprep.subr.mxu0 0.0
  %7518 = vmatpush1.msra.mxu0 0.0
  %7519 = vmatprep.subr.mxu0 0.0
  %7520 = vmatpush1.msra.mxu0 0.0
  %7521 = vmatprep.subr.mxu0 0.0
  %7522 = vmatpush1.msra.mxu0 0.0
  %7523 = vmatprep.subr.mxu0 0.0
  %7524 = vmatpush1.msra.mxu0 0.0
  %7525 = vmatprep.subr.mxu0 0.0
  %7526 = vmatpush1.msra.mxu0 0.0
  %7527 = vmatprep.subr.mxu0 0.0
  %7528 = vmatpush1.msra.mxu0 0.0
  %7529 = vmatprep.subr.mxu0 0.0
  %7530 = vmatpush1.msra.mxu0 0.0
  %7531 = vmatprep.subr.mxu0 0.0
  %7532 = vmatpush1.msra.mxu0 0.0
  %7533 = vmatprep.subr.mxu0 0.0
  %7534 = vmatpush1.msra.mxu0 0.0
  %7535 = vmatprep.subr.mxu0 0.0
  %7536 = vmatpush1.msra.mxu0 0.0
  %7537 = vmatprep.subr.mxu0 0.0
  %7538 = vmatpush1.msra.mxu0 0.0
  %7539 = vmatprep.subr.mxu0 0.0
  %7540 = vmatpush1.msra.mxu0 0.0
  %7541 = vmatprep.subr.mxu0 0.0
  %7542 = vmatpush1.msra.mxu0 0.0
  %7543 = vmatprep.subr.mxu0 0.0
  %7544 = vmatpush1.msra.mxu0 0.0
  %7545 = vmatprep.subr.mxu0 0.0
  %7546 = vmatpush1.msra.mxu0 0.0
  %7547 = vmatprep.subr.mxu0 0.0
  %7548 = vmatpush1.msra.mxu0 0.0
  %7549 = vmatprep.subr.mxu0 0.0
  %7550 = vmatpush1.msra.mxu0 0.0
  %7551 = vmatprep.mubr.f32.mxu0 0.0
  %7552 = vmatmul.mubr.f32.gmra.mrb[0].mxu0 %v7482
  %v7553 = vpop.f32.mrb[0].mxu0
  %v7554 = vadd.f32 0.0, %v7553
  %v7555 = vpop.f32.mrb[0].mxu0
  %7556 = vmatprep.mubr.f32.mxu0 0.0
  %7557 = vmatmul.mubr.f32.gmra.mrb[0].mxu0 %v7485
  %v7558 = vpop.f32.mrb[0].mxu0
  %v7559 = vadd.f32 0.0, %v7558
  %v7560 = vpop.f32.mrb[0].mxu0
  %7561 = vdwg.mxu0
  %7562 = vmatprep.subr.mxu0 0.0
  %7563 = vmatpush1.msra.mxu0 %v7448
  %7564 = vmatprep.subr.mxu0 0.0
  %7565 = vmatpush1.msra.mxu0 %v7449
  %7566 = vmatprep.subr.mxu0 0.0
  %7567 = vmatpush1.msra.mxu0 %v7450
  %7568 = vmatprep.subr.mxu0 0.0
  %7569 = vmatpush1.msra.mxu0 %v7451
  %7570 = vmatprep.subr.mxu0 0.0
  %7571 = vmatpush1.msra.mxu0 0.0
  %7572 = vmatprep.subr.mxu0 0.0
  %7573 = vmatpush1.msra.mxu0 0.0
  %7574 = vmatprep.subr.mxu0 0.0
  %7575 = vmatpush1.msra.mxu0 0.0
  %7576 = vmatprep.subr.mxu0 0.0
  %7577 = vmatpush1.msra.mxu0 0.0
  %7578 = vmatprep.subr.mxu0 0.0
  %7579 = vmatpush1.msra.mxu0 0.0
  %7580 = vmatprep.subr.mxu0 0.0
  %7581 = vmatpush1.msra.mxu0 0.0
  %7582 = vmatprep.subr.mxu0 0.0
  %7583 = vmatpush1.msra.mxu0 0.0
  %7584 = vmatprep.subr.mxu0 0.0
  %7585 = vmatpush1.msra.mxu0 0.0
  %7586 = vmatprep.subr.mxu0 0.0
  %7587 = vmatpush1.msra.mxu0 0.0
  %7588 = vmatprep.subr.mxu0 0.0
  %7589 = vmatpush1.msra.mxu0 0.0
  %7590 = vmatprep.subr.mxu0 0.0
  %7591 = vmatpush1.msra.mxu0 0.0
  %7592 = vmatprep.subr.mxu0 0.0
  %7593 = vmatpush1.msra.mxu0 0.0
  %7594 = vmatprep.subr.mxu0 0.0
  %7595 = vmatpush1.msra.mxu0 0.0
  %7596 = vmatprep.subr.mxu0 0.0
  %7597 = vmatpush1.msra.mxu0 0.0
  %7598 = vmatprep.subr.mxu0 0.0
  %7599 = vmatpush1.msra.mxu0 0.0
  %7600 = vmatprep.subr.mxu0 0.0
  %7601 = vmatpush1.msra.mxu0 0.0
  %7602 = vmatprep.subr.mxu0 0.0
  %7603 = vmatpush1.msra.mxu0 0.0
  %7604 = vmatprep.subr.mxu0 0.0
  %7605 = vmatpush1.msra.mxu0 0.0
  %7606 = vmatprep.subr.mxu0 0.0
  %7607 = vmatpush1.msra.mxu0 0.0
  %7608 = vmatprep.subr.mxu0 0.0
  %7609 = vmatpush1.msra.mxu0 0.0
  %7610 = vmatprep.subr.mxu0 0.0
  %7611 = vmatpush1.msra.mxu0 0.0
  %7612 = vmatprep.subr.mxu0 0.0
  %7613 = vmatpush1.msra.mxu0 0.0
  %7614 = vmatprep.subr.mxu0 0.0
  %7615 = vmatpush1.msra.mxu0 0.0
  %7616 = vmatprep.subr.mxu0 0.0
  %7617 = vmatpush1.msra.mxu0 0.0
  %7618 = vmatprep.subr.mxu0 0.0
  %7619 = vmatpush1.msra.mxu0 0.0
  %7620 = vmatprep.subr.mxu0 0.0
  %7621 = vmatpush1.msra.mxu0 0.0
  %7622 = vmatprep.subr.mxu0 0.0
  %7623 = vmatpush1.msra.mxu0 0.0
  %7624 = vmatprep.subr.mxu0 0.0
  %7625 = vmatpush1.msra.mxu0 0.0
  %7626 = vmatprep.mubr.f32.mxu0 0.0
  %7627 = vmatmul.mubr.f32.gmra.mrb[0].mxu0 %v4682
  %v7628 = vpop.f32.mrb[0].mxu0
  %v7629 = vadd.f32 0.0, %v7628
  %v7630 = vpop.f32.mrb[0].mxu0
  %7631 = vmatprep.mubr.f32.mxu0 0.0
  %7632 = vmatmul.mubr.f32.gmra.mrb[0].mxu0 %v4685
  %v7633 = vpop.f32.mrb[0].mxu0
  %v7634 = vadd.f32 0.0, %v7633
  %v7635 = vpop.f32.mrb[0].mxu0
  %7636 = vdwg.mxu0
  %v7638 = vsel %vm304, %v7554, 0
  %v7641 = vsel %vm304, %v7559, 0
  %v7644 = vsel %vm304, %v7629, 0
  %v7647 = vsel %vm304, %v7634, 0
  %7649 = vmatprep.subr.mxu0 0.0
  %7650 = vmatpush1.xpose.msra.mxu0 %v7644
  %7651 = vmatprep.subr.mxu0 0.0
  %7652 = vmatpush1.xpose.msra.mxu0 %v7647
  %7653 = vmatprep.subr.mxu0 0.0
  %7654 = vmatpush1.xpose.msra.mxu0 0.0
  %7655 = vmatprep.subr.mxu0 0.0
  %7656 = vmatpush1.xpose.msra.mxu0 0.0
  %7657 = vmatprep.subr.mxu0 0.0
  %7658 = vmatpush1.xpose.msra.mxu0 0.0
  %7659 = vmatprep.subr.mxu0 0.0
  %7660 = vmatpush1.xpose.msra.mxu0 0.0
  %7661 = vmatprep.subr.mxu0 0.0
  %7662 = vmatpush1.xpose.msra.mxu0 0.0
  %7663 = vmatprep.subr.mxu0 0.0
  %7664 = vmatpush1.xpose.msra.mxu0 0.0
  %7665 = vmatprep.subr.mxu0 0.0
  %7666 = vmatpush1.xpose.msra.mxu0 0.0
  %7667 = vmatprep.subr.mxu0 0.0
  %7668 = vmatpush1.xpose.msra.mxu0 0.0
  %7669 = vmatprep.subr.mxu0 0.0
  %7670 = vmatpush1.xpose.msra.mxu0 0.0
  %7671 = vmatprep.subr.mxu0 0.0
  %7672 = vmatpush1.xpose.msra.mxu0 0.0
  %7673 = vmatprep.subr.mxu0 0.0
  %7674 = vmatpush1.xpose.msra.mxu0 0.0
  %7675 = vmatprep.subr.mxu0 0.0
  %7676 = vmatpush1.xpose.msra.mxu0 0.0
  %7677 = vmatprep.subr.mxu0 0.0
  %7678 = vmatpush1.xpose.msra.mxu0 0.0
  %7679 = vmatprep.subr.mxu0 0.0
  %7680 = vmatpush1.xpose.msra.mxu0 0.0
  %7681 = vmatprep.subr.mxu0 0.0
  %7682 = vmatpush1.xpose.msra.mxu0 0.0
  %7683 = vmatprep.subr.mxu0 0.0
  %7684 = vmatpush1.xpose.msra.mxu0 0.0
  %7685 = vmatprep.subr.mxu0 0.0
  %7686 = vmatpush1.xpose.msra.mxu0 0.0
  %7687 = vmatprep.subr.mxu0 0.0
  %7688 = vmatpush1.xpose.msra.mxu0 0.0
  %7689 = vmatprep.subr.mxu0 0.0
  %7690 = vmatpush1.xpose.msra.mxu0 0.0
  %7691 = vmatprep.subr.mxu0 0.0
  %7692 = vmatpush1.xpose.msra.mxu0 0.0
  %7693 = vmatprep.subr.mxu0 0.0
  %7694 = vmatpush1.xpose.msra.mxu0 0.0
  %7695 = vmatprep.subr.mxu0 0.0
  %7696 = vmatpush1.xpose.msra.mxu0 0.0
  %7697 = vmatprep.subr.mxu0 0.0
  %7698 = vmatpush1.xpose.msra.mxu0 0.0
  %7699 = vmatprep.subr.mxu0 0.0
  %7700 = vmatpush1.xpose.msra.mxu0 0.0
  %7701 = vmatprep.subr.mxu0 0.0
  %7702 = vmatpush1.xpose.msra.mxu0 0.0
  %7703 = vmatprep.subr.mxu0 0.0
  %7704 = vmatpush1.xpose.msra.mxu0 0.0
  %7705 = vmatprep.subr.mxu0 0.0
  %7706 = vmatpush1.xpose.msra.mxu0 0.0
  %7707 = vmatprep.subr.mxu0 0.0
  %7708 = vmatpush1.xpose.msra.mxu0 0.0
  %7709 = vmatprep.subr.mxu0 0.0
  %7710 = vmatpush1.xpose.msra.mxu0 0.0
  %7711 = vmatprep.subr.mxu0 0.0
  %7712 = vmatpush1.xpose.msra.mxu0 0.0
  %7713 = vmatprep.mubr.f32.mxu0 0.0
  %7714 = vmatmul.mubr.f32.gmra.mrb[0].mxu0 %v7638
  %v7715 = vpop.f32.mrb[0].mxu0
  %v7716 = vadd.f32 %v99, %v7715
  %v7717 = vpop.f32.mrb[0].mxu0
  %7718 = vmatprep.mubr.f32.mxu0 0.0
  %7719 = vmatmul.mubr.f32.gmra.mrb[0].mxu0 %v7641
  %v7720 = vpop.f32.mrb[0].mxu0
  %v7721 = vadd.f32 %v100, %v7720
  %v7722 = vpop.f32.mrb[0].mxu0
  %7723 = vdwg.mxu0
  %v7724 = vsel %vm392, %v7716, -inf
  %7725 = vmax.xlane.f32.xlu0 %v7724
  %v7726 = vpop.xlane.xlu0 %7725
  %v7727 = vsel %vm392, %v7721, -inf
  %7728 = vmax.xlane.f32.xlu0 %v7727
  %v7729 = vpop.xlane.xlu0 %7728
  %v7730 = vsub.f32 %v7716, %v7726
  %v7731 = vsub.f32 %v7721, %v7729
  %v7732 = vmul.f32 %v7730, 1.442695
  %v7733 = vpow.pop %v7732
  %v7734 = vmul.f32 %v7731, 1.442695
  %v7735 = vpow.pop %v7734
  %v7736 = vsel %vm392, %v7733, 0.0
  %7737 = vadd.xlane.f32.xlu0 %v7736
  %v7738 = vpop.xlane.xlu0 %7737
  %v7739 = vsel %vm392, %v7735, 0.0
  %7740 = vadd.xlane.f32.xlu0 %v7739
  %v7741 = vpop.xlane.xlu0 %7740
  %v7742 = vrcp.pop %v7738
  %v7743 = vrcp.pop %v7741
  %v7744 = vmul.f32 %v7733, %v7742
  %v7745 = vmul.f32 %v7735, %v7743
  %7746 = vrot.lane.b32.xlu0 %v7629, 96
  %v7747 = vpop.permute.xlu0 %7746
  %7748 = vrot.lane.b32.xlu0 %v7634, 96
  %v7749 = vpop.permute.xlu0 %7748
  %v7753 = vsel %vm392, %v7744, 0
  %v7756 = vsel %vm392, %v7745, 0
  %7758 = vmatprep.subr.mxu0 0.0
  %7759 = vmatpush1.msra.mxu0 %v7747
  %7760 = vmatprep.subr.mxu0 0.0
  %7761 = vmatpush1.msra.mxu0 %v7749
  %7762 = vmatprep.subr.mxu0 0.0
  %7763 = vmatpush1.msra.mxu0 0.0
  %7764 = vmatprep.subr.mxu0 0.0
  %7765 = vmatpush1.msra.mxu0 0.0
  %7766 = vmatprep.subr.mxu0 0.0
  %7767 = vmatpush1.msra.mxu0 0.0
  %7768 = vmatprep.subr.mxu0 0.0
  %7769 = vmatpush1.msra.mxu0 0.0
  %7770 = vmatprep.subr.mxu0 0.0
  %7771 = vmatpush1.msra.mxu0 0.0
  %7772 = vmatprep.subr.mxu0 0.0
  %7773 = vmatpush1.msra.mxu0 0.0
  %7774 = vmatprep.subr.mxu0 0.0
  %7775 = vmatpush1.msra.mxu0 0.0
  %7776 = vmatprep.subr.mxu0 0.0
  %7777 = vmatpush1.msra.mxu0 0.0
  %7778 = vmatprep.subr.mxu0 0.0
  %7779 = vmatpush1.msra.mxu0 0.0
  %7780 = vmatprep.subr.mxu0 0.0
  %7781 = vmatpush1.msra.mxu0 0.0
  %7782 = vmatprep.subr.mxu0 0.0
  %7783 = vmatpush1.msra.mxu0 0.0
  %7784 = vmatprep.subr.mxu0 0.0
  %7785 = vmatpush1.msra.mxu0 0.0
  %7786 = vmatprep.subr.mxu0 0.0
  %7787 = vmatpush1.msra.mxu0 0.0
  %7788 = vmatprep.subr.mxu0 0.0
  %7789 = vmatpush1.msra.mxu0 0.0
  %7790 = vmatprep.subr.mxu0 0.0
  %7791 = vmatpush1.msra.mxu0 0.0
  %7792 = vmatprep.subr.mxu0 0.0
  %7793 = vmatpush1.msra.mxu0 0.0
  %7794 = vmatprep.subr.mxu0 0.0
  %7795 = vmatpush1.msra.mxu0 0.0
  %7796 = vmatprep.subr.mxu0 0.0
  %7797 = vmatpush1.msra.mxu0 0.0
  %7798 = vmatprep.subr.mxu0 0.0
  %7799 = vmatpush1.msra.mxu0 0.0
  %7800 = vmatprep.subr.mxu0 0.0
  %7801 = vmatpush1.msra.mxu0 0.0
  %7802 = vmatprep.subr.mxu0 0.0
  %7803 = vmatpush1.msra.mxu0 0.0
  %7804 = vmatprep.subr.mxu0 0.0
  %7805 = vmatpush1.msra.mxu0 0.0
  %7806 = vmatprep.subr.mxu0 0.0
  %7807 = vmatpush1.msra.mxu0 0.0
  %7808 = vmatprep.subr.mxu0 0.0
  %7809 = vmatpush1.msra.mxu0 0.0
  %7810 = vmatprep.subr.mxu0 0.0
  %7811 = vmatpush1.msra.mxu0 0.0
  %7812 = vmatprep.subr.mxu0 0.0
  %7813 = vmatpush1.msra.mxu0 0.0
  %7814 = vmatprep.subr.mxu0 0.0
  %7815 = vmatpush1.msra.mxu0 0.0
  %7816 = vmatprep.subr.mxu0 0.0
  %7817 = vmatpush1.msra.mxu0 0.0
  %7818 = vmatprep.subr.mxu0 0.0
  %7819 = vmatpush1.msra.mxu0 0.0
  %7820 = vmatprep.subr.mxu0 0.0
  %7821 = vmatpush1.msra.mxu0 0.0
  %7822 = vmatprep.mubr.f32.mxu0 0.0
  %7823 = vmatmul.mubr.f32.gmra.mrb[0].mxu0 %v7753
  %v7824 = vpop.f32.mrb[0].mxu0
  %v7825 = vadd.f32 0.0, %v7824
  %v7826 = vpop.f32.mrb[0].mxu0
  %7827 = vmatprep.mubr.f32.mxu0 0.0
  %7828 = vmatmul.mubr.f32.gmra.mrb[0].mxu0 %v7756
  %v7829 = vpop.f32.mrb[0].mxu0
  %v7830 = vadd.f32 0.0, %v7829
  %v7831 = vpop.f32.mrb[0].mxu0
  %7832 = vdwg.mxu0
  %7833 = vrot.lane.b32.xlu0 %v7554, 120
  %v7834 = vpop.permute.xlu0 %7833
  %7835 = vrot.lane.b32.xlu0 %v7559, 120
  %v7836 = vpop.permute.xlu0 %7835
  %7837 = vrot.lane.b32.xlu0 %v7629, 120
  %v7838 = vpop.permute.xlu0 %7837
  %7839 = vrot.lane.b32.xlu0 %v7634, 120
  %v7840 = vpop.permute.xlu0 %7839
  %v7841 = vsel %vm304, %v7834, 0
  %v7843 = vsel %vm304, %v7836, 0
  %v7845 = vsel %vm304, %v7838, 0
  %v7847 = vsel %vm304, %v7840, 0
  %7849 = vmatprep.subr.mxu0 0.0
  %7850 = vmatpush1.xpose.msra.mxu0 %v7845
  %7851 = vmatprep.subr.mxu0 0.0
  %7852 = vmatpush1.xpose.msra.mxu0 %v7847
  %7853 = vmatprep.subr.mxu0 0.0
  %7854 = vmatpush1.xpose.msra.mxu0 0.0
  %7855 = vmatprep.subr.mxu0 0.0
  %7856 = vmatpush1.xpose.msra.mxu0 0.0
  %7857 = vmatprep.subr.mxu0 0.0
  %7858 = vmatpush1.xpose.msra.mxu0 0.0
  %7859 = vmatprep.subr.mxu0 0.0
  %7860 = vmatpush1.xpose.msra.mxu0 0.0
  %7861 = vmatprep.subr.mxu0 0.0
  %7862 = vmatpush1.xpose.msra.mxu0 0.0
  %7863 = vmatprep.subr.mxu0 0.0
  %7864 = vmatpush1.xpose.msra.mxu0 0.0
  %7865 = vmatprep.subr.mxu0 0.0
  %7866 = vmatpush1.xpose.msra.mxu0 0.0
  %7867 = vmatprep.subr.mxu0 0.0
  %7868 = vmatpush1.xpose.msra.mxu0 0.0
  %7869 = vmatprep.subr.mxu0 0.0
  %7870 = vmatpush1.xpose.msra.mxu0 0.0
  %7871 = vmatprep.subr.mxu0 0.0
  %7872 = vmatpush1.xpose.msra.mxu0 0.0
  %7873 = vmatprep.subr.mxu0 0.0
  %7874 = vmatpush1.xpose.msra.mxu0 0.0
  %7875 = vmatprep.subr.mxu0 0.0
  %7876 = vmatpush1.xpose.msra.mxu0 0.0
  %7877 = vmatprep.subr.mxu0 0.0
  %7878 = vmatpush1.xpose.msra.mxu0 0.0
  %7879 = vmatprep.subr.mxu0 0.0
  %7880 = vmatpush1.xpose.msra.mxu0 0.0
  %7881 = vmatprep.subr.mxu0 0.0
  %7882 = vmatpush1.xpose.msra.mxu0 0.0
  %7883 = vmatprep.subr.mxu0 0.0
  %7884 = vmatpush1.xpose.msra.mxu0 0.0
  %7885 = vmatprep.subr.mxu0 0.0
  %7886 = vmatpush1.xpose.msra.mxu0 0.0
  %7887 = vmatprep.subr.mxu0 0.0
  %7888 = vmatpush1.xpose.msra.mxu0 0.0
  %7889 = vmatprep.subr.mxu0 0.0
  %7890 = vmatpush1.xpose.msra.mxu0 0.0
  %7891 = vmatprep.subr.mxu0 0.0
  %7892 = vmatpush1.xpose.msra.mxu0 0.0
  %7893 = vmatprep.subr.mxu0 0.0
  %7894 = vmatpush1.xpose.msra.mxu0 0.0
  %7895 = vmatprep.subr.mxu0 0.0
  %7896 = vmatpush1.xpose.msra.mxu0 0.0
  %7897 = vmatprep.subr.mxu0 0.0
  %7898 = vmatpush1.xpose.msra.mxu0 0.0
  %7899 = vmatprep.subr.mxu0 0.0
  %7900 = vmatpush1.xpose.msra.mxu0 0.0
  %7901 = vmatprep.subr.mxu0 0.0
  %7902 = vmatpush1.xpose.msra.mxu0 0.0
  %7903 = vmatprep.subr.mxu0 0.0
  %7904 = vmatpush1.xpose.msra.mxu0 0.0
  %7905 = vmatprep.subr.mxu0 0.0
  %7906 = vmatpush1.xpose.msra.mxu0 0.0
  %7907 = vmatprep.subr.mxu0 0.0
  %7908 = vmatpush1.xpose.msra.mxu0 0.0
  %7909 = vmatprep.subr.mxu0 0.0
  %7910 = vmatpush1.xpose.msra.mxu0 0.0
  %7911 = vmatprep.subr.mxu0 0.0
  %7912 = vmatpush1.xpose.msra.mxu0 0.0
  %7913 = vmatprep.mubr.f32.mxu0 0.0
  %7914 = vmatmul.mubr.f32.gmra.mrb[0].mxu0 %v7841
  %v7915 = vpop.f32.mrb[0].mxu0
  %v7916 = vadd.f32 %v101, %v7915
  %v7917 = vpop.f32.mrb[0].mxu0
  %7918 = vmatprep.mubr.f32.mxu0 0.0
  %7919 = vmatmul.mubr.f32.gmra.mrb[0].mxu0 %v7843
  %v7920 = vpop.f32.mrb[0].mxu0
  %v7921 = vadd.f32 %v102, %v7920
  %v7922 = vpop.f32.mrb[0].mxu0
  %7923 = vdwg.mxu0
  %v7924 = vsel %vm392, %v7916, -inf
  %7925 = vmax.xlane.f32.xlu0 %v7924
  %v7926 = vpop.xlane.xlu0 %7925
  %v7927 = vsel %vm392, %v7921, -inf
  %7928 = vmax.xlane.f32.xlu0 %v7927
  %v7929 = vpop.xlane.xlu0 %7928
  %v7930 = vsub.f32 %v7916, %v7926
  %v7931 = vsub.f32 %v7921, %v7929
  %v7932 = vmul.f32 %v7930, 1.442695
  %v7933 = vpow.pop %v7932
  %v7934 = vmul.f32 %v7931, 1.442695
  %v7935 = vpow.pop %v7934
  %v7936 = vsel %vm392, %v7933, 0.0
  %7937 = vadd.xlane.f32.xlu0 %v7936
  %v7938 = vpop.xlane.xlu0 %7937
  %v7939 = vsel %vm392, %v7935, 0.0
  %7940 = vadd.xlane.f32.xlu0 %v7939
  %v7941 = vpop.xlane.xlu0 %7940
  %v7942 = vrcp.pop %v7938
  %v7943 = vrcp.pop %v7941
  %v7944 = vmul.f32 %v7933, %v7942
  %v7945 = vmul.f32 %v7935, %v7943
  %7946 = vrot.lane.b32.xlu0 %v7629, 88
  %v7947 = vpop.permute.xlu0 %7946
  %7948 = vrot.lane.b32.xlu0 %v7634, 88
  %v7949 = vpop.permute.xlu0 %7948
  %v7953 = vsel %vm392, %v7944, 0
  %v7956 = vsel %vm392, %v7945, 0
  %7958 = vmatprep.subr.mxu0 0.0
  %7959 = vmatpush1.msra.mxu0 %v7947
  %7960 = vmatprep.subr.mxu0 0.0
  %7961 = vmatpush1.msra.mxu0 %v7949
  %7962 = vmatprep.subr.mxu0 0.0
  %7963 = vmatpush1.msra.mxu0 0.0
  %7964 = vmatprep.subr.mxu0 0.0
  %7965 = vmatpush1.msra.mxu0 0.0
  %7966 = vmatprep.subr.mxu0 0.0
  %7967 = vmatpush1.msra.mxu0 0.0
  %7968 = vmatprep.subr.mxu0 0.0
  %7969 = vmatpush1.msra.mxu0 0.0
  %7970 = vmatprep.subr.mxu0 0.0
  %7971 = vmatpush1.msra.mxu0 0.0
  %7972 = vmatprep.subr.mxu0 0.0
  %7973 = vmatpush1.msra.mxu0 0.0
  %7974 = vmatprep.subr.mxu0 0.0
  %7975 = vmatpush1.msra.mxu0 0.0
  %7976 = vmatprep.subr.mxu0 0.0
  %7977 = vmatpush1.msra.mxu0 0.0
  %7978 = vmatprep.subr.mxu0 0.0
  %7979 = vmatpush1.msra.mxu0 0.0
  %7980 = vmatprep.subr.mxu0 0.0
  %7981 = vmatpush1.msra.mxu0 0.0
  %7982 = vmatprep.subr.mxu0 0.0
  %7983 = vmatpush1.msra.mxu0 0.0
  %7984 = vmatprep.subr.mxu0 0.0
  %7985 = vmatpush1.msra.mxu0 0.0
  %7986 = vmatprep.subr.mxu0 0.0
  %7987 = vmatpush1.msra.mxu0 0.0
  %7988 = vmatprep.subr.mxu0 0.0
  %7989 = vmatpush1.msra.mxu0 0.0
  %7990 = vmatprep.subr.mxu0 0.0
  %7991 = vmatpush1.msra.mxu0 0.0
  %7992 = vmatprep.subr.mxu0 0.0
  %7993 = vmatpush1.msra.mxu0 0.0
  %7994 = vmatprep.subr.mxu0 0.0
  %7995 = vmatpush1.msra.mxu0 0.0
  %7996 = vmatprep.subr.mxu0 0.0
  %7997 = vmatpush1.msra.mxu0 0.0
  %7998 = vmatprep.subr.mxu0 0.0
  %7999 = vmatpush1.msra.mxu0 0.0
  %8000 = vmatprep.subr.mxu0 0.0
  %8001 = vmatpush1.msra.mxu0 0.0
  %8002 = vmatprep.subr.mxu0 0.0
  %8003 = vmatpush1.msra.mxu0 0.0
  %8004 = vmatprep.subr.mxu0 0.0
  %8005 = vmatpush1.msra.mxu0 0.0
  %8006 = vmatprep.subr.mxu0 0.0
  %8007 = vmatpush1.msra.mxu0 0.0
  %8008 = vmatprep.subr.mxu0 0.0
  %8009 = vmatpush1.msra.mxu0 0.0
  %8010 = vmatprep.subr.mxu0 0.0
  %8011 = vmatpush1.msra.mxu0 0.0
  %8012 = vmatprep.subr.mxu0 0.0
  %8013 = vmatpush1.msra.mxu0 0.0
  %8014 = vmatprep.subr.mxu0 0.0
  %8015 = vmatpush1.msra.mxu0 0.0
  %8016 = vmatprep.subr.mxu0 0.0
  %8017 = vmatpush1.msra.mxu0 0.0
  %8018 = vmatprep.subr.mxu0 0.0
  %8019 = vmatpush1.msra.mxu0 0.0
  %8020 = vmatprep.subr.mxu0 0.0
  %8021 = vmatpush1.msra.mxu0 0.0
  %8022 = vmatprep.mubr.f32.mxu0 0.0
  %8023 = vmatmul.mubr.f32.gmra.mrb[0].mxu0 %v7953
  %v8024 = vpop.f32.mrb[0].mxu0
  %v8025 = vadd.f32 0.0, %v8024
  %v8026 = vpop.f32.mrb[0].mxu0
  %8027 = vmatprep.mubr.f32.mxu0 0.0
  %8028 = vmatmul.mubr.f32.gmra.mrb[0].mxu0 %v7956
  %v8029 = vpop.f32.mrb[0].mxu0
  %v8030 = vadd.f32 0.0, %v8029
  %v8031 = vpop.f32.mrb[0].mxu0
  %8032 = vdwg.mxu0
  %v8034 = vsel %vm304, %v8025, 0
  %v8037 = vsel %vm304, %v8030, 0
  %8039 = vmatprep.subr.mxu0 0.0
  %8040 = vmatpush1.msra.mxu0 %v7454
  %8041 = vmatprep.subr.mxu0 0.0
  %8042 = vmatpush1.msra.mxu0 0.0
  %8043 = vmatprep.subr.mxu0 0.0
  %8044 = vmatpush1.msra.mxu0 0.0
  %8045 = vmatprep.subr.mxu0 0.0
  %8046 = vmatpush1.msra.mxu0 0.0
  %8047 = vmatprep.subr.mxu0 0.0
  %8048 = vmatpush1.msra.mxu0 0.0
  %8049 = vmatprep.subr.mxu0 0.0
  %8050 = vmatpush1.msra.mxu0 0.0
  %8051 = vmatprep.subr.mxu0 0.0
  %8052 = vmatpush1.msra.mxu0 0.0
  %8053 = vmatprep.subr.mxu0 0.0
  %8054 = vmatpush1.msra.mxu0 0.0
  %8055 = vmatprep.subr.mxu0 0.0
  %8056 = vmatpush1.msra.mxu0 0.0
  %8057 = vmatprep.subr.mxu0 0.0
  %8058 = vmatpush1.msra.mxu0 0.0
  %8059 = vmatprep.subr.mxu0 0.0
  %8060 = vmatpush1.msra.mxu0 0.0
  %8061 = vmatprep.subr.mxu0 0.0
  %8062 = vmatpush1.msra.mxu0 0.0
  %8063 = vmatprep.subr.mxu0 0.0
  %8064 = vmatpush1.msra.mxu0 0.0
  %8065 = vmatprep.subr.mxu0 0.0
  %8066 = vmatpush1.msra.mxu0 0.0
  %8067 = vmatprep.subr.mxu0 0.0
  %8068 = vmatpush1.msra.mxu0 0.0
  %8069 = vmatprep.subr.mxu0 0.0
  %8070 = vmatpush1.msra.mxu0 0.0
  %8071 = vmatprep.subr.mxu0 0.0
  %8072 = vmatpush1.msra.mxu0 0.0
  %8073 = vmatprep.subr.mxu0 0.0
  %8074 = vmatpush1.msra.mxu0 0.0
  %8075 = vmatprep.subr.mxu0 0.0
  %8076 = vmatpush1.msra.mxu0 0.0
  %8077 = vmatprep.subr.mxu0 0.0
  %8078 = vmatpush1.msra.mxu0 0.0
  %8079 = vmatprep.subr.mxu0 0.0
  %8080 = vmatpush1.msra.mxu0 0.0
  %8081 = vmatprep.subr.mxu0 0.0
  %8082 = vmatpush1.msra.mxu0 0.0
  %8083 = vmatprep.subr.mxu0 0.0
  %8084 = vmatpush1.msra.mxu0 0.0
  %8085 = vmatprep.subr.mxu0 0.0
  %8086 = vmatpush1.msra.mxu0 0.0
  %8087 = vmatprep.subr.mxu0 0.0
  %8088 = vmatpush1.msra.mxu0 0.0
  %8089 = vmatprep.subr.mxu0 0.0
  %8090 = vmatpush1.msra.mxu0 0.0
  %8091 = vmatprep.subr.mxu0 0.0
  %8092 = vmatpush1.msra.mxu0 0.0
  %8093 = vmatprep.subr.mxu0 0.0
  %8094 = vmatpush1.msra.mxu0 0.0
  %8095 = vmatprep.subr.mxu0 0.0
  %8096 = vmatpush1.msra.mxu0 0.0
  %8097 = vmatprep.subr.mxu0 0.0
  %8098 = vmatpush1.msra.mxu0 0.0
  %8099 = vmatprep.subr.mxu0 0.0
  %8100 = vmatpush1.msra.mxu0 0.0
  %8101 = vmatprep.subr.mxu0 0.0
  %8102 = vmatpush1.msra.mxu0 0.0
  %8103 = vmatprep.mubr.f32.mxu0 0.0
  %8104 = vmatmul.mubr.f32.gmra.mrb[0].mxu0 %v8034
  %v8105 = vpop.f32.mrb[0].mxu0
  %v8106 = vadd.f32 0.0, %v8105
  %v8107 = vpop.f32.mrb[0].mxu0
  %8108 = vmatprep.mubr.f32.mxu0 0.0
  %8109 = vmatmul.mubr.f32.gmra.mrb[0].mxu0 %v8037
  %v8110 = vpop.f32.mrb[0].mxu0
  %v8111 = vadd.f32 0.0, %v8110
  %v8112 = vpop.f32.mrb[0].mxu0
  %8113 = vdwg.mxu0
  %v8115 = vsel %vm304, %v7825, 0
  %v8118 = vsel %vm304, %v7830, 0
  %8120 = vmatprep.subr.mxu0 0.0
  %8121 = vmatpush1.msra.mxu0 %v7453
  %8122 = vmatprep.subr.mxu0 0.0
  %8123 = vmatpush1.msra.mxu0 0.0
  %8124 = vmatprep.subr.mxu0 0.0
  %8125 = vmatpush1.msra.mxu0 0.0
  %8126 = vmatprep.subr.mxu0 0.0
  %8127 = vmatpush1.msra.mxu0 0.0
  %8128 = vmatprep.subr.mxu0 0.0
  %8129 = vmatpush1.msra.mxu0 0.0
  %8130 = vmatprep.subr.mxu0 0.0
  %8131 = vmatpush1.msra.mxu0 0.0
  %8132 = vmatprep.subr.mxu0 0.0
  %8133 = vmatpush1.msra.mxu0 0.0
  %8134 = vmatprep.subr.mxu0 0.0
  %8135 = vmatpush1.msra.mxu0 0.0
  %8136 = vmatprep.subr.mxu0 0.0
  %8137 = vmatpush1.msra.mxu0 0.0
  %8138 = vmatprep.subr.mxu0 0.0
  %8139 = vmatpush1.msra.mxu0 0.0
  %8140 = vmatprep.subr.mxu0 0.0
  %8141 = vmatpush1.msra.mxu0 0.0
  %8142 = vmatprep.subr.mxu0 0.0
  %8143 = vmatpush1.msra.mxu0 0.0
  %8144 = vmatprep.subr.mxu0 0.0
  %8145 = vmatpush1.msra.mxu0 0.0
  %8146 = vmatprep.subr.mxu0 0.0
  %8147 = vmatpush1.msra.mxu0 0.0
  %8148 = vmatprep.subr.mxu0 0.0
  %8149 = vmatpush1.msra.mxu0 0.0
  %8150 = vmatprep.subr.mxu0 0.0
  %8151 = vmatpush1.msra.mxu0 0.0
  %8152 = vmatprep.subr.mxu0 0.0
  %8153 = vmatpush1.msra.mxu0 0.0
  %8154 = vmatprep.subr.mxu0 0.0
  %8155 = vmatpush1.msra.mxu0 0.0
  %8156 = vmatprep.subr.mxu0 0.0
  %8157 = vmatpush1.msra.mxu0 0.0
  %8158 = vmatprep.subr.mxu0 0.0
  %8159 = vmatpush1.msra.mxu0 0.0
  %8160 = vmatprep.subr.mxu0 0.0
  %8161 = vmatpush1.msra.mxu0 0.0
  %8162 = vmatprep.subr.mxu0 0.0
  %8163 = vmatpush1.msra.mxu0 0.0
  %8164 = vmatprep.subr.mxu0 0.0
  %8165 = vmatpush1.msra.mxu0 0.0
  %8166 = vmatprep.subr.mxu0 0.0
  %8167 = vmatpush1.msra.mxu0 0.0
  %8168 = vmatprep.subr.mxu0 0.0
  %8169 = vmatpush1.msra.mxu0 0.0
  %8170 = vmatprep.subr.mxu0 0.0
  %8171 = vmatpush1.msra.mxu0 0.0
  %8172 = vmatprep.subr.mxu0 0.0
  %8173 = vmatpush1.msra.mxu0 0.0
  %8174 = vmatprep.subr.mxu0 0.0
  %8175 = vmatpush1.msra.mxu0 0.0
  %8176 = vmatprep.subr.mxu0 0.0
  %8177 = vmatpush1.msra.mxu0 0.0
  %8178 = vmatprep.subr.mxu0 0.0
  %8179 = vmatpush1.msra.mxu0 0.0
  %8180 = vmatprep.subr.mxu0 0.0
  %8181 = vmatpush1.msra.mxu0 0.0
  %8182 = vmatprep.subr.mxu0 0.0
  %8183 = vmatpush1.msra.mxu0 0.0
  %8184 = vmatprep.mubr.f32.mxu0 0.0
  %8185 = vmatmul.mubr.f32.gmra.mrb[0].mxu0 %v8115
  %v8186 = vpop.f32.mrb[0].mxu0
  %v8187 = vadd.f32 %v8106, %v8186
  %v8188 = vpop.f32.mrb[0].mxu0
  %8189 = vmatprep.mubr.f32.mxu0 0.0
  %8190 = vmatmul.mubr.f32.gmra.mrb[0].mxu0 %v8118
  %v8191 = vpop.f32.mrb[0].mxu0
  %v8192 = vadd.f32 %v8111, %v8191
  %v8193 = vpop.f32.mrb[0].mxu0
  %8194 = vdwg.mxu0
  %8195 = vrot.lane.b32.xlu0 %v7554, 112
  %v8196 = vpop.permute.xlu0 %8195
  %8197 = vrot.lane.b32.xlu0 %v7559, 112
  %v8198 = vpop.permute.xlu0 %8197
  %8199 = vrot.lane.b32.xlu0 %v7629, 112
  %v8200 = vpop.permute.xlu0 %8199
  %8201 = vrot.lane.b32.xlu0 %v7634, 112
  %v8202 = vpop.permute.xlu0 %8201
  %v8203 = vsel %vm304, %v8196, 0
  %v8205 = vsel %vm304, %v8198, 0
  %v8207 = vsel %vm304, %v8200, 0
  %v8209 = vsel %vm304, %v8202, 0
  %8211 = vmatprep.subr.mxu0 0.0
  %8212 = vmatpush1.xpose.msra.mxu0 %v8207
  %8213 = vmatprep.subr.mxu0 0.0
  %8214 = vmatpush1.xpose.msra.mxu0 %v8209
  %8215 = vmatprep.subr.mxu0 0.0
  %8216 = vmatpush1.xpose.msra.mxu0 0.0
  %8217 = vmatprep.subr.mxu0 0.0
  %8218 = vmatpush1.xpose.msra.mxu0 0.0
  %8219 = vmatprep.subr.mxu0 0.0
  %8220 = vmatpush1.xpose.msra.mxu0 0.0
  %8221 = vmatprep.subr.mxu0 0.0
  %8222 = vmatpush1.xpose.msra.mxu0 0.0
  %8223 = vmatprep.subr.mxu0 0.0
  %8224 = vmatpush1.xpose.msra.mxu0 0.0
  %8225 = vmatprep.subr.mxu0 0.0
  %8226 = vmatpush1.xpose.msra.mxu0 0.0
  %8227 = vmatprep.subr.mxu0 0.0
  %8228 = vmatpush1.xpose.msra.mxu0 0.0
  %8229 = vmatprep.subr.mxu0 0.0
  %8230 = vmatpush1.xpose.msra.mxu0 0.0
  %8231 = vmatprep.subr.mxu0 0.0
  %8232 = vmatpush1.xpose.msra.mxu0 0.0
  %8233 = vmatprep.subr.mxu0 0.0
  %8234 = vmatpush1.xpose.msra.mxu0 0.0
  %8235 = vmatprep.subr.mxu0 0.0
  %8236 = vmatpush1.xpose.msra.mxu0 0.0
  %8237 = vmatprep.subr.mxu0 0.0
  %8238 = vmatpush1.xpose.msra.mxu0 0.0
  %8239 = vmatprep.subr.mxu0 0.0
  %8240 = vmatpush1.xpose.msra.mxu0 0.0
  %8241 = vmatprep.subr.mxu0 0.0
  %8242 = vmatpush1.xpose.msra.mxu0 0.0
  %8243 = vmatprep.subr.mxu0 0.0
  %8244 = vmatpush1.xpose.msra.mxu0 0.0
  %8245 = vmatprep.subr.mxu0 0.0
  %8246 = vmatpush1.xpose.msra.mxu0 0.0
  %8247 = vmatprep.subr.mxu0 0.0
  %8248 = vmatpush1.xpose.msra.mxu0 0.0
  %8249 = vmatprep.subr.mxu0 0.0
  %8250 = vmatpush1.xpose.msra.mxu0 0.0
  %8251 = vmatprep.subr.mxu0 0.0
  %8252 = vmatpush1.xpose.msra.mxu0 0.0
  %8253 = vmatprep.subr.mxu0 0.0
  %8254 = vmatpush1.xpose.msra.mxu0 0.0
  %8255 = vmatprep.subr.mxu0 0.0
  %8256 = vmatpush1.xpose.msra.mxu0 0.0
  %8257 = vmatprep.subr.mxu0 0.0
  %8258 = vmatpush1.xpose.msra.mxu0 0.0
  %8259 = vmatprep.subr.mxu0 0.0
  %8260 = vmatpush1.xpose.msra.mxu0 0.0
  %8261 = vmatprep.subr.mxu0 0.0
  %8262 = vmatpush1.xpose.msra.mxu0 0.0
  %8263 = vmatprep.subr.mxu0 0.0
  %8264 = vmatpush1.xpose.msra.mxu0 0.0
  %8265 = vmatprep.subr.mxu0 0.0
  %8266 = vmatpush1.xpose.msra.mxu0 0.0
  %8267 = vmatprep.subr.mxu0 0.0
  %8268 = vmatpush1.xpose.msra.mxu0 0.0
  %8269 = vmatprep.subr.mxu0 0.0
  %8270 = vmatpush1.xpose.msra.mxu0 0.0
  %8271 = vmatprep.subr.mxu0 0.0
  %8272 = vmatpush1.xpose.msra.mxu0 0.0
  %8273 = vmatprep.subr.mxu0 0.0
  %8274 = vmatpush1.xpose.msra.mxu0 0.0
  %8275 = vmatprep.mubr.f32.mxu0 0.0
  %8276 = vmatmul.mubr.f32.gmra.mrb[0].mxu0 %v8203
  %v8277 = vpop.f32.mrb[0].mxu0
  %v8278 = vadd.f32 %v103, %v8277
  %v8279 = vpop.f32.mrb[0].mxu0
  %8280 = vmatprep.mubr.f32.mxu0 0.0
  %8281 = vmatmul.mubr.f32.gmra.mrb[0].mxu0 %v8205
  %v8282 = vpop.f32.mrb[0].mxu0
  %v8283 = vadd.f32 %v104, %v8282
  %v8284 = vpop.f32.mrb[0].mxu0
  %8285 = vdwg.mxu0
  %v8286 = vsel %vm392, %v8278, -inf
  %8287 = vmax.xlane.f32.xlu0 %v8286
  %v8288 = vpop.xlane.xlu0 %8287
  %v8289 = vsel %vm392, %v8283, -inf
  %8290 = vmax.xlane.f32.xlu0 %v8289
  %v8291 = vpop.xlane.xlu0 %8290
  %v8292 = vsub.f32 %v8278, %v8288
  %v8293 = vsub.f32 %v8283, %v8291
  %v8294 = vmul.f32 %v8292, 1.442695
  %v8295 = vpow.pop %v8294
  %v8296 = vmul.f32 %v8293, 1.442695
  %v8297 = vpow.pop %v8296
  %v8298 = vsel %vm392, %v8295, 0.0
  %8299 = vadd.xlane.f32.xlu0 %v8298
  %v8300 = vpop.xlane.xlu0 %8299
  %v8301 = vsel %vm392, %v8297, 0.0
  %8302 = vadd.xlane.f32.xlu0 %v8301
  %v8303 = vpop.xlane.xlu0 %8302
  %v8304 = vrcp.pop %v8300
  %v8305 = vrcp.pop %v8303
  %v8306 = vmul.f32 %v8295, %v8304
  %v8307 = vmul.f32 %v8297, %v8305
  %8308 = vrot.lane.b32.xlu0 %v7629, 80
  %v8309 = vpop.permute.xlu0 %8308
  %8310 = vrot.lane.b32.xlu0 %v7634, 80
  %v8311 = vpop.permute.xlu0 %8310
  %v8315 = vsel %vm392, %v8306, 0
  %v8318 = vsel %vm392, %v8307, 0
  %8320 = vmatprep.subr.mxu0 0.0
  %8321 = vmatpush1.msra.mxu0 %v8309
  %8322 = vmatprep.subr.mxu0 0.0
  %8323 = vmatpush1.msra.mxu0 %v8311
  %8324 = vmatprep.subr.mxu0 0.0
  %8325 = vmatpush1.msra.mxu0 0.0
  %8326 = vmatprep.subr.mxu0 0.0
  %8327 = vmatpush1.msra.mxu0 0.0
  %8328 = vmatprep.subr.mxu0 0.0
  %8329 = vmatpush1.msra.mxu0 0.0
  %8330 = vmatprep.subr.mxu0 0.0
  %8331 = vmatpush1.msra.mxu0 0.0
  %8332 = vmatprep.subr.mxu0 0.0
  %8333 = vmatpush1.msra.mxu0 0.0
  %8334 = vmatprep.subr.mxu0 0.0
  %8335 = vmatpush1.msra.mxu0 0.0
  %8336 = vmatprep.subr.mxu0 0.0
  %8337 = vmatpush1.msra.mxu0 0.0
  %8338 = vmatprep.subr.mxu0 0.0
  %8339 = vmatpush1.msra.mxu0 0.0
  %8340 = vmatprep.subr.mxu0 0.0
  %8341 = vmatpush1.msra.mxu0 0.0
  %8342 = vmatprep.subr.mxu0 0.0
  %8343 = vmatpush1.msra.mxu0 0.0
  %8344 = vmatprep.subr.mxu0 0.0
  %8345 = vmatpush1.msra.mxu0 0.0
  %8346 = vmatprep.subr.mxu0 0.0
  %8347 = vmatpush1.msra.mxu0 0.0
  %8348 = vmatprep.subr.mxu0 0.0
  %8349 = vmatpush1.msra.mxu0 0.0
  %8350 = vmatprep.subr.mxu0 0.0
  %8351 = vmatpush1.msra.mxu0 0.0
  %8352 = vmatprep.subr.mxu0 0.0
  %8353 = vmatpush1.msra.mxu0 0.0
  %8354 = vmatprep.subr.mxu0 0.0
  %8355 = vmatpush1.msra.mxu0 0.0
  %8356 = vmatprep.subr.mxu0 0.0
  %8357 = vmatpush1.msra.mxu0 0.0
  %8358 = vmatprep.subr.mxu0 0.0
  %8359 = vmatpush1.msra.mxu0 0.0
  %8360 = vmatprep.subr.mxu0 0.0
  %8361 = vmatpush1.msra.mxu0 0.0
  %8362 = vmatprep.subr.mxu0 0.0
  %8363 = vmatpush1.msra.mxu0 0.0
  %8364 = vmatprep.subr.mxu0 0.0
  %8365 = vmatpush1.msra.mxu0 0.0
  %8366 = vmatprep.subr.mxu0 0.0
  %8367 = vmatpush1.msra.mxu0 0.0
  %8368 = vmatprep.subr.mxu0 0.0
  %8369 = vmatpush1.msra.mxu0 0.0
  %8370 = vmatprep.subr.mxu0 0.0
  %8371 = vmatpush1.msra.mxu0 0.0
  %8372 = vmatprep.subr.mxu0 0.0
  %8373 = vmatpush1.msra.mxu0 0.0
  %8374 = vmatprep.subr.mxu0 0.0
  %8375 = vmatpush1.msra.mxu0 0.0
  %8376 = vmatprep.subr.mxu0 0.0
  %8377 = vmatpush1.msra.mxu0 0.0
  %8378 = vmatprep.subr.mxu0 0.0
  %8379 = vmatpush1.msra.mxu0 0.0
  %8380 = vmatprep.subr.mxu0 0.0
  %8381 = vmatpush1.msra.mxu0 0.0
  %8382 = vmatprep.subr.mxu0 0.0
  %8383 = vmatpush1.msra.mxu0 0.0
  %8384 = vmatprep.mubr.f32.mxu0 0.0
  %8385 = vmatmul.mubr.f32.gmra.mrb[0].mxu0 %v8315
  %v8386 = vpop.f32.mrb[0].mxu0
  %v8387 = vadd.f32 0.0, %v8386
  %v8388 = vpop.f32.mrb[0].mxu0
  %8389 = vmatprep.mubr.f32.mxu0 0.0
  %8390 = vmatmul.mubr.f32.gmra.mrb[0].mxu0 %v8318
  %v8391 = vpop.f32.mrb[0].mxu0
  %v8392 = vadd.f32 0.0, %v8391
  %v8393 = vpop.f32.mrb[0].mxu0
  %8394 = vdwg.mxu0
  %v8396 = vsel %vm304, %v8387, 0
  %v8399 = vsel %vm304, %v8392, 0
  %8401 = vmatprep.subr.mxu0 0.0
  %8402 = vmatpush1.msra.mxu0 %v7455
  %8403 = vmatprep.subr.mxu0 0.0
  %8404 = vmatpush1.msra.mxu0 0.0
  %8405 = vmatprep.subr.mxu0 0.0
  %8406 = vmatpush1.msra.mxu0 0.0
  %8407 = vmatprep.subr.mxu0 0.0
  %8408 = vmatpush1.msra.mxu0 0.0
  %8409 = vmatprep.subr.mxu0 0.0
  %8410 = vmatpush1.msra.mxu0 0.0
  %8411 = vmatprep.subr.mxu0 0.0
  %8412 = vmatpush1.msra.mxu0 0.0
  %8413 = vmatprep.subr.mxu0 0.0
  %8414 = vmatpush1.msra.mxu0 0.0
  %8415 = vmatprep.subr.mxu0 0.0
  %8416 = vmatpush1.msra.mxu0 0.0
  %8417 = vmatprep.subr.mxu0 0.0
  %8418 = vmatpush1.msra.mxu0 0.0
  %8419 = vmatprep.subr.mxu0 0.0
  %8420 = vmatpush1.msra.mxu0 0.0
  %8421 = vmatprep.subr.mxu0 0.0
  %8422 = vmatpush1.msra.mxu0 0.0
  %8423 = vmatprep.subr.mxu0 0.0
  %8424 = vmatpush1.msra.mxu0 0.0
  %8425 = vmatprep.subr.mxu0 0.0
  %8426 = vmatpush1.msra.mxu0 0.0
  %8427 = vmatprep.subr.mxu0 0.0
  %8428 = vmatpush1.msra.mxu0 0.0
  %8429 = vmatprep.subr.mxu0 0.0
  %8430 = vmatpush1.msra.mxu0 0.0
  %8431 = vmatprep.subr.mxu0 0.0
  %8432 = vmatpush1.msra.mxu0 0.0
  %8433 = vmatprep.subr.mxu0 0.0
  %8434 = vmatpush1.msra.mxu0 0.0
  %8435 = vmatprep.subr.mxu0 0.0
  %8436 = vmatpush1.msra.mxu0 0.0
  %8437 = vmatprep.subr.mxu0 0.0
  %8438 = vmatpush1.msra.mxu0 0.0
  %8439 = vmatprep.subr.mxu0 0.0
  %8440 = vmatpush1.msra.mxu0 0.0
  %8441 = vmatprep.subr.mxu0 0.0
  %8442 = vmatpush1.msra.mxu0 0.0
  %8443 = vmatprep.subr.mxu0 0.0
  %8444 = vmatpush1.msra.mxu0 0.0
  %8445 = vmatprep.subr.mxu0 0.0
  %8446 = vmatpush1.msra.mxu0 0.0
  %8447 = vmatprep.subr.mxu0 0.0
  %8448 = vmatpush1.msra.mxu0 0.0
  %8449 = vmatprep.subr.mxu0 0.0
  %8450 = vmatpush1.msra.mxu0 0.0
  %8451 = vmatprep.subr.mxu0 0.0
  %8452 = vmatpush1.msra.mxu0 0.0
  %8453 = vmatprep.subr.mxu0 0.0
  %8454 = vmatpush1.msra.mxu0 0.0
  %8455 = vmatprep.subr.mxu0 0.0
  %8456 = vmatpush1.msra.mxu0 0.0
  %8457 = vmatprep.subr.mxu0 0.0
  %8458 = vmatpush1.msra.mxu0 0.0
  %8459 = vmatprep.subr.mxu0 0.0
  %8460 = vmatpush1.msra.mxu0 0.0
  %8461 = vmatprep.subr.mxu0 0.0
  %8462 = vmatpush1.msra.mxu0 0.0
  %8463 = vmatprep.subr.mxu0 0.0
  %8464 = vmatpush1.msra.mxu0 0.0
  %8465 = vmatprep.mubr.f32.mxu0 0.0
  %8466 = vmatmul.mubr.f32.gmra.mrb[0].mxu0 %v8396
  %v8467 = vpop.f32.mrb[0].mxu0
  %v8468 = vadd.f32 0.0, %v8467
  %v8469 = vpop.f32.mrb[0].mxu0
  %8470 = vmatprep.mubr.f32.mxu0 0.0
  %8471 = vmatmul.mubr.f32.gmra.mrb[0].mxu0 %v8399
  %v8472 = vpop.f32.mrb[0].mxu0
  %v8473 = vadd.f32 0.0, %v8472
  %v8474 = vpop.f32.mrb[0].mxu0
  %8475 = vdwg.mxu0
  %v8476 = vadd.f32 %v8187, %v8468
  %v8477 = vadd.f32 %v8192, %v8473
  %8478 = vrot.lane.b32.xlu0 %v7554, 104
  %v8479 = vpop.permute.xlu0 %8478
  %8480 = vrot.lane.b32.xlu0 %v7559, 104
  %v8481 = vpop.permute.xlu0 %8480
  %8482 = vrot.lane.b32.xlu0 %v7629, 104
  %v8483 = vpop.permute.xlu0 %8482
  %8484 = vrot.lane.b32.xlu0 %v7634, 104
  %v8485 = vpop.permute.xlu0 %8484
  %v8486 = vsel %vm304, %v8479, 0
  %v8488 = vsel %vm304, %v8481, 0
  %v8490 = vsel %vm304, %v8483, 0
  %v8492 = vsel %vm304, %v8485, 0
  %8494 = vmatprep.subr.mxu0 0.0
  %8495 = vmatpush1.xpose.msra.mxu0 %v8490
  %8496 = vmatprep.subr.mxu0 0.0
  %8497 = vmatpush1.xpose.msra.mxu0 %v8492
  %8498 = vmatprep.subr.mxu0 0.0
  %8499 = vmatpush1.xpose.msra.mxu0 0.0
  %8500 = vmatprep.subr.mxu0 0.0
  %8501 = vmatpush1.xpose.msra.mxu0 0.0
  %8502 = vmatprep.subr.mxu0 0.0
  %8503 = vmatpush1.xpose.msra.mxu0 0.0
  %8504 = vmatprep.subr.mxu0 0.0
  %8505 = vmatpush1.xpose.msra.mxu0 0.0
  %8506 = vmatprep.subr.mxu0 0.0
  %8507 = vmatpush1.xpose.msra.mxu0 0.0
  %8508 = vmatprep.subr.mxu0 0.0
  %8509 = vmatpush1.xpose.msra.mxu0 0.0
  %8510 = vmatprep.subr.mxu0 0.0
  %8511 = vmatpush1.xpose.msra.mxu0 0.0
  %8512 = vmatprep.subr.mxu0 0.0
  %8513 = vmatpush1.xpose.msra.mxu0 0.0
  %8514 = vmatprep.subr.mxu0 0.0
  %8515 = vmatpush1.xpose.msra.mxu0 0.0
  %8516 = vmatprep.subr.mxu0 0.0
  %8517 = vmatpush1.xpose.msra.mxu0 0.0
  %8518 = vmatprep.subr.mxu0 0.0
  %8519 = vmatpush1.xpose.msra.mxu0 0.0
  %8520 = vmatprep.subr.mxu0 0.0
  %8521 = vmatpush1.xpose.msra.mxu0 0.0
  %8522 = vmatprep.subr.mxu0 0.0
  %8523 = vmatpush1.xpose.msra.mxu0 0.0
  %8524 = vmatprep.subr.mxu0 0.0
  %8525 = vmatpush1.xpose.msra.mxu0 0.0
  %8526 = vmatprep.subr.mxu0 0.0
  %8527 = vmatpush1.xpose.msra.mxu0 0.0
  %8528 = vmatprep.subr.mxu0 0.0
  %8529 = vmatpush1.xpose.msra.mxu0 0.0
  %8530 = vmatprep.subr.mxu0 0.0
  %8531 = vmatpush1.xpose.msra.mxu0 0.0
  %8532 = vmatprep.subr.mxu0 0.0
  %8533 = vmatpush1.xpose.msra.mxu0 0.0
  %8534 = vmatprep.subr.mxu0 0.0
  %8535 = vmatpush1.xpose.msra.mxu0 0.0
  %8536 = vmatprep.subr.mxu0 0.0
  %8537 = vmatpush1.xpose.msra.mxu0 0.0
  %8538 = vmatprep.subr.mxu0 0.0
  %8539 = vmatpush1.xpose.msra.mxu0 0.0
  %8540 = vmatprep.subr.mxu0 0.0
  %8541 = vmatpush1.xpose.msra.mxu0 0.0
  %8542 = vmatprep.subr.mxu0 0.0
  %8543 = vmatpush1.xpose.msra.mxu0 0.0
  %8544 = vmatprep.subr.mxu0 0.0
  %8545 = vmatpush1.xpose.msra.mxu0 0.0
  %8546 = vmatprep.subr.mxu0 0.0
  %8547 = vmatpush1.xpose.msra.mxu0 0.0
  %8548 = vmatprep.subr.mxu0 0.0
  %8549 = vmatpush1.xpose.msra.mxu0 0.0
  %8550 = vmatprep.subr.mxu0 0.0
  %8551 = vmatpush1.xpose.msra.mxu0 0.0
  %8552 = vmatprep.subr.mxu0 0.0
  %8553 = vmatpush1.xpose.msra.mxu0 0.0
  %8554 = vmatprep.subr.mxu0 0.0
  %8555 = vmatpush1.xpose.msra.mxu0 0.0
  %8556 = vmatprep.subr.mxu0 0.0
  %8557 = vmatpush1.xpose.msra.mxu0 0.0
  %8558 = vmatprep.mubr.f32.mxu0 0.0
  %8559 = vmatmul.mubr.f32.gmra.mrb[0].mxu0 %v8486
  %v8560 = vpop.f32.mrb[0].mxu0
  %v8561 = vadd.f32 %v105, %v8560
  %v8562 = vpop.f32.mrb[0].mxu0
  %8563 = vmatprep.mubr.f32.mxu0 0.0
  %8564 = vmatmul.mubr.f32.gmra.mrb[0].mxu0 %v8488
  %v8565 = vpop.f32.mrb[0].mxu0
  %v8566 = vadd.f32 %v106, %v8565
  %v8567 = vpop.f32.mrb[0].mxu0
  %8568 = vdwg.mxu0
  %v8569 = vsel %vm392, %v8561, -inf
  %8570 = vmax.xlane.f32.xlu0 %v8569
  %v8571 = vpop.xlane.xlu0 %8570
  %v8572 = vsel %vm392, %v8566, -inf
  %8573 = vmax.xlane.f32.xlu0 %v8572
  %v8574 = vpop.xlane.xlu0 %8573
  %v8575 = vsub.f32 %v8561, %v8571
  %v8576 = vsub.f32 %v8566, %v8574
  %v8577 = vmul.f32 %v8575, 1.442695
  %v8578 = vpow.pop %v8577
  %v8579 = vmul.f32 %v8576, 1.442695
  %v8580 = vpow.pop %v8579
  %v8581 = vsel %vm392, %v8578, 0.0
  %8582 = vadd.xlane.f32.xlu0 %v8581
  %v8583 = vpop.xlane.xlu0 %8582
  %v8584 = vsel %vm392, %v8580, 0.0
  %8585 = vadd.xlane.f32.xlu0 %v8584
  %v8586 = vpop.xlane.xlu0 %8585
  %v8587 = vrcp.pop %v8583
  %v8588 = vrcp.pop %v8586
  %v8589 = vmul.f32 %v8578, %v8587
  %v8590 = vmul.f32 %v8580, %v8588
  %8591 = vrot.lane.b32.xlu0 %v7629, 72
  %v8592 = vpop.permute.xlu0 %8591
  %8593 = vrot.lane.b32.xlu0 %v7634, 72
  %v8594 = vpop.permute.xlu0 %8593
  %v8598 = vsel %vm392, %v8589, 0
  %v8601 = vsel %vm392, %v8590, 0
  %8603 = vmatprep.subr.mxu0 0.0
  %8604 = vmatpush1.msra.mxu0 %v8592
  %8605 = vmatprep.subr.mxu0 0.0
  %8606 = vmatpush1.msra.mxu0 %v8594
  %8607 = vmatprep.subr.mxu0 0.0
  %8608 = vmatpush1.msra.mxu0 0.0
  %8609 = vmatprep.subr.mxu0 0.0
  %8610 = vmatpush1.msra.mxu0 0.0
  %8611 = vmatprep.subr.mxu0 0.0
  %8612 = vmatpush1.msra.mxu0 0.0
  %8613 = vmatprep.subr.mxu0 0.0
  %8614 = vmatpush1.msra.mxu0 0.0
  %8615 = vmatprep.subr.mxu0 0.0
  %8616 = vmatpush1.msra.mxu0 0.0
  %8617 = vmatprep.subr.mxu0 0.0
  %8618 = vmatpush1.msra.mxu0 0.0
  %8619 = vmatprep.subr.mxu0 0.0
  %8620 = vmatpush1.msra.mxu0 0.0
  %8621 = vmatprep.subr.mxu0 0.0
  %8622 = vmatpush1.msra.mxu0 0.0
  %8623 = vmatprep.subr.mxu0 0.0
  %8624 = vmatpush1.msra.mxu0 0.0
  %8625 = vmatprep.subr.mxu0 0.0
  %8626 = vmatpush1.msra.mxu0 0.0
  %8627 = vmatprep.subr.mxu0 0.0
  %8628 = vmatpush1.msra.mxu0 0.0
  %8629 = vmatprep.subr.mxu0 0.0
  %8630 = vmatpush1.msra.mxu0 0.0
  %8631 = vmatprep.subr.mxu0 0.0
  %8632 = vmatpush1.msra.mxu0 0.0
  %8633 = vmatprep.subr.mxu0 0.0
  %8634 = vmatpush1.msra.mxu0 0.0
  %8635 = vmatprep.subr.mxu0 0.0
  %8636 = vmatpush1.msra.mxu0 0.0
  %8637 = vmatprep.subr.mxu0 0.0
  %8638 = vmatpush1.msra.mxu0 0.0
  %8639 = vmatprep.subr.mxu0 0.0
  %8640 = vmatpush1.msra.mxu0 0.0
  %8641 = vmatprep.subr.mxu0 0.0
  %8642 = vmatpush1.msra.mxu0 0.0
  %8643 = vmatprep.subr.mxu0 0.0
  %8644 = vmatpush1.msra.mxu0 0.0
  %8645 = vmatprep.subr.mxu0 0.0
  %8646 = vmatpush1.msra.mxu0 0.0
  %8647 = vmatprep.subr.mxu0 0.0
  %8648 = vmatpush1.msra.mxu0 0.0
  %8649 = vmatprep.subr.mxu0 0.0
  %8650 = vmatpush1.msra.mxu0 0.0
  %8651 = vmatprep.subr.mxu0 0.0
  %8652 = vmatpush1.msra.mxu0 0.0
  %8653 = vmatprep.subr.mxu0 0.0
  %8654 = vmatpush1.msra.mxu0 0.0
  %8655 = vmatprep.subr.mxu0 0.0
  %8656 = vmatpush1.msra.mxu0 0.0
  %8657 = vmatprep.subr.mxu0 0.0
  %8658 = vmatpush1.msra.mxu0 0.0
  %8659 = vmatprep.subr.mxu0 0.0
  %8660 = vmatpush1.msra.mxu0 0.0
  %8661 = vmatprep.subr.mxu0 0.0
  %8662 = vmatpush1.msra.mxu0 0.0
  %8663 = vmatprep.subr.mxu0 0.0
  %8664 = vmatpush1.msra.mxu0 0.0
  %8665 = vmatprep.subr.mxu0 0.0
  %8666 = vmatpush1.msra.mxu0 0.0
  %8667 = vmatprep.mubr.f32.mxu0 0.0
  %8668 = vmatmul.mubr.f32.gmra.mrb[0].mxu0 %v8598
  %v8669 = vpop.f32.mrb[0].mxu0
  %v8670 = vadd.f32 0.0, %v8669
  %v8671 = vpop.f32.mrb[0].mxu0
  %8672 = vmatprep.mubr.f32.mxu0 0.0
  %8673 = vmatmul.mubr.f32.gmra.mrb[0].mxu0 %v8601
  %v8674 = vpop.f32.mrb[0].mxu0
  %v8675 = vadd.f32 0.0, %v8674
  %v8676 = vpop.f32.mrb[0].mxu0
  %8677 = vdwg.mxu0
  %v8679 = vsel %vm304, %v8670, 0
  %v8682 = vsel %vm304, %v8675, 0
  %8684 = vmatprep.subr.mxu0 0.0
  %8685 = vmatpush1.msra.mxu0 %v7456
  %8686 = vmatprep.subr.mxu0 0.0
  %8687 = vmatpush1.msra.mxu0 0.0
  %8688 = vmatprep.subr.mxu0 0.0
  %8689 = vmatpush1.msra.mxu0 0.0
  %8690 = vmatprep.subr.mxu0 0.0
  %8691 = vmatpush1.msra.mxu0 0.0
  %8692 = vmatprep.subr.mxu0 0.0
  %8693 = vmatpush1.msra.mxu0 0.0
  %8694 = vmatprep.subr.mxu0 0.0
  %8695 = vmatpush1.msra.mxu0 0.0
  %8696 = vmatprep.subr.mxu0 0.0
  %8697 = vmatpush1.msra.mxu0 0.0
  %8698 = vmatprep.subr.mxu0 0.0
  %8699 = vmatpush1.msra.mxu0 0.0
  %8700 = vmatprep.subr.mxu0 0.0
  %8701 = vmatpush1.msra.mxu0 0.0
  %8702 = vmatprep.subr.mxu0 0.0
  %8703 = vmatpush1.msra.mxu0 0.0
  %8704 = vmatprep.subr.mxu0 0.0
  %8705 = vmatpush1.msra.mxu0 0.0
  %8706 = vmatprep.subr.mxu0 0.0
  %8707 = vmatpush1.msra.mxu0 0.0
  %8708 = vmatprep.subr.mxu0 0.0
  %8709 = vmatpush1.msra.mxu0 0.0
  %8710 = vmatprep.subr.mxu0 0.0
  %8711 = vmatpush1.msra.mxu0 0.0
  %8712 = vmatprep.subr.mxu0 0.0
  %8713 = vmatpush1.msra.mxu0 0.0
  %8714 = vmatprep.subr.mxu0 0.0
  %8715 = vmatpush1.msra.mxu0 0.0
  %8716 = vmatprep.subr.mxu0 0.0
  %8717 = vmatpush1.msra.mxu0 0.0
  %8718 = vmatprep.subr.mxu0 0.0
  %8719 = vmatpush1.msra.mxu0 0.0
  %8720 = vmatprep.subr.mxu0 0.0
  %8721 = vmatpush1.msra.mxu0 0.0
  %8722 = vmatprep.subr.mxu0 0.0
  %8723 = vmatpush1.msra.mxu0 0.0
  %8724 = vmatprep.subr.mxu0 0.0
  %8725 = vmatpush1.msra.mxu0 0.0
  %8726 = vmatprep.subr.mxu0 0.0
  %8727 = vmatpush1.msra.mxu0 0.0
  %8728 = vmatprep.subr.mxu0 0.0
  %8729 = vmatpush1.msra.mxu0 0.0
  %8730 = vmatprep.subr.mxu0 0.0
  %8731 = vmatpush1.msra.mxu0 0.0
  %8732 = vmatprep.subr.mxu0 0.0
  %8733 = vmatpush1.msra.mxu0 0.0
  %8734 = vmatprep.subr.mxu0 0.0
  %8735 = vmatpush1.msra.mxu0 0.0
  %8736 = vmatprep.subr.mxu0 0.0
  %8737 = vmatpush1.msra.mxu0 0.0
  %8738 = vmatprep.subr.mxu0 0.0
  %8739 = vmatpush1.msra.mxu0 0.0
  %8740 = vmatprep.subr.mxu0 0.0
  %8741 = vmatpush1.msra.mxu0 0.0
  %8742 = vmatprep.subr.mxu0 0.0
  %8743 = vmatpush1.msra.mxu0 0.0
  %8744 = vmatprep.subr.mxu0 0.0
  %8745 = vmatpush1.msra.mxu0 0.0
  %8746 = vmatprep.subr.mxu0 0.0
  %8747 = vmatpush1.msra.mxu0 0.0
  %8748 = vmatprep.mubr.f32.mxu0 0.0
  %8749 = vmatmul.mubr.f32.gmra.mrb[0].mxu0 %v8679
  %v8750 = vpop.f32.mrb[0].mxu0
  %v8751 = vadd.f32 0.0, %v8750
  %v8752 = vpop.f32.mrb[0].mxu0
  %8753 = vmatprep.mubr.f32.mxu0 0.0
  %8754 = vmatmul.mubr.f32.gmra.mrb[0].mxu0 %v8682
  %v8755 = vpop.f32.mrb[0].mxu0
  %v8756 = vadd.f32 0.0, %v8755
  %v8757 = vpop.f32.mrb[0].mxu0
  %8758 = vdwg.mxu0
  %v8759 = vadd.f32 %v8476, %v8751
  %v8760 = vadd.f32 %v8477, %v8756
  %v8761 = vadd.f32 %v7438, %v8759
  %v8762 = vadd.f32 %v7439, %v8760
  %s8763 = scalar_lea.vmem %s20, 1
  %v8764 = vld [vmem:[%s8763] sm:$0x1]
  %s8765 = scalar_lea.vmem %s21, 32
  %v8766 = vld [vmem:[%s8765] sm:$0xff]
  %v8767 = vld [vmem:[%s8765 + $0x8] sm:$0xff]
  %v8768 = vld [vmem:[%s8765 + $0x10] sm:$0xff]
  %v8769 = vld [vmem:[%s8765 + $0x18] sm:$0xff]
  %s8770 = scalar_lea.vmem %s22, 64
  %v8771 = vld [vmem:[%s8770] sm:$0xff]
  %v8772 = vld [vmem:[%s8770 + $0x8] sm:$0xff]
  %v8773 = vld [vmem:[%s8770 + $0x10] sm:$0xff]
  %v8774 = vld [vmem:[%s8770 + $0x18] sm:$0xff]
  %v8775 = vld [vmem:[%s8770 + $0x20] sm:$0xff]
  %v8776 = vld [vmem:[%s8770 + $0x28] sm:$0xff]
  %v8777 = vld [vmem:[%s8770 + $0x30] sm:$0xff]
  %v8778 = vld [vmem:[%s8770 + $0x38] sm:$0xff]
  %v8779 = vmul.f32 %v8761, %v8761
  %v8780 = vmul.f32 %v8762, %v8762
  %v8781 = vsel %vm124, %v8779, 0.0
  %8782 = vadd.xlane.f32.xlu0 %v8781
  %v8783 = vpop.xlane.xlu0 %8782
  %v8784 = vsel %vm124, %v8780, 0.0
  %8785 = vadd.xlane.f32.xlu0 %v8784
  %v8786 = vpop.xlane.xlu0 %8785
  %v8787 = vmul.f32 %v8783, %v131
  %v8788 = vmul.f32 %v8786, %v131
  %v8789 = vadd.f32 %v8787, 1e-06
  %v8790 = vadd.f32 %v8788, 1e-06
  %v8791 = vrsqrt.pop %v8789
  %v8792 = vrsqrt.pop %v8790
  %v8793 = vmul.f32 %v8761, %v8791
  %v8794 = vmul.f32 %v8762, %v8792
  %v8796 = vlaneseq
  %v8797 = vshrl.u32 %v8796, 7
  %v8798 = vsub.s32 0, %v8797
  %v8799 = vrot.slane %v8764, %v8798
  %v8801 = vmul.f32 %v8793, %v8799
  %v8802 = vmul.f32 %v8794, %v8799
  %v8804 = vsel %vm124, %v8801, 0
  %v8807 = vsel %vm124, %v8802, 0
  %8809 = vmatprep.subr.mxu0 0.0
  %8810 = vmatpush1.msra.mxu0 %v8766
  %8811 = vmatprep.subr.mxu0 0.0
  %8812 = vmatpush1.msra.mxu0 %v8767
  %8813 = vmatprep.subr.mxu0 0.0
  %8814 = vmatpush1.msra.mxu0 %v8768
  %8815 = vmatprep.subr.mxu0 0.0
  %8816 = vmatpush1.msra.mxu0 %v8769
  %8817 = vmatprep.subr.mxu0 0.0
  %8818 = vmatpush1.msra.mxu0 0.0
  %8819 = vmatprep.subr.mxu0 0.0
  %8820 = vmatpush1.msra.mxu0 0.0
  %8821 = vmatprep.subr.mxu0 0.0
  %8822 = vmatpush1.msra.mxu0 0.0
  %8823 = vmatprep.subr.mxu0 0.0
  %8824 = vmatpush1.msra.mxu0 0.0
  %8825 = vmatprep.subr.mxu0 0.0
  %8826 = vmatpush1.msra.mxu0 0.0
  %8827 = vmatprep.subr.mxu0 0.0
  %8828 = vmatpush1.msra.mxu0 0.0
  %8829 = vmatprep.subr.mxu0 0.0
  %8830 = vmatpush1.msra.mxu0 0.0
  %8831 = vmatprep.subr.mxu0 0.0
  %8832 = vmatpush1.msra.mxu0 0.0
  %8833 = vmatprep.subr.mxu0 0.0
  %8834 = vmatpush1.msra.mxu0 0.0
  %8835 = vmatprep.subr.mxu0 0.0
  %8836 = vmatpush1.msra.mxu0 0.0
  %8837 = vmatprep.subr.mxu0 0.0
  %8838 = vmatpush1.msra.mxu0 0.0
  %8839 = vmatprep.subr.mxu0 0.0
  %8840 = vmatpush1.msra.mxu0 0.0
  %8841 = vmatprep.subr.mxu0 0.0
  %8842 = vmatpush1.msra.mxu0 0.0
  %8843 = vmatprep.subr.mxu0 0.0
  %8844 = vmatpush1.msra.mxu0 0.0
  %8845 = vmatprep.subr.mxu0 0.0
  %8846 = vmatpush1.msra.mxu0 0.0
  %8847 = vmatprep.subr.mxu0 0.0
  %8848 = vmatpush1.msra.mxu0 0.0
  %8849 = vmatprep.subr.mxu0 0.0
  %8850 = vmatpush1.msra.mxu0 0.0
  %8851 = vmatprep.subr.mxu0 0.0
  %8852 = vmatpush1.msra.mxu0 0.0
  %8853 = vmatprep.subr.mxu0 0.0
  %8854 = vmatpush1.msra.mxu0 0.0
  %8855 = vmatprep.subr.mxu0 0.0
  %8856 = vmatpush1.msra.mxu0 0.0
  %8857 = vmatprep.subr.mxu0 0.0
  %8858 = vmatpush1.msra.mxu0 0.0
  %8859 = vmatprep.subr.mxu0 0.0
  %8860 = vmatpush1.msra.mxu0 0.0
  %8861 = vmatprep.subr.mxu0 0.0
  %8862 = vmatpush1.msra.mxu0 0.0
  %8863 = vmatprep.subr.mxu0 0.0
  %8864 = vmatpush1.msra.mxu0 0.0
  %8865 = vmatprep.subr.mxu0 0.0
  %8866 = vmatpush1.msra.mxu0 0.0
  %8867 = vmatprep.subr.mxu0 0.0
  %8868 = vmatpush1.msra.mxu0 0.0
  %8869 = vmatprep.subr.mxu0 0.0
  %8870 = vmatpush1.msra.mxu0 0.0
  %8871 = vmatprep.subr.mxu0 0.0
  %8872 = vmatpush1.msra.mxu0 0.0
  %8873 = vmatprep.mubr.f32.mxu0 0.0
  %8874 = vmatmul.mubr.f32.gmra.mrb[0].mxu0 %v8804
  %v8875 = vpop.f32.mrb[0].mxu0
  %v8876 = vadd.f32 0.0, %v8875
  %v8877 = vpop.f32.mrb[0].mxu0
  %8878 = vmatprep.mubr.f32.mxu0 0.0
  %8879 = vmatmul.mubr.f32.gmra.mrb[0].mxu0 %v8807
  %v8880 = vpop.f32.mrb[0].mxu0
  %v8881 = vadd.f32 0.0, %v8880
  %v8882 = vpop.f32.mrb[0].mxu0
  %8883 = vdwg.mxu0
  %v8884 = vmul.f32 %v8876, 0.5
  %v8885 = vmul.f32 %v8881, 0.5
  %v8886 = vmul.f32 %v8876, 0.044715
  %v8887 = vmul.f32 %v8881, 0.044715
  %v8888 = vmul.f32 %v8886, %v8876
  %v8889 = vmul.f32 %v8887, %v8881
  %v8890 = vmul.f32 %v8888, %v8876
  %v8891 = vmul.f32 %v8889, %v8881
  %v8892 = vadd.f32 %v8876, %v8890
  %v8893 = vadd.f32 %v8881, %v8891
  %v8894 = vmul.f32 %v8892, 0.7978846
  %v8895 = vmul.f32 %v8893, 0.7978846
  %v8896 = vtanh.pop %v8894
  %v8897 = vtanh.pop %v8895
  %v8898 = vadd.f32 %v8896, 1.0
  %v8899 = vadd.f32 %v8897, 1.0
  %v8900 = vmul.f32 %v8884, %v8898
  %v8901 = vmul.f32 %v8885, %v8899
  %8904 = vrot.lane.b32.xlu0 %v8876, 64
  %v8905 = vpop.permute.xlu0 %8904
  %8906 = vrot.lane.b32.xlu0 %v8881, 64
  %v8907 = vpop.permute.xlu0 %8906
  %v8910 = vmul.f32 %v8900, %v8905
  %v8911 = vmul.f32 %v8901, %v8907
  %v8913 = vsel %vm1578, %v8910, 0
  %v8916 = vsel %vm1578, %v8911, 0
  %8918 = vmatprep.subr.mxu0 0.0
  %8919 = vmatpush1.msra.mxu0 %v8771
  %8920 = vmatprep.subr.mxu0 0.0
  %8921 = vmatpush1.msra.mxu0 %v8772
  %8922 = vmatprep.subr.mxu0 0.0
  %8923 = vmatpush1.msra.mxu0 %v8773
  %8924 = vmatprep.subr.mxu0 0.0
  %8925 = vmatpush1.msra.mxu0 %v8774
  %8926 = vmatprep.subr.mxu0 0.0
  %8927 = vmatpush1.msra.mxu0 %v8775
  %8928 = vmatprep.subr.mxu0 0.0
  %8929 = vmatpush1.msra.mxu0 %v8776
  %8930 = vmatprep.subr.mxu0 0.0
  %8931 = vmatpush1.msra.mxu0 %v8777
  %8932 = vmatprep.subr.mxu0 0.0
  %8933 = vmatpush1.msra.mxu0 %v8778
  %8934 = vmatprep.subr.mxu0 0.0
  %8935 = vmatpush1.msra.mxu0 0.0
  %8936 = vmatprep.subr.mxu0 0.0
  %8937 = vmatpush1.msra.mxu0 0.0
  %8938 = vmatprep.subr.mxu0 0.0
  %8939 = vmatpush1.msra.mxu0 0.0
  %8940 = vmatprep.subr.mxu0 0.0
  %8941 = vmatpush1.msra.mxu0 0.0
  %8942 = vmatprep.subr.mxu0 0.0
  %8943 = vmatpush1.msra.mxu0 0.0
  %8944 = vmatprep.subr.mxu0 0.0
  %8945 = vmatpush1.msra.mxu0 0.0
  %8946 = vmatprep.subr.mxu0 0.0
  %8947 = vmatpush1.msra.mxu0 0.0
  %8948 = vmatprep.subr.mxu0 0.0
  %8949 = vmatpush1.msra.mxu0 0.0
  %8950 = vmatprep.subr.mxu0 0.0
  %8951 = vmatpush1.msra.mxu0 0.0
  %8952 = vmatprep.subr.mxu0 0.0
  %8953 = vmatpush1.msra.mxu0 0.0
  %8954 = vmatprep.subr.mxu0 0.0
  %8955 = vmatpush1.msra.mxu0 0.0
  %8956 = vmatprep.subr.mxu0 0.0
  %8957 = vmatpush1.msra.mxu0 0.0
  %8958 = vmatprep.subr.mxu0 0.0
  %8959 = vmatpush1.msra.mxu0 0.0
  %8960 = vmatprep.subr.mxu0 0.0
  %8961 = vmatpush1.msra.mxu0 0.0
  %8962 = vmatprep.subr.mxu0 0.0
  %8963 = vmatpush1.msra.mxu0 0.0
  %8964 = vmatprep.subr.mxu0 0.0
  %8965 = vmatpush1.msra.mxu0 0.0
  %8966 = vmatprep.subr.mxu0 0.0
  %8967 = vmatpush1.msra.mxu0 0.0
  %8968 = vmatprep.subr.mxu0 0.0
  %8969 = vmatpush1.msra.mxu0 0.0
  %8970 = vmatprep.subr.mxu0 0.0
  %8971 = vmatpush1.msra.mxu0 0.0
  %8972 = vmatprep.subr.mxu0 0.0
  %8973 = vmatpush1.msra.mxu0 0.0
  %8974 = vmatprep.subr.mxu0 0.0
  %8975 = vmatpush1.msra.mxu0 0.0
  %8976 = vmatprep.subr.mxu0 0.0
  %8977 = vmatpush1.msra.mxu0 0.0
  %8978 = vmatprep.subr.mxu0 0.0
  %8979 = vmatpush1.msra.mxu0 0.0
  %8980 = vmatprep.subr.mxu0 0.0
  %8981 = vmatpush1.msra.mxu0 0.0
  %8982 = vmatprep.mubr.f32.mxu0 0.0
  %8983 = vmatmul.mubr.f32.gmra.mrb[0].mxu0 %v8913
  %v8984 = vpop.f32.mrb[0].mxu0
  %v8985 = vadd.f32 0.0, %v8984
  %v8986 = vpop.f32.mrb[0].mxu0
  %8987 = vmatprep.mubr.f32.mxu0 0.0
  %8988 = vmatmul.mubr.f32.gmra.mrb[0].mxu0 %v8916
  %v8989 = vpop.f32.mrb[0].mxu0
  %v8990 = vadd.f32 0.0, %v8989
  %v8991 = vpop.f32.mrb[0].mxu0
  %8992 = vdwg.mxu0
  %v8993 = vadd.f32 %v8761, %v8985
  %v8994 = vadd.f32 %v8762, %v8990
  %v8995 = vld [vmem:[%s24] sm:$0x1]
  %v8996 = vmul.f32 %v8993, %v8993
  %v8997 = vmul.f32 %v8994, %v8994
  %v8998 = vsel %vm124, %v8996, 0.0
  %8999 = vadd.xlane.f32.xlu0 %v8998
  %v9000 = vpop.xlane.xlu0 %8999
  %v9001 = vsel %vm124, %v8997, 0.0
  %9002 = vadd.xlane.f32.xlu0 %v9001
  %v9003 = vpop.xlane.xlu0 %9002
  %v9004 = vmul.f32 %v9000, %v131
  %v9005 = vmul.f32 %v9003, %v131
  %v9006 = vadd.f32 %v9004, 1e-06
  %v9007 = vadd.f32 %v9005, 1e-06
  %v9008 = vrsqrt.pop %v9006
  %v9009 = vrsqrt.pop %v9007
  %v9010 = vmul.f32 %v8993, %v9008
  %v9011 = vmul.f32 %v8994, %v9009
  %v9013 = vlaneseq
  %v9014 = vshrl.u32 %v9013, 7
  %v9015 = vsub.s32 0, %v9014
  %v9016 = vrot.slane %v8995, %v9015
  %v9018 = vmul.f32 %v9010, %v9016
  %v9019 = vmul.f32 %v9011, %v9016
  %v9020 = vld [vmem:[%s25] sm:$0xff]
  %v9021 = vld [vmem:[%s25 + $0x8] sm:$0xff]
  %v9022 = vld [vmem:[%s25 + $0x10] sm:$0xff]
  %v9023 = vld [vmem:[%s25 + $0x18] sm:$0xff]
  %v9025 = vsel %vm124, %v9018, 0
  %v9028 = vsel %vm124, %v9019, 0
  %9030 = vmatprep.subr.mxu0 0.0
  %9031 = vmatpush1.msra.mxu0 %v9020
  %9032 = vmatprep.subr.mxu0 0.0
  %9033 = vmatpush1.msra.mxu0 %v9021
  %9034 = vmatprep.subr.mxu0 0.0
  %9035 = vmatpush1.msra.mxu0 %v9022
  %9036 = vmatprep.subr.mxu0 0.0
  %9037 = vmatpush1.msra.mxu0 %v9023
  %9038 = vmatprep.subr.mxu0 0.0
  %9039 = vmatpush1.msra.mxu0 0.0
  %9040 = vmatprep.subr.mxu0 0.0
  %9041 = vmatpush1.msra.mxu0 0.0
  %9042 = vmatprep.subr.mxu0 0.0
  %9043 = vmatpush1.msra.mxu0 0.0
  %9044 = vmatprep.subr.mxu0 0.0
  %9045 = vmatpush1.msra.mxu0 0.0
  %9046 = vmatprep.subr.mxu0 0.0
  %9047 = vmatpush1.msra.mxu0 0.0
  %9048 = vmatprep.subr.mxu0 0.0
  %9049 = vmatpush1.msra.mxu0 0.0
  %9050 = vmatprep.subr.mxu0 0.0
  %9051 = vmatpush1.msra.mxu0 0.0
  %9052 = vmatprep.subr.mxu0 0.0
  %9053 = vmatpush1.msra.mxu0 0.0
  %9054 = vmatprep.subr.mxu0 0.0
  %9055 = vmatpush1.msra.mxu0 0.0
  %9056 = vmatprep.subr.mxu0 0.0
  %9057 = vmatpush1.msra.mxu0 0.0
  %9058 = vmatprep.subr.mxu0 0.0
  %9059 = vmatpush1.msra.mxu0 0.0
  %9060 = vmatprep.subr.mxu0 0.0
  %9061 = vmatpush1.msra.mxu0 0.0
  %9062 = vmatprep.subr.mxu0 0.0
  %9063 = vmatpush1.msra.mxu0 0.0
  %9064 = vmatprep.subr.mxu0 0.0
  %9065 = vmatpush1.msra.mxu0 0.0
  %9066 = vmatprep.subr.mxu0 0.0
  %9067 = vmatpush1.msra.mxu0 0.0
  %9068 = vmatprep.subr.mxu0 0.0
  %9069 = vmatpush1.msra.mxu0 0.0
  %9070 = vmatprep.subr.mxu0 0.0
  %9071 = vmatpush1.msra.mxu0 0.0
  %9072 = vmatprep.subr.mxu0 0.0
  %9073 = vmatpush1.msra.mxu0 0.0
  %9074 = vmatprep.subr.mxu0 0.0
  %9075 = vmatpush1.msra.mxu0 0.0
  %9076 = vmatprep.subr.mxu0 0.0
  %9077 = vmatpush1.msra.mxu0 0.0
  %9078 = vmatprep.subr.mxu0 0.0
  %9079 = vmatpush1.msra.mxu0 0.0
  %9080 = vmatprep.subr.mxu0 0.0
  %9081 = vmatpush1.msra.mxu0 0.0
  %9082 = vmatprep.subr.mxu0 0.0
  %9083 = vmatpush1.msra.mxu0 0.0
  %9084 = vmatprep.subr.mxu0 0.0
  %9085 = vmatpush1.msra.mxu0 0.0
  %9086 = vmatprep.subr.mxu0 0.0
  %9087 = vmatpush1.msra.mxu0 0.0
  %9088 = vmatprep.subr.mxu0 0.0
  %9089 = vmatpush1.msra.mxu0 0.0
  %9090 = vmatprep.subr.mxu0 0.0
  %9091 = vmatpush1.msra.mxu0 0.0
  %9092 = vmatprep.subr.mxu0 0.0
  %9093 = vmatpush1.msra.mxu0 0.0
  %9094 = vmatprep.mubr.f32.mxu0 0.0
  %9095 = vmatmul.mubr.f32.gmra.mrb[0].mxu0 %v9025
  %v9096 = vpop.f32.mrb[0].mxu0
  %v9097 = vadd.f32 0.0, %v9096
  %v9098 = vpop.f32.mrb[0].mxu0
  %9099 = vmatprep.mubr.f32.mxu0 0.0
  %9100 = vmatmul.mubr.f32.gmra.mrb[0].mxu0 %v9028
  %v9101 = vpop.f32.mrb[0].mxu0
  %v9102 = vadd.f32 0.0, %v9101
  %v9103 = vpop.f32.mrb[0].mxu0
  %9104 = vdwg.mxu0
  %9105 = vst [vmem:[%s26] sm:$0xff] %v9097
  %9106 = vst [vmem:[%s26 + $0x8] sm:$0xff] %v9102
  // Predicated region
  $region106: #{forward.1} parent=0 // pred_check
    _
  $region107: #{forward.1} parent=0 // pred_check_branch
    %9108 = sbr.rel (0) target = $region109
  $region108: #{forward.1} parent=0 // pred_region
    _
  $region109: #{forward.1} parent=0 // pred_fallthru
    _
  // Predicated region
  $region110: #{forward.1} parent=0 // pred_check
    _
  $region111: #{forward.1} parent=0 // pred_check_branch
    %9110 = sbr.rel (0) target = $region113
  $region112: #{forward.1} parent=0 // pred_region
    _
  $region113: #{forward.1} parent=0 // pred_fallthru
    _

</llo_original>
